<compile_context>
chip_gen: v6e
topology: v6e:2x2x1
jax: 0.10.0
libtpu: 0.0.40
codegen_flags: <defaults>
</compile_context>

<pallas_src>
import functools

import jax
import jax.numpy as jnp
from jax import lax
from jax.experimental import pallas as pl
from jax.experimental.pallas import tpu as pltpu


def _decoder_kernel(init_emb_ref, ctx0_ref, enc_ref, mask_add_ref,
                    emb_ref, w_ef_ref, w_cf_ref, w_af_ref, w_hf_ref, b_ref,
                    attn_w_ref, attn_b_ref,
                    slot_wh_ref, slot_wc_ref, slot_b_ref,
                    intent_wh_ref, intent_wc_ref, intent_b_ref,
                    slot_out_ref, intent_out_ref,
                    *, Bt, T, D, Sp):
    f32 = jnp.float32
    bf16 = jnp.bfloat16

    # ---- load operands once (weights replicated across the batch grid) ----
    emb_table = emb_ref[...]            # (Sp, E)    bf16
    enc = enc_ref[...]                  # (Bt, T, D) bf16
    mask_add = mask_add_ref[...]        # (Bt, T)    f32 additive mask (0 / -1e12)
    attn_w = attn_w_ref[...]            # (D, D)     bf16 (already transposed)
    attn_b = attn_b_ref[...]            # (1, D)     f32
    w_ef = w_ef_ref[...]                # (E, 4D)    bf16  fused-gate slabs
    w_cf = w_cf_ref[...]                # (D, 4D)    bf16
    w_af = w_af_ref[...]                # (D, 4D)    bf16
    w_hf = w_hf_ref[...]                # (D, 4D)    bf16
    b_f = b_ref[...]                    # (1, 4D)    f32
    slot_wh = slot_wh_ref[...]          # (D, Sp)    bf16
    slot_wc = slot_wc_ref[...]          # (D, Sp)    bf16
    slot_b = slot_b_ref[...]            # (1, Sp)    f32 (padded cols = -1e30)
    intent_wh = intent_wh_ref[...]      # (D, Ip)    bf16
    intent_wc = intent_wc_ref[...]      # (D, Ip)    bf16
    intent_b = intent_b_ref[...]        # (1, Ip)    f32

    def dot(a, b):
        return jnp.dot(a, b, preferred_element_type=f32)

    # ---- loop-invariant encoder projection (attn Linear), computed once ----
    # (reshape->dot->reshape is a one-off outside the serial decode loop)
    enc_proj = (dot(enc.reshape(Bt * T, D), attn_w) + attn_b).reshape(Bt, T, D)
    enc_f32 = enc.astype(f32)           # hoisted; used by every attention call

    def attention(h_f32):
        # q-length is 1 -> VPU broadcast-multiply + XLU reduces, no MXU.
        s = jnp.sum(h_f32[:, None, :] * enc_proj, axis=-1) + mask_add  # (Bt, T)
        m = jnp.max(s, axis=-1, keepdims=True)
        p = jnp.exp(s - m)
        alpha = p / jnp.sum(p, axis=-1, keepdims=True)                 # exact
        ctx = jnp.sum(alpha[:, :, None] * enc_f32, axis=1)             # (Bt, D)
        return ctx.astype(bf16)

    # ---- initial state ----
    emb_b = init_emb_ref[...]            # (Bt, E) bf16
    ctx_b = ctx0_ref[...]                # (Bt, D) bf16
    c = jnp.zeros((Bt, D), f32)
    h_b = jnp.zeros((Bt, D), bf16)

    iota_s = lax.broadcasted_iota(jnp.int32, (Bt, Sp), 1)

    # T is small & static -> unrolled greedy decode loop.
    # TODO(synk): switch to lax.fori_loop with (h, c, emb, ctx) carries for large
    # T to bound vreg live ranges / compile time.
    for i in range(T):
        ali_b = enc[:, i, :]             # (Bt, D) bf16, sliced from loaded enc

        # Fused LSTM gates: one (Bt, 4D) lane-dense pre-activation, 4 dots/step.
        pre = (dot(emb_b, w_ef) + dot(ctx_b, w_cf)
               + dot(ali_b, w_af) + dot(h_b, w_hf) + b_f)              # (Bt, 4D)
        ig = jax.nn.sigmoid(pre[:, 0 * D:1 * D])
        fg = jax.nn.sigmoid(pre[:, 1 * D:2 * D])
        gg = jnp.tanh(pre[:, 2 * D:3 * D])
        og = jax.nn.sigmoid(pre[:, 3 * D:4 * D])
        c = fg * c + ig * gg
        h = og * jnp.tanh(c)
        h_b = h.astype(bf16)

        # Attention on the new hidden state: used by (a) the intent head at
        # step 0 and (b) the next step's context.  The reference also computes
        # it on the last step but never uses it -> skipped (dead).
        if i == 0 or i < T - 1:
            new_ctx_b = attention(h)

        if i == 0:
            intent_out_ref[...] = (dot(h_b, intent_wh)
                                   + dot(new_ctx_b, intent_wc) + intent_b)

        # Slot head uses the *previous* context (same ctx fed to the LSTM).
        score = dot(h_b, slot_wh) + dot(ctx_b, slot_wc) + slot_b       # (Bt, Sp)
        m = jnp.max(score, axis=-1, keepdims=True)
        lse = m + jnp.log(jnp.sum(jnp.exp(score - m), axis=-1, keepdims=True))
        logp = score - lse
        slot_out_ref[i] = logp           # dense (Bt, 128) tile store

        if i < T - 1:
            # greedy feedback: first-index argmax -> embedding row (f32 compare
            # keeps first-index tie-break; padded cols are -1e30, never win)
            mx = jnp.max(logp, axis=-1, keepdims=True)
            masked_iota = jnp.where(logp >= mx, iota_s, jnp.int32(Sp))
            idx = jnp.min(masked_iota, axis=-1, keepdims=True)
            onehot = (iota_s == idx).astype(bf16)
            emb_b = dot(onehot, emb_table).astype(bf16)
            ctx_b = new_ctx_b


def _rep_spec(x):
    nd = x.ndim
    return pl.BlockSpec(x.shape, lambda i, _nd=nd: (0,) * _nd)


def decoder_forward(params, tokens, context0, encoder_outputs, encoder_mask,
                    *, tile_b=None):
    """params: PyTorch-layout weights. tokens: (B,1) int32. context0: (B,1,D).
    encoder_outputs: (B,T,D). encoder_mask: (B,T) float (1.0 = masked).
    Returns (slot_log_probs (B*T, S), intent_score (B, I))."""
    B, T, D = encoder_outputs.shape
    S, E = params["embedding"].shape
    I = params["intent_w"].shape[0]

    Sp = ((S + 127) // 128) * 128           # lane-dense slot output
    Ip = ((I + 127) // 128) * 128           # lane-dense intent output

    Bp = ((B + 7) // 8) * 8                 # pad batch to full sublanes
    if tile_b is None:
        tile_b = min(Bp, 128)               # per-program batch tile
    tile_b = ((tile_b + 7) // 8) * 8
    Bp = ((Bp + tile_b - 1) // tile_b) * tile_b
    num_b = Bp // tile_b

    f32, bf16 = jnp.float32, jnp.bfloat16

    # ---- kernel-layout weights: per-input, gate-fused (lane dim), bf16 ----
    w_ih = params["w_ih"].reshape(4, D, E + 2 * D)   # PyTorch gate order [i,f,g,o]
    w_hh = params["w_hh"].reshape(4, D, D)
    w_ef = jnp.transpose(w_ih[:, :, :E], (2, 0, 1)).reshape(E, 4 * D).astype(bf16)
    w_cf = jnp.transpose(w_ih[:, :, E:E + D], (2, 0, 1)).reshape(D, 4 * D).astype(bf16)
    w_af = jnp.transpose(w_ih[:, :, E + D:], (2, 0, 1)).reshape(D, 4 * D).astype(bf16)
    w_hf = jnp.transpose(w_hh, (2, 0, 1)).reshape(D, 4 * D).astype(bf16)
    b_f = (params["b_ih"] + params["b_hh"]).reshape(1, 4 * D).astype(f32)

    attn_w_t = params["attn_w"].T.astype(bf16)                     # (D, D)
    attn_b = params["attn_b"].reshape(1, D).astype(f32)

    slot_w = params["slot_w"]                                      # (S, 2D)
    slot_wh = jnp.zeros((D, Sp), bf16).at[:, :S].set(slot_w[:, :D].T.astype(bf16))
    slot_wc = jnp.zeros((D, Sp), bf16).at[:, :S].set(slot_w[:, D:].T.astype(bf16))
    slot_b = jnp.full((1, Sp), -1e30, f32).at[0, :S].set(params["slot_b"].astype(f32))

    intent_w = params["intent_w"]                                  # (I, 2D)
    intent_wh = jnp.zeros((D, Ip), bf16).at[:, :I].set(intent_w[:, :D].T.astype(bf16))
    intent_wc = jnp.zeros((D, Ip), bf16).at[:, :I].set(intent_w[:, D:].T.astype(bf16))
    intent_b = jnp.zeros((1, Ip), f32).at[0, :I].set(params["intent_b"].astype(f32))

    emb = jnp.zeros((Sp, E), bf16).at[:S].set(params["embedding"].astype(bf16))

    # ---- batch-padded activations (no duplicate `aligns` copy) ----
    tok = tokens[:, 0]
    init_emb = jnp.zeros((Bp, E), bf16).at[:B].set(params["embedding"][tok].astype(bf16))
    ctx0 = jnp.zeros((Bp, D), bf16).at[:B].set(context0[:, 0, :].astype(bf16))
    enc = jnp.zeros((Bp, T, D), bf16).at[:B].set(encoder_outputs.astype(bf16))
    mask_add = jnp.zeros((Bp, T), f32).at[:B].set(
        encoder_mask.astype(f32) * jnp.float32(-1e12))

    batched = (init_emb, ctx0, enc, mask_add)
    weights = (emb, w_ef, w_cf, w_af, w_hf, b_f,
               attn_w_t, attn_b,
               slot_wh, slot_wc, slot_b,
               intent_wh, intent_wc, intent_b)
    inputs = batched + weights

    in_specs = [
        pl.BlockSpec((tile_b, E), lambda i: (i, 0)),
        pl.BlockSpec((tile_b, D), lambda i: (i, 0)),
        pl.BlockSpec((tile_b, T, D), lambda i: (i, 0, 0)),
        pl.BlockSpec((tile_b, T), lambda i: (i, 0)),
    ] + [_rep_spec(w) for w in weights]

    out_specs = (
        pl.BlockSpec((T, tile_b, Sp), lambda i: (0, i, 0)),
        pl.BlockSpec((tile_b, Ip), lambda i: (i, 0)),
    )

    # Explicit VMEM budget (double-buffered operands + outputs + slack),
    # capped at v7x's 64 MiB physical VMEM.
    def _nbytes(a):
        return a.size * a.dtype.itemsize
    total = sum(_nbytes(a) for a in inputs) + T * Bp * Sp * 4 + Bp * Ip * 4
    vmem_limit = int(min(max(2 * total + (4 << 20), 16 << 20), 64 << 20))

    kernel = functools.partial(_decoder_kernel, Bt=tile_b, T=T, D=D, Sp=Sp)

    slot_tbs, intent_p = pl.pallas_call(
        kernel,
        out_shape=(
            jax.ShapeDtypeStruct((T, Bp, Sp), jnp.float32),
            jax.ShapeDtypeStruct((Bp, Ip), jnp.float32),
        ),
        grid=(num_b,),
        in_specs=in_specs,
        out_specs=out_specs,
        compiler_params=pltpu.CompilerParams(
            dimension_semantics=("parallel",),
            vmem_limit_bytes=vmem_limit),
    )(*inputs)

    # PyTorch: cat(decode, dim=1).view(B*T, S)  ==  (B, T, S).reshape(B*T, S)
    slot_scores = jnp.transpose(slot_tbs, (1, 0, 2))[:B, :, :S].reshape(B * T, S)
    intent_score = intent_p[:B, :I]
    return slot_scores, intent_score


def make_params(key, slot_size, intent_size, embedding_size, hidden_size):
    """PyTorch-layout parameters: nn.Embedding(S,E); nn.LSTM weight_ih (4D,E+2D),
    weight_hh (4D,D), b_ih/b_hh (4D,) in gate order [i,f,g,o]; nn.Linear weights
    as (out, in) with separate biases."""
    S, I, E, D = slot_size, intent_size, embedding_size, hidden_size
    ks = jax.random.split(key, 11)
    scale = 0.1
    return {
        "embedding": jax.random.uniform(ks[0], (S, E), jnp.float32, -0.1, 0.1),
        "w_ih": jax.random.normal(ks[1], (4 * D, E + 2 * D), jnp.float32) * scale,
        "w_hh": jax.random.normal(ks[2], (4 * D, D), jnp.float32) * scale,
        "b_ih": jax.random.normal(ks[3], (4 * D,), jnp.float32) * scale,
        "b_hh": jax.random.normal(ks[4], (4 * D,), jnp.float32) * scale,
        "attn_w": jax.random.normal(ks[5], (D, D), jnp.float32) * scale,
        "attn_b": jax.random.normal(ks[6], (D,), jnp.float32) * scale,
        "slot_w": jax.random.normal(ks[7], (S, 2 * D), jnp.float32) * scale,
        "slot_b": jax.random.normal(ks[8], (S,), jnp.float32) * scale,
        "intent_w": jax.random.normal(ks[9], (I, 2 * D), jnp.float32) * scale,
        "intent_b": jax.random.normal(ks[10], (I,), jnp.float32) * scale,
    }


if __name__ == "__main__":
    # Small, self-consistent sizes
    B, T = 4, 6          # batch, encoder length
    D = 32               # hidden_size (== encoder output dim)
    E = 16               # embedding_size
    S = 12               # slot_size
    I = 7                # intent_size

    key = jax.random.PRNGKey(0)
    kp, kt, kc, ke = jax.random.split(key, 4)

    params = make_params(kp, S, I, E, D)

    tokens = jax.random.randint(kt, (B, 1), 0, S, dtype=jnp.int32)   # input : B,1
    context0 = jax.random.normal(kc, (B, 1, D), jnp.float32)         # B,1,D
    encoder_outputs = jax.random.normal(ke, (B, T, D), jnp.float32)  # B,T,D
    lengths = jnp.array([6, 5, 4, 6], dtype=jnp.int32)
    encoder_mask = (jnp.arange(T)[None, :] >= lengths[:, None]).astype(jnp.float32)

    slot_scores, intent_score = decoder_forward(
        params, tokens, context0, encoder_outputs, encoder_mask)
    jax.block_until_ready((slot_scores, intent_score))

    assert slot_scores.shape == (B * T, S)
    assert intent_score.shape == (B, I)
    assert bool(jnp.all(jnp.isfinite(slot_scores)))
    assert bool(jnp.all(jnp.isfinite(intent_score)))
    print("KERNEL_OK")
</pallas_src>

<mosaic_0001>
module attributes {stable_mosaic.version = 11 : i64} {
  func.func @_decoder_kernel(%arg0: i32, %arg1: memref<8x16xbf16, #tpu.memory_space<vmem>>, %arg2: memref<8x32xbf16, #tpu.memory_space<vmem>>, %arg3: memref<8x6x32xbf16, #tpu.memory_space<vmem>>, %arg4: memref<8x6xf32, #tpu.memory_space<vmem>>, %arg5: memref<128x16xbf16, #tpu.memory_space<vmem>>, %arg6: memref<16x128xbf16, #tpu.memory_space<vmem>>, %arg7: memref<32x128xbf16, #tpu.memory_space<vmem>>, %arg8: memref<32x128xbf16, #tpu.memory_space<vmem>>, %arg9: memref<32x128xbf16, #tpu.memory_space<vmem>>, %arg10: memref<1x128xf32, #tpu.memory_space<vmem>>, %arg11: memref<32x32xbf16, #tpu.memory_space<vmem>>, %arg12: memref<1x32xf32, #tpu.memory_space<vmem>>, %arg13: memref<32x128xbf16, #tpu.memory_space<vmem>>, %arg14: memref<32x128xbf16, #tpu.memory_space<vmem>>, %arg15: memref<1x128xf32, #tpu.memory_space<vmem>>, %arg16: memref<32x128xbf16, #tpu.memory_space<vmem>>, %arg17: memref<32x128xbf16, #tpu.memory_space<vmem>>, %arg18: memref<1x128xf32, #tpu.memory_space<vmem>>, %arg19: memref<6x8x128xf32, #tpu.memory_space<vmem>>, %arg20: memref<8x128xf32, #tpu.memory_space<vmem>>) attributes {dimension_semantics = [#tpu.dimension_semantics<parallel>], iteration_bounds = array<i64: 1>, scalar_prefetch = 0 : i64, scratch_operands = 0 : i64, tpu.core_type = #tpu.core_type<tc>, window_params = [{transform_indices = @transform_0, window_bounds = array<i64: 8, 16>}, {transform_indices = @transform_1, window_bounds = array<i64: 8, 32>}, {transform_indices = @transform_2, window_bounds = array<i64: 8, 6, 32>}, {transform_indices = @transform_3, window_bounds = array<i64: 8, 6>}, {pipeline_mode = #tpu.pipeline_mode<synchronous>, transform_indices = @transform_4, window_bounds = array<i64: 128, 16>}, {pipeline_mode = #tpu.pipeline_mode<synchronous>, transform_indices = @transform_5, window_bounds = array<i64: 16, 128>}, {pipeline_mode = #tpu.pipeline_mode<synchronous>, transform_indices = @transform_6, window_bounds = array<i64: 32, 128>}, {pipeline_mode = #tpu.pipeline_mode<synchronous>, transform_indices = @transform_7, window_bounds = array<i64: 32, 128>}, {pipeline_mode = #tpu.pipeline_mode<synchronous>, transform_indices = @transform_8, window_bounds = array<i64: 32, 128>}, {pipeline_mode = #tpu.pipeline_mode<synchronous>, transform_indices = @transform_9, window_bounds = array<i64: 1, 128>}, {pipeline_mode = #tpu.pipeline_mode<synchronous>, transform_indices = @transform_10, window_bounds = array<i64: 32, 32>}, {pipeline_mode = #tpu.pipeline_mode<synchronous>, transform_indices = @transform_11, window_bounds = array<i64: 1, 32>}, {pipeline_mode = #tpu.pipeline_mode<synchronous>, transform_indices = @transform_12, window_bounds = array<i64: 32, 128>}, {pipeline_mode = #tpu.pipeline_mode<synchronous>, transform_indices = @transform_13, window_bounds = array<i64: 32, 128>}, {pipeline_mode = #tpu.pipeline_mode<synchronous>, transform_indices = @transform_14, window_bounds = array<i64: 1, 128>}, {pipeline_mode = #tpu.pipeline_mode<synchronous>, transform_indices = @transform_15, window_bounds = array<i64: 32, 128>}, {pipeline_mode = #tpu.pipeline_mode<synchronous>, transform_indices = @transform_16, window_bounds = array<i64: 32, 128>}, {pipeline_mode = #tpu.pipeline_mode<synchronous>, transform_indices = @transform_17, window_bounds = array<i64: 1, 128>}, {transform_indices = @transform_18, window_bounds = array<i64: 6, 8, 128>}, {transform_indices = @transform_19, window_bounds = array<i64: 8, 128>}]} {
    %c0 = arith.constant 0 : index
    %c0_0 = arith.constant 0 : index
    %0 = vector.load %arg5[%c0, %c0_0] : memref<128x16xbf16, #tpu.memory_space<vmem>>, vector<128x16xbf16>
    %c0_1 = arith.constant 0 : index
    %c0_2 = arith.constant 0 : index
    %c0_3 = arith.constant 0 : index
    %1 = vector.load %arg3[%c0_1, %c0_2, %c0_3] : memref<8x6x32xbf16, #tpu.memory_space<vmem>>, vector<8x6x32xbf16>
    %c0_4 = arith.constant 0 : index
    %c0_5 = arith.constant 0 : index
    %2 = vector.load %arg4[%c0_4, %c0_5] : memref<8x6xf32, #tpu.memory_space<vmem>>, vector<8x6xf32>
    %c0_6 = arith.constant 0 : index
    %c0_7 = arith.constant 0 : index
    %3 = vector.load %arg11[%c0_6, %c0_7] : memref<32x32xbf16, #tpu.memory_space<vmem>>, vector<32x32xbf16>
    %c0_8 = arith.constant 0 : index
    %c0_9 = arith.constant 0 : index
    %4 = vector.load %arg12[%c0_8, %c0_9] : memref<1x32xf32, #tpu.memory_space<vmem>>, vector<1x32xf32>
    %c0_10 = arith.constant 0 : index
    %c0_11 = arith.constant 0 : index
    %5 = vector.load %arg6[%c0_10, %c0_11] : memref<16x128xbf16, #tpu.memory_space<vmem>>, vector<16x128xbf16>
    %c0_12 = arith.constant 0 : index
    %c0_13 = arith.constant 0 : index
    %6 = vector.load %arg7[%c0_12, %c0_13] : memref<32x128xbf16, #tpu.memory_space<vmem>>, vector<32x128xbf16>
    %c0_14 = arith.constant 0 : index
    %c0_15 = arith.constant 0 : index
    %7 = vector.load %arg8[%c0_14, %c0_15] : memref<32x128xbf16, #tpu.memory_space<vmem>>, vector<32x128xbf16>
    %c0_16 = arith.constant 0 : index
    %c0_17 = arith.constant 0 : index
    %8 = vector.load %arg9[%c0_16, %c0_17] : memref<32x128xbf16, #tpu.memory_space<vmem>>, vector<32x128xbf16>
    %c0_18 = arith.constant 0 : index
    %c0_19 = arith.constant 0 : index
    %9 = vector.load %arg10[%c0_18, %c0_19] : memref<1x128xf32, #tpu.memory_space<vmem>>, vector<1x128xf32>
    %c0_20 = arith.constant 0 : index
    %c0_21 = arith.constant 0 : index
    %10 = vector.load %arg13[%c0_20, %c0_21] : memref<32x128xbf16, #tpu.memory_space<vmem>>, vector<32x128xbf16>
    %c0_22 = arith.constant 0 : index
    %c0_23 = arith.constant 0 : index
    %11 = vector.load %arg14[%c0_22, %c0_23] : memref<32x128xbf16, #tpu.memory_space<vmem>>, vector<32x128xbf16>
    %c0_24 = arith.constant 0 : index
    %c0_25 = arith.constant 0 : index
    %12 = vector.load %arg15[%c0_24, %c0_25] : memref<1x128xf32, #tpu.memory_space<vmem>>, vector<1x128xf32>
    %c0_26 = arith.constant 0 : index
    %c0_27 = arith.constant 0 : index
    %13 = vector.load %arg16[%c0_26, %c0_27] : memref<32x128xbf16, #tpu.memory_space<vmem>>, vector<32x128xbf16>
    %c0_28 = arith.constant 0 : index
    %c0_29 = arith.constant 0 : index
    %14 = vector.load %arg17[%c0_28, %c0_29] : memref<32x128xbf16, #tpu.memory_space<vmem>>, vector<32x128xbf16>
    %c0_30 = arith.constant 0 : index
    %c0_31 = arith.constant 0 : index
    %15 = vector.load %arg18[%c0_30, %c0_31] : memref<1x128xf32, #tpu.memory_space<vmem>>, vector<1x128xf32>
    %16 = vector.shape_cast %1 : vector<8x6x32xbf16> to vector<48x32xbf16>
    %cst = arith.constant dense<0.000000e+00> : vector<48x32xf32>
    %17 = tpu.matmul %16, %3, %cst {dimension_numbers = #tpu.dot_dimension_numbers<[1], [0], [0], [1], [0, 0, 1, 1], [], []>} : vector<48x32xbf16>, vector<32x32xbf16>, vector<48x32xf32> -> vector<48x32xf32>
    %18 = vector.broadcast %4 : vector<1x32xf32> to vector<48x32xf32>
    %19 = arith.addf %17, %18 : vector<48x32xf32>
    %20 = vector.shape_cast %19 : vector<48x32xf32> to vector<8x6x32xf32>
    %21 = arith.extf %1 : vector<8x6x32xbf16> to vector<8x6x32xf32>
    %c0_32 = arith.constant 0 : index
    %c0_33 = arith.constant 0 : index
    %22 = vector.load %arg1[%c0_32, %c0_33] : memref<8x16xbf16, #tpu.memory_space<vmem>>, vector<8x16xbf16>
    %c0_34 = arith.constant 0 : index
    %c0_35 = arith.constant 0 : index
    %23 = vector.load %arg2[%c0_34, %c0_35] : memref<8x32xbf16, #tpu.memory_space<vmem>>, vector<8x32xbf16>
    %cst_36 = arith.constant 0.000000e+00 : f32
    %24 = vector.broadcast %cst_36 : f32 to vector<8x32xf32>
    %cst_37 = arith.constant 0.000000e+00 : bf16
    %25 = vector.broadcast %cst_37 : bf16 to vector<8x32xbf16>
    %26 = tpu.iota {dimensions = array<i32: 1>} : vector<8x128xi32>
    %27 = vector.extract_strided_slice %1 {offsets = [0, 0, 0], sizes = [8, 1, 32], strides = [1, 1, 1]} : vector<8x6x32xbf16> to vector<8x1x32xbf16>
    %28 = vector.shape_cast %27 : vector<8x1x32xbf16> to vector<8x32xbf16>
    %cst_38 = arith.constant dense<0.000000e+00> : vector<8x128xf32>
    %29 = tpu.matmul %22, %5, %cst_38 {dimension_numbers = #tpu.dot_dimension_numbers<[1], [0], [0], [1], [0, 0, 1, 1], [], []>} : vector<8x16xbf16>, vector<16x128xbf16>, vector<8x128xf32> -> vector<8x128xf32>
    %cst_39 = arith.constant dense<0.000000e+00> : vector<8x128xf32>
    %30 = tpu.matmul %23, %6, %cst_39 {dimension_numbers = #tpu.dot_dimension_numbers<[1], [0], [0], [1], [0, 0, 1, 1], [], []>} : vector<8x32xbf16>, vector<32x128xbf16>, vector<8x128xf32> -> vector<8x128xf32>
    %31 = arith.addf %29, %30 : vector<8x128xf32>
    %cst_40 = arith.constant dense<0.000000e+00> : vector<8x128xf32>
    %32 = tpu.matmul %28, %7, %cst_40 {dimension_numbers = #tpu.dot_dimension_numbers<[1], [0], [0], [1], [0, 0, 1, 1], [], []>} : vector<8x32xbf16>, vector<32x128xbf16>, vector<8x128xf32> -> vector<8x128xf32>
    %33 = arith.addf %31, %32 : vector<8x128xf32>
    %cst_41 = arith.constant dense<0.000000e+00> : vector<8x128xf32>
    %34 = tpu.matmul %25, %8, %cst_41 {dimension_numbers = #tpu.dot_dimension_numbers<[1], [0], [0], [1], [0, 0, 1, 1], [], []>} : vector<8x32xbf16>, vector<32x128xbf16>, vector<8x128xf32> -> vector<8x128xf32>
    %35 = arith.addf %33, %34 : vector<8x128xf32>
    %36 = vector.broadcast %9 : vector<1x128xf32> to vector<8x128xf32>
    %37 = arith.addf %35, %36 : vector<8x128xf32>
    %38 = vector.extract_strided_slice %37 {offsets = [0, 0], sizes = [8, 32], strides = [1, 1]} : vector<8x128xf32> to vector<8x32xf32>
    %39 = arith.negf %38 : vector<8x32xf32>
    %40 = math.exp %39 : vector<8x32xf32>
    %cst_42 = arith.constant 1.000000e+00 : f32
    %41 = vector.broadcast %cst_42 : f32 to vector<8x32xf32>
    %42 = arith.addf %41, %40 : vector<8x32xf32>
    %43 = arith.divf %41, %42 : vector<8x32xf32>
    %44 = vector.extract_strided_slice %37 {offsets = [0, 32], sizes = [8, 32], strides = [1, 1]} : vector<8x128xf32> to vector<8x32xf32>
    %45 = arith.negf %44 : vector<8x32xf32>
    %46 = math.exp %45 : vector<8x32xf32>
    %cst_43 = arith.constant 1.000000e+00 : f32
    %47 = vector.broadcast %cst_43 : f32 to vector<8x32xf32>
    %48 = arith.addf %47, %46 : vector<8x32xf32>
    %49 = arith.divf %47, %48 : vector<8x32xf32>
    %50 = vector.extract_strided_slice %37 {offsets = [0, 64], sizes = [8, 32], strides = [1, 1]} : vector<8x128xf32> to vector<8x32xf32>
    %51 = math.tanh %50 : vector<8x32xf32>
    %52 = vector.extract_strided_slice %37 {offsets = [0, 96], sizes = [8, 32], strides = [1, 1]} : vector<8x128xf32> to vector<8x32xf32>
    %53 = arith.negf %52 : vector<8x32xf32>
    %54 = math.exp %53 : vector<8x32xf32>
    %cst_44 = arith.constant 1.000000e+00 : f32
    %55 = vector.broadcast %cst_44 : f32 to vector<8x32xf32>
    %56 = arith.addf %55, %54 : vector<8x32xf32>
    %57 = arith.divf %55, %56 : vector<8x32xf32>
    %58 = arith.mulf %49, %24 : vector<8x32xf32>
    %59 = arith.mulf %43, %51 : vector<8x32xf32>
    %60 = arith.addf %58, %59 : vector<8x32xf32>
    %61 = math.tanh %60 : vector<8x32xf32>
    %62 = arith.mulf %57, %61 : vector<8x32xf32>
    %63 = arith.truncf %62 : vector<8x32xf32> to vector<8x32xbf16>
    %64 = vector.shape_cast %62 : vector<8x32xf32> to vector<8x1x32xf32>
    %65 = vector.broadcast %64 : vector<8x1x32xf32> to vector<8x6x32xf32>
    %66 = arith.mulf %65, %20 : vector<8x6x32xf32>
    %cst_45 = arith.constant dense<0.000000e+00> : vector<8x6xf32>
    %67 = vector.multi_reduction <add>, %66, %cst_45 [2] : vector<8x6x32xf32> to vector<8x6xf32>
    %68 = arith.addf %67, %2 : vector<8x6xf32>
    %cst_46 = arith.constant dense<0xFF800000> : vector<8xf32>
    %69 = vector.multi_reduction <maximumf>, %68, %cst_46 [1] : vector<8x6xf32> to vector<8xf32>
    %70 = vector.shape_cast %69 : vector<8xf32> to vector<8x1xf32>
    %71 = vector.broadcast %70 : vector<8x1xf32> to vector<8x6xf32>
    %72 = arith.subf %68, %71 : vector<8x6xf32>
    %73 = math.exp %72 : vector<8x6xf32>
    %cst_47 = arith.constant dense<0.000000e+00> : vector<8xf32>
    %74 = vector.multi_reduction <add>, %73, %cst_47 [1] : vector<8x6xf32> to vector<8xf32>
    %75 = vector.shape_cast %74 : vector<8xf32> to vector<8x1xf32>
    %76 = vector.broadcast %75 : vector<8x1xf32> to vector<8x6xf32>
    %77 = arith.divf %73, %76 : vector<8x6xf32>
    %78 = vector.shape_cast %77 : vector<8x6xf32> to vector<8x6x1xf32>
    %79 = vector.broadcast %78 : vector<8x6x1xf32> to vector<8x6x32xf32>
    %80 = arith.mulf %79, %21 : vector<8x6x32xf32>
    %cst_48 = arith.constant dense<0.000000e+00> : vector<8x32xf32>
    %81 = vector.multi_reduction <add>, %80, %cst_48 [1] : vector<8x6x32xf32> to vector<8x32xf32>
    %82 = arith.truncf %81 : vector<8x32xf32> to vector<8x32xbf16>
    %cst_49 = arith.constant dense<0.000000e+00> : vector<8x128xf32>
    %83 = tpu.matmul %63, %13, %cst_49 {dimension_numbers = #tpu.dot_dimension_numbers<[1], [0], [0], [1], [0, 0, 1, 1], [], []>} : vector<8x32xbf16>, vector<32x128xbf16>, vector<8x128xf32> -> vector<8x128xf32>
    %cst_50 = arith.constant dense<0.000000e+00> : vector<8x128xf32>
    %84 = tpu.matmul %82, %14, %cst_50 {dimension_numbers = #tpu.dot_dimension_numbers<[1], [0], [0], [1], [0, 0, 1, 1], [], []>} : vector<8x32xbf16>, vector<32x128xbf16>, vector<8x128xf32> -> vector<8x128xf32>
    %85 = arith.addf %83, %84 : vector<8x128xf32>
    %86 = vector.broadcast %15 : vector<1x128xf32> to vector<8x128xf32>
    %87 = arith.addf %85, %86 : vector<8x128xf32>
    %c0_51 = arith.constant 0 : index
    %c0_52 = arith.constant 0 : index
    %88 = vector.load %arg20[%c0_51, %c0_52] : memref<8x128xf32, #tpu.memory_space<vmem>>, vector<8x128xf32>
    tpu.vector_store %arg20[%c0_51, %c0_52], %87 {strides = array<i32>} : memref<8x128xf32, #tpu.memory_space<vmem>>, vector<8x128xf32>,
    %cst_53 = arith.constant dense<0.000000e+00> : vector<8x128xf32>
    %89 = tpu.matmul %63, %10, %cst_53 {dimension_numbers = #tpu.dot_dimension_numbers<[1], [0], [0], [1], [0, 0, 1, 1], [], []>} : vector<8x32xbf16>, vector<32x128xbf16>, vector<8x128xf32> -> vector<8x128xf32>
    %cst_54 = arith.constant dense<0.000000e+00> : vector<8x128xf32>
    %90 = tpu.matmul %23, %11, %cst_54 {dimension_numbers = #tpu.dot_dimension_numbers<[1], [0], [0], [1], [0, 0, 1, 1], [], []>} : vector<8x32xbf16>, vector<32x128xbf16>, vector<8x128xf32> -> vector<8x128xf32>
    %91 = arith.addf %89, %90 : vector<8x128xf32>
    %92 = vector.broadcast %12 : vector<1x128xf32> to vector<8x128xf32>
    %93 = arith.addf %91, %92 : vector<8x128xf32>
    %cst_55 = arith.constant dense<0xFF800000> : vector<8xf32>
    %94 = vector.multi_reduction <maximumf>, %93, %cst_55 [1] : vector<8x128xf32> to vector<8xf32>
    %95 = vector.shape_cast %94 : vector<8xf32> to vector<8x1xf32>
    %96 = vector.broadcast %95 : vector<8x1xf32> to vector<8x128xf32>
    %97 = arith.subf %93, %96 : vector<8x128xf32>
    %98 = math.exp %97 : vector<8x128xf32>
    %cst_56 = arith.constant dense<0.000000e+00> : vector<8xf32>
    %99 = vector.multi_reduction <add>, %98, %cst_56 [1] : vector<8x128xf32> to vector<8xf32>
    %100 = vector.shape_cast %99 : vector<8xf32> to vector<8x1xf32>
    %101 = math.log %100 : vector<8x1xf32>
    %102 = arith.addf %95, %101 : vector<8x1xf32>
    %103 = vector.broadcast %102 : vector<8x1xf32> to vector<8x128xf32>
    %104 = arith.subf %93, %103 : vector<8x128xf32>
    %c0_57 = arith.constant 0 : index
    %c0_58 = arith.constant 0 : index
    %c0_59 = arith.constant 0 : index
    %105 = vector.load %arg19[%c0_57, %c0_58, %c0_59] : memref<6x8x128xf32, #tpu.memory_space<vmem>>, vector<1x8x128xf32>
    %106 = vector.shape_cast %105 : vector<1x8x128xf32> to vector<8x128xf32>
    %107 = vector.shape_cast %104 : vector<8x128xf32> to vector<1x8x128xf32>
    tpu.vector_store %arg19[%c0_57, %c0_58, %c0_59], %107 {strides = array<i32>} : memref<6x8x128xf32, #tpu.memory_space<vmem>>, vector<1x8x128xf32>,
    %cst_60 = arith.constant dense<0xFF800000> : vector<8xf32>
    %108 = vector.multi_reduction <maximumf>, %104, %cst_60 [1] : vector<8x128xf32> to vector<8xf32>
    %109 = vector.shape_cast %108 : vector<8xf32> to vector<8x1xf32>
    %110 = vector.broadcast %109 : vector<8x1xf32> to vector<8x128xf32>
    %111 = arith.cmpf oge, %104, %110 : vector<8x128xf32>
    %c128_i32 = arith.constant 128 : i32
    %112 = vector.broadcast %c128_i32 : i32 to vector<8x128xi32>
    %113 = arith.select %111, %26, %112 : vector<8x128xi1>, vector<8x128xi32>
    %cst_61 = arith.constant dense<2147483647> : vector<8xi32>
    %114 = vector.multi_reduction <minsi>, %113, %cst_61 [1] : vector<8x128xi32> to vector<8xi32>
    %115 = vector.shape_cast %114 : vector<8xi32> to vector<8x1xi32>
    %116 = vector.broadcast %115 : vector<8x1xi32> to vector<8x128xi32>
    %117 = arith.cmpi eq, %26, %116 : vector<8x128xi32>
    %118 = arith.extui %117 : vector<8x128xi1> to vector<8x128xi32>
    %119 = arith.sitofp %118 : vector<8x128xi32> to vector<8x128xf32>
    %120 = arith.truncf %119 : vector<8x128xf32> to vector<8x128xbf16>
    %cst_62 = arith.constant dense<0.000000e+00> : vector<8x16xf32>
    %121 = tpu.matmul %120, %0, %cst_62 {dimension_numbers = #tpu.dot_dimension_numbers<[1], [0], [0], [1], [0, 0, 1, 1], [], []>} : vector<8x128xbf16>, vector<128x16xbf16>, vector<8x16xf32> -> vector<8x16xf32>
    %122 = arith.truncf %121 : vector<8x16xf32> to vector<8x16xbf16>
    %123 = vector.extract_strided_slice %1 {offsets = [0, 1, 0], sizes = [8, 1, 32], strides = [1, 1, 1]} : vector<8x6x32xbf16> to vector<8x1x32xbf16>
    %124 = vector.shape_cast %123 : vector<8x1x32xbf16> to vector<8x32xbf16>
    %cst_63 = arith.constant dense<0.000000e+00> : vector<8x128xf32>
    %125 = tpu.matmul %122, %5, %cst_63 {dimension_numbers = #tpu.dot_dimension_numbers<[1], [0], [0], [1], [0, 0, 1, 1], [], []>} : vector<8x16xbf16>, vector<16x128xbf16>, vector<8x128xf32> -> vector<8x128xf32>
    %cst_64 = arith.constant dense<0.000000e+00> : vector<8x128xf32>
    %126 = tpu.matmul %82, %6, %cst_64 {dimension_numbers = #tpu.dot_dimension_numbers<[1], [0], [0], [1], [0, 0, 1, 1], [], []>} : vector<8x32xbf16>, vector<32x128xbf16>, vector<8x128xf32> -> vector<8x128xf32>
    %127 = arith.addf %125, %126 : vector<8x128xf32>
    %cst_65 = arith.constant dense<0.000000e+00> : vector<8x128xf32>
    %128 = tpu.matmul %124, %7, %cst_65 {dimension_numbers = #tpu.dot_dimension_numbers<[1], [0], [0], [1], [0, 0, 1, 1], [], []>} : vector<8x32xbf16>, vector<32x128xbf16>, vector<8x128xf32> -> vector<8x128xf32>
    %129 = arith.addf %127, %128 : vector<8x128xf32>
    %cst_66 = arith.constant dense<0.000000e+00> : vector<8x128xf32>
    %130 = tpu.matmul %63, %8, %cst_66 {dimension_numbers = #tpu.dot_dimension_numbers<[1], [0], [0], [1], [0, 0, 1, 1], [], []>} : vector<8x32xbf16>, vector<32x128xbf16>, vector<8x128xf32> -> vector<8x128xf32>
    %131 = arith.addf %129, %130 : vector<8x128xf32>
    %132 = vector.broadcast %9 : vector<1x128xf32> to vector<8x128xf32>
    %133 = arith.addf %131, %132 : vector<8x128xf32>
    %134 = vector.extract_strided_slice %133 {offsets = [0, 0], sizes = [8, 32], strides = [1, 1]} : vector<8x128xf32> to vector<8x32xf32>
    %135 = arith.negf %134 : vector<8x32xf32>
    %136 = math.exp %135 : vector<8x32xf32>
    %cst_67 = arith.constant 1.000000e+00 : f32
    %137 = vector.broadcast %cst_67 : f32 to vector<8x32xf32>
    %138 = arith.addf %137, %136 : vector<8x32xf32>
    %139 = arith.divf %137, %138 : vector<8x32xf32>
    %140 = vector.extract_strided_slice %133 {offsets = [0, 32], sizes = [8, 32], strides = [1, 1]} : vector<8x128xf32> to vector<8x32xf32>
    %141 = arith.negf %140 : vector<8x32xf32>
    %142 = math.exp %141 : vector<8x32xf32>
    %cst_68 = arith.constant 1.000000e+00 : f32
    %143 = vector.broadcast %cst_68 : f32 to vector<8x32xf32>
    %144 = arith.addf %143, %142 : vector<8x32xf32>
    %145 = arith.divf %143, %144 : vector<8x32xf32>
    %146 = vector.extract_strided_slice %133 {offsets = [0, 64], sizes = [8, 32], strides = [1, 1]} : vector<8x128xf32> to vector<8x32xf32>
    %147 = math.tanh %146 : vector<8x32xf32>
    %148 = vector.extract_strided_slice %133 {offsets = [0, 96], sizes = [8, 32], strides = [1, 1]} : vector<8x128xf32> to vector<8x32xf32>
    %149 = arith.negf %148 : vector<8x32xf32>
    %150 = math.exp %149 : vector<8x32xf32>
    %cst_69 = arith.constant 1.000000e+00 : f32
    %151 = vector.broadcast %cst_69 : f32 to vector<8x32xf32>
    %152 = arith.addf %151, %150 : vector<8x32xf32>
    %153 = arith.divf %151, %152 : vector<8x32xf32>
    %154 = arith.mulf %145, %60 : vector<8x32xf32>
    %155 = arith.mulf %139, %147 : vector<8x32xf32>
    %156 = arith.addf %154, %155 : vector<8x32xf32>
    %157 = math.tanh %156 : vector<8x32xf32>
    %158 = arith.mulf %153, %157 : vector<8x32xf32>
    %159 = arith.truncf %158 : vector<8x32xf32> to vector<8x32xbf16>
    %160 = vector.shape_cast %158 : vector<8x32xf32> to vector<8x1x32xf32>
    %161 = vector.broadcast %160 : vector<8x1x32xf32> to vector<8x6x32xf32>
    %162 = arith.mulf %161, %20 : vector<8x6x32xf32>
    %cst_70 = arith.constant dense<0.000000e+00> : vector<8x6xf32>
    %163 = vector.multi_reduction <add>, %162, %cst_70 [2] : vector<8x6x32xf32> to vector<8x6xf32>
    %164 = arith.addf %163, %2 : vector<8x6xf32>
    %cst_71 = arith.constant dense<0xFF800000> : vector<8xf32>
    %165 = vector.multi_reduction <maximumf>, %164, %cst_71 [1] : vector<8x6xf32> to vector<8xf32>
    %166 = vector.shape_cast %165 : vector<8xf32> to vector<8x1xf32>
    %167 = vector.broadcast %166 : vector<8x1xf32> to vector<8x6xf32>
    %168 = arith.subf %164, %167 : vector<8x6xf32>
    %169 = math.exp %168 : vector<8x6xf32>
    %cst_72 = arith.constant dense<0.000000e+00> : vector<8xf32>
    %170 = vector.multi_reduction <add>, %169, %cst_72 [1] : vector<8x6xf32> to vector<8xf32>
    %171 = vector.shape_cast %170 : vector<8xf32> to vector<8x1xf32>
    %172 = vector.broadcast %171 : vector<8x1xf32> to vector<8x6xf32>
    %173 = arith.divf %169, %172 : vector<8x6xf32>
    %174 = vector.shape_cast %173 : vector<8x6xf32> to vector<8x6x1xf32>
    %175 = vector.broadcast %174 : vector<8x6x1xf32> to vector<8x6x32xf32>
    %176 = arith.mulf %175, %21 : vector<8x6x32xf32>
    %cst_73 = arith.constant dense<0.000000e+00> : vector<8x32xf32>
    %177 = vector.multi_reduction <add>, %176, %cst_73 [1] : vector<8x6x32xf32> to vector<8x32xf32>
    %178 = arith.truncf %177 : vector<8x32xf32> to vector<8x32xbf16>
    %cst_74 = arith.constant dense<0.000000e+00> : vector<8x128xf32>
    %179 = tpu.matmul %159, %10, %cst_74 {dimension_numbers = #tpu.dot_dimension_numbers<[1], [0], [0], [1], [0, 0, 1, 1], [], []>} : vector<8x32xbf16>, vector<32x128xbf16>, vector<8x128xf32> -> vector<8x128xf32>
    %cst_75 = arith.constant dense<0.000000e+00> : vector<8x128xf32>
    %180 = tpu.matmul %82, %11, %cst_75 {dimension_numbers = #tpu.dot_dimension_numbers<[1], [0], [0], [1], [0, 0, 1, 1], [], []>} : vector<8x32xbf16>, vector<32x128xbf16>, vector<8x128xf32> -> vector<8x128xf32>
    %181 = arith.addf %179, %180 : vector<8x128xf32>
    %182 = vector.broadcast %12 : vector<1x128xf32> to vector<8x128xf32>
    %183 = arith.addf %181, %182 : vector<8x128xf32>
    %cst_76 = arith.constant dense<0xFF800000> : vector<8xf32>
    %184 = vector.multi_reduction <maximumf>, %183, %cst_76 [1] : vector<8x128xf32> to vector<8xf32>
    %185 = vector.shape_cast %184 : vector<8xf32> to vector<8x1xf32>
    %186 = vector.broadcast %185 : vector<8x1xf32> to vector<8x128xf32>
    %187 = arith.subf %183, %186 : vector<8x128xf32>
    %188 = math.exp %187 : vector<8x128xf32>
    %cst_77 = arith.constant dense<0.000000e+00> : vector<8xf32>
    %189 = vector.multi_reduction <add>, %188, %cst_77 [1] : vector<8x128xf32> to vector<8xf32>
    %190 = vector.shape_cast %189 : vector<8xf32> to vector<8x1xf32>
    %191 = math.log %190 : vector<8x1xf32>
    %192 = arith.addf %185, %191 : vector<8x1xf32>
    %193 = vector.broadcast %192 : vector<8x1xf32> to vector<8x128xf32>
    %194 = arith.subf %183, %193 : vector<8x128xf32>
    %c1 = arith.constant 1 : index
    %c0_78 = arith.constant 0 : index
    %c0_79 = arith.constant 0 : index
    %195 = vector.load %arg19[%c1, %c0_78, %c0_79] : memref<6x8x128xf32, #tpu.memory_space<vmem>>, vector<1x8x128xf32>
    %196 = vector.shape_cast %195 : vector<1x8x128xf32> to vector<8x128xf32>
    %197 = vector.shape_cast %194 : vector<8x128xf32> to vector<1x8x128xf32>
    tpu.vector_store %arg19[%c1, %c0_78, %c0_79], %197 {strides = array<i32>} : memref<6x8x128xf32, #tpu.memory_space<vmem>>, vector<1x8x128xf32>,
    %cst_80 = arith.constant dense<0xFF800000> : vector<8xf32>
    %198 = vector.multi_reduction <maximumf>, %194, %cst_80 [1] : vector<8x128xf32> to vector<8xf32>
    %199 = vector.shape_cast %198 : vector<8xf32> to vector<8x1xf32>
    %200 = vector.broadcast %199 : vector<8x1xf32> to vector<8x128xf32>
    %201 = arith.cmpf oge, %194, %200 : vector<8x128xf32>
    %c128_i32_81 = arith.constant 128 : i32
    %202 = vector.broadcast %c128_i32_81 : i32 to vector<8x128xi32>
    %203 = arith.select %201, %26, %202 : vector<8x128xi1>, vector<8x128xi32>
    %cst_82 = arith.constant dense<2147483647> : vector<8xi32>
    %204 = vector.multi_reduction <minsi>, %203, %cst_82 [1] : vector<8x128xi32> to vector<8xi32>
    %205 = vector.shape_cast %204 : vector<8xi32> to vector<8x1xi32>
    %206 = vector.broadcast %205 : vector<8x1xi32> to vector<8x128xi32>
    %207 = arith.cmpi eq, %26, %206 : vector<8x128xi32>
    %208 = arith.extui %207 : vector<8x128xi1> to vector<8x128xi32>
    %209 = arith.sitofp %208 : vector<8x128xi32> to vector<8x128xf32>
    %210 = arith.truncf %209 : vector<8x128xf32> to vector<8x128xbf16>
    %cst_83 = arith.constant dense<0.000000e+00> : vector<8x16xf32>
    %211 = tpu.matmul %210, %0, %cst_83 {dimension_numbers = #tpu.dot_dimension_numbers<[1], [0], [0], [1], [0, 0, 1, 1], [], []>} : vector<8x128xbf16>, vector<128x16xbf16>, vector<8x16xf32> -> vector<8x16xf32>
    %212 = arith.truncf %211 : vector<8x16xf32> to vector<8x16xbf16>
    %213 = vector.extract_strided_slice %1 {offsets = [0, 2, 0], sizes = [8, 1, 32], strides = [1, 1, 1]} : vector<8x6x32xbf16> to vector<8x1x32xbf16>
    %214 = vector.shape_cast %213 : vector<8x1x32xbf16> to vector<8x32xbf16>
    %cst_84 = arith.constant dense<0.000000e+00> : vector<8x128xf32>
    %215 = tpu.matmul %212, %5, %cst_84 {dimension_numbers = #tpu.dot_dimension_numbers<[1], [0], [0], [1], [0, 0, 1, 1], [], []>} : vector<8x16xbf16>, vector<16x128xbf16>, vector<8x128xf32> -> vector<8x128xf32>
    %cst_85 = arith.constant dense<0.000000e+00> : vector<8x128xf32>
    %216 = tpu.matmul %178, %6, %cst_85 {dimension_numbers = #tpu.dot_dimension_numbers<[1], [0], [0], [1], [0, 0, 1, 1], [], []>} : vector<8x32xbf16>, vector<32x128xbf16>, vector<8x128xf32> -> vector<8x128xf32>
    %217 = arith.addf %215, %216 : vector<8x128xf32>
    %cst_86 = arith.constant dense<0.000000e+00> : vector<8x128xf32>
    %218 = tpu.matmul %214, %7, %cst_86 {dimension_numbers = #tpu.dot_dimension_numbers<[1], [0], [0], [1], [0, 0, 1, 1], [], []>} : vector<8x32xbf16>, vector<32x128xbf16>, vector<8x128xf32> -> vector<8x128xf32>
    %219 = arith.addf %217, %218 : vector<8x128xf32>
    %cst_87 = arith.constant dense<0.000000e+00> : vector<8x128xf32>
    %220 = tpu.matmul %159, %8, %cst_87 {dimension_numbers = #tpu.dot_dimension_numbers<[1], [0], [0], [1], [0, 0, 1, 1], [], []>} : vector<8x32xbf16>, vector<32x128xbf16>, vector<8x128xf32> -> vector<8x128xf32>
    %221 = arith.addf %219, %220 : vector<8x128xf32>
    %222 = vector.broadcast %9 : vector<1x128xf32> to vector<8x128xf32>
    %223 = arith.addf %221, %222 : vector<8x128xf32>
    %224 = vector.extract_strided_slice %223 {offsets = [0, 0], sizes = [8, 32], strides = [1, 1]} : vector<8x128xf32> to vector<8x32xf32>
    %225 = arith.negf %224 : vector<8x32xf32>
    %226 = math.exp %225 : vector<8x32xf32>
    %cst_88 = arith.constant 1.000000e+00 : f32
    %227 = vector.broadcast %cst_88 : f32 to vector<8x32xf32>
    %228 = arith.addf %227, %226 : vector<8x32xf32>
    %229 = arith.divf %227, %228 : vector<8x32xf32>
    %230 = vector.extract_strided_slice %223 {offsets = [0, 32], sizes = [8, 32], strides = [1, 1]} : vector<8x128xf32> to vector<8x32xf32>
    %231 = arith.negf %230 : vector<8x32xf32>
    %232 = math.exp %231 : vector<8x32xf32>
    %cst_89 = arith.constant 1.000000e+00 : f32
    %233 = vector.broadcast %cst_89 : f32 to vector<8x32xf32>
    %234 = arith.addf %233, %232 : vector<8x32xf32>
    %235 = arith.divf %233, %234 : vector<8x32xf32>
    %236 = vector.extract_strided_slice %223 {offsets = [0, 64], sizes = [8, 32], strides = [1, 1]} : vector<8x128xf32> to vector<8x32xf32>
    %237 = math.tanh %236 : vector<8x32xf32>
    %238 = vector.extract_strided_slice %223 {offsets = [0, 96], sizes = [8, 32], strides = [1, 1]} : vector<8x128xf32> to vector<8x32xf32>
    %239 = arith.negf %238 : vector<8x32xf32>
    %240 = math.exp %239 : vector<8x32xf32>
    %cst_90 = arith.constant 1.000000e+00 : f32
    %241 = vector.broadcast %cst_90 : f32 to vector<8x32xf32>
    %242 = arith.addf %241, %240 : vector<8x32xf32>
    %243 = arith.divf %241, %242 : vector<8x32xf32>
    %244 = arith.mulf %235, %156 : vector<8x32xf32>
    %245 = arith.mulf %229, %237 : vector<8x32xf32>
    %246 = arith.addf %244, %245 : vector<8x32xf32>
    %247 = math.tanh %246 : vector<8x32xf32>
    %248 = arith.mulf %243, %247 : vector<8x32xf32>
    %249 = arith.truncf %248 : vector<8x32xf32> to vector<8x32xbf16>
    %250 = vector.shape_cast %248 : vector<8x32xf32> to vector<8x1x32xf32>
    %251 = vector.broadcast %250 : vector<8x1x32xf32> to vector<8x6x32xf32>
    %252 = arith.mulf %251, %20 : vector<8x6x32xf32>
    %cst_91 = arith.constant dense<0.000000e+00> : vector<8x6xf32>
    %253 = vector.multi_reduction <add>, %252, %cst_91 [2] : vector<8x6x32xf32> to vector<8x6xf32>
    %254 = arith.addf %253, %2 : vector<8x6xf32>
    %cst_92 = arith.constant dense<0xFF800000> : vector<8xf32>
    %255 = vector.multi_reduction <maximumf>, %254, %cst_92 [1] : vector<8x6xf32> to vector<8xf32>
    %256 = vector.shape_cast %255 : vector<8xf32> to vector<8x1xf32>
    %257 = vector.broadcast %256 : vector<8x1xf32> to vector<8x6xf32>
    %258 = arith.subf %254, %257 : vector<8x6xf32>
    %259 = math.exp %258 : vector<8x6xf32>
    %cst_93 = arith.constant dense<0.000000e+00> : vector<8xf32>
    %260 = vector.multi_reduction <add>, %259, %cst_93 [1] : vector<8x6xf32> to vector<8xf32>
    %261 = vector.shape_cast %260 : vector<8xf32> to vector<8x1xf32>
    %262 = vector.broadcast %261 : vector<8x1xf32> to vector<8x6xf32>
    %263 = arith.divf %259, %262 : vector<8x6xf32>
    %264 = vector.shape_cast %263 : vector<8x6xf32> to vector<8x6x1xf32>
    %265 = vector.broadcast %264 : vector<8x6x1xf32> to vector<8x6x32xf32>
    %266 = arith.mulf %265, %21 : vector<8x6x32xf32>
    %cst_94 = arith.constant dense<0.000000e+00> : vector<8x32xf32>
    %267 = vector.multi_reduction <add>, %266, %cst_94 [1] : vector<8x6x32xf32> to vector<8x32xf32>
    %268 = arith.truncf %267 : vector<8x32xf32> to vector<8x32xbf16>
    %cst_95 = arith.constant dense<0.000000e+00> : vector<8x128xf32>
    %269 = tpu.matmul %249, %10, %cst_95 {dimension_numbers = #tpu.dot_dimension_numbers<[1], [0], [0], [1], [0, 0, 1, 1], [], []>} : vector<8x32xbf16>, vector<32x128xbf16>, vector<8x128xf32> -> vector<8x128xf32>
    %cst_96 = arith.constant dense<0.000000e+00> : vector<8x128xf32>
    %270 = tpu.matmul %178, %11, %cst_96 {dimension_numbers = #tpu.dot_dimension_numbers<[1], [0], [0], [1], [0, 0, 1, 1], [], []>} : vector<8x32xbf16>, vector<32x128xbf16>, vector<8x128xf32> -> vector<8x128xf32>
    %271 = arith.addf %269, %270 : vector<8x128xf32>
    %272 = vector.broadcast %12 : vector<1x128xf32> to vector<8x128xf32>
    %273 = arith.addf %271, %272 : vector<8x128xf32>
    %cst_97 = arith.constant dense<0xFF800000> : vector<8xf32>
    %274 = vector.multi_reduction <maximumf>, %273, %cst_97 [1] : vector<8x128xf32> to vector<8xf32>
    %275 = vector.shape_cast %274 : vector<8xf32> to vector<8x1xf32>
    %276 = vector.broadcast %275 : vector<8x1xf32> to vector<8x128xf32>
    %277 = arith.subf %273, %276 : vector<8x128xf32>
    %278 = math.exp %277 : vector<8x128xf32>
    %cst_98 = arith.constant dense<0.000000e+00> : vector<8xf32>
    %279 = vector.multi_reduction <add>, %278, %cst_98 [1] : vector<8x128xf32> to vector<8xf32>
    %280 = vector.shape_cast %279 : vector<8xf32> to vector<8x1xf32>
    %281 = math.log %280 : vector<8x1xf32>
    %282 = arith.addf %275, %281 : vector<8x1xf32>
    %283 = vector.broadcast %282 : vector<8x1xf32> to vector<8x128xf32>
    %284 = arith.subf %273, %283 : vector<8x128xf32>
    %c2 = arith.constant 2 : index
    %c0_99 = arith.constant 0 : index
    %c0_100 = arith.constant 0 : index
    %285 = vector.load %arg19[%c2, %c0_99, %c0_100] : memref<6x8x128xf32, #tpu.memory_space<vmem>>, vector<1x8x128xf32>
    %286 = vector.shape_cast %285 : vector<1x8x128xf32> to vector<8x128xf32>
    %287 = vector.shape_cast %284 : vector<8x128xf32> to vector<1x8x128xf32>
    tpu.vector_store %arg19[%c2, %c0_99, %c0_100], %287 {strides = array<i32>} : memref<6x8x128xf32, #tpu.memory_space<vmem>>, vector<1x8x128xf32>,
    %cst_101 = arith.constant dense<0xFF800000> : vector<8xf32>
    %288 = vector.multi_reduction <maximumf>, %284, %cst_101 [1] : vector<8x128xf32> to vector<8xf32>
    %289 = vector.shape_cast %288 : vector<8xf32> to vector<8x1xf32>
    %290 = vector.broadcast %289 : vector<8x1xf32> to vector<8x128xf32>
    %291 = arith.cmpf oge, %284, %290 : vector<8x128xf32>
    %c128_i32_102 = arith.constant 128 : i32
    %292 = vector.broadcast %c128_i32_102 : i32 to vector<8x128xi32>
    %293 = arith.select %291, %26, %292 : vector<8x128xi1>, vector<8x128xi32>
    %cst_103 = arith.constant dense<2147483647> : vector<8xi32>
    %294 = vector.multi_reduction <minsi>, %293, %cst_103 [1] : vector<8x128xi32> to vector<8xi32>
    %295 = vector.shape_cast %294 : vector<8xi32> to vector<8x1xi32>
    %296 = vector.broadcast %295 : vector<8x1xi32> to vector<8x128xi32>
    %297 = arith.cmpi eq, %26, %296 : vector<8x128xi32>
    %298 = arith.extui %297 : vector<8x128xi1> to vector<8x128xi32>
    %299 = arith.sitofp %298 : vector<8x128xi32> to vector<8x128xf32>
    %300 = arith.truncf %299 : vector<8x128xf32> to vector<8x128xbf16>
    %cst_104 = arith.constant dense<0.000000e+00> : vector<8x16xf32>
    %301 = tpu.matmul %300, %0, %cst_104 {dimension_numbers = #tpu.dot_dimension_numbers<[1], [0], [0], [1], [0, 0, 1, 1], [], []>} : vector<8x128xbf16>, vector<128x16xbf16>, vector<8x16xf32> -> vector<8x16xf32>
    %302 = arith.truncf %301 : vector<8x16xf32> to vector<8x16xbf16>
    %303 = vector.extract_strided_slice %1 {offsets = [0, 3, 0], sizes = [8, 1, 32], strides = [1, 1, 1]} : vector<8x6x32xbf16> to vector<8x1x32xbf16>
    %304 = vector.shape_cast %303 : vector<8x1x32xbf16> to vector<8x32xbf16>
    %cst_105 = arith.constant dense<0.000000e+00> : vector<8x128xf32>
    %305 = tpu.matmul %302, %5, %cst_105 {dimension_numbers = #tpu.dot_dimension_numbers<[1], [0], [0], [1], [0, 0, 1, 1], [], []>} : vector<8x16xbf16>, vector<16x128xbf16>, vector<8x128xf32> -> vector<8x128xf32>
    %cst_106 = arith.constant dense<0.000000e+00> : vector<8x128xf32>
    %306 = tpu.matmul %268, %6, %cst_106 {dimension_numbers = #tpu.dot_dimension_numbers<[1], [0], [0], [1], [0, 0, 1, 1], [], []>} : vector<8x32xbf16>, vector<32x128xbf16>, vector<8x128xf32> -> vector<8x128xf32>
    %307 = arith.addf %305, %306 : vector<8x128xf32>
    %cst_107 = arith.constant dense<0.000000e+00> : vector<8x128xf32>
    %308 = tpu.matmul %304, %7, %cst_107 {dimension_numbers = #tpu.dot_dimension_numbers<[1], [0], [0], [1], [0, 0, 1, 1], [], []>} : vector<8x32xbf16>, vector<32x128xbf16>, vector<8x128xf32> -> vector<8x128xf32>
    %309 = arith.addf %307, %308 : vector<8x128xf32>
    %cst_108 = arith.constant dense<0.000000e+00> : vector<8x128xf32>
    %310 = tpu.matmul %249, %8, %cst_108 {dimension_numbers = #tpu.dot_dimension_numbers<[1], [0], [0], [1], [0, 0, 1, 1], [], []>} : vector<8x32xbf16>, vector<32x128xbf16>, vector<8x128xf32> -> vector<8x128xf32>
    %311 = arith.addf %309, %310 : vector<8x128xf32>
    %312 = vector.broadcast %9 : vector<1x128xf32> to vector<8x128xf32>
    %313 = arith.addf %311, %312 : vector<8x128xf32>
    %314 = vector.extract_strided_slice %313 {offsets = [0, 0], sizes = [8, 32], strides = [1, 1]} : vector<8x128xf32> to vector<8x32xf32>
    %315 = arith.negf %314 : vector<8x32xf32>
    %316 = math.exp %315 : vector<8x32xf32>
    %cst_109 = arith.constant 1.000000e+00 : f32
    %317 = vector.broadcast %cst_109 : f32 to vector<8x32xf32>
    %318 = arith.addf %317, %316 : vector<8x32xf32>
    %319 = arith.divf %317, %318 : vector<8x32xf32>
    %320 = vector.extract_strided_slice %313 {offsets = [0, 32], sizes = [8, 32], strides = [1, 1]} : vector<8x128xf32> to vector<8x32xf32>
    %321 = arith.negf %320 : vector<8x32xf32>
    %322 = math.exp %321 : vector<8x32xf32>
    %cst_110 = arith.constant 1.000000e+00 : f32
    %323 = vector.broadcast %cst_110 : f32 to vector<8x32xf32>
    %324 = arith.addf %323, %322 : vector<8x32xf32>
    %325 = arith.divf %323, %324 : vector<8x32xf32>
    %326 = vector.extract_strided_slice %313 {offsets = [0, 64], sizes = [8, 32], strides = [1, 1]} : vector<8x128xf32> to vector<8x32xf32>
    %327 = math.tanh %326 : vector<8x32xf32>
    %328 = vector.extract_strided_slice %313 {offsets = [0, 96], sizes = [8, 32], strides = [1, 1]} : vector<8x128xf32> to vector<8x32xf32>
    %329 = arith.negf %328 : vector<8x32xf32>
    %330 = math.exp %329 : vector<8x32xf32>
    %cst_111 = arith.constant 1.000000e+00 : f32
    %331 = vector.broadcast %cst_111 : f32 to vector<8x32xf32>
    %332 = arith.addf %331, %330 : vector<8x32xf32>
    %333 = arith.divf %331, %332 : vector<8x32xf32>
    %334 = arith.mulf %325, %246 : vector<8x32xf32>
    %335 = arith.mulf %319, %327 : vector<8x32xf32>
    %336 = arith.addf %334, %335 : vector<8x32xf32>
    %337 = math.tanh %336 : vector<8x32xf32>
    %338 = arith.mulf %333, %337 : vector<8x32xf32>
    %339 = arith.truncf %338 : vector<8x32xf32> to vector<8x32xbf16>
    %340 = vector.shape_cast %338 : vector<8x32xf32> to vector<8x1x32xf32>
    %341 = vector.broadcast %340 : vector<8x1x32xf32> to vector<8x6x32xf32>
    %342 = arith.mulf %341, %20 : vector<8x6x32xf32>
    %cst_112 = arith.constant dense<0.000000e+00> : vector<8x6xf32>
    %343 = vector.multi_reduction <add>, %342, %cst_112 [2] : vector<8x6x32xf32> to vector<8x6xf32>
    %344 = arith.addf %343, %2 : vector<8x6xf32>
    %cst_113 = arith.constant dense<0xFF800000> : vector<8xf32>
    %345 = vector.multi_reduction <maximumf>, %344, %cst_113 [1] : vector<8x6xf32> to vector<8xf32>
    %346 = vector.shape_cast %345 : vector<8xf32> to vector<8x1xf32>
    %347 = vector.broadcast %346 : vector<8x1xf32> to vector<8x6xf32>
    %348 = arith.subf %344, %347 : vector<8x6xf32>
    %349 = math.exp %348 : vector<8x6xf32>
    %cst_114 = arith.constant dense<0.000000e+00> : vector<8xf32>
    %350 = vector.multi_reduction <add>, %349, %cst_114 [1] : vector<8x6xf32> to vector<8xf32>
    %351 = vector.shape_cast %350 : vector<8xf32> to vector<8x1xf32>
    %352 = vector.broadcast %351 : vector<8x1xf32> to vector<8x6xf32>
    %353 = arith.divf %349, %352 : vector<8x6xf32>
    %354 = vector.shape_cast %353 : vector<8x6xf32> to vector<8x6x1xf32>
    %355 = vector.broadcast %354 : vector<8x6x1xf32> to vector<8x6x32xf32>
    %356 = arith.mulf %355, %21 : vector<8x6x32xf32>
    %cst_115 = arith.constant dense<0.000000e+00> : vector<8x32xf32>
    %357 = vector.multi_reduction <add>, %356, %cst_115 [1] : vector<8x6x32xf32> to vector<8x32xf32>
    %358 = arith.truncf %357 : vector<8x32xf32> to vector<8x32xbf16>
    %cst_116 = arith.constant dense<0.000000e+00> : vector<8x128xf32>
    %359 = tpu.matmul %339, %10, %cst_116 {dimension_numbers = #tpu.dot_dimension_numbers<[1], [0], [0], [1], [0, 0, 1, 1], [], []>} : vector<8x32xbf16>, vector<32x128xbf16>, vector<8x128xf32> -> vector<8x128xf32>
    %cst_117 = arith.constant dense<0.000000e+00> : vector<8x128xf32>
    %360 = tpu.matmul %268, %11, %cst_117 {dimension_numbers = #tpu.dot_dimension_numbers<[1], [0], [0], [1], [0, 0, 1, 1], [], []>} : vector<8x32xbf16>, vector<32x128xbf16>, vector<8x128xf32> -> vector<8x128xf32>
    %361 = arith.addf %359, %360 : vector<8x128xf32>
    %362 = vector.broadcast %12 : vector<1x128xf32> to vector<8x128xf32>
    %363 = arith.addf %361, %362 : vector<8x128xf32>
    %cst_118 = arith.constant dense<0xFF800000> : vector<8xf32>
    %364 = vector.multi_reduction <maximumf>, %363, %cst_118 [1] : vector<8x128xf32> to vector<8xf32>
    %365 = vector.shape_cast %364 : vector<8xf32> to vector<8x1xf32>
    %366 = vector.broadcast %365 : vector<8x1xf32> to vector<8x128xf32>
    %367 = arith.subf %363, %366 : vector<8x128xf32>
    %368 = math.exp %367 : vector<8x128xf32>
    %cst_119 = arith.constant dense<0.000000e+00> : vector<8xf32>
    %369 = vector.multi_reduction <add>, %368, %cst_119 [1] : vector<8x128xf32> to vector<8xf32>
    %370 = vector.shape_cast %369 : vector<8xf32> to vector<8x1xf32>
    %371 = math.log %370 : vector<8x1xf32>
    %372 = arith.addf %365, %371 : vector<8x1xf32>
    %373 = vector.broadcast %372 : vector<8x1xf32> to vector<8x128xf32>
    %374 = arith.subf %363, %373 : vector<8x128xf32>
    %c3 = arith.constant 3 : index
    %c0_120 = arith.constant 0 : index
    %c0_121 = arith.constant 0 : index
    %375 = vector.load %arg19[%c3, %c0_120, %c0_121] : memref<6x8x128xf32, #tpu.memory_space<vmem>>, vector<1x8x128xf32>
    %376 = vector.shape_cast %375 : vector<1x8x128xf32> to vector<8x128xf32>
    %377 = vector.shape_cast %374 : vector<8x128xf32> to vector<1x8x128xf32>
    tpu.vector_store %arg19[%c3, %c0_120, %c0_121], %377 {strides = array<i32>} : memref<6x8x128xf32, #tpu.memory_space<vmem>>, vector<1x8x128xf32>,
    %cst_122 = arith.constant dense<0xFF800000> : vector<8xf32>
    %378 = vector.multi_reduction <maximumf>, %374, %cst_122 [1] : vector<8x128xf32> to vector<8xf32>
    %379 = vector.shape_cast %378 : vector<8xf32> to vector<8x1xf32>
    %380 = vector.broadcast %379 : vector<8x1xf32> to vector<8x128xf32>
    %381 = arith.cmpf oge, %374, %380 : vector<8x128xf32>
    %c128_i32_123 = arith.constant 128 : i32
    %382 = vector.broadcast %c128_i32_123 : i32 to vector<8x128xi32>
    %383 = arith.select %381, %26, %382 : vector<8x128xi1>, vector<8x128xi32>
    %cst_124 = arith.constant dense<2147483647> : vector<8xi32>
    %384 = vector.multi_reduction <minsi>, %383, %cst_124 [1] : vector<8x128xi32> to vector<8xi32>
    %385 = vector.shape_cast %384 : vector<8xi32> to vector<8x1xi32>
    %386 = vector.broadcast %385 : vector<8x1xi32> to vector<8x128xi32>
    %387 = arith.cmpi eq, %26, %386 : vector<8x128xi32>
    %388 = arith.extui %387 : vector<8x128xi1> to vector<8x128xi32>
    %389 = arith.sitofp %388 : vector<8x128xi32> to vector<8x128xf32>
    %390 = arith.truncf %389 : vector<8x128xf32> to vector<8x128xbf16>
    %cst_125 = arith.constant dense<0.000000e+00> : vector<8x16xf32>
    %391 = tpu.matmul %390, %0, %cst_125 {dimension_numbers = #tpu.dot_dimension_numbers<[1], [0], [0], [1], [0, 0, 1, 1], [], []>} : vector<8x128xbf16>, vector<128x16xbf16>, vector<8x16xf32> -> vector<8x16xf32>
    %392 = arith.truncf %391 : vector<8x16xf32> to vector<8x16xbf16>
    %393 = vector.extract_strided_slice %1 {offsets = [0, 4, 0], sizes = [8, 1, 32], strides = [1, 1, 1]} : vector<8x6x32xbf16> to vector<8x1x32xbf16>
    %394 = vector.shape_cast %393 : vector<8x1x32xbf16> to vector<8x32xbf16>
    %cst_126 = arith.constant dense<0.000000e+00> : vector<8x128xf32>
    %395 = tpu.matmul %392, %5, %cst_126 {dimension_numbers = #tpu.dot_dimension_numbers<[1], [0], [0], [1], [0, 0, 1, 1], [], []>} : vector<8x16xbf16>, vector<16x128xbf16>, vector<8x128xf32> -> vector<8x128xf32>
    %cst_127 = arith.constant dense<0.000000e+00> : vector<8x128xf32>
    %396 = tpu.matmul %358, %6, %cst_127 {dimension_numbers = #tpu.dot_dimension_numbers<[1], [0], [0], [1], [0, 0, 1, 1], [], []>} : vector<8x32xbf16>, vector<32x128xbf16>, vector<8x128xf32> -> vector<8x128xf32>
    %397 = arith.addf %395, %396 : vector<8x128xf32>
    %cst_128 = arith.constant dense<0.000000e+00> : vector<8x128xf32>
    %398 = tpu.matmul %394, %7, %cst_128 {dimension_numbers = #tpu.dot_dimension_numbers<[1], [0], [0], [1], [0, 0, 1, 1], [], []>} : vector<8x32xbf16>, vector<32x128xbf16>, vector<8x128xf32> -> vector<8x128xf32>
    %399 = arith.addf %397, %398 : vector<8x128xf32>
    %cst_129 = arith.constant dense<0.000000e+00> : vector<8x128xf32>
    %400 = tpu.matmul %339, %8, %cst_129 {dimension_numbers = #tpu.dot_dimension_numbers<[1], [0], [0], [1], [0, 0, 1, 1], [], []>} : vector<8x32xbf16>, vector<32x128xbf16>, vector<8x128xf32> -> vector<8x128xf32>
    %401 = arith.addf %399, %400 : vector<8x128xf32>
    %402 = vector.broadcast %9 : vector<1x128xf32> to vector<8x128xf32>
    %403 = arith.addf %401, %402 : vector<8x128xf32>
    %404 = vector.extract_strided_slice %403 {offsets = [0, 0], sizes = [8, 32], strides = [1, 1]} : vector<8x128xf32> to vector<8x32xf32>
    %405 = arith.negf %404 : vector<8x32xf32>
    %406 = math.exp %405 : vector<8x32xf32>
    %cst_130 = arith.constant 1.000000e+00 : f32
    %407 = vector.broadcast %cst_130 : f32 to vector<8x32xf32>
    %408 = arith.addf %407, %406 : vector<8x32xf32>
    %409 = arith.divf %407, %408 : vector<8x32xf32>
    %410 = vector.extract_strided_slice %403 {offsets = [0, 32], sizes = [8, 32], strides = [1, 1]} : vector<8x128xf32> to vector<8x32xf32>
    %411 = arith.negf %410 : vector<8x32xf32>
    %412 = math.exp %411 : vector<8x32xf32>
    %cst_131 = arith.constant 1.000000e+00 : f32
    %413 = vector.broadcast %cst_131 : f32 to vector<8x32xf32>
    %414 = arith.addf %413, %412 : vector<8x32xf32>
    %415 = arith.divf %413, %414 : vector<8x32xf32>
    %416 = vector.extract_strided_slice %403 {offsets = [0, 64], sizes = [8, 32], strides = [1, 1]} : vector<8x128xf32> to vector<8x32xf32>
    %417 = math.tanh %416 : vector<8x32xf32>
    %418 = vector.extract_strided_slice %403 {offsets = [0, 96], sizes = [8, 32], strides = [1, 1]} : vector<8x128xf32> to vector<8x32xf32>
    %419 = arith.negf %418 : vector<8x32xf32>
    %420 = math.exp %419 : vector<8x32xf32>
    %cst_132 = arith.constant 1.000000e+00 : f32
    %421 = vector.broadcast %cst_132 : f32 to vector<8x32xf32>
    %422 = arith.addf %421, %420 : vector<8x32xf32>
    %423 = arith.divf %421, %422 : vector<8x32xf32>
    %424 = arith.mulf %415, %336 : vector<8x32xf32>
    %425 = arith.mulf %409, %417 : vector<8x32xf32>
    %426 = arith.addf %424, %425 : vector<8x32xf32>
    %427 = math.tanh %426 : vector<8x32xf32>
    %428 = arith.mulf %423, %427 : vector<8x32xf32>
    %429 = arith.truncf %428 : vector<8x32xf32> to vector<8x32xbf16>
    %430 = vector.shape_cast %428 : vector<8x32xf32> to vector<8x1x32xf32>
    %431 = vector.broadcast %430 : vector<8x1x32xf32> to vector<8x6x32xf32>
    %432 = arith.mulf %431, %20 : vector<8x6x32xf32>
    %cst_133 = arith.constant dense<0.000000e+00> : vector<8x6xf32>
    %433 = vector.multi_reduction <add>, %432, %cst_133 [2] : vector<8x6x32xf32> to vector<8x6xf32>
    %434 = arith.addf %433, %2 : vector<8x6xf32>
    %cst_134 = arith.constant dense<0xFF800000> : vector<8xf32>
    %435 = vector.multi_reduction <maximumf>, %434, %cst_134 [1] : vector<8x6xf32> to vector<8xf32>
    %436 = vector.shape_cast %435 : vector<8xf32> to vector<8x1xf32>
    %437 = vector.broadcast %436 : vector<8x1xf32> to vector<8x6xf32>
    %438 = arith.subf %434, %437 : vector<8x6xf32>
    %439 = math.exp %438 : vector<8x6xf32>
    %cst_135 = arith.constant dense<0.000000e+00> : vector<8xf32>
    %440 = vector.multi_reduction <add>, %439, %cst_135 [1] : vector<8x6xf32> to vector<8xf32>
    %441 = vector.shape_cast %440 : vector<8xf32> to vector<8x1xf32>
    %442 = vector.broadcast %441 : vector<8x1xf32> to vector<8x6xf32>
    %443 = arith.divf %439, %442 : vector<8x6xf32>
    %444 = vector.shape_cast %443 : vector<8x6xf32> to vector<8x6x1xf32>
    %445 = vector.broadcast %444 : vector<8x6x1xf32> to vector<8x6x32xf32>
    %446 = arith.mulf %445, %21 : vector<8x6x32xf32>
    %cst_136 = arith.constant dense<0.000000e+00> : vector<8x32xf32>
    %447 = vector.multi_reduction <add>, %446, %cst_136 [1] : vector<8x6x32xf32> to vector<8x32xf32>
    %448 = arith.truncf %447 : vector<8x32xf32> to vector<8x32xbf16>
    %cst_137 = arith.constant dense<0.000000e+00> : vector<8x128xf32>
    %449 = tpu.matmul %429, %10, %cst_137 {dimension_numbers = #tpu.dot_dimension_numbers<[1], [0], [0], [1], [0, 0, 1, 1], [], []>} : vector<8x32xbf16>, vector<32x128xbf16>, vector<8x128xf32> -> vector<8x128xf32>
    %cst_138 = arith.constant dense<0.000000e+00> : vector<8x128xf32>
    %450 = tpu.matmul %358, %11, %cst_138 {dimension_numbers = #tpu.dot_dimension_numbers<[1], [0], [0], [1], [0, 0, 1, 1], [], []>} : vector<8x32xbf16>, vector<32x128xbf16>, vector<8x128xf32> -> vector<8x128xf32>
    %451 = arith.addf %449, %450 : vector<8x128xf32>
    %452 = vector.broadcast %12 : vector<1x128xf32> to vector<8x128xf32>
    %453 = arith.addf %451, %452 : vector<8x128xf32>
    %cst_139 = arith.constant dense<0xFF800000> : vector<8xf32>
    %454 = vector.multi_reduction <maximumf>, %453, %cst_139 [1] : vector<8x128xf32> to vector<8xf32>
    %455 = vector.shape_cast %454 : vector<8xf32> to vector<8x1xf32>
    %456 = vector.broadcast %455 : vector<8x1xf32> to vector<8x128xf32>
    %457 = arith.subf %453, %456 : vector<8x128xf32>
    %458 = math.exp %457 : vector<8x128xf32>
    %cst_140 = arith.constant dense<0.000000e+00> : vector<8xf32>
    %459 = vector.multi_reduction <add>, %458, %cst_140 [1] : vector<8x128xf32> to vector<8xf32>
    %460 = vector.shape_cast %459 : vector<8xf32> to vector<8x1xf32>
    %461 = math.log %460 : vector<8x1xf32>
    %462 = arith.addf %455, %461 : vector<8x1xf32>
    %463 = vector.broadcast %462 : vector<8x1xf32> to vector<8x128xf32>
    %464 = arith.subf %453, %463 : vector<8x128xf32>
    %c4 = arith.constant 4 : index
    %c0_141 = arith.constant 0 : index
    %c0_142 = arith.constant 0 : index
    %465 = vector.load %arg19[%c4, %c0_141, %c0_142] : memref<6x8x128xf32, #tpu.memory_space<vmem>>, vector<1x8x128xf32>
    %466 = vector.shape_cast %465 : vector<1x8x128xf32> to vector<8x128xf32>
    %467 = vector.shape_cast %464 : vector<8x128xf32> to vector<1x8x128xf32>
    tpu.vector_store %arg19[%c4, %c0_141, %c0_142], %467 {strides = array<i32>} : memref<6x8x128xf32, #tpu.memory_space<vmem>>, vector<1x8x128xf32>,
    %cst_143 = arith.constant dense<0xFF800000> : vector<8xf32>
    %468 = vector.multi_reduction <maximumf>, %464, %cst_143 [1] : vector<8x128xf32> to vector<8xf32>
    %469 = vector.shape_cast %468 : vector<8xf32> to vector<8x1xf32>
    %470 = vector.broadcast %469 : vector<8x1xf32> to vector<8x128xf32>
    %471 = arith.cmpf oge, %464, %470 : vector<8x128xf32>
    %c128_i32_144 = arith.constant 128 : i32
    %472 = vector.broadcast %c128_i32_144 : i32 to vector<8x128xi32>
    %473 = arith.select %471, %26, %472 : vector<8x128xi1>, vector<8x128xi32>
    %cst_145 = arith.constant dense<2147483647> : vector<8xi32>
    %474 = vector.multi_reduction <minsi>, %473, %cst_145 [1] : vector<8x128xi32> to vector<8xi32>
    %475 = vector.shape_cast %474 : vector<8xi32> to vector<8x1xi32>
    %476 = vector.broadcast %475 : vector<8x1xi32> to vector<8x128xi32>
    %477 = arith.cmpi eq, %26, %476 : vector<8x128xi32>
    %478 = arith.extui %477 : vector<8x128xi1> to vector<8x128xi32>
    %479 = arith.sitofp %478 : vector<8x128xi32> to vector<8x128xf32>
    %480 = arith.truncf %479 : vector<8x128xf32> to vector<8x128xbf16>
    %cst_146 = arith.constant dense<0.000000e+00> : vector<8x16xf32>
    %481 = tpu.matmul %480, %0, %cst_146 {dimension_numbers = #tpu.dot_dimension_numbers<[1], [0], [0], [1], [0, 0, 1, 1], [], []>} : vector<8x128xbf16>, vector<128x16xbf16>, vector<8x16xf32> -> vector<8x16xf32>
    %482 = arith.truncf %481 : vector<8x16xf32> to vector<8x16xbf16>
    %483 = vector.extract_strided_slice %1 {offsets = [0, 5, 0], sizes = [8, 1, 32], strides = [1, 1, 1]} : vector<8x6x32xbf16> to vector<8x1x32xbf16>
    %484 = vector.shape_cast %483 : vector<8x1x32xbf16> to vector<8x32xbf16>
    %cst_147 = arith.constant dense<0.000000e+00> : vector<8x128xf32>
    %485 = tpu.matmul %482, %5, %cst_147 {dimension_numbers = #tpu.dot_dimension_numbers<[1], [0], [0], [1], [0, 0, 1, 1], [], []>} : vector<8x16xbf16>, vector<16x128xbf16>, vector<8x128xf32> -> vector<8x128xf32>
    %cst_148 = arith.constant dense<0.000000e+00> : vector<8x128xf32>
    %486 = tpu.matmul %448, %6, %cst_148 {dimension_numbers = #tpu.dot_dimension_numbers<[1], [0], [0], [1], [0, 0, 1, 1], [], []>} : vector<8x32xbf16>, vector<32x128xbf16>, vector<8x128xf32> -> vector<8x128xf32>
    %487 = arith.addf %485, %486 : vector<8x128xf32>
    %cst_149 = arith.constant dense<0.000000e+00> : vector<8x128xf32>
    %488 = tpu.matmul %484, %7, %cst_149 {dimension_numbers = #tpu.dot_dimension_numbers<[1], [0], [0], [1], [0, 0, 1, 1], [], []>} : vector<8x32xbf16>, vector<32x128xbf16>, vector<8x128xf32> -> vector<8x128xf32>
    %489 = arith.addf %487, %488 : vector<8x128xf32>
    %cst_150 = arith.constant dense<0.000000e+00> : vector<8x128xf32>
    %490 = tpu.matmul %429, %8, %cst_150 {dimension_numbers = #tpu.dot_dimension_numbers<[1], [0], [0], [1], [0, 0, 1, 1], [], []>} : vector<8x32xbf16>, vector<32x128xbf16>, vector<8x128xf32> -> vector<8x128xf32>
    %491 = arith.addf %489, %490 : vector<8x128xf32>
    %492 = vector.broadcast %9 : vector<1x128xf32> to vector<8x128xf32>
    %493 = arith.addf %491, %492 : vector<8x128xf32>
    %494 = vector.extract_strided_slice %493 {offsets = [0, 0], sizes = [8, 32], strides = [1, 1]} : vector<8x128xf32> to vector<8x32xf32>
    %495 = arith.negf %494 : vector<8x32xf32>
    %496 = math.exp %495 : vector<8x32xf32>
    %cst_151 = arith.constant 1.000000e+00 : f32
    %497 = vector.broadcast %cst_151 : f32 to vector<8x32xf32>
    %498 = arith.addf %497, %496 : vector<8x32xf32>
    %499 = arith.divf %497, %498 : vector<8x32xf32>
    %500 = vector.extract_strided_slice %493 {offsets = [0, 32], sizes = [8, 32], strides = [1, 1]} : vector<8x128xf32> to vector<8x32xf32>
    %501 = arith.negf %500 : vector<8x32xf32>
    %502 = math.exp %501 : vector<8x32xf32>
    %cst_152 = arith.constant 1.000000e+00 : f32
    %503 = vector.broadcast %cst_152 : f32 to vector<8x32xf32>
    %504 = arith.addf %503, %502 : vector<8x32xf32>
    %505 = arith.divf %503, %504 : vector<8x32xf32>
    %506 = vector.extract_strided_slice %493 {offsets = [0, 64], sizes = [8, 32], strides = [1, 1]} : vector<8x128xf32> to vector<8x32xf32>
    %507 = math.tanh %506 : vector<8x32xf32>
    %508 = vector.extract_strided_slice %493 {offsets = [0, 96], sizes = [8, 32], strides = [1, 1]} : vector<8x128xf32> to vector<8x32xf32>
    %509 = arith.negf %508 : vector<8x32xf32>
    %510 = math.exp %509 : vector<8x32xf32>
    %cst_153 = arith.constant 1.000000e+00 : f32
    %511 = vector.broadcast %cst_153 : f32 to vector<8x32xf32>
    %512 = arith.addf %511, %510 : vector<8x32xf32>
    %513 = arith.divf %511, %512 : vector<8x32xf32>
    %514 = arith.mulf %505, %426 : vector<8x32xf32>
    %515 = arith.mulf %499, %507 : vector<8x32xf32>
    %516 = arith.addf %514, %515 : vector<8x32xf32>
    %517 = math.tanh %516 : vector<8x32xf32>
    %518 = arith.mulf %513, %517 : vector<8x32xf32>
    %519 = arith.truncf %518 : vector<8x32xf32> to vector<8x32xbf16>
    %cst_154 = arith.constant dense<0.000000e+00> : vector<8x128xf32>
    %520 = tpu.matmul %519, %10, %cst_154 {dimension_numbers = #tpu.dot_dimension_numbers<[1], [0], [0], [1], [0, 0, 1, 1], [], []>} : vector<8x32xbf16>, vector<32x128xbf16>, vector<8x128xf32> -> vector<8x128xf32>
    %cst_155 = arith.constant dense<0.000000e+00> : vector<8x128xf32>
    %521 = tpu.matmul %448, %11, %cst_155 {dimension_numbers = #tpu.dot_dimension_numbers<[1], [0], [0], [1], [0, 0, 1, 1], [], []>} : vector<8x32xbf16>, vector<32x128xbf16>, vector<8x128xf32> -> vector<8x128xf32>
    %522 = arith.addf %520, %521 : vector<8x128xf32>
    %523 = vector.broadcast %12 : vector<1x128xf32> to vector<8x128xf32>
    %524 = arith.addf %522, %523 : vector<8x128xf32>
    %cst_156 = arith.constant dense<0xFF800000> : vector<8xf32>
    %525 = vector.multi_reduction <maximumf>, %524, %cst_156 [1] : vector<8x128xf32> to vector<8xf32>
    %526 = vector.shape_cast %525 : vector<8xf32> to vector<8x1xf32>
    %527 = vector.broadcast %526 : vector<8x1xf32> to vector<8x128xf32>
    %528 = arith.subf %524, %527 : vector<8x128xf32>
    %529 = math.exp %528 : vector<8x128xf32>
    %cst_157 = arith.constant dense<0.000000e+00> : vector<8xf32>
    %530 = vector.multi_reduction <add>, %529, %cst_157 [1] : vector<8x128xf32> to vector<8xf32>
    %531 = vector.shape_cast %530 : vector<8xf32> to vector<8x1xf32>
    %532 = math.log %531 : vector<8x1xf32>
    %533 = arith.addf %526, %532 : vector<8x1xf32>
    %534 = vector.broadcast %533 : vector<8x1xf32> to vector<8x128xf32>
    %535 = arith.subf %524, %534 : vector<8x128xf32>
    %c5 = arith.constant 5 : index
    %c0_158 = arith.constant 0 : index
    %c0_159 = arith.constant 0 : index
    %536 = vector.load %arg19[%c5, %c0_158, %c0_159] : memref<6x8x128xf32, #tpu.memory_space<vmem>>, vector<1x8x128xf32>
    %537 = vector.shape_cast %536 : vector<1x8x128xf32> to vector<8x128xf32>
    %538 = vector.shape_cast %535 : vector<8x128xf32> to vector<1x8x128xf32>
    tpu.vector_store %arg19[%c5, %c0_158, %c0_159], %538 {strides = array<i32>} : memref<6x8x128xf32, #tpu.memory_space<vmem>>, vector<1x8x128xf32>,
    return
  }
  func.func @transform_0(%arg0: i32) -> (i32, i32) {
    %c0_i32 = arith.constant 0 : i32
    %c0_i32_0 = arith.constant 0 : i32
    return %arg0, %c0_i32 : i32, i32
  }
  func.func @transform_1(%arg0: i32) -> (i32, i32) {
    %c0_i32 = arith.constant 0 : i32
    %c0_i32_0 = arith.constant 0 : i32
    return %arg0, %c0_i32 : i32, i32
  }
  func.func @transform_2(%arg0: i32) -> (i32, i32, i32) {
    %c0_i32 = arith.constant 0 : i32
    %c0_i32_0 = arith.constant 0 : i32
    %c0_i32_1 = arith.constant 0 : i32
    return %arg0, %c0_i32, %c0_i32_0 : i32, i32, i32
  }
  func.func @transform_3(%arg0: i32) -> (i32, i32) {
    %c0_i32 = arith.constant 0 : i32
    %c0_i32_0 = arith.constant 0 : i32
    return %arg0, %c0_i32 : i32, i32
  }
  func.func @transform_4(%arg0: i32) -> (i32, i32) {
    %c0_i32 = arith.constant 0 : i32
    %c0_i32_0 = arith.constant 0 : i32
    %c0_i32_1 = arith.constant 0 : i32
    return %c0_i32, %c0_i32_0 : i32, i32
  }
  func.func @transform_5(%arg0: i32) -> (i32, i32) {
    %c0_i32 = arith.constant 0 : i32
    %c0_i32_0 = arith.constant 0 : i32
    %c0_i32_1 = arith.constant 0 : i32
    return %c0_i32, %c0_i32_0 : i32, i32
  }
  func.func @transform_6(%arg0: i32) -> (i32, i32) {
    %c0_i32 = arith.constant 0 : i32
    %c0_i32_0 = arith.constant 0 : i32
    %c0_i32_1 = arith.constant 0 : i32
    return %c0_i32, %c0_i32_0 : i32, i32
  }
  func.func @transform_7(%arg0: i32) -> (i32, i32) {
    %c0_i32 = arith.constant 0 : i32
    %c0_i32_0 = arith.constant 0 : i32
    %c0_i32_1 = arith.constant 0 : i32
    return %c0_i32, %c0_i32_0 : i32, i32
  }
  func.func @transform_8(%arg0: i32) -> (i32, i32) {
    %c0_i32 = arith.constant 0 : i32
    %c0_i32_0 = arith.constant 0 : i32
    %c0_i32_1 = arith.constant 0 : i32
    return %c0_i32, %c0_i32_0 : i32, i32
  }
  func.func @transform_9(%arg0: i32) -> (i32, i32) {
    %c0_i32 = arith.constant 0 : i32
    %c0_i32_0 = arith.constant 0 : i32
    %c0_i32_1 = arith.constant 0 : i32
    return %c0_i32, %c0_i32_0 : i32, i32
  }
  func.func @transform_10(%arg0: i32) -> (i32, i32) {
    %c0_i32 = arith.constant 0 : i32
    %c0_i32_0 = arith.constant 0 : i32
    %c0_i32_1 = arith.constant 0 : i32
    return %c0_i32, %c0_i32_0 : i32, i32
  }
  func.func @transform_11(%arg0: i32) -> (i32, i32) {
    %c0_i32 = arith.constant 0 : i32
    %c0_i32_0 = arith.constant 0 : i32
    %c0_i32_1 = arith.constant 0 : i32
    return %c0_i32, %c0_i32_0 : i32, i32
  }
  func.func @transform_12(%arg0: i32) -> (i32, i32) {
    %c0_i32 = arith.constant 0 : i32
    %c0_i32_0 = arith.constant 0 : i32
    %c0_i32_1 = arith.constant 0 : i32
    return %c0_i32, %c0_i32_0 : i32, i32
  }
  func.func @transform_13(%arg0: i32) -> (i32, i32) {
    %c0_i32 = arith.constant 0 : i32
    %c0_i32_0 = arith.constant 0 : i32
    %c0_i32_1 = arith.constant 0 : i32
    return %c0_i32, %c0_i32_0 : i32, i32
  }
  func.func @transform_14(%arg0: i32) -> (i32, i32) {
    %c0_i32 = arith.constant 0 : i32
    %c0_i32_0 = arith.constant 0 : i32
    %c0_i32_1 = arith.constant 0 : i32
    return %c0_i32, %c0_i32_0 : i32, i32
  }
  func.func @transform_15(%arg0: i32) -> (i32, i32) {
    %c0_i32 = arith.constant 0 : i32
    %c0_i32_0 = arith.constant 0 : i32
    %c0_i32_1 = arith.constant 0 : i32
    return %c0_i32, %c0_i32_0 : i32, i32
  }
  func.func @transform_16(%arg0: i32) -> (i32, i32) {
    %c0_i32 = arith.constant 0 : i32
    %c0_i32_0 = arith.constant 0 : i32
    %c0_i32_1 = arith.constant 0 : i32
    return %c0_i32, %c0_i32_0 : i32, i32
  }
  func.func @transform_17(%arg0: i32) -> (i32, i32) {
    %c0_i32 = arith.constant 0 : i32
    %c0_i32_0 = arith.constant 0 : i32
    %c0_i32_1 = arith.constant 0 : i32
    return %c0_i32, %c0_i32_0 : i32, i32
  }
  func.func @transform_18(%arg0: i32) -> (i32, i32, i32) {
    %c0_i32 = arith.constant 0 : i32
    %c0_i32_0 = arith.constant 0 : i32
    %c0_i32_1 = arith.constant 0 : i32
    return %c0_i32, %arg0, %c0_i32_0 : i32, i32, i32
  }
  func.func @transform_19(%arg0: i32) -> (i32, i32) {
    %c0_i32 = arith.constant 0 : i32
    %c0_i32_0 = arith.constant 0 : i32
    return %arg0, %c0_i32 : i32, i32
  }
}

</mosaic_0001>

<llo_original>
// kernel: tpu_custom_call.1
$region0: #{tpu_custom_call.1}
  #allocation0 [shape = 'u32[]', space=smem, size = 0x4, offset = 0x4, fixed_abs, tag = 'smem constant byte address 0x4 - core index']
  #allocation1 [shape = 'u32[144,128]{1,0:T(1,128)}', space=vmem, size = 0x12000, scoped, tag = 'internal scratch']
  %s0 = inlined_call_operand.hbm [shape: bf16[8,16], index: 0, kind: input, shape index: {}]
  %s1 = inlined_call_operand.hbm [shape: bf16[8,32], index: 1, kind: input, shape index: {}]
  %s2 = inlined_call_operand.vmem [shape: bf16[8,6,32], index: 2, kind: input, shape index: {}]
  %s3 = inlined_call_operand.hbm [shape: f32[8,6], index: 3, kind: input, shape index: {}]
  %s4 = inlined_call_operand.vmem [shape: bf16[128,16], index: 4, kind: input, shape index: {}]
  %s5 = inlined_call_operand.vmem [shape: bf16[16,128], index: 5, kind: input, shape index: {}]
  %s6 = inlined_call_operand.vmem [shape: bf16[32,128], index: 6, kind: input, shape index: {}]
  %s7 = inlined_call_operand.vmem [shape: bf16[32,128], index: 7, kind: input, shape index: {}]
  %s8 = inlined_call_operand.vmem [shape: bf16[32,128], index: 8, kind: input, shape index: {}]
  %s9 = inlined_call_operand.vmem [shape: f32[1,128], index: 9, kind: input, shape index: {}]
  %s10 = inlined_call_operand.vmem [shape: bf16[32,32], index: 10, kind: input, shape index: {}]
  %s11 = inlined_call_operand.vmem [shape: f32[1,32], index: 11, kind: input, shape index: {}]
  %s12 = inlined_call_operand.vmem [shape: bf16[32,128], index: 12, kind: input, shape index: {}]
  %s13 = inlined_call_operand.vmem [shape: bf16[32,128], index: 13, kind: input, shape index: {}]
  %s14 = inlined_call_operand.vmem [shape: f32[1,128], index: 14, kind: input, shape index: {}]
  %s15 = inlined_call_operand.vmem [shape: bf16[32,128], index: 15, kind: input, shape index: {}]
  %s16 = inlined_call_operand.vmem [shape: bf16[32,128], index: 16, kind: input, shape index: {}]
  %s17 = inlined_call_operand.vmem [shape: f32[1,128], index: 17, kind: input, shape index: {}]
  %s18 = inlined_call_operand.hbm [shape: f32[6,8,128], index: 18, kind: output, shape index: {0}]
  %s19 = inlined_call_operand.hbm [shape: f32[8,128], index: 19, kind: output, shape index: {1}]
  %20 = xla_tuple %s18, %s19
  %s21 = sld [smem:[#allocation0]]
  $region102: #{tpu_custom_call.1} parent=0
    _
  %s23 = ssub.s32 1, %s21
  %s24 = scalar_select 0, %s23, %s21
  $region1: #{tpu_custom_call.1} parent=0
    #allocation2 [shape = 'u8[2048]{0}', space=vmem, size = 0x800, scoped, tag = 'input window, operand 0, single buffered']
    #allocation3 [shape = 's32[1]{0}', space=sflag, size = 0x4, scoped, tag = 'scoped memory for tpu_custom_call.1']
    #allocation4 [shape = 's32[1]{0}', space=sflag, size = 0x4, scoped, tag = 'scoped memory for tpu_custom_call.1']
    #allocation5 [shape = 'u8[2048]{0}', space=vmem, size = 0x800, scoped, tag = 'input window, operand 1, single buffered']
    #allocation6 [shape = 's32[1]{0}', space=sflag, size = 0x4, scoped, tag = 'scoped memory for tpu_custom_call.1']
    #allocation7 [shape = 'u8[4096]{0}', space=vmem, size = 0x1000, scoped, tag = 'input window, operand 3, single buffered']
    #allocation8 [shape = 'u8[24576]{0}', space=vmem, size = 0x6000, scoped, tag = 'output window, operand 0, single buffered']
    #allocation9 [shape = 'u8[4096]{0}', space=vmem, size = 0x1000, scoped, tag = 'output window, operand 1, single buffered']
    #allocation10 [shape = 's32[1]{0}', space=sflag, size = 0x4, scoped, tag = 'scoped memory for tpu_custom_call.1']
    %25 = vsyncpa [#allocation3], 0
    %26 = vsyncpa [#allocation6], 0
    %27 = vsyncpa [#allocation4], 0
    %28 = vsyncpa [#allocation10], 0
    // Predicated region
    $region2: #{tpu_custom_call.1} parent=1 // pred_check
      _
    $region3: #{tpu_custom_call.1} parent=1 // pred_check_branch
      %30 = sbr.rel (0) target = $region5
    $region4: #{tpu_custom_call.1} parent=1 // pred_region
      %s32 = ssub.s32 64, 64
      %33 = vsyncadd [#allocation3], %s32
      %s35 = sshll.u32 [#allocation2], 4
      %s36 = int_to_ptr.vmem [resolvable:$true] %s35
      %38 = dma.hbm_to_vmem [thread:$0]  %s0, 64, %s36, [#allocation3]
    $region5: #{tpu_custom_call.1} parent=1 // pred_fallthru
      _
    // Predicated region
    $region6: #{tpu_custom_call.1} parent=1 // pred_check
      _
    $region7: #{tpu_custom_call.1} parent=1 // pred_check_branch
      %40 = sbr.rel (0) target = $region9
    $region8: #{tpu_custom_call.1} parent=1 // pred_region
      %s42 = ssub.s32 64, 64
      %43 = vsyncadd [#allocation6], %s42
      %s45 = sshll.u32 [#allocation5], 4
      %s46 = int_to_ptr.vmem [resolvable:$true] %s45
      %48 = dma.hbm_to_vmem [thread:$0]  %s1, 64, %s46, [#allocation6]
    $region9: #{tpu_custom_call.1} parent=1 // pred_fallthru
      _
    // Predicated region
    $region10: #{tpu_custom_call.1} parent=1 // pred_check
      _
    $region11: #{tpu_custom_call.1} parent=1 // pred_check_branch
      %50 = sbr.rel (0) target = $region13
    $region12: #{tpu_custom_call.1} parent=1 // pred_region
      _
    $region13: #{tpu_custom_call.1} parent=1 // pred_fallthru
      _
    // Predicated region
    $region14: #{tpu_custom_call.1} parent=1 // pred_check
      _
    $region15: #{tpu_custom_call.1} parent=1 // pred_check_branch
      %52 = sbr.rel (0) target = $region17
    $region16: #{tpu_custom_call.1} parent=1 // pred_region
      %s54 = ssub.s32 128, 128
      %55 = vsyncadd [#allocation6], %s54
      %s57 = sshll.u32 [#allocation7], 4
      %s58 = int_to_ptr.vmem [resolvable:$true] %s57
      %60 = dma.hbm_to_vmem [thread:$0]  %s3, 128, %s58, [#allocation6]
    $region17: #{tpu_custom_call.1} parent=1 // pred_fallthru
      _
    // Predicated region
    $region18: #{tpu_custom_call.1} parent=1 // pred_check
      _
    $region19: #{tpu_custom_call.1} parent=1 // pred_check_branch
      %62 = sbr.rel (0) target = $region21
    $region20: #{tpu_custom_call.1} parent=1 // pred_region
      _
    $region21: #{tpu_custom_call.1} parent=1 // pred_fallthru
      _
    // Predicated region
    $region22: #{tpu_custom_call.1} parent=1 // pred_check
      _
    $region23: #{tpu_custom_call.1} parent=1 // pred_check_branch
      %64 = sbr.rel (0) target = $region25
    $region24: #{tpu_custom_call.1} parent=1 // pred_region
      _
    $region25: #{tpu_custom_call.1} parent=1 // pred_fallthru
      _
    // Predicated region
    $region26: #{tpu_custom_call.1} parent=1 // pred_check
      _
    $region27: #{tpu_custom_call.1} parent=1 // pred_check_branch
      %66 = sbr.rel (0) target = $region29
    $region28: #{tpu_custom_call.1} parent=1 // pred_region
      _
    $region29: #{tpu_custom_call.1} parent=1 // pred_fallthru
      _
    // Predicated region
    $region30: #{tpu_custom_call.1} parent=1 // pred_check
      _
    $region31: #{tpu_custom_call.1} parent=1 // pred_check_branch
      %68 = sbr.rel (0) target = $region33
    $region32: #{tpu_custom_call.1} parent=1 // pred_region
      _
    $region33: #{tpu_custom_call.1} parent=1 // pred_fallthru
      _
    // Predicated region
    $region34: #{tpu_custom_call.1} parent=1 // pred_check
      _
    $region35: #{tpu_custom_call.1} parent=1 // pred_check_branch
      %70 = sbr.rel (0) target = $region37
    $region36: #{tpu_custom_call.1} parent=1 // pred_region
      _
    $region37: #{tpu_custom_call.1} parent=1 // pred_fallthru
      _
    // Predicated region
    $region38: #{tpu_custom_call.1} parent=1 // pred_check
      _
    $region39: #{tpu_custom_call.1} parent=1 // pred_check_branch
      %72 = sbr.rel (0) target = $region41
    $region40: #{tpu_custom_call.1} parent=1 // pred_region
      _
    $region41: #{tpu_custom_call.1} parent=1 // pred_fallthru
      _
    // Predicated region
    $region42: #{tpu_custom_call.1} parent=1 // pred_check
      _
    $region43: #{tpu_custom_call.1} parent=1 // pred_check_branch
      %74 = sbr.rel (0) target = $region45
    $region44: #{tpu_custom_call.1} parent=1 // pred_region
      _
    $region45: #{tpu_custom_call.1} parent=1 // pred_fallthru
      _
    // Predicated region
    $region46: #{tpu_custom_call.1} parent=1 // pred_check
      _
    $region47: #{tpu_custom_call.1} parent=1 // pred_check_branch
      %76 = sbr.rel (0) target = $region49
    $region48: #{tpu_custom_call.1} parent=1 // pred_region
      _
    $region49: #{tpu_custom_call.1} parent=1 // pred_fallthru
      _
    // Predicated region
    $region50: #{tpu_custom_call.1} parent=1 // pred_check
      _
    $region51: #{tpu_custom_call.1} parent=1 // pred_check_branch
      %78 = sbr.rel (0) target = $region53
    $region52: #{tpu_custom_call.1} parent=1 // pred_region
      _
    $region53: #{tpu_custom_call.1} parent=1 // pred_fallthru
      _
    // Predicated region
    $region54: #{tpu_custom_call.1} parent=1 // pred_check
      _
    $region55: #{tpu_custom_call.1} parent=1 // pred_check_branch
      %80 = sbr.rel (0) target = $region57
    $region56: #{tpu_custom_call.1} parent=1 // pred_region
      _
    $region57: #{tpu_custom_call.1} parent=1 // pred_fallthru
      _
    // Predicated region
    $region58: #{tpu_custom_call.1} parent=1 // pred_check
      _
    $region59: #{tpu_custom_call.1} parent=1 // pred_check_branch
      %82 = sbr.rel (0) target = $region61
    $region60: #{tpu_custom_call.1} parent=1 // pred_region
      _
    $region61: #{tpu_custom_call.1} parent=1 // pred_fallthru
      _
    // Predicated region
    $region62: #{tpu_custom_call.1} parent=1 // pred_check
      _
    $region63: #{tpu_custom_call.1} parent=1 // pred_check_branch
      %84 = sbr.rel (0) target = $region65
    $region64: #{tpu_custom_call.1} parent=1 // pred_region
      _
    $region65: #{tpu_custom_call.1} parent=1 // pred_fallthru
      _
    // Predicated region
    $region66: #{tpu_custom_call.1} parent=1 // pred_check
      _
    $region67: #{tpu_custom_call.1} parent=1 // pred_check_branch
      %86 = sbr.rel (0) target = $region69
    $region68: #{tpu_custom_call.1} parent=1 // pred_region
      _
    $region69: #{tpu_custom_call.1} parent=1 // pred_fallthru
      _
    // Predicated region
    $region70: #{tpu_custom_call.1} parent=1 // pred_check
      _
    $region71: #{tpu_custom_call.1} parent=1 // pred_check_branch
      %88 = sbr.rel (0) target = $region73
    $region72: #{tpu_custom_call.1} parent=1 // pred_region
      _
    $region73: #{tpu_custom_call.1} parent=1 // pred_fallthru
      _
    // Predicated region
    $region74: #{tpu_custom_call.1} parent=1 // pred_check
      _
    $region75: #{tpu_custom_call.1} parent=1 // pred_check_branch
      %90 = sbr.rel (0) target = $region77
    $region76: #{tpu_custom_call.1} parent=1 // pred_region
      %91 = dma.done [#allocation3], 64
    $region77: #{tpu_custom_call.1} parent=1 // pred_fallthru
      _
    // Predicated region
    $region78: #{tpu_custom_call.1} parent=1 // pred_check
      _
    $region79: #{tpu_custom_call.1} parent=1 // pred_check_branch
      %93 = sbr.rel (0) target = $region81
    $region80: #{tpu_custom_call.1} parent=1 // pred_region
      %94 = dma.done [#allocation6], 64
    $region81: #{tpu_custom_call.1} parent=1 // pred_fallthru
      _
    // Predicated region
    $region82: #{tpu_custom_call.1} parent=1 // pred_check
      _
    $region83: #{tpu_custom_call.1} parent=1 // pred_check_branch
      %96 = sbr.rel (0) target = $region85
    $region84: #{tpu_custom_call.1} parent=1 // pred_region
      %97 = dma.done [#allocation6], 128
    $region85: #{tpu_custom_call.1} parent=1 // pred_fallthru
      _
    %v99 = vld [vmem:[%s4] sm:$0xf]
    %v100 = vld [vmem:[%s4 + $0x4] sm:$0xf]
    %v101 = vld [vmem:[%s4 + $0x8] sm:$0xf]
    %v102 = vld [vmem:[%s4 + $0xc] sm:$0xf]
    %v103 = vld [vmem:[%s4 + $0x10] sm:$0xf]
    %v104 = vld [vmem:[%s4 + $0x14] sm:$0xf]
    %v105 = vld [vmem:[%s4 + $0x18] sm:$0xf]
    %v106 = vld [vmem:[%s4 + $0x1c] sm:$0xf]
    %v107 = vld [vmem:[%s4 + $0x20] sm:$0xf]
    %v108 = vld [vmem:[%s4 + $0x24] sm:$0xf]
    %v109 = vld [vmem:[%s4 + $0x28] sm:$0xf]
    %v110 = vld [vmem:[%s4 + $0x2c] sm:$0xf]
    %v111 = vld [vmem:[%s4 + $0x30] sm:$0xf]
    %v112 = vld [vmem:[%s4 + $0x34] sm:$0xf]
    %v113 = vld [vmem:[%s4 + $0x38] sm:$0xf]
    %v114 = vld [vmem:[%s4 + $0x3c] sm:$0xf]
    %v115 = vld [vmem:[%s2] sm:$0x7]
    %v116 = vld [vmem:[%s2 + $0x4] sm:$0x7]
    %v117 = vld [vmem:[%s2 + $0x8] sm:$0x7]
    %v118 = vld [vmem:[%s2 + $0xc] sm:$0x7]
    %v119 = vld [vmem:[%s2 + $0x10] sm:$0x7]
    %v120 = vld [vmem:[%s2 + $0x14] sm:$0x7]
    %v121 = vld [vmem:[%s2 + $0x18] sm:$0x7]
    %v122 = vld [vmem:[%s2 + $0x1c] sm:$0x7]
    %v123 = vld [vmem:[#allocation7] sm:$0xff]
    %v124 = vld [vmem:[%s10] sm:$0xf]
    %v125 = vld [vmem:[%s10 + $0x4] sm:$0xf]
    %v126 = vld [vmem:[%s10 + $0x8] sm:$0xf]
    %v127 = vld [vmem:[%s10 + $0xc] sm:$0xf]
    %v128 = vld [vmem:[%s11] sm:$0x1]
    %v129 = vld [vmem:[%s5] sm:$0xf]
    %v130 = vld [vmem:[%s5 + $0x4] sm:$0xf]
    %v131 = vld [vmem:[%s6] sm:$0xf]
    %v132 = vld [vmem:[%s6 + $0x4] sm:$0xf]
    %v133 = vld [vmem:[%s6 + $0x8] sm:$0xf]
    %v134 = vld [vmem:[%s6 + $0xc] sm:$0xf]
    %v135 = vld [vmem:[%s7] sm:$0xf]
    %v136 = vld [vmem:[%s7 + $0x4] sm:$0xf]
    %v137 = vld [vmem:[%s7 + $0x8] sm:$0xf]
    %v138 = vld [vmem:[%s7 + $0xc] sm:$0xf]
    %v139 = vld [vmem:[%s8] sm:$0xf]
    %v140 = vld [vmem:[%s8 + $0x4] sm:$0xf]
    %v141 = vld [vmem:[%s8 + $0x8] sm:$0xf]
    %v142 = vld [vmem:[%s8 + $0xc] sm:$0xf]
    %v143 = vld [vmem:[%s9] sm:$0x1]
    %v144 = vld [vmem:[%s12] sm:$0xf]
    %v145 = vld [vmem:[%s12 + $0x4] sm:$0xf]
    %v146 = vld [vmem:[%s12 + $0x8] sm:$0xf]
    %v147 = vld [vmem:[%s12 + $0xc] sm:$0xf]
    %v148 = vld [vmem:[%s13] sm:$0xf]
    %v149 = vld [vmem:[%s13 + $0x4] sm:$0xf]
    %v150 = vld [vmem:[%s13 + $0x8] sm:$0xf]
    %v151 = vld [vmem:[%s13 + $0xc] sm:$0xf]
    %v152 = vld [vmem:[%s14] sm:$0x1]
    %v153 = vld [vmem:[%s15] sm:$0xf]
    %v154 = vld [vmem:[%s15 + $0x4] sm:$0xf]
    %v155 = vld [vmem:[%s15 + $0x8] sm:$0xf]
    %v156 = vld [vmem:[%s15 + $0xc] sm:$0xf]
    %v157 = vld [vmem:[%s16] sm:$0xf]
    %v158 = vld [vmem:[%s16 + $0x4] sm:$0xf]
    %v159 = vld [vmem:[%s16 + $0x8] sm:$0xf]
    %v160 = vld [vmem:[%s16 + $0xc] sm:$0xf]
    %v161 = vld [vmem:[%s17] sm:$0x1]
    %v171 = vunpack.c.l.s4 1966171168
    %v172 = vunpack.c.0.s8 %v171
    %v173 = vlaneseq
    %v174 = vshrl.u32 %v173, 7
    %v175 = vsub.s32 %v172, %v174
    %v176 = vrot.slane %v115, %v175
    %v177 = vcombine.high %v176, %v176
    %v179 = vunpack.c.l.s4 1966171168
    %v180 = vunpack.c.0.s8 %v179
    %v181 = vlaneseq
    %v182 = vshrl.u32 %v181, 7
    %v183 = vsub.s32 %v180, %v182
    %v184 = vrot.slane %v176, %v183
    %v186 = vunpack.c.l.s4 1966171168
    %v187 = vunpack.c.0.s8 %v186
    %v188 = vlaneseq
    %v189 = vshrl.u32 %v188, 7
    %v190 = vsub.s32 %v187, %v189
    %v191 = vrot.slane %v177, %v190
    %v192 = vcombine.high %v184, %v184
    %v194 = vunpack.c.l.s4 1966171168
    %v195 = vunpack.c.0.s8 %v194
    %v196 = vlaneseq
    %v197 = vshrl.u32 %v196, 7
    %v198 = vsub.s32 %v195, %v197
    %v199 = vrot.slane %v116, %v198
    %v200 = vcombine.high %v199, %v199
    %v202 = vunpack.c.l.s4 1966171168
    %v203 = vunpack.c.0.s8 %v202
    %v204 = vlaneseq
    %v205 = vshrl.u32 %v204, 7
    %v206 = vsub.s32 %v203, %v205
    %v207 = vrot.slane %v199, %v206
    %v209 = vunpack.c.l.s4 1966171168
    %v210 = vunpack.c.0.s8 %v209
    %v211 = vlaneseq
    %v212 = vshrl.u32 %v211, 7
    %v213 = vsub.s32 %v210, %v212
    %v214 = vrot.slane %v200, %v213
    %v215 = vcombine.high %v207, %v207
    %v217 = vunpack.c.l.s4 1966171168
    %v218 = vunpack.c.0.s8 %v217
    %v219 = vlaneseq
    %v220 = vshrl.u32 %v219, 7
    %v221 = vsub.s32 %v218, %v220
    %v222 = vrot.slane %v117, %v221
    %v223 = vcombine.high %v222, %v222
    %v225 = vunpack.c.l.s4 1966171168
    %v226 = vunpack.c.0.s8 %v225
    %v227 = vlaneseq
    %v228 = vshrl.u32 %v227, 7
    %v229 = vsub.s32 %v226, %v228
    %v230 = vrot.slane %v222, %v229
    %v232 = vunpack.c.l.s4 1966171168
    %v233 = vunpack.c.0.s8 %v232
    %v234 = vlaneseq
    %v235 = vshrl.u32 %v234, 7
    %v236 = vsub.s32 %v233, %v235
    %v237 = vrot.slane %v223, %v236
    %v238 = vcombine.high %v230, %v230
    %v240 = vunpack.c.l.s4 1966171168
    %v241 = vunpack.c.0.s8 %v240
    %v242 = vlaneseq
    %v243 = vshrl.u32 %v242, 7
    %v244 = vsub.s32 %v241, %v243
    %v245 = vrot.slane %v118, %v244
    %v246 = vcombine.high %v245, %v245
    %v248 = vunpack.c.l.s4 1966171168
    %v249 = vunpack.c.0.s8 %v248
    %v250 = vlaneseq
    %v251 = vshrl.u32 %v250, 7
    %v252 = vsub.s32 %v249, %v251
    %v253 = vrot.slane %v245, %v252
    %v255 = vunpack.c.l.s4 1966171168
    %v256 = vunpack.c.0.s8 %v255
    %v257 = vlaneseq
    %v258 = vshrl.u32 %v257, 7
    %v259 = vsub.s32 %v256, %v258
    %v260 = vrot.slane %v246, %v259
    %v261 = vcombine.high %v253, %v253
    %v263 = vunpack.c.l.s4 1966171168
    %v264 = vunpack.c.0.s8 %v263
    %v265 = vlaneseq
    %v266 = vshrl.u32 %v265, 7
    %v267 = vsub.s32 %v264, %v266
    %v268 = vrot.slane %v119, %v267
    %v269 = vcombine.high %v268, %v268
    %v271 = vunpack.c.l.s4 1966171168
    %v272 = vunpack.c.0.s8 %v271
    %v273 = vlaneseq
    %v274 = vshrl.u32 %v273, 7
    %v275 = vsub.s32 %v272, %v274
    %v276 = vrot.slane %v268, %v275
    %v278 = vunpack.c.l.s4 1966171168
    %v279 = vunpack.c.0.s8 %v278
    %v280 = vlaneseq
    %v281 = vshrl.u32 %v280, 7
    %v282 = vsub.s32 %v279, %v281
    %v283 = vrot.slane %v269, %v282
    %v284 = vcombine.high %v276, %v276
    %v286 = vunpack.c.l.s4 1966171168
    %v287 = vunpack.c.0.s8 %v286
    %v288 = vlaneseq
    %v289 = vshrl.u32 %v288, 7
    %v290 = vsub.s32 %v287, %v289
    %v291 = vrot.slane %v120, %v290
    %v292 = vcombine.high %v291, %v291
    %v294 = vunpack.c.l.s4 1966171168
    %v295 = vunpack.c.0.s8 %v294
    %v296 = vlaneseq
    %v297 = vshrl.u32 %v296, 7
    %v298 = vsub.s32 %v295, %v297
    %v299 = vrot.slane %v291, %v298
    %v301 = vunpack.c.l.s4 1966171168
    %v302 = vunpack.c.0.s8 %v301
    %v303 = vlaneseq
    %v304 = vshrl.u32 %v303, 7
    %v305 = vsub.s32 %v302, %v304
    %v306 = vrot.slane %v292, %v305
    %v307 = vcombine.high %v299, %v299
    %v309 = vunpack.c.l.s4 1966171168
    %v310 = vunpack.c.0.s8 %v309
    %v311 = vlaneseq
    %v312 = vshrl.u32 %v311, 7
    %v313 = vsub.s32 %v310, %v312
    %v314 = vrot.slane %v121, %v313
    %v315 = vcombine.high %v314, %v314
    %v317 = vunpack.c.l.s4 1966171168
    %v318 = vunpack.c.0.s8 %v317
    %v319 = vlaneseq
    %v320 = vshrl.u32 %v319, 7
    %v321 = vsub.s32 %v318, %v320
    %v322 = vrot.slane %v314, %v321
    %v324 = vunpack.c.l.s4 1966171168
    %v325 = vunpack.c.0.s8 %v324
    %v326 = vlaneseq
    %v327 = vshrl.u32 %v326, 7
    %v328 = vsub.s32 %v325, %v327
    %v329 = vrot.slane %v315, %v328
    %v330 = vcombine.high %v322, %v322
    %v332 = vunpack.c.l.s4 1966171168
    %v333 = vunpack.c.0.s8 %v332
    %v334 = vlaneseq
    %v335 = vshrl.u32 %v334, 7
    %v336 = vsub.s32 %v333, %v335
    %v337 = vrot.slane %v122, %v336
    %v338 = vcombine.high %v337, %v337
    %v340 = vunpack.c.l.s4 1966171168
    %v341 = vunpack.c.0.s8 %v340
    %v342 = vlaneseq
    %v343 = vshrl.u32 %v342, 7
    %v344 = vsub.s32 %v341, %v343
    %v345 = vrot.slane %v337, %v344
    %v347 = vunpack.c.l.s4 1966171168
    %v348 = vunpack.c.0.s8 %v347
    %v349 = vlaneseq
    %v350 = vshrl.u32 %v349, 7
    %v351 = vsub.s32 %v348, %v350
    %v352 = vrot.slane %v338, %v351
    %v353 = vcombine.high %v345, %v345
    %v355 = vlaneseq
    %v356 = vshrl.u32 %v355, 7
    %v357 = vsub.s32 0, %v356
    %v358 = vrot.slane %v128, %v357
    %v360 = vcombine.low %v184, %v191
    %v361 = vcombine.low %v192, %v207
    %v362 = vcombine.low %v214, %v215
    %v363 = vcombine.low %v230, %v237
    %v365 = vunpack.c.l.s4 1966171168
    %v366 = vunpack.c.0.s8 %v365
    %v367 = vlaneseq
    %v368 = vshrl.u32 %v367, 7
    %v369 = vsub.s32 %v366, %v368
    %v370 = vrot.slane %v360, %v369
    %v372 = vunpack.c.l.s4 1966171168
    %v373 = vunpack.c.0.s8 %v372
    %v374 = vlaneseq
    %v375 = vshrl.u32 %v374, 7
    %v376 = vsub.s32 %v373, %v375
    %v377 = vrot.slane %v361, %v376
    %v379 = vunpack.c.l.s4 1966171168
    %v380 = vunpack.c.0.s8 %v379
    %v381 = vlaneseq
    %v382 = vshrl.u32 %v381, 7
    %v383 = vsub.s32 %v380, %v382
    %v384 = vrot.slane %v362, %v383
    %v386 = vunpack.c.l.s4 1966171168
    %v387 = vunpack.c.0.s8 %v386
    %v388 = vlaneseq
    %v389 = vshrl.u32 %v388, 7
    %v390 = vsub.s32 %v387, %v389
    %v391 = vrot.slane %v363, %v390
    %v392 = vcombine.low %v370, %v377
    %v393 = vcombine.low %v384, %v391
    %v395 = vunpack.c.l.s4 1966171168
    %v396 = vunpack.c.0.s8 %v395
    %v397 = vlaneseq
    %v398 = vshrl.u32 %v397, 7
    %v399 = vsub.s32 %v396, %v398
    %v400 = vrot.slane %v392, %v399
    %v402 = vunpack.c.l.s4 1966171168
    %v403 = vunpack.c.0.s8 %v402
    %v404 = vlaneseq
    %v405 = vshrl.u32 %v404, 7
    %v406 = vsub.s32 %v403, %v405
    %v407 = vrot.slane %v393, %v406
    %v408 = vcombine.low %v400, %v407
    %v409 = vcombine.low %v238, %v253
    %v410 = vcombine.low %v260, %v261
    %v411 = vcombine.low %v276, %v283
    %v412 = vcombine.low %v284, %v299
    %v414 = vunpack.c.l.s4 1966171168
    %v415 = vunpack.c.0.s8 %v414
    %v416 = vlaneseq
    %v417 = vshrl.u32 %v416, 7
    %v418 = vsub.s32 %v415, %v417
    %v419 = vrot.slane %v409, %v418
    %v421 = vunpack.c.l.s4 1966171168
    %v422 = vunpack.c.0.s8 %v421
    %v423 = vlaneseq
    %v424 = vshrl.u32 %v423, 7
    %v425 = vsub.s32 %v422, %v424
    %v426 = vrot.slane %v410, %v425
    %v428 = vunpack.c.l.s4 1966171168
    %v429 = vunpack.c.0.s8 %v428
    %v430 = vlaneseq
    %v431 = vshrl.u32 %v430, 7
    %v432 = vsub.s32 %v429, %v431
    %v433 = vrot.slane %v411, %v432
    %v435 = vunpack.c.l.s4 1966171168
    %v436 = vunpack.c.0.s8 %v435
    %v437 = vlaneseq
    %v438 = vshrl.u32 %v437, 7
    %v439 = vsub.s32 %v436, %v438
    %v440 = vrot.slane %v412, %v439
    %v441 = vcombine.low %v419, %v426
    %v442 = vcombine.low %v433, %v440
    %v444 = vunpack.c.l.s4 1966171168
    %v445 = vunpack.c.0.s8 %v444
    %v446 = vlaneseq
    %v447 = vshrl.u32 %v446, 7
    %v448 = vsub.s32 %v445, %v447
    %v449 = vrot.slane %v441, %v448
    %v451 = vunpack.c.l.s4 1966171168
    %v452 = vunpack.c.0.s8 %v451
    %v453 = vlaneseq
    %v454 = vshrl.u32 %v453, 7
    %v455 = vsub.s32 %v452, %v454
    %v456 = vrot.slane %v442, %v455
    %v457 = vcombine.low %v449, %v456
    %v458 = vcombine.low %v306, %v307
    %v459 = vcombine.low %v322, %v329
    %v460 = vcombine.low %v330, %v345
    %v461 = vcombine.low %v352, %v353
    %v463 = vunpack.c.l.s4 1966171168
    %v464 = vunpack.c.0.s8 %v463
    %v465 = vlaneseq
    %v466 = vshrl.u32 %v465, 7
    %v467 = vsub.s32 %v464, %v466
    %v468 = vrot.slane %v458, %v467
    %v470 = vunpack.c.l.s4 1966171168
    %v471 = vunpack.c.0.s8 %v470
    %v472 = vlaneseq
    %v473 = vshrl.u32 %v472, 7
    %v474 = vsub.s32 %v471, %v473
    %v475 = vrot.slane %v459, %v474
    %v477 = vunpack.c.l.s4 1966171168
    %v478 = vunpack.c.0.s8 %v477
    %v479 = vlaneseq
    %v480 = vshrl.u32 %v479, 7
    %v481 = vsub.s32 %v478, %v480
    %v482 = vrot.slane %v460, %v481
    %v484 = vunpack.c.l.s4 1966171168
    %v485 = vunpack.c.0.s8 %v484
    %v486 = vlaneseq
    %v487 = vshrl.u32 %v486, 7
    %v488 = vsub.s32 %v485, %v487
    %v489 = vrot.slane %v461, %v488
    %v490 = vcombine.low %v468, %v475
    %v491 = vcombine.low %v482, %v489
    %v493 = vunpack.c.l.s4 1966171168
    %v494 = vunpack.c.0.s8 %v493
    %v495 = vlaneseq
    %v496 = vshrl.u32 %v495, 7
    %v497 = vsub.s32 %v494, %v496
    %v498 = vrot.slane %v490, %v497
    %v500 = vunpack.c.l.s4 1966171168
    %v501 = vunpack.c.0.s8 %v500
    %v502 = vlaneseq
    %v503 = vshrl.u32 %v502, 7
    %v504 = vsub.s32 %v501, %v503
    %v505 = vrot.slane %v491, %v504
    %v506 = vcombine.low %v498, %v505
    %v511 = vunpack.c.l.b16 %v124
    %v512 = vunpack.c.l.b16 %v125
    %v513 = vunpack.c.l.b16 %v126
    %v514 = vunpack.c.l.b16 %v127
    %v515 = vpack.c.b16 %v512, %v511
    %v516 = vpack.c.b16 %v514, %v513
    %vm519 = vcmask 261120
    %v521 = vsel %vm519, %v408, 0
    %v524 = vsel %vm519, %v457, 0
    %v527 = vsel %vm519, %v506, 0
    %529 = vmatprep.subr.bf16.mxu0 0
    %530 = vmatpush1.bf16.msra.mxu0 0
    %531 = vmatprep.subr.bf16.mxu0 0
    %532 = vmatpush1.bf16.msra.mxu0 0
    %533 = vmatprep.subr.bf16.mxu0 0
    %534 = vmatpush1.bf16.msra.mxu0 0
    %535 = vmatprep.subr.bf16.mxu0 0
    %536 = vmatpush1.bf16.msra.mxu0 0
    %537 = vmatprep.subr.bf16.mxu0 0
    %538 = vmatpush1.bf16.msra.mxu0 0
    %539 = vmatprep.subr.bf16.mxu0 0
    %540 = vmatpush1.bf16.msra.mxu0 0
    %541 = vmatprep.subr.bf16.mxu0 0
    %542 = vmatpush1.bf16.msra.mxu0 %v516
    %543 = vmatprep.subr.bf16.mxu0 0
    %544 = vmatpush1.bf16.msra.mxu0 %v515
    %545 = vmatprep.subr.bf16.mxu0 0
    %546 = vmatpush2.bf16.msra.mxu0 0
    %547 = vmatprep.subr.bf16.mxu0 0
    %548 = vmatpush2.bf16.msra.mxu0 0
    %549 = vmatprep.subr.bf16.mxu0 0
    %550 = vmatpush2.bf16.msra.mxu0 0
    %551 = vmatprep.subr.bf16.mxu0 0
    %552 = vmatpush2.bf16.msra.mxu0 0
    %553 = vmatprep.subr.bf16.mxu0 0
    %554 = vmatpush2.bf16.msra.mxu0 0
    %555 = vmatprep.subr.bf16.mxu0 0
    %556 = vmatpush2.bf16.msra.mxu0 0
    %557 = vmatprep.subr.bf16.mxu0 0
    %558 = vmatpush2.bf16.msra.mxu0 0
    %559 = vmatprep.subr.bf16.mxu0 0
    %560 = vmatpush2.bf16.msra.mxu0 0
    %561 = vmatprep.mubr.bf16.mxu0 0
    %562 = vmatmul.mubr.bf16.gmra.mxu0 %v521
    %v563 = vpop.f32.mrf.mxu0
    %v564 = vadd.f32 %v358, %v563
    %v565 = vpop.f32.mrf.mxu0
    %v566 = vpop.f32.mrf.mxu0
    %v567 = vadd.f32 %v358, %v566
    %v568 = vpop.f32.mrf.mxu0
    %569 = vmatprep.mubr.bf16.mxu0 0
    %570 = vmatmul.mubr.bf16.gmra.mxu0 %v524
    %v571 = vpop.f32.mrf.mxu0
    %v572 = vadd.f32 %v358, %v571
    %v573 = vpop.f32.mrf.mxu0
    %v574 = vpop.f32.mrf.mxu0
    %v575 = vadd.f32 %v358, %v574
    %v576 = vpop.f32.mrf.mxu0
    %577 = vmatprep.mubr.bf16.mxu0 0
    %578 = vmatmul.mubr.bf16.gmra.mxu0 %v527
    %v579 = vpop.f32.mrf.mxu0
    %v580 = vadd.f32 %v358, %v579
    %v581 = vpop.f32.mrf.mxu0
    %v582 = vpop.f32.mrf.mxu0
    %v583 = vadd.f32 %v358, %v582
    %v584 = vpop.f32.mrf.mxu0
    %585 = vdwg.mxu0
    %v592 = vcombine.high %v564, %v564
    %v594 = vunpack.c.l.s4 1983009808
    %v595 = vunpack.c.0.s8 %v594
    %v596 = vlaneseq
    %v597 = vshrl.u32 %v596, 7
    %v598 = vsub.s32 %v595, %v597
    %v599 = vrot.slane %v564, %v598
    %v601 = vunpack.c.l.s4 1983009808
    %v602 = vunpack.c.0.s8 %v601
    %v603 = vlaneseq
    %v604 = vshrl.u32 %v603, 7
    %v605 = vsub.s32 %v602, %v604
    %v606 = vrot.slane %v592, %v605
    %v607 = vcombine.high %v599, %v599
    %v608 = vcombine.high %v606, %v606
    %v609 = vcombine.high %v567, %v567
    %v611 = vunpack.c.l.s4 1983009808
    %v612 = vunpack.c.0.s8 %v611
    %v613 = vlaneseq
    %v614 = vshrl.u32 %v613, 7
    %v615 = vsub.s32 %v612, %v614
    %v616 = vrot.slane %v567, %v615
    %v618 = vunpack.c.l.s4 1983009808
    %v619 = vunpack.c.0.s8 %v618
    %v620 = vlaneseq
    %v621 = vshrl.u32 %v620, 7
    %v622 = vsub.s32 %v619, %v621
    %v623 = vrot.slane %v609, %v622
    %v624 = vcombine.high %v616, %v616
    %v625 = vcombine.high %v623, %v623
    %v626 = vcombine.high %v572, %v572
    %v628 = vunpack.c.l.s4 1983009808
    %v629 = vunpack.c.0.s8 %v628
    %v630 = vlaneseq
    %v631 = vshrl.u32 %v630, 7
    %v632 = vsub.s32 %v629, %v631
    %v633 = vrot.slane %v572, %v632
    %v635 = vunpack.c.l.s4 1983009808
    %v636 = vunpack.c.0.s8 %v635
    %v637 = vlaneseq
    %v638 = vshrl.u32 %v637, 7
    %v639 = vsub.s32 %v636, %v638
    %v640 = vrot.slane %v626, %v639
    %v641 = vcombine.high %v633, %v633
    %v642 = vcombine.high %v640, %v640
    %v643 = vcombine.high %v575, %v575
    %v645 = vunpack.c.l.s4 1983009808
    %v646 = vunpack.c.0.s8 %v645
    %v647 = vlaneseq
    %v648 = vshrl.u32 %v647, 7
    %v649 = vsub.s32 %v646, %v648
    %v650 = vrot.slane %v575, %v649
    %v652 = vunpack.c.l.s4 1983009808
    %v653 = vunpack.c.0.s8 %v652
    %v654 = vlaneseq
    %v655 = vshrl.u32 %v654, 7
    %v656 = vsub.s32 %v653, %v655
    %v657 = vrot.slane %v643, %v656
    %v658 = vcombine.high %v650, %v650
    %v659 = vcombine.high %v657, %v657
    %v660 = vcombine.high %v580, %v580
    %v662 = vunpack.c.l.s4 1983009808
    %v663 = vunpack.c.0.s8 %v662
    %v664 = vlaneseq
    %v665 = vshrl.u32 %v664, 7
    %v666 = vsub.s32 %v663, %v665
    %v667 = vrot.slane %v580, %v666
    %v669 = vunpack.c.l.s4 1983009808
    %v670 = vunpack.c.0.s8 %v669
    %v671 = vlaneseq
    %v672 = vshrl.u32 %v671, 7
    %v673 = vsub.s32 %v670, %v672
    %v674 = vrot.slane %v660, %v673
    %v675 = vcombine.high %v667, %v667
    %v676 = vcombine.high %v674, %v674
    %v677 = vcombine.high %v583, %v583
    %v679 = vunpack.c.l.s4 1983009808
    %v680 = vunpack.c.0.s8 %v679
    %v681 = vlaneseq
    %v682 = vshrl.u32 %v681, 7
    %v683 = vsub.s32 %v680, %v682
    %v684 = vrot.slane %v583, %v683
    %v686 = vunpack.c.l.s4 1983009808
    %v687 = vunpack.c.0.s8 %v686
    %v688 = vlaneseq
    %v689 = vshrl.u32 %v688, 7
    %v690 = vsub.s32 %v687, %v689
    %v691 = vrot.slane %v677, %v690
    %v692 = vcombine.high %v684, %v684
    %v693 = vcombine.high %v691, %v691
    %v694 = vunpack.c.l.bf16 %v115
    %v695 = vunpack.c.l.bf16 %v116
    %v696 = vunpack.c.l.bf16 %v117
    %v697 = vunpack.c.l.bf16 %v118
    %v698 = vunpack.c.l.bf16 %v119
    %v699 = vunpack.c.l.bf16 %v120
    %v700 = vunpack.c.l.bf16 %v121
    %v701 = vunpack.c.l.bf16 %v122
    %v702 = vld [vmem:[#allocation2] sm:$0xf]
    %v703 = vld [vmem:[#allocation5] sm:$0xf]
    %v704 = vlaneseq
    %v705 = vand.u32 %v704, 127
    %v710 = vunpack.c.l.b16 %v131
    %v711 = vunpack.c.l.b16 %v132
    %v712 = vunpack.c.l.b16 %v133
    %v713 = vunpack.c.l.b16 %v134
    %v714 = vpack.c.b16 %v711, %v710
    %v715 = vpack.c.b16 %v713, %v712
    %v719 = vsel %vm519, %v703, 0
    %721 = vmatprep.subr.bf16.mxu0 0
    %722 = vmatpush1.bf16.msra.mxu0 0
    %723 = vmatprep.subr.bf16.mxu0 0
    %724 = vmatpush1.bf16.msra.mxu0 0
    %725 = vmatprep.subr.bf16.mxu0 0
    %726 = vmatpush1.bf16.msra.mxu0 0
    %727 = vmatprep.subr.bf16.mxu0 0
    %728 = vmatpush1.bf16.msra.mxu0 0
    %729 = vmatprep.subr.bf16.mxu0 0
    %730 = vmatpush1.bf16.msra.mxu0 0
    %731 = vmatprep.subr.bf16.mxu0 0
    %732 = vmatpush1.bf16.msra.mxu0 0
    %733 = vmatprep.subr.bf16.mxu0 0
    %734 = vmatpush1.bf16.msra.mxu0 %v715
    %735 = vmatprep.subr.bf16.mxu0 0
    %736 = vmatpush1.bf16.msra.mxu0 %v714
    %737 = vmatprep.subr.bf16.mxu0 0
    %738 = vmatpush2.bf16.msra.mxu0 0
    %739 = vmatprep.subr.bf16.mxu0 0
    %740 = vmatpush2.bf16.msra.mxu0 0
    %741 = vmatprep.subr.bf16.mxu0 0
    %742 = vmatpush2.bf16.msra.mxu0 0
    %743 = vmatprep.subr.bf16.mxu0 0
    %744 = vmatpush2.bf16.msra.mxu0 0
    %745 = vmatprep.subr.bf16.mxu0 0
    %746 = vmatpush2.bf16.msra.mxu0 0
    %747 = vmatprep.subr.bf16.mxu0 0
    %748 = vmatpush2.bf16.msra.mxu0 0
    %749 = vmatprep.subr.bf16.mxu0 0
    %750 = vmatpush2.bf16.msra.mxu0 0
    %751 = vmatprep.subr.bf16.mxu0 0
    %752 = vmatpush2.bf16.msra.mxu0 0
    %753 = vmatprep.mubr.bf16.mxu0 0
    %754 = vmatmul.mubr.bf16.gmra.mxu0 %v719
    %v755 = vpop.f32.mrf.mxu0
    %v756 = vadd.f32 0.0, %v755
    %v757 = vpop.f32.mrf.mxu0
    %v758 = vpop.f32.mrf.mxu0
    %v759 = vpop.f32.mrf.mxu0
    %760 = vdwg.mxu0
    %v763 = vunpack.c.l.b16 %v129
    %v764 = vunpack.c.l.b16 %v130
    %v765 = vpack.c.b16 %v764, %v763
    %vm767 = vcmask 130048
    %v769 = vsel %vm767, %v702, 0
    %771 = vmatprep.subr.bf16.mxu0 0
    %772 = vmatpush1.bf16.msra.mxu0 0
    %773 = vmatprep.subr.bf16.mxu0 0
    %774 = vmatpush1.bf16.msra.mxu0 0
    %775 = vmatprep.subr.bf16.mxu0 0
    %776 = vmatpush1.bf16.msra.mxu0 0
    %777 = vmatprep.subr.bf16.mxu0 0
    %778 = vmatpush1.bf16.msra.mxu0 0
    %779 = vmatprep.subr.bf16.mxu0 0
    %780 = vmatpush1.bf16.msra.mxu0 0
    %781 = vmatprep.subr.bf16.mxu0 0
    %782 = vmatpush1.bf16.msra.mxu0 0
    %783 = vmatprep.subr.bf16.mxu0 0
    %784 = vmatpush1.bf16.msra.mxu0 0
    %785 = vmatprep.subr.bf16.mxu0 0
    %786 = vmatpush1.bf16.msra.mxu0 %v765
    %787 = vmatprep.subr.bf16.mxu0 0
    %788 = vmatpush2.bf16.msra.mxu0 0
    %789 = vmatprep.subr.bf16.mxu0 0
    %790 = vmatpush2.bf16.msra.mxu0 0
    %791 = vmatprep.subr.bf16.mxu0 0
    %792 = vmatpush2.bf16.msra.mxu0 0
    %793 = vmatprep.subr.bf16.mxu0 0
    %794 = vmatpush2.bf16.msra.mxu0 0
    %795 = vmatprep.subr.bf16.mxu0 0
    %796 = vmatpush2.bf16.msra.mxu0 0
    %797 = vmatprep.subr.bf16.mxu0 0
    %798 = vmatpush2.bf16.msra.mxu0 0
    %799 = vmatprep.subr.bf16.mxu0 0
    %800 = vmatpush2.bf16.msra.mxu0 0
    %801 = vmatprep.subr.bf16.mxu0 0
    %802 = vmatpush2.bf16.msra.mxu0 0
    %803 = vmatprep.mubr.bf16.mxu0 0
    %804 = vmatmul.mubr.bf16.gmra.mxu0 %v769
    %v805 = vpop.f32.mrf.mxu0
    %v806 = vadd.f32 %v756, %v805
    %v807 = vpop.f32.mrf.mxu0
    %v808 = vpop.f32.mrf.mxu0
    %v809 = vpop.f32.mrf.mxu0
    %810 = vdwg.mxu0
    %v811 = vunpack.c.l.b16 %v115
    %v812 = vunpack.c.l.b16 %v116
    %v813 = vunpack.c.l.b16 %v117
    %v814 = vunpack.c.l.b16 %v118
    %v815 = vunpack.c.l.b16 %v119
    %v816 = vunpack.c.l.b16 %v120
    %v817 = vunpack.c.l.b16 %v121
    %v818 = vunpack.c.l.b16 %v122
    %v819 = vpack.c.b16 %v811, %v811
    %v820 = vpack.c.b16 %v812, %v812
    %v821 = vpack.c.b16 %v813, %v813
    %v822 = vpack.c.b16 %v814, %v814
    %v823 = vpack.c.b16 %v815, %v815
    %v824 = vpack.c.b16 %v816, %v816
    %v825 = vpack.c.b16 %v817, %v817
    %v826 = vpack.c.b16 %v818, %v818
    %v827 = vunpack.c.l.b16 %v819
    %v828 = vunpack.c.l.b16 %v820
    %v829 = vunpack.c.l.b16 %v821
    %v830 = vunpack.c.l.b16 %v822
    %v831 = vunpack.c.l.b16 %v823
    %v832 = vunpack.c.l.b16 %v824
    %v833 = vunpack.c.l.b16 %v825
    %v834 = vunpack.c.l.b16 %v826
    %v835 = vrot.slane %v828, 7
    %vm836 = vcmask 1041409
    %v837 = vsel %vm836, %v835, %v827
    %v838 = vrot.slane %v829, 6
    %vm839 = vcmask 1042434
    %v840 = vsel %vm839, %v838, %v837
    %v841 = vrot.slane %v830, 5
    %vm842 = vcmask 1043459
    %v843 = vsel %vm842, %v841, %v840
    %v844 = vrot.slane %v831, 4
    %vm845 = vcmask 1044484
    %v846 = vsel %vm845, %v844, %v843
    %v847 = vrot.slane %v832, 3
    %vm848 = vcmask 1045509
    %v849 = vsel %vm848, %v847, %v846
    %v850 = vrot.slane %v833, 2
    %vm851 = vcmask 1046534
    %v852 = vsel %vm851, %v850, %v849
    %v853 = vrot.slane %v834, 1
    %vm854 = vcmask 1047559
    %v855 = vsel %vm854, %v853, %v852
    %v856 = vpack.c.b16 %v855, %v855
    %v861 = vunpack.c.l.b16 %v135
    %v862 = vunpack.c.l.b16 %v136
    %v863 = vunpack.c.l.b16 %v137
    %v864 = vunpack.c.l.b16 %v138
    %v865 = vpack.c.b16 %v862, %v861
    %v866 = vpack.c.b16 %v864, %v863
    %v870 = vsel %vm519, %v856, 0
    %872 = vmatprep.subr.bf16.mxu0 0
    %873 = vmatpush1.bf16.msra.mxu0 0
    %874 = vmatprep.subr.bf16.mxu0 0
    %875 = vmatpush1.bf16.msra.mxu0 0
    %876 = vmatprep.subr.bf16.mxu0 0
    %877 = vmatpush1.bf16.msra.mxu0 0
    %878 = vmatprep.subr.bf16.mxu0 0
    %879 = vmatpush1.bf16.msra.mxu0 0
    %880 = vmatprep.subr.bf16.mxu0 0
    %881 = vmatpush1.bf16.msra.mxu0 0
    %882 = vmatprep.subr.bf16.mxu0 0
    %883 = vmatpush1.bf16.msra.mxu0 0
    %884 = vmatprep.subr.bf16.mxu0 0
    %885 = vmatpush1.bf16.msra.mxu0 %v866
    %886 = vmatprep.subr.bf16.mxu0 0
    %887 = vmatpush1.bf16.msra.mxu0 %v865
    %888 = vmatprep.subr.bf16.mxu0 0
    %889 = vmatpush2.bf16.msra.mxu0 0
    %890 = vmatprep.subr.bf16.mxu0 0
    %891 = vmatpush2.bf16.msra.mxu0 0
    %892 = vmatprep.subr.bf16.mxu0 0
    %893 = vmatpush2.bf16.msra.mxu0 0
    %894 = vmatprep.subr.bf16.mxu0 0
    %895 = vmatpush2.bf16.msra.mxu0 0
    %896 = vmatprep.subr.bf16.mxu0 0
    %897 = vmatpush2.bf16.msra.mxu0 0
    %898 = vmatprep.subr.bf16.mxu0 0
    %899 = vmatpush2.bf16.msra.mxu0 0
    %900 = vmatprep.subr.bf16.mxu0 0
    %901 = vmatpush2.bf16.msra.mxu0 0
    %902 = vmatprep.subr.bf16.mxu0 0
    %903 = vmatpush2.bf16.msra.mxu0 0
    %904 = vmatprep.mubr.bf16.mxu0 0
    %905 = vmatmul.mubr.bf16.gmra.mxu0 %v870
    %v906 = vpop.f32.mrf.mxu0
    %v907 = vadd.f32 0.0, %v906
    %v908 = vpop.f32.mrf.mxu0
    %v909 = vpop.f32.mrf.mxu0
    %v910 = vpop.f32.mrf.mxu0
    %911 = vdwg.mxu0
    %v912 = vadd.f32 %v806, %v907
    %v917 = vunpack.c.l.b16 %v139
    %v918 = vunpack.c.l.b16 %v140
    %v919 = vunpack.c.l.b16 %v141
    %v920 = vunpack.c.l.b16 %v142
    %v921 = vpack.c.b16 %v918, %v917
    %v922 = vpack.c.b16 %v920, %v919
    %v926 = vsel %vm519, 0, 0
    %928 = vmatprep.subr.bf16.mxu0 0
    %929 = vmatpush1.bf16.msra.mxu0 0
    %930 = vmatprep.subr.bf16.mxu0 0
    %931 = vmatpush1.bf16.msra.mxu0 0
    %932 = vmatprep.subr.bf16.mxu0 0
    %933 = vmatpush1.bf16.msra.mxu0 0
    %934 = vmatprep.subr.bf16.mxu0 0
    %935 = vmatpush1.bf16.msra.mxu0 0
    %936 = vmatprep.subr.bf16.mxu0 0
    %937 = vmatpush1.bf16.msra.mxu0 0
    %938 = vmatprep.subr.bf16.mxu0 0
    %939 = vmatpush1.bf16.msra.mxu0 0
    %940 = vmatprep.subr.bf16.mxu0 0
    %941 = vmatpush1.bf16.msra.mxu0 %v922
    %942 = vmatprep.subr.bf16.mxu0 0
    %943 = vmatpush1.bf16.msra.mxu0 %v921
    %944 = vmatprep.subr.bf16.mxu0 0
    %945 = vmatpush2.bf16.msra.mxu0 0
    %946 = vmatprep.subr.bf16.mxu0 0
    %947 = vmatpush2.bf16.msra.mxu0 0
    %948 = vmatprep.subr.bf16.mxu0 0
    %949 = vmatpush2.bf16.msra.mxu0 0
    %950 = vmatprep.subr.bf16.mxu0 0
    %951 = vmatpush2.bf16.msra.mxu0 0
    %952 = vmatprep.subr.bf16.mxu0 0
    %953 = vmatpush2.bf16.msra.mxu0 0
    %954 = vmatprep.subr.bf16.mxu0 0
    %955 = vmatpush2.bf16.msra.mxu0 0
    %956 = vmatprep.subr.bf16.mxu0 0
    %957 = vmatpush2.bf16.msra.mxu0 0
    %958 = vmatprep.subr.bf16.mxu0 0
    %959 = vmatpush2.bf16.msra.mxu0 0
    %960 = vmatprep.mubr.bf16.mxu0 0
    %961 = vmatmul.mubr.bf16.gmra.mxu0 %v926
    %v962 = vpop.f32.mrf.mxu0
    %v963 = vadd.f32 0.0, %v962
    %v964 = vpop.f32.mrf.mxu0
    %v965 = vpop.f32.mrf.mxu0
    %v966 = vpop.f32.mrf.mxu0
    %967 = vdwg.mxu0
    %v968 = vadd.f32 %v912, %v963
    %v970 = vlaneseq
    %v971 = vshrl.u32 %v970, 7
    %v972 = vsub.s32 0, %v971
    %v973 = vrot.slane %v143, %v972
    %v975 = vadd.f32 %v968, %v973
    %v976 = vxor.u32 %v975, 2147483648
    %v977 = vmul.f32 %v976, 1.442695
    %v978 = vpow.pop %v977
    %v979 = vadd.f32 %v978, 1.0
    %v980 = vrcp.pop %v979
    %v981 = vmul.f32 1.0, %v980
    %v982 = vtanh.pop %v975
    %v983 = vmul.f32 %v981, 0.0
    %985 = vrot.lane.b32.xlu0 %v982, 64
    %v986 = vpop.permute.xlu0 %985
    %v988 = vmul.f32 %v981, %v986
    %990 = vrot.lane.b32.xlu0 %v988, 32
    %v991 = vpop.permute.xlu0 %990
    %v993 = vadd.f32 %v983, %v991
    %v994 = vtanh.pop %v993
    %996 = vrot.lane.b32.xlu0 %v994, 64
    %v997 = vpop.permute.xlu0 %996
    %v999 = vmul.f32 %v981, %v997
    %v1000 = vpack.c.bf16 %v999, %v999
    %v1002 = vcombine.high %v999, %v999
    %v1004 = vunpack.c.l.s4 1966171168
    %v1005 = vunpack.c.0.s8 %v1004
    %v1006 = vlaneseq
    %v1007 = vshrl.u32 %v1006, 7
    %v1008 = vsub.s32 %v1005, %v1007
    %v1009 = vrot.slane %v999, %v1008
    %v1011 = vunpack.c.l.s4 1966171168
    %v1012 = vunpack.c.0.s8 %v1011
    %v1013 = vlaneseq
    %v1014 = vshrl.u32 %v1013, 7
    %v1015 = vsub.s32 %v1012, %v1014
    %v1016 = vrot.slane %v1002, %v1015
    %v1017 = vcombine.high %v1009, %v1009
    %v1018 = vcombine.high %v1016, %v1016
    %v1020 = vunpack.c.l.s4 1966171168
    %v1021 = vunpack.c.0.s8 %v1020
    %v1022 = vlaneseq
    %v1023 = vshrl.u32 %v1022, 7
    %v1024 = vsub.s32 %v1021, %v1023
    %v1025 = vrot.slane %v1009, %v1024
    %v1027 = vunpack.c.l.s4 1966171168
    %v1028 = vunpack.c.0.s8 %v1027
    %v1029 = vlaneseq
    %v1030 = vshrl.u32 %v1029, 7
    %v1031 = vsub.s32 %v1028, %v1030
    %v1032 = vrot.slane %v1016, %v1031
    %v1034 = vunpack.c.l.s4 1966171168
    %v1035 = vunpack.c.0.s8 %v1034
    %v1036 = vlaneseq
    %v1037 = vshrl.u32 %v1036, 7
    %v1038 = vsub.s32 %v1035, %v1037
    %v1039 = vrot.slane %v1017, %v1038
    %v1041 = vunpack.c.l.s4 1966171168
    %v1042 = vunpack.c.0.s8 %v1041
    %v1043 = vlaneseq
    %v1044 = vshrl.u32 %v1043, 7
    %v1045 = vsub.s32 %v1042, %v1044
    %v1046 = vrot.slane %v1018, %v1045
    %v1047 = vcombine.high %v1025, %v1025
    %v1048 = vcombine.high %v1032, %v1032
    %v1049 = vcombine.high %v1039, %v1039
    %v1050 = vcombine.high %v1046, %v1046
    %v1051 = vlaneseq
    %v1052 = vshrl.u32 %v1051, 7
    %v1053 = vsub.s32 0, %v1052
    %v1054 = vrot.slane %v1025, %v1053
    %v1055 = vlaneseq
    %v1056 = vshrl.u32 %v1055, 7
    %v1057 = vsub.s32 0, %v1056
    %v1058 = vrot.slane %v1039, %v1057
    %v1059 = vlaneseq
    %v1060 = vshrl.u32 %v1059, 7
    %v1061 = vsub.s32 0, %v1060
    %v1062 = vrot.slane %v1047, %v1061
    %v1063 = vlaneseq
    %v1064 = vshrl.u32 %v1063, 7
    %v1065 = vsub.s32 0, %v1064
    %v1066 = vrot.slane %v1049, %v1065
    %v1067 = vlaneseq
    %v1068 = vshrl.u32 %v1067, 7
    %v1069 = vsub.s32 0, %v1068
    %v1070 = vrot.slane %v1032, %v1069
    %v1071 = vlaneseq
    %v1072 = vshrl.u32 %v1071, 7
    %v1073 = vsub.s32 0, %v1072
    %v1074 = vrot.slane %v1046, %v1073
    %v1075 = vlaneseq
    %v1076 = vshrl.u32 %v1075, 7
    %v1077 = vsub.s32 0, %v1076
    %v1078 = vrot.slane %v1048, %v1077
    %v1079 = vlaneseq
    %v1080 = vshrl.u32 %v1079, 7
    %v1081 = vsub.s32 0, %v1080
    %v1082 = vrot.slane %v1050, %v1081
    %v1091 = vcombine.low %v599, %v607
    %v1093 = vunpack.c.l.s4 1983009808
    %v1094 = vunpack.c.0.s8 %v1093
    %v1095 = vlaneseq
    %v1096 = vshrl.u32 %v1095, 7
    %v1097 = vsub.s32 %v1094, %v1096
    %v1098 = vrot.slane %v1091, %v1097
    %v1100 = vunpack.c.l.s4 1983009808
    %v1101 = vunpack.c.0.s8 %v1100
    %v1102 = vlaneseq
    %v1103 = vshrl.u32 %v1102, 7
    %v1104 = vsub.s32 %v1101, %v1103
    %v1105 = vrot.slane %v606, %v1104
    %v1106 = vcombine.low %v1098, %v1105
    %v1107 = vcombine.low %v608, %v616
    %v1109 = vunpack.c.l.s4 1983009808
    %v1110 = vunpack.c.0.s8 %v1109
    %v1111 = vlaneseq
    %v1112 = vshrl.u32 %v1111, 7
    %v1113 = vsub.s32 %v1110, %v1112
    %v1114 = vrot.slane %v1107, %v1113
    %v1116 = vunpack.c.l.s4 1983009808
    %v1117 = vunpack.c.0.s8 %v1116
    %v1118 = vlaneseq
    %v1119 = vshrl.u32 %v1118, 7
    %v1120 = vsub.s32 %v1117, %v1119
    %v1121 = vrot.slane %v624, %v1120
    %v1122 = vcombine.low %v1114, %v1121
    %v1123 = vcombine.low %v623, %v625
    %v1125 = vunpack.c.l.s4 1983009808
    %v1126 = vunpack.c.0.s8 %v1125
    %v1127 = vlaneseq
    %v1128 = vshrl.u32 %v1127, 7
    %v1129 = vsub.s32 %v1126, %v1128
    %v1130 = vrot.slane %v1123, %v1129
    %v1132 = vunpack.c.l.s4 1983009808
    %v1133 = vunpack.c.0.s8 %v1132
    %v1134 = vlaneseq
    %v1135 = vshrl.u32 %v1134, 7
    %v1136 = vsub.s32 %v1133, %v1135
    %v1137 = vrot.slane %v633, %v1136
    %v1138 = vcombine.low %v1130, %v1137
    %v1139 = vcombine.low %v641, %v640
    %v1141 = vunpack.c.l.s4 1983009808
    %v1142 = vunpack.c.0.s8 %v1141
    %v1143 = vlaneseq
    %v1144 = vshrl.u32 %v1143, 7
    %v1145 = vsub.s32 %v1142, %v1144
    %v1146 = vrot.slane %v1139, %v1145
    %v1148 = vunpack.c.l.s4 1983009808
    %v1149 = vunpack.c.0.s8 %v1148
    %v1150 = vlaneseq
    %v1151 = vshrl.u32 %v1150, 7
    %v1152 = vsub.s32 %v1149, %v1151
    %v1153 = vrot.slane %v642, %v1152
    %v1154 = vcombine.low %v1146, %v1153
    %v1155 = vcombine.low %v650, %v658
    %v1157 = vunpack.c.l.s4 1983009808
    %v1158 = vunpack.c.0.s8 %v1157
    %v1159 = vlaneseq
    %v1160 = vshrl.u32 %v1159, 7
    %v1161 = vsub.s32 %v1158, %v1160
    %v1162 = vrot.slane %v1155, %v1161
    %v1164 = vunpack.c.l.s4 1983009808
    %v1165 = vunpack.c.0.s8 %v1164
    %v1166 = vlaneseq
    %v1167 = vshrl.u32 %v1166, 7
    %v1168 = vsub.s32 %v1165, %v1167
    %v1169 = vrot.slane %v657, %v1168
    %v1170 = vcombine.low %v1162, %v1169
    %v1171 = vcombine.low %v659, %v667
    %v1173 = vunpack.c.l.s4 1983009808
    %v1174 = vunpack.c.0.s8 %v1173
    %v1175 = vlaneseq
    %v1176 = vshrl.u32 %v1175, 7
    %v1177 = vsub.s32 %v1174, %v1176
    %v1178 = vrot.slane %v1171, %v1177
    %v1180 = vunpack.c.l.s4 1983009808
    %v1181 = vunpack.c.0.s8 %v1180
    %v1182 = vlaneseq
    %v1183 = vshrl.u32 %v1182, 7
    %v1184 = vsub.s32 %v1181, %v1183
    %v1185 = vrot.slane %v675, %v1184
    %v1186 = vcombine.low %v1178, %v1185
    %v1187 = vcombine.low %v674, %v676
    %v1189 = vunpack.c.l.s4 1983009808
    %v1190 = vunpack.c.0.s8 %v1189
    %v1191 = vlaneseq
    %v1192 = vshrl.u32 %v1191, 7
    %v1193 = vsub.s32 %v1190, %v1192
    %v1194 = vrot.slane %v1187, %v1193
    %v1196 = vunpack.c.l.s4 1983009808
    %v1197 = vunpack.c.0.s8 %v1196
    %v1198 = vlaneseq
    %v1199 = vshrl.u32 %v1198, 7
    %v1200 = vsub.s32 %v1197, %v1199
    %v1201 = vrot.slane %v684, %v1200
    %v1202 = vcombine.low %v1194, %v1201
    %v1203 = vcombine.low %v692, %v691
    %v1205 = vunpack.c.l.s4 1983009808
    %v1206 = vunpack.c.0.s8 %v1205
    %v1207 = vlaneseq
    %v1208 = vshrl.u32 %v1207, 7
    %v1209 = vsub.s32 %v1206, %v1208
    %v1210 = vrot.slane %v1203, %v1209
    %v1212 = vunpack.c.l.s4 1983009808
    %v1213 = vunpack.c.0.s8 %v1212
    %v1214 = vlaneseq
    %v1215 = vshrl.u32 %v1214, 7
    %v1216 = vsub.s32 %v1213, %v1215
    %v1217 = vrot.slane %v693, %v1216
    %v1218 = vcombine.low %v1210, %v1217
    %1219 = vrot.lane.b32.xlu0 %v1106, 96
    %v1220 = vpop.permute.xlu0 %1219
    %1221 = vrot.lane.b32.xlu0 %v1122, 96
    %v1222 = vpop.permute.xlu0 %1221
    %1223 = vrot.lane.b32.xlu0 %v1138, 96
    %v1224 = vpop.permute.xlu0 %1223
    %1225 = vrot.lane.b32.xlu0 %v1154, 96
    %v1226 = vpop.permute.xlu0 %1225
    %1227 = vrot.lane.b32.xlu0 %v1170, 96
    %v1228 = vpop.permute.xlu0 %1227
    %1229 = vrot.lane.b32.xlu0 %v1186, 96
    %v1230 = vpop.permute.xlu0 %1229
    %1231 = vrot.lane.b32.xlu0 %v1202, 96
    %v1232 = vpop.permute.xlu0 %1231
    %1233 = vrot.lane.b32.xlu0 %v1218, 96
    %v1234 = vpop.permute.xlu0 %1233
    %v1243 = vmul.f32 %v1054, %v1220
    %v1244 = vmul.f32 %v1058, %v1222
    %v1245 = vmul.f32 %v1062, %v1224
    %v1246 = vmul.f32 %v1066, %v1226
    %v1247 = vmul.f32 %v1070, %v1228
    %v1248 = vmul.f32 %v1074, %v1230
    %v1249 = vmul.f32 %v1078, %v1232
    %v1250 = vmul.f32 %v1082, %v1234
    %1259 = vrot.lane.b32.xlu0 %v1243, 32
    %v1260 = vpop.permute.xlu0 %1259
    %1261 = vrot.lane.b32.xlu0 %v1244, 32
    %v1262 = vpop.permute.xlu0 %1261
    %1263 = vrot.lane.b32.xlu0 %v1245, 32
    %v1264 = vpop.permute.xlu0 %1263
    %1265 = vrot.lane.b32.xlu0 %v1246, 32
    %v1266 = vpop.permute.xlu0 %1265
    %1267 = vrot.lane.b32.xlu0 %v1247, 32
    %v1268 = vpop.permute.xlu0 %1267
    %1269 = vrot.lane.b32.xlu0 %v1248, 32
    %v1270 = vpop.permute.xlu0 %1269
    %1271 = vrot.lane.b32.xlu0 %v1249, 32
    %v1272 = vpop.permute.xlu0 %1271
    %1273 = vrot.lane.b32.xlu0 %v1250, 32
    %v1274 = vpop.permute.xlu0 %1273
    %vm1283 = vcmask 259072
    %v1284 = vsel %vm1283, %v1260, 0.0
    %1285 = vadd.xlane.f32.xlu0 %v1284
    %v1286 = vpop.xlane.xlu0 %1285
    %v1287 = vsel %vm1283, %v1262, 0.0
    %1288 = vadd.xlane.f32.xlu0 %v1287
    %v1289 = vpop.xlane.xlu0 %1288
    %v1290 = vsel %vm1283, %v1264, 0.0
    %1291 = vadd.xlane.f32.xlu0 %v1290
    %v1292 = vpop.xlane.xlu0 %1291
    %v1293 = vsel %vm1283, %v1266, 0.0
    %1294 = vadd.xlane.f32.xlu0 %v1293
    %v1295 = vpop.xlane.xlu0 %1294
    %v1296 = vsel %vm1283, %v1268, 0.0
    %1297 = vadd.xlane.f32.xlu0 %v1296
    %v1298 = vpop.xlane.xlu0 %1297
    %v1299 = vsel %vm1283, %v1270, 0.0
    %1300 = vadd.xlane.f32.xlu0 %v1299
    %v1301 = vpop.xlane.xlu0 %1300
    %v1302 = vsel %vm1283, %v1272, 0.0
    %1303 = vadd.xlane.f32.xlu0 %v1302
    %v1304 = vpop.xlane.xlu0 %1303
    %v1305 = vsel %vm1283, %v1274, 0.0
    %1306 = vadd.xlane.f32.xlu0 %v1305
    %v1307 = vpop.xlane.xlu0 %1306
    %v1309 = vlaneseq
    %v1310 = vshrl.u32 %v1309, 7
    %v1311 = vsub.s32 0, %v1310
    %v1312 = vrot.slane %v123, %v1311
    %1314 = vbcast.lane.b32.xlu0 %v1312, 256
    %v1315 = vpop.permute.xlu0 %1314
    %v1316 = vlaneseq
    %v1317 = vshrl.u32 %v1316, 7
    %v1318 = vsub.s32 1, %v1317
    %v1319 = vrot.slane %v123, %v1318
    %1321 = vbcast.lane.b32.xlu0 %v1319, 256
    %v1322 = vpop.permute.xlu0 %1321
    %v1323 = vlaneseq
    %v1324 = vshrl.u32 %v1323, 7
    %v1325 = vsub.s32 2, %v1324
    %v1326 = vrot.slane %v123, %v1325
    %1328 = vbcast.lane.b32.xlu0 %v1326, 256
    %v1329 = vpop.permute.xlu0 %1328
    %v1330 = vlaneseq
    %v1331 = vshrl.u32 %v1330, 7
    %v1332 = vsub.s32 3, %v1331
    %v1333 = vrot.slane %v123, %v1332
    %1335 = vbcast.lane.b32.xlu0 %v1333, 256
    %v1336 = vpop.permute.xlu0 %1335
    %v1337 = vlaneseq
    %v1338 = vshrl.u32 %v1337, 7
    %v1339 = vsub.s32 4, %v1338
    %v1340 = vrot.slane %v123, %v1339
    %1342 = vbcast.lane.b32.xlu0 %v1340, 256
    %v1343 = vpop.permute.xlu0 %1342
    %v1344 = vlaneseq
    %v1345 = vshrl.u32 %v1344, 7
    %v1346 = vsub.s32 5, %v1345
    %v1347 = vrot.slane %v123, %v1346
    %1349 = vbcast.lane.b32.xlu0 %v1347, 256
    %v1350 = vpop.permute.xlu0 %1349
    %v1351 = vlaneseq
    %v1352 = vshrl.u32 %v1351, 7
    %v1353 = vsub.s32 6, %v1352
    %v1354 = vrot.slane %v123, %v1353
    %1356 = vbcast.lane.b32.xlu0 %v1354, 256
    %v1357 = vpop.permute.xlu0 %1356
    %v1358 = vlaneseq
    %v1359 = vshrl.u32 %v1358, 7
    %v1360 = vsub.s32 7, %v1359
    %v1361 = vrot.slane %v123, %v1360
    %1363 = vbcast.lane.b32.xlu0 %v1361, 256
    %v1364 = vpop.permute.xlu0 %1363
    %v1373 = vadd.f32 %v1286, %v1315
    %v1374 = vadd.f32 %v1289, %v1322
    %v1375 = vadd.f32 %v1292, %v1329
    %v1376 = vadd.f32 %v1295, %v1336
    %v1377 = vadd.f32 %v1298, %v1343
    %v1378 = vadd.f32 %v1301, %v1350
    %v1379 = vadd.f32 %v1304, %v1357
    %v1380 = vadd.f32 %v1307, %v1364
    %1389 = vset.pattern.permute.xlu0 0
    %1390 = vperm.xlu0 %1389, %v1373
    %v1391 = vpop.permute.xlu0 %1390
    %1392 = vset.pattern.permute.xlu0 0
    %1393 = vperm.xlu0 %1392, %v1374
    %v1394 = vpop.permute.xlu0 %1393
    %1395 = vset.pattern.permute.xlu0 0
    %1396 = vperm.xlu0 %1395, %v1375
    %v1397 = vpop.permute.xlu0 %1396
    %1398 = vset.pattern.permute.xlu0 0
    %1399 = vperm.xlu0 %1398, %v1376
    %v1400 = vpop.permute.xlu0 %1399
    %1401 = vset.pattern.permute.xlu0 0
    %1402 = vperm.xlu0 %1401, %v1377
    %v1403 = vpop.permute.xlu0 %1402
    %1404 = vset.pattern.permute.xlu0 0
    %1405 = vperm.xlu0 %1404, %v1378
    %v1406 = vpop.permute.xlu0 %1405
    %1407 = vset.pattern.permute.xlu0 0
    %1408 = vperm.xlu0 %1407, %v1379
    %v1409 = vpop.permute.xlu0 %1408
    %1410 = vset.pattern.permute.xlu0 0
    %1411 = vperm.xlu0 %1410, %v1380
    %v1412 = vpop.permute.xlu0 %1411
    %v1413 = vlaneseq
    %v1414 = vshrl.u32 %v1413, 7
    %v1415 = vsub.s32 %v705, %v1414
    %v1416 = vrot.slane %v1391, %v1415
    %v1417 = vlaneseq
    %v1418 = vshrl.u32 %v1417, 7
    %v1419 = vsub.s32 %v705, %v1418
    %v1420 = vrot.slane %v1394, %v1419
    %v1421 = vlaneseq
    %v1422 = vshrl.u32 %v1421, 7
    %v1423 = vsub.s32 %v705, %v1422
    %v1424 = vrot.slane %v1397, %v1423
    %v1425 = vlaneseq
    %v1426 = vshrl.u32 %v1425, 7
    %v1427 = vsub.s32 %v705, %v1426
    %v1428 = vrot.slane %v1400, %v1427
    %v1429 = vlaneseq
    %v1430 = vshrl.u32 %v1429, 7
    %v1431 = vsub.s32 %v705, %v1430
    %v1432 = vrot.slane %v1403, %v1431
    %v1433 = vlaneseq
    %v1434 = vshrl.u32 %v1433, 7
    %v1435 = vsub.s32 %v705, %v1434
    %v1436 = vrot.slane %v1406, %v1435
    %v1437 = vlaneseq
    %v1438 = vshrl.u32 %v1437, 7
    %v1439 = vsub.s32 %v705, %v1438
    %v1440 = vrot.slane %v1409, %v1439
    %v1441 = vlaneseq
    %v1442 = vshrl.u32 %v1441, 7
    %v1443 = vsub.s32 %v705, %v1442
    %v1444 = vrot.slane %v1412, %v1443
    %v1445 = vsel %vm836, %v1420, %v1416
    %v1446 = vsel %vm839, %v1424, %v1445
    %v1447 = vsel %vm842, %v1428, %v1446
    %v1448 = vsel %vm845, %v1432, %v1447
    %v1449 = vsel %vm848, %v1436, %v1448
    %v1450 = vsel %vm851, %v1440, %v1449
    %v1451 = vsel %vm854, %v1444, %v1450
    %vm1453 = vcmask 48128
    %v1454 = vsel %vm1453, %v1451, -inf
    %1455 = vmax.xlane.f32.xlu0 %v1454
    %v1456 = vpop.xlane.xlu0 %1455
    %v1458 = vlaneseq
    %v1459 = vshrl.u32 %v1458, 7
    %v1460 = vsub.s32 0, %v1459
    %v1461 = vrot.slane %v1456, %v1460
    %v1462 = vlaneseq
    %v1463 = vshrl.u32 %v1462, 7
    %v1464 = vsub.s32 1, %v1463
    %v1465 = vrot.slane %v1456, %v1464
    %v1466 = vlaneseq
    %v1467 = vshrl.u32 %v1466, 7
    %v1468 = vsub.s32 2, %v1467
    %v1469 = vrot.slane %v1456, %v1468
    %v1470 = vlaneseq
    %v1471 = vshrl.u32 %v1470, 7
    %v1472 = vsub.s32 3, %v1471
    %v1473 = vrot.slane %v1456, %v1472
    %v1474 = vlaneseq
    %v1475 = vshrl.u32 %v1474, 7
    %v1476 = vsub.s32 4, %v1475
    %v1477 = vrot.slane %v1456, %v1476
    %v1478 = vlaneseq
    %v1479 = vshrl.u32 %v1478, 7
    %v1480 = vsub.s32 5, %v1479
    %v1481 = vrot.slane %v1456, %v1480
    %v1482 = vlaneseq
    %v1483 = vshrl.u32 %v1482, 7
    %v1484 = vsub.s32 6, %v1483
    %v1485 = vrot.slane %v1456, %v1484
    %v1486 = vlaneseq
    %v1487 = vshrl.u32 %v1486, 7
    %v1488 = vsub.s32 7, %v1487
    %v1489 = vrot.slane %v1456, %v1488
    %v1498 = vsub.f32 %v1373, %v1461
    %v1499 = vsub.f32 %v1374, %v1465
    %v1500 = vsub.f32 %v1375, %v1469
    %v1501 = vsub.f32 %v1376, %v1473
    %v1502 = vsub.f32 %v1377, %v1477
    %v1503 = vsub.f32 %v1378, %v1481
    %v1504 = vsub.f32 %v1379, %v1485
    %v1505 = vsub.f32 %v1380, %v1489
    %v1506 = vmul.f32 %v1498, 1.442695
    %v1507 = vpow.pop %v1506
    %v1508 = vmul.f32 %v1499, 1.442695
    %v1509 = vpow.pop %v1508
    %v1510 = vmul.f32 %v1500, 1.442695
    %v1511 = vpow.pop %v1510
    %v1512 = vmul.f32 %v1501, 1.442695
    %v1513 = vpow.pop %v1512
    %v1514 = vmul.f32 %v1502, 1.442695
    %v1515 = vpow.pop %v1514
    %v1516 = vmul.f32 %v1503, 1.442695
    %v1517 = vpow.pop %v1516
    %v1518 = vmul.f32 %v1504, 1.442695
    %v1519 = vpow.pop %v1518
    %v1520 = vmul.f32 %v1505, 1.442695
    %v1521 = vpow.pop %v1520
    %1530 = vset.pattern.permute.xlu0 0
    %1531 = vperm.xlu0 %1530, %v1507
    %v1532 = vpop.permute.xlu0 %1531
    %1533 = vset.pattern.permute.xlu0 0
    %1534 = vperm.xlu0 %1533, %v1509
    %v1535 = vpop.permute.xlu0 %1534
    %1536 = vset.pattern.permute.xlu0 0
    %1537 = vperm.xlu0 %1536, %v1511
    %v1538 = vpop.permute.xlu0 %1537
    %1539 = vset.pattern.permute.xlu0 0
    %1540 = vperm.xlu0 %1539, %v1513
    %v1541 = vpop.permute.xlu0 %1540
    %1542 = vset.pattern.permute.xlu0 0
    %1543 = vperm.xlu0 %1542, %v1515
    %v1544 = vpop.permute.xlu0 %1543
    %1545 = vset.pattern.permute.xlu0 0
    %1546 = vperm.xlu0 %1545, %v1517
    %v1547 = vpop.permute.xlu0 %1546
    %1548 = vset.pattern.permute.xlu0 0
    %1549 = vperm.xlu0 %1548, %v1519
    %v1550 = vpop.permute.xlu0 %1549
    %1551 = vset.pattern.permute.xlu0 0
    %1552 = vperm.xlu0 %1551, %v1521
    %v1553 = vpop.permute.xlu0 %1552
    %v1554 = vlaneseq
    %v1555 = vshrl.u32 %v1554, 7
    %v1556 = vsub.s32 %v705, %v1555
    %v1557 = vrot.slane %v1532, %v1556
    %v1558 = vlaneseq
    %v1559 = vshrl.u32 %v1558, 7
    %v1560 = vsub.s32 %v705, %v1559
    %v1561 = vrot.slane %v1535, %v1560
    %v1562 = vlaneseq
    %v1563 = vshrl.u32 %v1562, 7
    %v1564 = vsub.s32 %v705, %v1563
    %v1565 = vrot.slane %v1538, %v1564
    %v1566 = vlaneseq
    %v1567 = vshrl.u32 %v1566, 7
    %v1568 = vsub.s32 %v705, %v1567
    %v1569 = vrot.slane %v1541, %v1568
    %v1570 = vlaneseq
    %v1571 = vshrl.u32 %v1570, 7
    %v1572 = vsub.s32 %v705, %v1571
    %v1573 = vrot.slane %v1544, %v1572
    %v1574 = vlaneseq
    %v1575 = vshrl.u32 %v1574, 7
    %v1576 = vsub.s32 %v705, %v1575
    %v1577 = vrot.slane %v1547, %v1576
    %v1578 = vlaneseq
    %v1579 = vshrl.u32 %v1578, 7
    %v1580 = vsub.s32 %v705, %v1579
    %v1581 = vrot.slane %v1550, %v1580
    %v1582 = vlaneseq
    %v1583 = vshrl.u32 %v1582, 7
    %v1584 = vsub.s32 %v705, %v1583
    %v1585 = vrot.slane %v1553, %v1584
    %v1586 = vsel %vm836, %v1561, %v1557
    %v1587 = vsel %vm839, %v1565, %v1586
    %v1588 = vsel %vm842, %v1569, %v1587
    %v1589 = vsel %vm845, %v1573, %v1588
    %v1590 = vsel %vm848, %v1577, %v1589
    %v1591 = vsel %vm851, %v1581, %v1590
    %v1592 = vsel %vm854, %v1585, %v1591
    %v1594 = vsel %vm1453, %v1592, 0.0
    %1595 = vadd.xlane.f32.xlu0 %v1594
    %v1596 = vpop.xlane.xlu0 %1595
    %v1598 = vlaneseq
    %v1599 = vshrl.u32 %v1598, 7
    %v1600 = vsub.s32 0, %v1599
    %v1601 = vrot.slane %v1596, %v1600
    %v1602 = vlaneseq
    %v1603 = vshrl.u32 %v1602, 7
    %v1604 = vsub.s32 1, %v1603
    %v1605 = vrot.slane %v1596, %v1604
    %v1606 = vlaneseq
    %v1607 = vshrl.u32 %v1606, 7
    %v1608 = vsub.s32 2, %v1607
    %v1609 = vrot.slane %v1596, %v1608
    %v1610 = vlaneseq
    %v1611 = vshrl.u32 %v1610, 7
    %v1612 = vsub.s32 3, %v1611
    %v1613 = vrot.slane %v1596, %v1612
    %v1614 = vlaneseq
    %v1615 = vshrl.u32 %v1614, 7
    %v1616 = vsub.s32 4, %v1615
    %v1617 = vrot.slane %v1596, %v1616
    %v1618 = vlaneseq
    %v1619 = vshrl.u32 %v1618, 7
    %v1620 = vsub.s32 5, %v1619
    %v1621 = vrot.slane %v1596, %v1620
    %v1622 = vlaneseq
    %v1623 = vshrl.u32 %v1622, 7
    %v1624 = vsub.s32 6, %v1623
    %v1625 = vrot.slane %v1596, %v1624
    %v1626 = vlaneseq
    %v1627 = vshrl.u32 %v1626, 7
    %v1628 = vsub.s32 7, %v1627
    %v1629 = vrot.slane %v1596, %v1628
    %v1638 = vrcp.pop %v1601
    %v1639 = vmul.f32 %v1507, %v1638
    %v1640 = vrcp.pop %v1605
    %v1641 = vmul.f32 %v1509, %v1640
    %v1642 = vrcp.pop %v1609
    %v1643 = vmul.f32 %v1511, %v1642
    %v1644 = vrcp.pop %v1613
    %v1645 = vmul.f32 %v1513, %v1644
    %v1646 = vrcp.pop %v1617
    %v1647 = vmul.f32 %v1515, %v1646
    %v1648 = vrcp.pop %v1621
    %v1649 = vmul.f32 %v1517, %v1648
    %v1650 = vrcp.pop %v1625
    %v1651 = vmul.f32 %v1519, %v1650
    %v1652 = vrcp.pop %v1629
    %v1653 = vmul.f32 %v1521, %v1652
    %1655 = vset.pattern.permute.xlu0 0
    %1656 = vperm.xlu0 %1655, %v1639
    %v1657 = vpop.permute.xlu0 %1656
    %1660 = vset.pattern.permute.xlu0 0
    %1661 = vperm.xlu0 %1660, %v1641
    %v1662 = vpop.permute.xlu0 %1661
    %1665 = vset.pattern.permute.xlu0 0
    %1666 = vperm.xlu0 %1665, %v1643
    %v1667 = vpop.permute.xlu0 %1666
    %1670 = vset.pattern.permute.xlu0 0
    %1671 = vperm.xlu0 %1670, %v1645
    %v1672 = vpop.permute.xlu0 %1671
    %1675 = vset.pattern.permute.xlu0 0
    %1676 = vperm.xlu0 %1675, %v1647
    %v1677 = vpop.permute.xlu0 %1676
    %1680 = vset.pattern.permute.xlu0 0
    %1681 = vperm.xlu0 %1680, %v1649
    %v1682 = vpop.permute.xlu0 %1681
    %1685 = vset.pattern.permute.xlu0 0
    %1686 = vperm.xlu0 %1685, %v1651
    %v1687 = vpop.permute.xlu0 %1686
    %1690 = vset.pattern.permute.xlu0 0
    %1691 = vperm.xlu0 %1690, %v1653
    %v1692 = vpop.permute.xlu0 %1691
    %v1694 = vmul.f32 %v1657, %v694
    %v1695 = vmul.f32 %v1662, %v695
    %v1696 = vmul.f32 %v1667, %v696
    %v1697 = vmul.f32 %v1672, %v697
    %v1698 = vmul.f32 %v1677, %v698
    %v1699 = vmul.f32 %v1682, %v699
    %v1700 = vmul.f32 %v1687, %v700
    %v1701 = vmul.f32 %v1692, %v701
    %v1702 = vsel %vm1283, %v1694, 0.0
    %v1703 = vrot.slane %v1702, 4
    %v1704 = vadd.f32 %v1702, %v1703
    %v1705 = vrot.slane %v1704, 2
    %v1706 = vadd.f32 %v1704, %v1705
    %v1707 = vrot.slane %v1706, 1
    %v1708 = vadd.f32 %v1706, %v1707
    %v1709 = vsel %vm1283, %v1695, 0.0
    %v1710 = vrot.slane %v1709, 4
    %v1711 = vadd.f32 %v1709, %v1710
    %v1712 = vrot.slane %v1711, 2
    %v1713 = vadd.f32 %v1711, %v1712
    %v1714 = vrot.slane %v1713, 1
    %v1715 = vadd.f32 %v1713, %v1714
    %v1716 = vsel %vm1283, %v1696, 0.0
    %v1717 = vrot.slane %v1716, 4
    %v1718 = vadd.f32 %v1716, %v1717
    %v1719 = vrot.slane %v1718, 2
    %v1720 = vadd.f32 %v1718, %v1719
    %v1721 = vrot.slane %v1720, 1
    %v1722 = vadd.f32 %v1720, %v1721
    %v1723 = vsel %vm1283, %v1697, 0.0
    %v1724 = vrot.slane %v1723, 4
    %v1725 = vadd.f32 %v1723, %v1724
    %v1726 = vrot.slane %v1725, 2
    %v1727 = vadd.f32 %v1725, %v1726
    %v1728 = vrot.slane %v1727, 1
    %v1729 = vadd.f32 %v1727, %v1728
    %v1730 = vsel %vm1283, %v1698, 0.0
    %v1731 = vrot.slane %v1730, 4
    %v1732 = vadd.f32 %v1730, %v1731
    %v1733 = vrot.slane %v1732, 2
    %v1734 = vadd.f32 %v1732, %v1733
    %v1735 = vrot.slane %v1734, 1
    %v1736 = vadd.f32 %v1734, %v1735
    %v1737 = vsel %vm1283, %v1699, 0.0
    %v1738 = vrot.slane %v1737, 4
    %v1739 = vadd.f32 %v1737, %v1738
    %v1740 = vrot.slane %v1739, 2
    %v1741 = vadd.f32 %v1739, %v1740
    %v1742 = vrot.slane %v1741, 1
    %v1743 = vadd.f32 %v1741, %v1742
    %v1744 = vsel %vm1283, %v1700, 0.0
    %v1745 = vrot.slane %v1744, 4
    %v1746 = vadd.f32 %v1744, %v1745
    %v1747 = vrot.slane %v1746, 2
    %v1748 = vadd.f32 %v1746, %v1747
    %v1749 = vrot.slane %v1748, 1
    %v1750 = vadd.f32 %v1748, %v1749
    %v1751 = vsel %vm1283, %v1701, 0.0
    %v1752 = vrot.slane %v1751, 4
    %v1753 = vadd.f32 %v1751, %v1752
    %v1754 = vrot.slane %v1753, 2
    %v1755 = vadd.f32 %v1753, %v1754
    %v1756 = vrot.slane %v1755, 1
    %v1757 = vadd.f32 %v1755, %v1756
    %v1758 = vpack.c.bf16 %v1708, %v1708
    %v1759 = vpack.c.bf16 %v1715, %v1715
    %v1760 = vpack.c.bf16 %v1722, %v1722
    %v1761 = vpack.c.bf16 %v1729, %v1729
    %v1762 = vpack.c.bf16 %v1736, %v1736
    %v1763 = vpack.c.bf16 %v1743, %v1743
    %v1764 = vpack.c.bf16 %v1750, %v1750
    %v1765 = vpack.c.bf16 %v1757, %v1757
    %v1774 = vunpack.c.l.b16 %v1758
    %v1775 = vunpack.c.l.b16 %v1759
    %v1776 = vunpack.c.l.b16 %v1760
    %v1777 = vunpack.c.l.b16 %v1761
    %v1778 = vunpack.c.l.b16 %v1762
    %v1779 = vunpack.c.l.b16 %v1763
    %v1780 = vunpack.c.l.b16 %v1764
    %v1781 = vunpack.c.l.b16 %v1765
    %v1782 = vsel %vm836, %v1775, %v1774
    %v1783 = vsel %vm839, %v1776, %v1782
    %v1784 = vsel %vm842, %v1777, %v1783
    %v1785 = vsel %vm845, %v1778, %v1784
    %v1786 = vsel %vm848, %v1779, %v1785
    %v1787 = vsel %vm851, %v1780, %v1786
    %v1788 = vsel %vm854, %v1781, %v1787
    %v1789 = vpack.c.b16 %v1788, %v1788
    %v1794 = vunpack.c.l.b16 %v157
    %v1795 = vunpack.c.l.b16 %v158
    %v1796 = vunpack.c.l.b16 %v159
    %v1797 = vunpack.c.l.b16 %v160
    %v1798 = vpack.c.b16 %v1795, %v1794
    %v1799 = vpack.c.b16 %v1797, %v1796
    %v1803 = vsel %vm519, %v1789, 0
    %1805 = vmatprep.subr.bf16.mxu0 0
    %1806 = vmatpush1.bf16.msra.mxu0 0
    %1807 = vmatprep.subr.bf16.mxu0 0
    %1808 = vmatpush1.bf16.msra.mxu0 0
    %1809 = vmatprep.subr.bf16.mxu0 0
    %1810 = vmatpush1.bf16.msra.mxu0 0
    %1811 = vmatprep.subr.bf16.mxu0 0
    %1812 = vmatpush1.bf16.msra.mxu0 0
    %1813 = vmatprep.subr.bf16.mxu0 0
    %1814 = vmatpush1.bf16.msra.mxu0 0
    %1815 = vmatprep.subr.bf16.mxu0 0
    %1816 = vmatpush1.bf16.msra.mxu0 0
    %1817 = vmatprep.subr.bf16.mxu0 0
    %1818 = vmatpush1.bf16.msra.mxu0 %v1799
    %1819 = vmatprep.subr.bf16.mxu0 0
    %1820 = vmatpush1.bf16.msra.mxu0 %v1798
    %1821 = vmatprep.subr.bf16.mxu0 0
    %1822 = vmatpush2.bf16.msra.mxu0 0
    %1823 = vmatprep.subr.bf16.mxu0 0
    %1824 = vmatpush2.bf16.msra.mxu0 0
    %1825 = vmatprep.subr.bf16.mxu0 0
    %1826 = vmatpush2.bf16.msra.mxu0 0
    %1827 = vmatprep.subr.bf16.mxu0 0
    %1828 = vmatpush2.bf16.msra.mxu0 0
    %1829 = vmatprep.subr.bf16.mxu0 0
    %1830 = vmatpush2.bf16.msra.mxu0 0
    %1831 = vmatprep.subr.bf16.mxu0 0
    %1832 = vmatpush2.bf16.msra.mxu0 0
    %1833 = vmatprep.subr.bf16.mxu0 0
    %1834 = vmatpush2.bf16.msra.mxu0 0
    %1835 = vmatprep.subr.bf16.mxu0 0
    %1836 = vmatpush2.bf16.msra.mxu0 0
    %1837 = vmatprep.mubr.bf16.mxu0 0
    %1838 = vmatmul.mubr.bf16.gmra.mxu0 %v1803
    %v1839 = vpop.f32.mrf.mxu0
    %v1840 = vadd.f32 0.0, %v1839
    %v1841 = vpop.f32.mrf.mxu0
    %v1842 = vpop.f32.mrf.mxu0
    %v1843 = vpop.f32.mrf.mxu0
    %1844 = vdwg.mxu0
    %1846 = vrot.lane.b32.xlu0 %v1000, 32
    %v1847 = vpop.permute.xlu0 %1846
    %v1852 = vunpack.c.l.b16 %v153
    %v1853 = vunpack.c.l.b16 %v154
    %v1854 = vunpack.c.l.b16 %v155
    %v1855 = vunpack.c.l.b16 %v156
    %v1856 = vpack.c.b16 %v1853, %v1852
    %v1857 = vpack.c.b16 %v1855, %v1854
    %v1861 = vsel %vm519, %v1847, 0
    %1863 = vmatprep.subr.bf16.mxu0 0
    %1864 = vmatpush1.bf16.msra.mxu0 0
    %1865 = vmatprep.subr.bf16.mxu0 0
    %1866 = vmatpush1.bf16.msra.mxu0 0
    %1867 = vmatprep.subr.bf16.mxu0 0
    %1868 = vmatpush1.bf16.msra.mxu0 0
    %1869 = vmatprep.subr.bf16.mxu0 0
    %1870 = vmatpush1.bf16.msra.mxu0 0
    %1871 = vmatprep.subr.bf16.mxu0 0
    %1872 = vmatpush1.bf16.msra.mxu0 0
    %1873 = vmatprep.subr.bf16.mxu0 0
    %1874 = vmatpush1.bf16.msra.mxu0 0
    %1875 = vmatprep.subr.bf16.mxu0 0
    %1876 = vmatpush1.bf16.msra.mxu0 %v1857
    %1877 = vmatprep.subr.bf16.mxu0 0
    %1878 = vmatpush1.bf16.msra.mxu0 %v1856
    %1879 = vmatprep.subr.bf16.mxu0 0
    %1880 = vmatpush2.bf16.msra.mxu0 0
    %1881 = vmatprep.subr.bf16.mxu0 0
    %1882 = vmatpush2.bf16.msra.mxu0 0
    %1883 = vmatprep.subr.bf16.mxu0 0
    %1884 = vmatpush2.bf16.msra.mxu0 0
    %1885 = vmatprep.subr.bf16.mxu0 0
    %1886 = vmatpush2.bf16.msra.mxu0 0
    %1887 = vmatprep.subr.bf16.mxu0 0
    %1888 = vmatpush2.bf16.msra.mxu0 0
    %1889 = vmatprep.subr.bf16.mxu0 0
    %1890 = vmatpush2.bf16.msra.mxu0 0
    %1891 = vmatprep.subr.bf16.mxu0 0
    %1892 = vmatpush2.bf16.msra.mxu0 0
    %1893 = vmatprep.subr.bf16.mxu0 0
    %1894 = vmatpush2.bf16.msra.mxu0 0
    %1895 = vmatprep.mubr.bf16.mxu0 0
    %1896 = vmatmul.mubr.bf16.gmra.mxu0 %v1861
    %v1897 = vpop.f32.mrf.mxu0
    %v1898 = vadd.f32 %v1840, %v1897
    %v1899 = vpop.f32.mrf.mxu0
    %v1900 = vpop.f32.mrf.mxu0
    %v1901 = vpop.f32.mrf.mxu0
    %1902 = vdwg.mxu0
    %v1904 = vlaneseq
    %v1905 = vshrl.u32 %v1904, 7
    %v1906 = vsub.s32 0, %v1905
    %v1907 = vrot.slane %v161, %v1906
    %v1909 = vadd.f32 %v1898, %v1907
    %1910 = vst [vmem:[#allocation9] sm:$0xff] %v1909
    %v1915 = vunpack.c.l.b16 %v148
    %v1916 = vunpack.c.l.b16 %v149
    %v1917 = vunpack.c.l.b16 %v150
    %v1918 = vunpack.c.l.b16 %v151
    %v1919 = vpack.c.b16 %v1916, %v1915
    %v1920 = vpack.c.b16 %v1918, %v1917
    %1923 = vmatprep.subr.bf16.mxu0 0
    %1924 = vmatpush1.bf16.msra.mxu0 0
    %1925 = vmatprep.subr.bf16.mxu0 0
    %1926 = vmatpush1.bf16.msra.mxu0 0
    %1927 = vmatprep.subr.bf16.mxu0 0
    %1928 = vmatpush1.bf16.msra.mxu0 0
    %1929 = vmatprep.subr.bf16.mxu0 0
    %1930 = vmatpush1.bf16.msra.mxu0 0
    %1931 = vmatprep.subr.bf16.mxu0 0
    %1932 = vmatpush1.bf16.msra.mxu0 0
    %1933 = vmatprep.subr.bf16.mxu0 0
    %1934 = vmatpush1.bf16.msra.mxu0 0
    %1935 = vmatprep.subr.bf16.mxu0 0
    %1936 = vmatpush1.bf16.msra.mxu0 %v1920
    %1937 = vmatprep.subr.bf16.mxu0 0
    %1938 = vmatpush1.bf16.msra.mxu0 %v1919
    %1939 = vmatprep.subr.bf16.mxu0 0
    %1940 = vmatpush2.bf16.msra.mxu0 0
    %1941 = vmatprep.subr.bf16.mxu0 0
    %1942 = vmatpush2.bf16.msra.mxu0 0
    %1943 = vmatprep.subr.bf16.mxu0 0
    %1944 = vmatpush2.bf16.msra.mxu0 0
    %1945 = vmatprep.subr.bf16.mxu0 0
    %1946 = vmatpush2.bf16.msra.mxu0 0
    %1947 = vmatprep.subr.bf16.mxu0 0
    %1948 = vmatpush2.bf16.msra.mxu0 0
    %1949 = vmatprep.subr.bf16.mxu0 0
    %1950 = vmatpush2.bf16.msra.mxu0 0
    %1951 = vmatprep.subr.bf16.mxu0 0
    %1952 = vmatpush2.bf16.msra.mxu0 0
    %1953 = vmatprep.subr.bf16.mxu0 0
    %1954 = vmatpush2.bf16.msra.mxu0 0
    %1955 = vmatprep.mubr.bf16.mxu0 0
    %1956 = vmatmul.mubr.bf16.gmra.mxu0 %v719
    %v1957 = vpop.f32.mrf.mxu0
    %v1958 = vadd.f32 0.0, %v1957
    %v1959 = vpop.f32.mrf.mxu0
    %v1960 = vpop.f32.mrf.mxu0
    %v1961 = vpop.f32.mrf.mxu0
    %1962 = vdwg.mxu0
    %v1967 = vunpack.c.l.b16 %v144
    %v1968 = vunpack.c.l.b16 %v145
    %v1969 = vunpack.c.l.b16 %v146
    %v1970 = vunpack.c.l.b16 %v147
    %v1971 = vpack.c.b16 %v1968, %v1967
    %v1972 = vpack.c.b16 %v1970, %v1969
    %1975 = vmatprep.subr.bf16.mxu0 0
    %1976 = vmatpush1.bf16.msra.mxu0 0
    %1977 = vmatprep.subr.bf16.mxu0 0
    %1978 = vmatpush1.bf16.msra.mxu0 0
    %1979 = vmatprep.subr.bf16.mxu0 0
    %1980 = vmatpush1.bf16.msra.mxu0 0
    %1981 = vmatprep.subr.bf16.mxu0 0
    %1982 = vmatpush1.bf16.msra.mxu0 0
    %1983 = vmatprep.subr.bf16.mxu0 0
    %1984 = vmatpush1.bf16.msra.mxu0 0
    %1985 = vmatprep.subr.bf16.mxu0 0
    %1986 = vmatpush1.bf16.msra.mxu0 0
    %1987 = vmatprep.subr.bf16.mxu0 0
    %1988 = vmatpush1.bf16.msra.mxu0 %v1972
    %1989 = vmatprep.subr.bf16.mxu0 0
    %1990 = vmatpush1.bf16.msra.mxu0 %v1971
    %1991 = vmatprep.subr.bf16.mxu0 0
    %1992 = vmatpush2.bf16.msra.mxu0 0
    %1993 = vmatprep.subr.bf16.mxu0 0
    %1994 = vmatpush2.bf16.msra.mxu0 0
    %1995 = vmatprep.subr.bf16.mxu0 0
    %1996 = vmatpush2.bf16.msra.mxu0 0
    %1997 = vmatprep.subr.bf16.mxu0 0
    %1998 = vmatpush2.bf16.msra.mxu0 0
    %1999 = vmatprep.subr.bf16.mxu0 0
    %2000 = vmatpush2.bf16.msra.mxu0 0
    %2001 = vmatprep.subr.bf16.mxu0 0
    %2002 = vmatpush2.bf16.msra.mxu0 0
    %2003 = vmatprep.subr.bf16.mxu0 0
    %2004 = vmatpush2.bf16.msra.mxu0 0
    %2005 = vmatprep.subr.bf16.mxu0 0
    %2006 = vmatpush2.bf16.msra.mxu0 0
    %2007 = vmatprep.mubr.bf16.mxu0 0
    %2008 = vmatmul.mubr.bf16.gmra.mxu0 %v1861
    %v2009 = vpop.f32.mrf.mxu0
    %v2010 = vadd.f32 %v1958, %v2009
    %v2011 = vpop.f32.mrf.mxu0
    %v2012 = vpop.f32.mrf.mxu0
    %v2013 = vpop.f32.mrf.mxu0
    %2014 = vdwg.mxu0
    %v2016 = vlaneseq
    %v2017 = vshrl.u32 %v2016, 7
    %v2018 = vsub.s32 0, %v2017
    %v2019 = vrot.slane %v152, %v2018
    %v2021 = vadd.f32 %v2010, %v2019
    %2022 = vmax.xlane.f32.xlu0 %v2021
    %v2023 = vpop.xlane.xlu0 %2022
    %v2024 = vsub.f32 %v2021, %v2023
    %v2025 = vmul.f32 %v2024, 1.442695
    %v2026 = vpow.pop %v2025
    %2027 = vadd.xlane.f32.xlu0 %v2026
    %v2028 = vpop.xlane.xlu0 %2027
    %v2029 = vlog2.pop %v2028
    %v2030 = vmul.f32 %v2029, 0.6931472
    %v2031 = vadd.f32 %v2023, %v2030
    %v2032 = vsub.f32 %v2021, %v2031
    %2033 = vst [vmem:[#allocation8] sm:$0xff] %v2032
    %2034 = vmax.xlane.f32.xlu0 %v2032
    %v2035 = vpop.xlane.xlu0 %2034
    %vm2036 = vcmp.ge.f32.partialorder %v2032, %v2035
    %v2037 = vsel %vm2036, %v705, 128
    %v2038 = vand.u32 %v2037, 65535
    %v2039 = vshra.s32 %v2037, 16
    %v2040 = vcvt.s32.f32 %v2038
    %v2041 = vcvt.s32.f32 %v2039
    %2042 = vmin.xlane.f32.xlu0 %v2041
    %v2043 = vpop.xlane.xlu0 %2042
    %vm2044 = vcmp.eq.f32.partialorder %v2041, %v2043
    %v2045 = vsel %vm2044, %v2040, inf
    %2046 = vmin.xlane.f32.xlu0 %v2045
    %v2047 = vpop.xlane.xlu0 %2046
    %v2048 = vcvt.f32.s32 %v2047
    %v2049 = vcvt.f32.s32 %v2043
    %v2050 = vshll.u32 %v2049, 16
    %v2051 = vadd.s32 %v2050, %v2048
    %vm2052 = vcmp.eq.s32.totalorder %v705, %v2051
    %v2053 = vsel %vm2052, 1, 0
    %v2054 = vcvt.s32.f32 %v2053
    %v2055 = vpack.c.bf16 %v2054, %v2054
    %v2072 = vunpack.c.l.b16 %v99
    %v2073 = vunpack.c.l.b16 %v100
    %v2074 = vunpack.c.l.b16 %v101
    %v2075 = vunpack.c.l.b16 %v102
    %v2076 = vunpack.c.l.b16 %v103
    %v2077 = vunpack.c.l.b16 %v104
    %v2078 = vunpack.c.l.b16 %v105
    %v2079 = vunpack.c.l.b16 %v106
    %v2080 = vunpack.c.l.b16 %v107
    %v2081 = vunpack.c.l.b16 %v108
    %v2082 = vunpack.c.l.b16 %v109
    %v2083 = vunpack.c.l.b16 %v110
    %v2084 = vunpack.c.l.b16 %v111
    %v2085 = vunpack.c.l.b16 %v112
    %v2086 = vunpack.c.l.b16 %v113
    %v2087 = vunpack.c.l.b16 %v114
    %v2088 = vpack.c.b16 %v2073, %v2072
    %v2089 = vpack.c.b16 %v2075, %v2074
    %v2090 = vpack.c.b16 %v2077, %v2076
    %v2091 = vpack.c.b16 %v2079, %v2078
    %v2092 = vpack.c.b16 %v2081, %v2080
    %v2093 = vpack.c.b16 %v2083, %v2082
    %v2094 = vpack.c.b16 %v2085, %v2084
    %v2095 = vpack.c.b16 %v2087, %v2086
    %2104 = vmatprep.subr.bf16.mxu0 0
    %2105 = vmatpush1.bf16.msra.mxu0 %v2095
    %2106 = vmatprep.subr.bf16.mxu0 0
    %2107 = vmatpush1.bf16.msra.mxu0 %v2094
    %2108 = vmatprep.subr.bf16.mxu0 0
    %2109 = vmatpush1.bf16.msra.mxu0 %v2093
    %2110 = vmatprep.subr.bf16.mxu0 0
    %2111 = vmatpush1.bf16.msra.mxu0 %v2092
    %2112 = vmatprep.subr.bf16.mxu0 0
    %2113 = vmatpush1.bf16.msra.mxu0 %v2091
    %2114 = vmatprep.subr.bf16.mxu0 0
    %2115 = vmatpush1.bf16.msra.mxu0 %v2090
    %2116 = vmatprep.subr.bf16.mxu0 0
    %2117 = vmatpush1.bf16.msra.mxu0 %v2089
    %2118 = vmatprep.subr.bf16.mxu0 0
    %2119 = vmatpush1.bf16.msra.mxu0 %v2088
    %2120 = vmatprep.subr.bf16.mxu0 0
    %2121 = vmatpush2.bf16.msra.mxu0 0
    %2122 = vmatprep.subr.bf16.mxu0 0
    %2123 = vmatpush2.bf16.msra.mxu0 0
    %2124 = vmatprep.subr.bf16.mxu0 0
    %2125 = vmatpush2.bf16.msra.mxu0 0
    %2126 = vmatprep.subr.bf16.mxu0 0
    %2127 = vmatpush2.bf16.msra.mxu0 0
    %2128 = vmatprep.subr.bf16.mxu0 0
    %2129 = vmatpush2.bf16.msra.mxu0 0
    %2130 = vmatprep.subr.bf16.mxu0 0
    %2131 = vmatpush2.bf16.msra.mxu0 0
    %2132 = vmatprep.subr.bf16.mxu0 0
    %2133 = vmatpush2.bf16.msra.mxu0 0
    %2134 = vmatprep.subr.bf16.mxu0 0
    %2135 = vmatpush2.bf16.msra.mxu0 0
    %2136 = vmatprep.mubr.bf16.mxu0 0
    %2137 = vmatmul.mubr.bf16.gmra.mxu0 %v2055
    %v2138 = vpop.f32.mrf.mxu0
    %v2139 = vadd.f32 0.0, %v2138
    %v2140 = vpop.f32.mrf.mxu0
    %v2141 = vpop.f32.mrf.mxu0
    %v2142 = vpop.f32.mrf.mxu0
    %2143 = vdwg.mxu0
    %v2144 = vpack.c.bf16 %v2139, %v2139
    %2145 = vmatprep.subr.bf16.mxu0 0
    %2146 = vmatpush1.bf16.msra.mxu0 0
    %2147 = vmatprep.subr.bf16.mxu0 0
    %2148 = vmatpush1.bf16.msra.mxu0 0
    %2149 = vmatprep.subr.bf16.mxu0 0
    %2150 = vmatpush1.bf16.msra.mxu0 0
    %2151 = vmatprep.subr.bf16.mxu0 0
    %2152 = vmatpush1.bf16.msra.mxu0 0
    %2153 = vmatprep.subr.bf16.mxu0 0
    %2154 = vmatpush1.bf16.msra.mxu0 0
    %2155 = vmatprep.subr.bf16.mxu0 0
    %2156 = vmatpush1.bf16.msra.mxu0 0
    %2157 = vmatprep.subr.bf16.mxu0 0
    %2158 = vmatpush1.bf16.msra.mxu0 %v715
    %2159 = vmatprep.subr.bf16.mxu0 0
    %2160 = vmatpush1.bf16.msra.mxu0 %v714
    %2161 = vmatprep.subr.bf16.mxu0 0
    %2162 = vmatpush2.bf16.msra.mxu0 0
    %2163 = vmatprep.subr.bf16.mxu0 0
    %2164 = vmatpush2.bf16.msra.mxu0 0
    %2165 = vmatprep.subr.bf16.mxu0 0
    %2166 = vmatpush2.bf16.msra.mxu0 0
    %2167 = vmatprep.subr.bf16.mxu0 0
    %2168 = vmatpush2.bf16.msra.mxu0 0
    %2169 = vmatprep.subr.bf16.mxu0 0
    %2170 = vmatpush2.bf16.msra.mxu0 0
    %2171 = vmatprep.subr.bf16.mxu0 0
    %2172 = vmatpush2.bf16.msra.mxu0 0
    %2173 = vmatprep.subr.bf16.mxu0 0
    %2174 = vmatpush2.bf16.msra.mxu0 0
    %2175 = vmatprep.subr.bf16.mxu0 0
    %2176 = vmatpush2.bf16.msra.mxu0 0
    %2177 = vmatprep.mubr.bf16.mxu0 0
    %2178 = vmatmul.mubr.bf16.gmra.mxu0 %v1803
    %v2179 = vpop.f32.mrf.mxu0
    %v2180 = vadd.f32 0.0, %v2179
    %v2181 = vpop.f32.mrf.mxu0
    %v2182 = vpop.f32.mrf.mxu0
    %v2183 = vpop.f32.mrf.mxu0
    %2184 = vdwg.mxu0
    %v2186 = vsel %vm767, %v2144, 0
    %2188 = vmatprep.subr.bf16.mxu0 0
    %2189 = vmatpush1.bf16.msra.mxu0 0
    %2190 = vmatprep.subr.bf16.mxu0 0
    %2191 = vmatpush1.bf16.msra.mxu0 0
    %2192 = vmatprep.subr.bf16.mxu0 0
    %2193 = vmatpush1.bf16.msra.mxu0 0
    %2194 = vmatprep.subr.bf16.mxu0 0
    %2195 = vmatpush1.bf16.msra.mxu0 0
    %2196 = vmatprep.subr.bf16.mxu0 0
    %2197 = vmatpush1.bf16.msra.mxu0 0
    %2198 = vmatprep.subr.bf16.mxu0 0
    %2199 = vmatpush1.bf16.msra.mxu0 0
    %2200 = vmatprep.subr.bf16.mxu0 0
    %2201 = vmatpush1.bf16.msra.mxu0 0
    %2202 = vmatprep.subr.bf16.mxu0 0
    %2203 = vmatpush1.bf16.msra.mxu0 %v765
    %2204 = vmatprep.subr.bf16.mxu0 0
    %2205 = vmatpush2.bf16.msra.mxu0 0
    %2206 = vmatprep.subr.bf16.mxu0 0
    %2207 = vmatpush2.bf16.msra.mxu0 0
    %2208 = vmatprep.subr.bf16.mxu0 0
    %2209 = vmatpush2.bf16.msra.mxu0 0
    %2210 = vmatprep.subr.bf16.mxu0 0
    %2211 = vmatpush2.bf16.msra.mxu0 0
    %2212 = vmatprep.subr.bf16.mxu0 0
    %2213 = vmatpush2.bf16.msra.mxu0 0
    %2214 = vmatprep.subr.bf16.mxu0 0
    %2215 = vmatpush2.bf16.msra.mxu0 0
    %2216 = vmatprep.subr.bf16.mxu0 0
    %2217 = vmatpush2.bf16.msra.mxu0 0
    %2218 = vmatprep.subr.bf16.mxu0 0
    %2219 = vmatpush2.bf16.msra.mxu0 0
    %2220 = vmatprep.mubr.bf16.mxu0 0
    %2221 = vmatmul.mubr.bf16.gmra.mxu0 %v2186
    %v2222 = vpop.f32.mrf.mxu0
    %v2223 = vadd.f32 %v2180, %v2222
    %v2224 = vpop.f32.mrf.mxu0
    %v2225 = vpop.f32.mrf.mxu0
    %v2226 = vpop.f32.mrf.mxu0
    %2227 = vdwg.mxu0
    %v2228 = vrot.slane %v827, 1
    %v2229 = vsel %vm836, %v828, %v2228
    %v2230 = vrot.slane %v829, 7
    %v2231 = vsel %vm839, %v2230, %v2229
    %v2232 = vrot.slane %v830, 6
    %v2233 = vsel %vm842, %v2232, %v2231
    %v2234 = vrot.slane %v831, 5
    %v2235 = vsel %vm845, %v2234, %v2233
    %v2236 = vrot.slane %v832, 4
    %v2237 = vsel %vm848, %v2236, %v2235
    %v2238 = vrot.slane %v833, 3
    %v2239 = vsel %vm851, %v2238, %v2237
    %v2240 = vrot.slane %v834, 2
    %v2241 = vsel %vm854, %v2240, %v2239
    %v2242 = vpack.c.b16 %v2241, %v2241
    %v2244 = vsel %vm519, %v2242, 0
    %2246 = vmatprep.subr.bf16.mxu0 0
    %2247 = vmatpush1.bf16.msra.mxu0 0
    %2248 = vmatprep.subr.bf16.mxu0 0
    %2249 = vmatpush1.bf16.msra.mxu0 0
    %2250 = vmatprep.subr.bf16.mxu0 0
    %2251 = vmatpush1.bf16.msra.mxu0 0
    %2252 = vmatprep.subr.bf16.mxu0 0
    %2253 = vmatpush1.bf16.msra.mxu0 0
    %2254 = vmatprep.subr.bf16.mxu0 0
    %2255 = vmatpush1.bf16.msra.mxu0 0
    %2256 = vmatprep.subr.bf16.mxu0 0
    %2257 = vmatpush1.bf16.msra.mxu0 0
    %2258 = vmatprep.subr.bf16.mxu0 0
    %2259 = vmatpush1.bf16.msra.mxu0 %v866
    %2260 = vmatprep.subr.bf16.mxu0 0
    %2261 = vmatpush1.bf16.msra.mxu0 %v865
    %2262 = vmatprep.subr.bf16.mxu0 0
    %2263 = vmatpush2.bf16.msra.mxu0 0
    %2264 = vmatprep.subr.bf16.mxu0 0
    %2265 = vmatpush2.bf16.msra.mxu0 0
    %2266 = vmatprep.subr.bf16.mxu0 0
    %2267 = vmatpush2.bf16.msra.mxu0 0
    %2268 = vmatprep.subr.bf16.mxu0 0
    %2269 = vmatpush2.bf16.msra.mxu0 0
    %2270 = vmatprep.subr.bf16.mxu0 0
    %2271 = vmatpush2.bf16.msra.mxu0 0
    %2272 = vmatprep.subr.bf16.mxu0 0
    %2273 = vmatpush2.bf16.msra.mxu0 0
    %2274 = vmatprep.subr.bf16.mxu0 0
    %2275 = vmatpush2.bf16.msra.mxu0 0
    %2276 = vmatprep.subr.bf16.mxu0 0
    %2277 = vmatpush2.bf16.msra.mxu0 0
    %2278 = vmatprep.mubr.bf16.mxu0 0
    %2279 = vmatmul.mubr.bf16.gmra.mxu0 %v2244
    %v2280 = vpop.f32.mrf.mxu0
    %v2281 = vadd.f32 0.0, %v2280
    %v2282 = vpop.f32.mrf.mxu0
    %v2283 = vpop.f32.mrf.mxu0
    %v2284 = vpop.f32.mrf.mxu0
    %2285 = vdwg.mxu0
    %v2286 = vadd.f32 %v2223, %v2281
    %2287 = vmatprep.subr.bf16.mxu0 0
    %2288 = vmatpush1.bf16.msra.mxu0 0
    %2289 = vmatprep.subr.bf16.mxu0 0
    %2290 = vmatpush1.bf16.msra.mxu0 0
    %2291 = vmatprep.subr.bf16.mxu0 0
    %2292 = vmatpush1.bf16.msra.mxu0 0
    %2293 = vmatprep.subr.bf16.mxu0 0
    %2294 = vmatpush1.bf16.msra.mxu0 0
    %2295 = vmatprep.subr.bf16.mxu0 0
    %2296 = vmatpush1.bf16.msra.mxu0 0
    %2297 = vmatprep.subr.bf16.mxu0 0
    %2298 = vmatpush1.bf16.msra.mxu0 0
    %2299 = vmatprep.subr.bf16.mxu0 0
    %2300 = vmatpush1.bf16.msra.mxu0 %v922
    %2301 = vmatprep.subr.bf16.mxu0 0
    %2302 = vmatpush1.bf16.msra.mxu0 %v921
    %2303 = vmatprep.subr.bf16.mxu0 0
    %2304 = vmatpush2.bf16.msra.mxu0 0
    %2305 = vmatprep.subr.bf16.mxu0 0
    %2306 = vmatpush2.bf16.msra.mxu0 0
    %2307 = vmatprep.subr.bf16.mxu0 0
    %2308 = vmatpush2.bf16.msra.mxu0 0
    %2309 = vmatprep.subr.bf16.mxu0 0
    %2310 = vmatpush2.bf16.msra.mxu0 0
    %2311 = vmatprep.subr.bf16.mxu0 0
    %2312 = vmatpush2.bf16.msra.mxu0 0
    %2313 = vmatprep.subr.bf16.mxu0 0
    %2314 = vmatpush2.bf16.msra.mxu0 0
    %2315 = vmatprep.subr.bf16.mxu0 0
    %2316 = vmatpush2.bf16.msra.mxu0 0
    %2317 = vmatprep.subr.bf16.mxu0 0
    %2318 = vmatpush2.bf16.msra.mxu0 0
    %2319 = vmatprep.mubr.bf16.mxu0 0
    %2320 = vmatmul.mubr.bf16.gmra.mxu0 %v1861
    %v2321 = vpop.f32.mrf.mxu0
    %v2322 = vadd.f32 0.0, %v2321
    %v2323 = vpop.f32.mrf.mxu0
    %v2324 = vpop.f32.mrf.mxu0
    %v2325 = vpop.f32.mrf.mxu0
    %2326 = vdwg.mxu0
    %v2327 = vadd.f32 %v2286, %v2322
    %v2328 = vadd.f32 %v2327, %v973
    %v2329 = vxor.u32 %v2328, 2147483648
    %v2330 = vmul.f32 %v2329, 1.442695
    %v2331 = vpow.pop %v2330
    %v2332 = vadd.f32 %v2331, 1.0
    %v2333 = vrcp.pop %v2332
    %v2334 = vmul.f32 1.0, %v2333
    %v2335 = vtanh.pop %v2328
    %v2336 = vmul.f32 %v2334, %v993
    %2338 = vrot.lane.b32.xlu0 %v2335, 64
    %v2339 = vpop.permute.xlu0 %2338
    %v2341 = vmul.f32 %v2334, %v2339
    %2343 = vrot.lane.b32.xlu0 %v2341, 32
    %v2344 = vpop.permute.xlu0 %2343
    %v2346 = vadd.f32 %v2336, %v2344
    %v2347 = vtanh.pop %v2346
    %2349 = vrot.lane.b32.xlu0 %v2347, 64
    %v2350 = vpop.permute.xlu0 %2349
    %v2352 = vmul.f32 %v2334, %v2350
    %v2353 = vpack.c.bf16 %v2352, %v2352
    %v2355 = vcombine.high %v2352, %v2352
    %v2357 = vunpack.c.l.s4 1966171168
    %v2358 = vunpack.c.0.s8 %v2357
    %v2359 = vlaneseq
    %v2360 = vshrl.u32 %v2359, 7
    %v2361 = vsub.s32 %v2358, %v2360
    %v2362 = vrot.slane %v2352, %v2361
    %v2364 = vunpack.c.l.s4 1966171168
    %v2365 = vunpack.c.0.s8 %v2364
    %v2366 = vlaneseq
    %v2367 = vshrl.u32 %v2366, 7
    %v2368 = vsub.s32 %v2365, %v2367
    %v2369 = vrot.slane %v2355, %v2368
    %v2370 = vcombine.high %v2362, %v2362
    %v2371 = vcombine.high %v2369, %v2369
    %v2373 = vunpack.c.l.s4 1966171168
    %v2374 = vunpack.c.0.s8 %v2373
    %v2375 = vlaneseq
    %v2376 = vshrl.u32 %v2375, 7
    %v2377 = vsub.s32 %v2374, %v2376
    %v2378 = vrot.slane %v2362, %v2377
    %v2380 = vunpack.c.l.s4 1966171168
    %v2381 = vunpack.c.0.s8 %v2380
    %v2382 = vlaneseq
    %v2383 = vshrl.u32 %v2382, 7
    %v2384 = vsub.s32 %v2381, %v2383
    %v2385 = vrot.slane %v2369, %v2384
    %v2387 = vunpack.c.l.s4 1966171168
    %v2388 = vunpack.c.0.s8 %v2387
    %v2389 = vlaneseq
    %v2390 = vshrl.u32 %v2389, 7
    %v2391 = vsub.s32 %v2388, %v2390
    %v2392 = vrot.slane %v2370, %v2391
    %v2394 = vunpack.c.l.s4 1966171168
    %v2395 = vunpack.c.0.s8 %v2394
    %v2396 = vlaneseq
    %v2397 = vshrl.u32 %v2396, 7
    %v2398 = vsub.s32 %v2395, %v2397
    %v2399 = vrot.slane %v2371, %v2398
    %v2400 = vcombine.high %v2378, %v2378
    %v2401 = vcombine.high %v2385, %v2385
    %v2402 = vcombine.high %v2392, %v2392
    %v2403 = vcombine.high %v2399, %v2399
    %v2404 = vlaneseq
    %v2405 = vshrl.u32 %v2404, 7
    %v2406 = vsub.s32 0, %v2405
    %v2407 = vrot.slane %v2378, %v2406
    %v2408 = vlaneseq
    %v2409 = vshrl.u32 %v2408, 7
    %v2410 = vsub.s32 0, %v2409
    %v2411 = vrot.slane %v2392, %v2410
    %v2412 = vlaneseq
    %v2413 = vshrl.u32 %v2412, 7
    %v2414 = vsub.s32 0, %v2413
    %v2415 = vrot.slane %v2400, %v2414
    %v2416 = vlaneseq
    %v2417 = vshrl.u32 %v2416, 7
    %v2418 = vsub.s32 0, %v2417
    %v2419 = vrot.slane %v2402, %v2418
    %v2420 = vlaneseq
    %v2421 = vshrl.u32 %v2420, 7
    %v2422 = vsub.s32 0, %v2421
    %v2423 = vrot.slane %v2385, %v2422
    %v2424 = vlaneseq
    %v2425 = vshrl.u32 %v2424, 7
    %v2426 = vsub.s32 0, %v2425
    %v2427 = vrot.slane %v2399, %v2426
    %v2428 = vlaneseq
    %v2429 = vshrl.u32 %v2428, 7
    %v2430 = vsub.s32 0, %v2429
    %v2431 = vrot.slane %v2401, %v2430
    %v2432 = vlaneseq
    %v2433 = vshrl.u32 %v2432, 7
    %v2434 = vsub.s32 0, %v2433
    %v2435 = vrot.slane %v2403, %v2434
    %v2444 = vmul.f32 %v2407, %v1220
    %v2445 = vmul.f32 %v2411, %v1222
    %v2446 = vmul.f32 %v2415, %v1224
    %v2447 = vmul.f32 %v2419, %v1226
    %v2448 = vmul.f32 %v2423, %v1228
    %v2449 = vmul.f32 %v2427, %v1230
    %v2450 = vmul.f32 %v2431, %v1232
    %v2451 = vmul.f32 %v2435, %v1234
    %2460 = vrot.lane.b32.xlu0 %v2444, 32
    %v2461 = vpop.permute.xlu0 %2460
    %2462 = vrot.lane.b32.xlu0 %v2445, 32
    %v2463 = vpop.permute.xlu0 %2462
    %2464 = vrot.lane.b32.xlu0 %v2446, 32
    %v2465 = vpop.permute.xlu0 %2464
    %2466 = vrot.lane.b32.xlu0 %v2447, 32
    %v2467 = vpop.permute.xlu0 %2466
    %2468 = vrot.lane.b32.xlu0 %v2448, 32
    %v2469 = vpop.permute.xlu0 %2468
    %2470 = vrot.lane.b32.xlu0 %v2449, 32
    %v2471 = vpop.permute.xlu0 %2470
    %2472 = vrot.lane.b32.xlu0 %v2450, 32
    %v2473 = vpop.permute.xlu0 %2472
    %2474 = vrot.lane.b32.xlu0 %v2451, 32
    %v2475 = vpop.permute.xlu0 %2474
    %v2484 = vsel %vm1283, %v2461, 0.0
    %2485 = vadd.xlane.f32.xlu0 %v2484
    %v2486 = vpop.xlane.xlu0 %2485
    %v2487 = vsel %vm1283, %v2463, 0.0
    %2488 = vadd.xlane.f32.xlu0 %v2487
    %v2489 = vpop.xlane.xlu0 %2488
    %v2490 = vsel %vm1283, %v2465, 0.0
    %2491 = vadd.xlane.f32.xlu0 %v2490
    %v2492 = vpop.xlane.xlu0 %2491
    %v2493 = vsel %vm1283, %v2467, 0.0
    %2494 = vadd.xlane.f32.xlu0 %v2493
    %v2495 = vpop.xlane.xlu0 %2494
    %v2496 = vsel %vm1283, %v2469, 0.0
    %2497 = vadd.xlane.f32.xlu0 %v2496
    %v2498 = vpop.xlane.xlu0 %2497
    %v2499 = vsel %vm1283, %v2471, 0.0
    %2500 = vadd.xlane.f32.xlu0 %v2499
    %v2501 = vpop.xlane.xlu0 %2500
    %v2502 = vsel %vm1283, %v2473, 0.0
    %2503 = vadd.xlane.f32.xlu0 %v2502
    %v2504 = vpop.xlane.xlu0 %2503
    %v2505 = vsel %vm1283, %v2475, 0.0
    %2506 = vadd.xlane.f32.xlu0 %v2505
    %v2507 = vpop.xlane.xlu0 %2506
    %v2508 = vadd.f32 %v2486, %v1315
    %v2509 = vadd.f32 %v2489, %v1322
    %v2510 = vadd.f32 %v2492, %v1329
    %v2511 = vadd.f32 %v2495, %v1336
    %v2512 = vadd.f32 %v2498, %v1343
    %v2513 = vadd.f32 %v2501, %v1350
    %v2514 = vadd.f32 %v2504, %v1357
    %v2515 = vadd.f32 %v2507, %v1364
    %2524 = vset.pattern.permute.xlu0 0
    %2525 = vperm.xlu0 %2524, %v2508
    %v2526 = vpop.permute.xlu0 %2525
    %2527 = vset.pattern.permute.xlu0 0
    %2528 = vperm.xlu0 %2527, %v2509
    %v2529 = vpop.permute.xlu0 %2528
    %2530 = vset.pattern.permute.xlu0 0
    %2531 = vperm.xlu0 %2530, %v2510
    %v2532 = vpop.permute.xlu0 %2531
    %2533 = vset.pattern.permute.xlu0 0
    %2534 = vperm.xlu0 %2533, %v2511
    %v2535 = vpop.permute.xlu0 %2534
    %2536 = vset.pattern.permute.xlu0 0
    %2537 = vperm.xlu0 %2536, %v2512
    %v2538 = vpop.permute.xlu0 %2537
    %2539 = vset.pattern.permute.xlu0 0
    %2540 = vperm.xlu0 %2539, %v2513
    %v2541 = vpop.permute.xlu0 %2540
    %2542 = vset.pattern.permute.xlu0 0
    %2543 = vperm.xlu0 %2542, %v2514
    %v2544 = vpop.permute.xlu0 %2543
    %2545 = vset.pattern.permute.xlu0 0
    %2546 = vperm.xlu0 %2545, %v2515
    %v2547 = vpop.permute.xlu0 %2546
    %v2548 = vlaneseq
    %v2549 = vshrl.u32 %v2548, 7
    %v2550 = vsub.s32 %v705, %v2549
    %v2551 = vrot.slane %v2526, %v2550
    %v2552 = vlaneseq
    %v2553 = vshrl.u32 %v2552, 7
    %v2554 = vsub.s32 %v705, %v2553
    %v2555 = vrot.slane %v2529, %v2554
    %v2556 = vlaneseq
    %v2557 = vshrl.u32 %v2556, 7
    %v2558 = vsub.s32 %v705, %v2557
    %v2559 = vrot.slane %v2532, %v2558
    %v2560 = vlaneseq
    %v2561 = vshrl.u32 %v2560, 7
    %v2562 = vsub.s32 %v705, %v2561
    %v2563 = vrot.slane %v2535, %v2562
    %v2564 = vlaneseq
    %v2565 = vshrl.u32 %v2564, 7
    %v2566 = vsub.s32 %v705, %v2565
    %v2567 = vrot.slane %v2538, %v2566
    %v2568 = vlaneseq
    %v2569 = vshrl.u32 %v2568, 7
    %v2570 = vsub.s32 %v705, %v2569
    %v2571 = vrot.slane %v2541, %v2570
    %v2572 = vlaneseq
    %v2573 = vshrl.u32 %v2572, 7
    %v2574 = vsub.s32 %v705, %v2573
    %v2575 = vrot.slane %v2544, %v2574
    %v2576 = vlaneseq
    %v2577 = vshrl.u32 %v2576, 7
    %v2578 = vsub.s32 %v705, %v2577
    %v2579 = vrot.slane %v2547, %v2578
    %v2580 = vsel %vm836, %v2555, %v2551
    %v2581 = vsel %vm839, %v2559, %v2580
    %v2582 = vsel %vm842, %v2563, %v2581
    %v2583 = vsel %vm845, %v2567, %v2582
    %v2584 = vsel %vm848, %v2571, %v2583
    %v2585 = vsel %vm851, %v2575, %v2584
    %v2586 = vsel %vm854, %v2579, %v2585
    %v2588 = vsel %vm1453, %v2586, -inf
    %2589 = vmax.xlane.f32.xlu0 %v2588
    %v2590 = vpop.xlane.xlu0 %2589
    %v2592 = vlaneseq
    %v2593 = vshrl.u32 %v2592, 7
    %v2594 = vsub.s32 0, %v2593
    %v2595 = vrot.slane %v2590, %v2594
    %v2596 = vlaneseq
    %v2597 = vshrl.u32 %v2596, 7
    %v2598 = vsub.s32 1, %v2597
    %v2599 = vrot.slane %v2590, %v2598
    %v2600 = vlaneseq
    %v2601 = vshrl.u32 %v2600, 7
    %v2602 = vsub.s32 2, %v2601
    %v2603 = vrot.slane %v2590, %v2602
    %v2604 = vlaneseq
    %v2605 = vshrl.u32 %v2604, 7
    %v2606 = vsub.s32 3, %v2605
    %v2607 = vrot.slane %v2590, %v2606
    %v2608 = vlaneseq
    %v2609 = vshrl.u32 %v2608, 7
    %v2610 = vsub.s32 4, %v2609
    %v2611 = vrot.slane %v2590, %v2610
    %v2612 = vlaneseq
    %v2613 = vshrl.u32 %v2612, 7
    %v2614 = vsub.s32 5, %v2613
    %v2615 = vrot.slane %v2590, %v2614
    %v2616 = vlaneseq
    %v2617 = vshrl.u32 %v2616, 7
    %v2618 = vsub.s32 6, %v2617
    %v2619 = vrot.slane %v2590, %v2618
    %v2620 = vlaneseq
    %v2621 = vshrl.u32 %v2620, 7
    %v2622 = vsub.s32 7, %v2621
    %v2623 = vrot.slane %v2590, %v2622
    %v2632 = vsub.f32 %v2508, %v2595
    %v2633 = vsub.f32 %v2509, %v2599
    %v2634 = vsub.f32 %v2510, %v2603
    %v2635 = vsub.f32 %v2511, %v2607
    %v2636 = vsub.f32 %v2512, %v2611
    %v2637 = vsub.f32 %v2513, %v2615
    %v2638 = vsub.f32 %v2514, %v2619
    %v2639 = vsub.f32 %v2515, %v2623
    %v2640 = vmul.f32 %v2632, 1.442695
    %v2641 = vpow.pop %v2640
    %v2642 = vmul.f32 %v2633, 1.442695
    %v2643 = vpow.pop %v2642
    %v2644 = vmul.f32 %v2634, 1.442695
    %v2645 = vpow.pop %v2644
    %v2646 = vmul.f32 %v2635, 1.442695
    %v2647 = vpow.pop %v2646
    %v2648 = vmul.f32 %v2636, 1.442695
    %v2649 = vpow.pop %v2648
    %v2650 = vmul.f32 %v2637, 1.442695
    %v2651 = vpow.pop %v2650
    %v2652 = vmul.f32 %v2638, 1.442695
    %v2653 = vpow.pop %v2652
    %v2654 = vmul.f32 %v2639, 1.442695
    %v2655 = vpow.pop %v2654
    %2664 = vset.pattern.permute.xlu0 0
    %2665 = vperm.xlu0 %2664, %v2641
    %v2666 = vpop.permute.xlu0 %2665
    %2667 = vset.pattern.permute.xlu0 0
    %2668 = vperm.xlu0 %2667, %v2643
    %v2669 = vpop.permute.xlu0 %2668
    %2670 = vset.pattern.permute.xlu0 0
    %2671 = vperm.xlu0 %2670, %v2645
    %v2672 = vpop.permute.xlu0 %2671
    %2673 = vset.pattern.permute.xlu0 0
    %2674 = vperm.xlu0 %2673, %v2647
    %v2675 = vpop.permute.xlu0 %2674
    %2676 = vset.pattern.permute.xlu0 0
    %2677 = vperm.xlu0 %2676, %v2649
    %v2678 = vpop.permute.xlu0 %2677
    %2679 = vset.pattern.permute.xlu0 0
    %2680 = vperm.xlu0 %2679, %v2651
    %v2681 = vpop.permute.xlu0 %2680
    %2682 = vset.pattern.permute.xlu0 0
    %2683 = vperm.xlu0 %2682, %v2653
    %v2684 = vpop.permute.xlu0 %2683
    %2685 = vset.pattern.permute.xlu0 0
    %2686 = vperm.xlu0 %2685, %v2655
    %v2687 = vpop.permute.xlu0 %2686
    %v2688 = vlaneseq
    %v2689 = vshrl.u32 %v2688, 7
    %v2690 = vsub.s32 %v705, %v2689
    %v2691 = vrot.slane %v2666, %v2690
    %v2692 = vlaneseq
    %v2693 = vshrl.u32 %v2692, 7
    %v2694 = vsub.s32 %v705, %v2693
    %v2695 = vrot.slane %v2669, %v2694
    %v2696 = vlaneseq
    %v2697 = vshrl.u32 %v2696, 7
    %v2698 = vsub.s32 %v705, %v2697
    %v2699 = vrot.slane %v2672, %v2698
    %v2700 = vlaneseq
    %v2701 = vshrl.u32 %v2700, 7
    %v2702 = vsub.s32 %v705, %v2701
    %v2703 = vrot.slane %v2675, %v2702
    %v2704 = vlaneseq
    %v2705 = vshrl.u32 %v2704, 7
    %v2706 = vsub.s32 %v705, %v2705
    %v2707 = vrot.slane %v2678, %v2706
    %v2708 = vlaneseq
    %v2709 = vshrl.u32 %v2708, 7
    %v2710 = vsub.s32 %v705, %v2709
    %v2711 = vrot.slane %v2681, %v2710
    %v2712 = vlaneseq
    %v2713 = vshrl.u32 %v2712, 7
    %v2714 = vsub.s32 %v705, %v2713
    %v2715 = vrot.slane %v2684, %v2714
    %v2716 = vlaneseq
    %v2717 = vshrl.u32 %v2716, 7
    %v2718 = vsub.s32 %v705, %v2717
    %v2719 = vrot.slane %v2687, %v2718
    %v2720 = vsel %vm836, %v2695, %v2691
    %v2721 = vsel %vm839, %v2699, %v2720
    %v2722 = vsel %vm842, %v2703, %v2721
    %v2723 = vsel %vm845, %v2707, %v2722
    %v2724 = vsel %vm848, %v2711, %v2723
    %v2725 = vsel %vm851, %v2715, %v2724
    %v2726 = vsel %vm854, %v2719, %v2725
    %v2728 = vsel %vm1453, %v2726, 0.0
    %2729 = vadd.xlane.f32.xlu0 %v2728
    %v2730 = vpop.xlane.xlu0 %2729
    %v2732 = vlaneseq
    %v2733 = vshrl.u32 %v2732, 7
    %v2734 = vsub.s32 0, %v2733
    %v2735 = vrot.slane %v2730, %v2734
    %v2736 = vlaneseq
    %v2737 = vshrl.u32 %v2736, 7
    %v2738 = vsub.s32 1, %v2737
    %v2739 = vrot.slane %v2730, %v2738
    %v2740 = vlaneseq
    %v2741 = vshrl.u32 %v2740, 7
    %v2742 = vsub.s32 2, %v2741
    %v2743 = vrot.slane %v2730, %v2742
    %v2744 = vlaneseq
    %v2745 = vshrl.u32 %v2744, 7
    %v2746 = vsub.s32 3, %v2745
    %v2747 = vrot.slane %v2730, %v2746
    %v2748 = vlaneseq
    %v2749 = vshrl.u32 %v2748, 7
    %v2750 = vsub.s32 4, %v2749
    %v2751 = vrot.slane %v2730, %v2750
    %v2752 = vlaneseq
    %v2753 = vshrl.u32 %v2752, 7
    %v2754 = vsub.s32 5, %v2753
    %v2755 = vrot.slane %v2730, %v2754
    %v2756 = vlaneseq
    %v2757 = vshrl.u32 %v2756, 7
    %v2758 = vsub.s32 6, %v2757
    %v2759 = vrot.slane %v2730, %v2758
    %v2760 = vlaneseq
    %v2761 = vshrl.u32 %v2760, 7
    %v2762 = vsub.s32 7, %v2761
    %v2763 = vrot.slane %v2730, %v2762
    %v2772 = vrcp.pop %v2735
    %v2773 = vmul.f32 %v2641, %v2772
    %v2774 = vrcp.pop %v2739
    %v2775 = vmul.f32 %v2643, %v2774
    %v2776 = vrcp.pop %v2743
    %v2777 = vmul.f32 %v2645, %v2776
    %v2778 = vrcp.pop %v2747
    %v2779 = vmul.f32 %v2647, %v2778
    %v2780 = vrcp.pop %v2751
    %v2781 = vmul.f32 %v2649, %v2780
    %v2782 = vrcp.pop %v2755
    %v2783 = vmul.f32 %v2651, %v2782
    %v2784 = vrcp.pop %v2759
    %v2785 = vmul.f32 %v2653, %v2784
    %v2786 = vrcp.pop %v2763
    %v2787 = vmul.f32 %v2655, %v2786
    %2789 = vset.pattern.permute.xlu0 0
    %2790 = vperm.xlu0 %2789, %v2773
    %v2791 = vpop.permute.xlu0 %2790
    %2794 = vset.pattern.permute.xlu0 0
    %2795 = vperm.xlu0 %2794, %v2775
    %v2796 = vpop.permute.xlu0 %2795
    %2799 = vset.pattern.permute.xlu0 0
    %2800 = vperm.xlu0 %2799, %v2777
    %v2801 = vpop.permute.xlu0 %2800
    %2804 = vset.pattern.permute.xlu0 0
    %2805 = vperm.xlu0 %2804, %v2779
    %v2806 = vpop.permute.xlu0 %2805
    %2809 = vset.pattern.permute.xlu0 0
    %2810 = vperm.xlu0 %2809, %v2781
    %v2811 = vpop.permute.xlu0 %2810
    %2814 = vset.pattern.permute.xlu0 0
    %2815 = vperm.xlu0 %2814, %v2783
    %v2816 = vpop.permute.xlu0 %2815
    %2819 = vset.pattern.permute.xlu0 0
    %2820 = vperm.xlu0 %2819, %v2785
    %v2821 = vpop.permute.xlu0 %2820
    %2824 = vset.pattern.permute.xlu0 0
    %2825 = vperm.xlu0 %2824, %v2787
    %v2826 = vpop.permute.xlu0 %2825
    %v2828 = vmul.f32 %v2791, %v694
    %v2829 = vmul.f32 %v2796, %v695
    %v2830 = vmul.f32 %v2801, %v696
    %v2831 = vmul.f32 %v2806, %v697
    %v2832 = vmul.f32 %v2811, %v698
    %v2833 = vmul.f32 %v2816, %v699
    %v2834 = vmul.f32 %v2821, %v700
    %v2835 = vmul.f32 %v2826, %v701
    %v2836 = vsel %vm1283, %v2828, 0.0
    %v2837 = vrot.slane %v2836, 4
    %v2838 = vadd.f32 %v2836, %v2837
    %v2839 = vrot.slane %v2838, 2
    %v2840 = vadd.f32 %v2838, %v2839
    %v2841 = vrot.slane %v2840, 1
    %v2842 = vadd.f32 %v2840, %v2841
    %v2843 = vsel %vm1283, %v2829, 0.0
    %v2844 = vrot.slane %v2843, 4
    %v2845 = vadd.f32 %v2843, %v2844
    %v2846 = vrot.slane %v2845, 2
    %v2847 = vadd.f32 %v2845, %v2846
    %v2848 = vrot.slane %v2847, 1
    %v2849 = vadd.f32 %v2847, %v2848
    %v2850 = vsel %vm1283, %v2830, 0.0
    %v2851 = vrot.slane %v2850, 4
    %v2852 = vadd.f32 %v2850, %v2851
    %v2853 = vrot.slane %v2852, 2
    %v2854 = vadd.f32 %v2852, %v2853
    %v2855 = vrot.slane %v2854, 1
    %v2856 = vadd.f32 %v2854, %v2855
    %v2857 = vsel %vm1283, %v2831, 0.0
    %v2858 = vrot.slane %v2857, 4
    %v2859 = vadd.f32 %v2857, %v2858
    %v2860 = vrot.slane %v2859, 2
    %v2861 = vadd.f32 %v2859, %v2860
    %v2862 = vrot.slane %v2861, 1
    %v2863 = vadd.f32 %v2861, %v2862
    %v2864 = vsel %vm1283, %v2832, 0.0
    %v2865 = vrot.slane %v2864, 4
    %v2866 = vadd.f32 %v2864, %v2865
    %v2867 = vrot.slane %v2866, 2
    %v2868 = vadd.f32 %v2866, %v2867
    %v2869 = vrot.slane %v2868, 1
    %v2870 = vadd.f32 %v2868, %v2869
    %v2871 = vsel %vm1283, %v2833, 0.0
    %v2872 = vrot.slane %v2871, 4
    %v2873 = vadd.f32 %v2871, %v2872
    %v2874 = vrot.slane %v2873, 2
    %v2875 = vadd.f32 %v2873, %v2874
    %v2876 = vrot.slane %v2875, 1
    %v2877 = vadd.f32 %v2875, %v2876
    %v2878 = vsel %vm1283, %v2834, 0.0
    %v2879 = vrot.slane %v2878, 4
    %v2880 = vadd.f32 %v2878, %v2879
    %v2881 = vrot.slane %v2880, 2
    %v2882 = vadd.f32 %v2880, %v2881
    %v2883 = vrot.slane %v2882, 1
    %v2884 = vadd.f32 %v2882, %v2883
    %v2885 = vsel %vm1283, %v2835, 0.0
    %v2886 = vrot.slane %v2885, 4
    %v2887 = vadd.f32 %v2885, %v2886
    %v2888 = vrot.slane %v2887, 2
    %v2889 = vadd.f32 %v2887, %v2888
    %v2890 = vrot.slane %v2889, 1
    %v2891 = vadd.f32 %v2889, %v2890
    %v2892 = vpack.c.bf16 %v2842, %v2842
    %v2893 = vpack.c.bf16 %v2849, %v2849
    %v2894 = vpack.c.bf16 %v2856, %v2856
    %v2895 = vpack.c.bf16 %v2863, %v2863
    %v2896 = vpack.c.bf16 %v2870, %v2870
    %v2897 = vpack.c.bf16 %v2877, %v2877
    %v2898 = vpack.c.bf16 %v2884, %v2884
    %v2899 = vpack.c.bf16 %v2891, %v2891
    %2900 = vmatprep.subr.bf16.mxu0 0
    %2901 = vmatpush1.bf16.msra.mxu0 0
    %2902 = vmatprep.subr.bf16.mxu0 0
    %2903 = vmatpush1.bf16.msra.mxu0 0
    %2904 = vmatprep.subr.bf16.mxu0 0
    %2905 = vmatpush1.bf16.msra.mxu0 0
    %2906 = vmatprep.subr.bf16.mxu0 0
    %2907 = vmatpush1.bf16.msra.mxu0 0
    %2908 = vmatprep.subr.bf16.mxu0 0
    %2909 = vmatpush1.bf16.msra.mxu0 0
    %2910 = vmatprep.subr.bf16.mxu0 0
    %2911 = vmatpush1.bf16.msra.mxu0 0
    %2912 = vmatprep.subr.bf16.mxu0 0
    %2913 = vmatpush1.bf16.msra.mxu0 %v1920
    %2914 = vmatprep.subr.bf16.mxu0 0
    %2915 = vmatpush1.bf16.msra.mxu0 %v1919
    %2916 = vmatprep.subr.bf16.mxu0 0
    %2917 = vmatpush2.bf16.msra.mxu0 0
    %2918 = vmatprep.subr.bf16.mxu0 0
    %2919 = vmatpush2.bf16.msra.mxu0 0
    %2920 = vmatprep.subr.bf16.mxu0 0
    %2921 = vmatpush2.bf16.msra.mxu0 0
    %2922 = vmatprep.subr.bf16.mxu0 0
    %2923 = vmatpush2.bf16.msra.mxu0 0
    %2924 = vmatprep.subr.bf16.mxu0 0
    %2925 = vmatpush2.bf16.msra.mxu0 0
    %2926 = vmatprep.subr.bf16.mxu0 0
    %2927 = vmatpush2.bf16.msra.mxu0 0
    %2928 = vmatprep.subr.bf16.mxu0 0
    %2929 = vmatpush2.bf16.msra.mxu0 0
    %2930 = vmatprep.subr.bf16.mxu0 0
    %2931 = vmatpush2.bf16.msra.mxu0 0
    %2932 = vmatprep.mubr.bf16.mxu0 0
    %2933 = vmatmul.mubr.bf16.gmra.mxu0 %v1803
    %v2934 = vpop.f32.mrf.mxu0
    %v2935 = vadd.f32 0.0, %v2934
    %v2936 = vpop.f32.mrf.mxu0
    %v2937 = vpop.f32.mrf.mxu0
    %v2938 = vpop.f32.mrf.mxu0
    %2939 = vdwg.mxu0
    %2941 = vrot.lane.b32.xlu0 %v2353, 32
    %v2942 = vpop.permute.xlu0 %2941
    %v2944 = vsel %vm519, %v2942, 0
    %2946 = vmatprep.subr.bf16.mxu0 0
    %2947 = vmatpush1.bf16.msra.mxu0 0
    %2948 = vmatprep.subr.bf16.mxu0 0
    %2949 = vmatpush1.bf16.msra.mxu0 0
    %2950 = vmatprep.subr.bf16.mxu0 0
    %2951 = vmatpush1.bf16.msra.mxu0 0
    %2952 = vmatprep.subr.bf16.mxu0 0
    %2953 = vmatpush1.bf16.msra.mxu0 0
    %2954 = vmatprep.subr.bf16.mxu0 0
    %2955 = vmatpush1.bf16.msra.mxu0 0
    %2956 = vmatprep.subr.bf16.mxu0 0
    %2957 = vmatpush1.bf16.msra.mxu0 0
    %2958 = vmatprep.subr.bf16.mxu0 0
    %2959 = vmatpush1.bf16.msra.mxu0 %v1972
    %2960 = vmatprep.subr.bf16.mxu0 0
    %2961 = vmatpush1.bf16.msra.mxu0 %v1971
    %2962 = vmatprep.subr.bf16.mxu0 0
    %2963 = vmatpush2.bf16.msra.mxu0 0
    %2964 = vmatprep.subr.bf16.mxu0 0
    %2965 = vmatpush2.bf16.msra.mxu0 0
    %2966 = vmatprep.subr.bf16.mxu0 0
    %2967 = vmatpush2.bf16.msra.mxu0 0
    %2968 = vmatprep.subr.bf16.mxu0 0
    %2969 = vmatpush2.bf16.msra.mxu0 0
    %2970 = vmatprep.subr.bf16.mxu0 0
    %2971 = vmatpush2.bf16.msra.mxu0 0
    %2972 = vmatprep.subr.bf16.mxu0 0
    %2973 = vmatpush2.bf16.msra.mxu0 0
    %2974 = vmatprep.subr.bf16.mxu0 0
    %2975 = vmatpush2.bf16.msra.mxu0 0
    %2976 = vmatprep.subr.bf16.mxu0 0
    %2977 = vmatpush2.bf16.msra.mxu0 0
    %2978 = vmatprep.mubr.bf16.mxu0 0
    %2979 = vmatmul.mubr.bf16.gmra.mxu0 %v2944
    %v2980 = vpop.f32.mrf.mxu0
    %v2981 = vadd.f32 %v2935, %v2980
    %v2982 = vpop.f32.mrf.mxu0
    %v2983 = vpop.f32.mrf.mxu0
    %v2984 = vpop.f32.mrf.mxu0
    %2985 = vdwg.mxu0
    %v2986 = vadd.f32 %v2981, %v2019
    %2987 = vmax.xlane.f32.xlu0 %v2986
    %v2988 = vpop.xlane.xlu0 %2987
    %v2989 = vsub.f32 %v2986, %v2988
    %v2990 = vmul.f32 %v2989, 1.442695
    %v2991 = vpow.pop %v2990
    %2992 = vadd.xlane.f32.xlu0 %v2991
    %v2993 = vpop.xlane.xlu0 %2992
    %v2994 = vlog2.pop %v2993
    %v2995 = vmul.f32 %v2994, 0.6931472
    %v2996 = vadd.f32 %v2988, %v2995
    %v2997 = vsub.f32 %v2986, %v2996
    %s2998 = scalar_lea.vmem [#allocation8], 8
    %2999 = vst [vmem:[%s2998] sm:$0xff] %v2997
    %3000 = vmax.xlane.f32.xlu0 %v2997
    %v3001 = vpop.xlane.xlu0 %3000
    %vm3002 = vcmp.ge.f32.partialorder %v2997, %v3001
    %v3003 = vsel %vm3002, %v705, 128
    %v3004 = vand.u32 %v3003, 65535
    %v3005 = vshra.s32 %v3003, 16
    %v3006 = vcvt.s32.f32 %v3004
    %v3007 = vcvt.s32.f32 %v3005
    %3008 = vmin.xlane.f32.xlu0 %v3007
    %v3009 = vpop.xlane.xlu0 %3008
    %vm3010 = vcmp.eq.f32.partialorder %v3007, %v3009
    %v3011 = vsel %vm3010, %v3006, inf
    %3012 = vmin.xlane.f32.xlu0 %v3011
    %v3013 = vpop.xlane.xlu0 %3012
    %v3014 = vcvt.f32.s32 %v3013
    %v3015 = vcvt.f32.s32 %v3009
    %v3016 = vshll.u32 %v3015, 16
    %v3017 = vadd.s32 %v3016, %v3014
    %vm3018 = vcmp.eq.s32.totalorder %v705, %v3017
    %v3019 = vsel %vm3018, 1, 0
    %v3020 = vcvt.s32.f32 %v3019
    %v3021 = vpack.c.bf16 %v3020, %v3020
    %3022 = vmatprep.subr.bf16.mxu0 0
    %3023 = vmatpush1.bf16.msra.mxu0 %v2095
    %3024 = vmatprep.subr.bf16.mxu0 0
    %3025 = vmatpush1.bf16.msra.mxu0 %v2094
    %3026 = vmatprep.subr.bf16.mxu0 0
    %3027 = vmatpush1.bf16.msra.mxu0 %v2093
    %3028 = vmatprep.subr.bf16.mxu0 0
    %3029 = vmatpush1.bf16.msra.mxu0 %v2092
    %3030 = vmatprep.subr.bf16.mxu0 0
    %3031 = vmatpush1.bf16.msra.mxu0 %v2091
    %3032 = vmatprep.subr.bf16.mxu0 0
    %3033 = vmatpush1.bf16.msra.mxu0 %v2090
    %3034 = vmatprep.subr.bf16.mxu0 0
    %3035 = vmatpush1.bf16.msra.mxu0 %v2089
    %3036 = vmatprep.subr.bf16.mxu0 0
    %3037 = vmatpush1.bf16.msra.mxu0 %v2088
    %3038 = vmatprep.subr.bf16.mxu0 0
    %3039 = vmatpush2.bf16.msra.mxu0 0
    %3040 = vmatprep.subr.bf16.mxu0 0
    %3041 = vmatpush2.bf16.msra.mxu0 0
    %3042 = vmatprep.subr.bf16.mxu0 0
    %3043 = vmatpush2.bf16.msra.mxu0 0
    %3044 = vmatprep.subr.bf16.mxu0 0
    %3045 = vmatpush2.bf16.msra.mxu0 0
    %3046 = vmatprep.subr.bf16.mxu0 0
    %3047 = vmatpush2.bf16.msra.mxu0 0
    %3048 = vmatprep.subr.bf16.mxu0 0
    %3049 = vmatpush2.bf16.msra.mxu0 0
    %3050 = vmatprep.subr.bf16.mxu0 0
    %3051 = vmatpush2.bf16.msra.mxu0 0
    %3052 = vmatprep.subr.bf16.mxu0 0
    %3053 = vmatpush2.bf16.msra.mxu0 0
    %3054 = vmatprep.mubr.bf16.mxu0 0
    %3055 = vmatmul.mubr.bf16.gmra.mxu0 %v3021
    %v3056 = vpop.f32.mrf.mxu0
    %v3057 = vadd.f32 0.0, %v3056
    %v3058 = vpop.f32.mrf.mxu0
    %v3059 = vpop.f32.mrf.mxu0
    %v3060 = vpop.f32.mrf.mxu0
    %3061 = vdwg.mxu0
    %v3062 = vpack.c.bf16 %v3057, %v3057
    %v3071 = vunpack.c.l.b16 %v2892
    %v3072 = vunpack.c.l.b16 %v2893
    %v3073 = vunpack.c.l.b16 %v2894
    %v3074 = vunpack.c.l.b16 %v2895
    %v3075 = vunpack.c.l.b16 %v2896
    %v3076 = vunpack.c.l.b16 %v2897
    %v3077 = vunpack.c.l.b16 %v2898
    %v3078 = vunpack.c.l.b16 %v2899
    %v3079 = vsel %vm836, %v3072, %v3071
    %v3080 = vsel %vm839, %v3073, %v3079
    %v3081 = vsel %vm842, %v3074, %v3080
    %v3082 = vsel %vm845, %v3075, %v3081
    %v3083 = vsel %vm848, %v3076, %v3082
    %v3084 = vsel %vm851, %v3077, %v3083
    %v3085 = vsel %vm854, %v3078, %v3084
    %v3086 = vpack.c.b16 %v3085, %v3085
    %v3088 = vsel %vm519, %v3086, 0
    %3090 = vmatprep.subr.bf16.mxu0 0
    %3091 = vmatpush1.bf16.msra.mxu0 0
    %3092 = vmatprep.subr.bf16.mxu0 0
    %3093 = vmatpush1.bf16.msra.mxu0 0
    %3094 = vmatprep.subr.bf16.mxu0 0
    %3095 = vmatpush1.bf16.msra.mxu0 0
    %3096 = vmatprep.subr.bf16.mxu0 0
    %3097 = vmatpush1.bf16.msra.mxu0 0
    %3098 = vmatprep.subr.bf16.mxu0 0
    %3099 = vmatpush1.bf16.msra.mxu0 0
    %3100 = vmatprep.subr.bf16.mxu0 0
    %3101 = vmatpush1.bf16.msra.mxu0 0
    %3102 = vmatprep.subr.bf16.mxu0 0
    %3103 = vmatpush1.bf16.msra.mxu0 %v715
    %3104 = vmatprep.subr.bf16.mxu0 0
    %3105 = vmatpush1.bf16.msra.mxu0 %v714
    %3106 = vmatprep.subr.bf16.mxu0 0
    %3107 = vmatpush2.bf16.msra.mxu0 0
    %3108 = vmatprep.subr.bf16.mxu0 0
    %3109 = vmatpush2.bf16.msra.mxu0 0
    %3110 = vmatprep.subr.bf16.mxu0 0
    %3111 = vmatpush2.bf16.msra.mxu0 0
    %3112 = vmatprep.subr.bf16.mxu0 0
    %3113 = vmatpush2.bf16.msra.mxu0 0
    %3114 = vmatprep.subr.bf16.mxu0 0
    %3115 = vmatpush2.bf16.msra.mxu0 0
    %3116 = vmatprep.subr.bf16.mxu0 0
    %3117 = vmatpush2.bf16.msra.mxu0 0
    %3118 = vmatprep.subr.bf16.mxu0 0
    %3119 = vmatpush2.bf16.msra.mxu0 0
    %3120 = vmatprep.subr.bf16.mxu0 0
    %3121 = vmatpush2.bf16.msra.mxu0 0
    %3122 = vmatprep.mubr.bf16.mxu0 0
    %3123 = vmatmul.mubr.bf16.gmra.mxu0 %v3088
    %v3124 = vpop.f32.mrf.mxu0
    %v3125 = vadd.f32 0.0, %v3124
    %v3126 = vpop.f32.mrf.mxu0
    %v3127 = vpop.f32.mrf.mxu0
    %v3128 = vpop.f32.mrf.mxu0
    %3129 = vdwg.mxu0
    %v3131 = vsel %vm767, %v3062, 0
    %3133 = vmatprep.subr.bf16.mxu0 0
    %3134 = vmatpush1.bf16.msra.mxu0 0
    %3135 = vmatprep.subr.bf16.mxu0 0
    %3136 = vmatpush1.bf16.msra.mxu0 0
    %3137 = vmatprep.subr.bf16.mxu0 0
    %3138 = vmatpush1.bf16.msra.mxu0 0
    %3139 = vmatprep.subr.bf16.mxu0 0
    %3140 = vmatpush1.bf16.msra.mxu0 0
    %3141 = vmatprep.subr.bf16.mxu0 0
    %3142 = vmatpush1.bf16.msra.mxu0 0
    %3143 = vmatprep.subr.bf16.mxu0 0
    %3144 = vmatpush1.bf16.msra.mxu0 0
    %3145 = vmatprep.subr.bf16.mxu0 0
    %3146 = vmatpush1.bf16.msra.mxu0 0
    %3147 = vmatprep.subr.bf16.mxu0 0
    %3148 = vmatpush1.bf16.msra.mxu0 %v765
    %3149 = vmatprep.subr.bf16.mxu0 0
    %3150 = vmatpush2.bf16.msra.mxu0 0
    %3151 = vmatprep.subr.bf16.mxu0 0
    %3152 = vmatpush2.bf16.msra.mxu0 0
    %3153 = vmatprep.subr.bf16.mxu0 0
    %3154 = vmatpush2.bf16.msra.mxu0 0
    %3155 = vmatprep.subr.bf16.mxu0 0
    %3156 = vmatpush2.bf16.msra.mxu0 0
    %3157 = vmatprep.subr.bf16.mxu0 0
    %3158 = vmatpush2.bf16.msra.mxu0 0
    %3159 = vmatprep.subr.bf16.mxu0 0
    %3160 = vmatpush2.bf16.msra.mxu0 0
    %3161 = vmatprep.subr.bf16.mxu0 0
    %3162 = vmatpush2.bf16.msra.mxu0 0
    %3163 = vmatprep.subr.bf16.mxu0 0
    %3164 = vmatpush2.bf16.msra.mxu0 0
    %3165 = vmatprep.mubr.bf16.mxu0 0
    %3166 = vmatmul.mubr.bf16.gmra.mxu0 %v3131
    %v3167 = vpop.f32.mrf.mxu0
    %v3168 = vadd.f32 %v3125, %v3167
    %v3169 = vpop.f32.mrf.mxu0
    %v3170 = vpop.f32.mrf.mxu0
    %v3171 = vpop.f32.mrf.mxu0
    %3172 = vdwg.mxu0
    %v3173 = vrot.slane %v827, 2
    %v3174 = vrot.slane %v828, 1
    %v3175 = vsel %vm836, %v3174, %v3173
    %v3176 = vsel %vm839, %v829, %v3175
    %v3177 = vrot.slane %v830, 7
    %v3178 = vsel %vm842, %v3177, %v3176
    %v3179 = vrot.slane %v831, 6
    %v3180 = vsel %vm845, %v3179, %v3178
    %v3181 = vrot.slane %v832, 5
    %v3182 = vsel %vm848, %v3181, %v3180
    %v3183 = vrot.slane %v833, 4
    %v3184 = vsel %vm851, %v3183, %v3182
    %v3185 = vrot.slane %v834, 3
    %v3186 = vsel %vm854, %v3185, %v3184
    %v3187 = vpack.c.b16 %v3186, %v3186
    %v3189 = vsel %vm519, %v3187, 0
    %3191 = vmatprep.subr.bf16.mxu0 0
    %3192 = vmatpush1.bf16.msra.mxu0 0
    %3193 = vmatprep.subr.bf16.mxu0 0
    %3194 = vmatpush1.bf16.msra.mxu0 0
    %3195 = vmatprep.subr.bf16.mxu0 0
    %3196 = vmatpush1.bf16.msra.mxu0 0
    %3197 = vmatprep.subr.bf16.mxu0 0
    %3198 = vmatpush1.bf16.msra.mxu0 0
    %3199 = vmatprep.subr.bf16.mxu0 0
    %3200 = vmatpush1.bf16.msra.mxu0 0
    %3201 = vmatprep.subr.bf16.mxu0 0
    %3202 = vmatpush1.bf16.msra.mxu0 0
    %3203 = vmatprep.subr.bf16.mxu0 0
    %3204 = vmatpush1.bf16.msra.mxu0 %v866
    %3205 = vmatprep.subr.bf16.mxu0 0
    %3206 = vmatpush1.bf16.msra.mxu0 %v865
    %3207 = vmatprep.subr.bf16.mxu0 0
    %3208 = vmatpush2.bf16.msra.mxu0 0
    %3209 = vmatprep.subr.bf16.mxu0 0
    %3210 = vmatpush2.bf16.msra.mxu0 0
    %3211 = vmatprep.subr.bf16.mxu0 0
    %3212 = vmatpush2.bf16.msra.mxu0 0
    %3213 = vmatprep.subr.bf16.mxu0 0
    %3214 = vmatpush2.bf16.msra.mxu0 0
    %3215 = vmatprep.subr.bf16.mxu0 0
    %3216 = vmatpush2.bf16.msra.mxu0 0
    %3217 = vmatprep.subr.bf16.mxu0 0
    %3218 = vmatpush2.bf16.msra.mxu0 0
    %3219 = vmatprep.subr.bf16.mxu0 0
    %3220 = vmatpush2.bf16.msra.mxu0 0
    %3221 = vmatprep.subr.bf16.mxu0 0
    %3222 = vmatpush2.bf16.msra.mxu0 0
    %3223 = vmatprep.mubr.bf16.mxu0 0
    %3224 = vmatmul.mubr.bf16.gmra.mxu0 %v3189
    %v3225 = vpop.f32.mrf.mxu0
    %v3226 = vadd.f32 0.0, %v3225
    %v3227 = vpop.f32.mrf.mxu0
    %v3228 = vpop.f32.mrf.mxu0
    %v3229 = vpop.f32.mrf.mxu0
    %3230 = vdwg.mxu0
    %v3231 = vadd.f32 %v3168, %v3226
    %3232 = vmatprep.subr.bf16.mxu0 0
    %3233 = vmatpush1.bf16.msra.mxu0 0
    %3234 = vmatprep.subr.bf16.mxu0 0
    %3235 = vmatpush1.bf16.msra.mxu0 0
    %3236 = vmatprep.subr.bf16.mxu0 0
    %3237 = vmatpush1.bf16.msra.mxu0 0
    %3238 = vmatprep.subr.bf16.mxu0 0
    %3239 = vmatpush1.bf16.msra.mxu0 0
    %3240 = vmatprep.subr.bf16.mxu0 0
    %3241 = vmatpush1.bf16.msra.mxu0 0
    %3242 = vmatprep.subr.bf16.mxu0 0
    %3243 = vmatpush1.bf16.msra.mxu0 0
    %3244 = vmatprep.subr.bf16.mxu0 0
    %3245 = vmatpush1.bf16.msra.mxu0 %v922
    %3246 = vmatprep.subr.bf16.mxu0 0
    %3247 = vmatpush1.bf16.msra.mxu0 %v921
    %3248 = vmatprep.subr.bf16.mxu0 0
    %3249 = vmatpush2.bf16.msra.mxu0 0
    %3250 = vmatprep.subr.bf16.mxu0 0
    %3251 = vmatpush2.bf16.msra.mxu0 0
    %3252 = vmatprep.subr.bf16.mxu0 0
    %3253 = vmatpush2.bf16.msra.mxu0 0
    %3254 = vmatprep.subr.bf16.mxu0 0
    %3255 = vmatpush2.bf16.msra.mxu0 0
    %3256 = vmatprep.subr.bf16.mxu0 0
    %3257 = vmatpush2.bf16.msra.mxu0 0
    %3258 = vmatprep.subr.bf16.mxu0 0
    %3259 = vmatpush2.bf16.msra.mxu0 0
    %3260 = vmatprep.subr.bf16.mxu0 0
    %3261 = vmatpush2.bf16.msra.mxu0 0
    %3262 = vmatprep.subr.bf16.mxu0 0
    %3263 = vmatpush2.bf16.msra.mxu0 0
    %3264 = vmatprep.mubr.bf16.mxu0 0
    %3265 = vmatmul.mubr.bf16.gmra.mxu0 %v2944
    %v3266 = vpop.f32.mrf.mxu0
    %v3267 = vadd.f32 0.0, %v3266
    %v3268 = vpop.f32.mrf.mxu0
    %v3269 = vpop.f32.mrf.mxu0
    %v3270 = vpop.f32.mrf.mxu0
    %3271 = vdwg.mxu0
    %v3272 = vadd.f32 %v3231, %v3267
    %v3273 = vadd.f32 %v3272, %v973
    %v3274 = vxor.u32 %v3273, 2147483648
    %v3275 = vmul.f32 %v3274, 1.442695
    %v3276 = vpow.pop %v3275
    %v3277 = vadd.f32 %v3276, 1.0
    %v3278 = vrcp.pop %v3277
    %v3279 = vmul.f32 1.0, %v3278
    %v3280 = vtanh.pop %v3273
    %v3281 = vmul.f32 %v3279, %v2346
    %3283 = vrot.lane.b32.xlu0 %v3280, 64
    %v3284 = vpop.permute.xlu0 %3283
    %v3286 = vmul.f32 %v3279, %v3284
    %3288 = vrot.lane.b32.xlu0 %v3286, 32
    %v3289 = vpop.permute.xlu0 %3288
    %v3291 = vadd.f32 %v3281, %v3289
    %v3292 = vtanh.pop %v3291
    %3294 = vrot.lane.b32.xlu0 %v3292, 64
    %v3295 = vpop.permute.xlu0 %3294
    %v3297 = vmul.f32 %v3279, %v3295
    %v3298 = vpack.c.bf16 %v3297, %v3297
    %v3300 = vcombine.high %v3297, %v3297
    %v3302 = vunpack.c.l.s4 1966171168
    %v3303 = vunpack.c.0.s8 %v3302
    %v3304 = vlaneseq
    %v3305 = vshrl.u32 %v3304, 7
    %v3306 = vsub.s32 %v3303, %v3305
    %v3307 = vrot.slane %v3297, %v3306
    %v3309 = vunpack.c.l.s4 1966171168
    %v3310 = vunpack.c.0.s8 %v3309
    %v3311 = vlaneseq
    %v3312 = vshrl.u32 %v3311, 7
    %v3313 = vsub.s32 %v3310, %v3312
    %v3314 = vrot.slane %v3300, %v3313
    %v3315 = vcombine.high %v3307, %v3307
    %v3316 = vcombine.high %v3314, %v3314
    %v3318 = vunpack.c.l.s4 1966171168
    %v3319 = vunpack.c.0.s8 %v3318
    %v3320 = vlaneseq
    %v3321 = vshrl.u32 %v3320, 7
    %v3322 = vsub.s32 %v3319, %v3321
    %v3323 = vrot.slane %v3307, %v3322
    %v3325 = vunpack.c.l.s4 1966171168
    %v3326 = vunpack.c.0.s8 %v3325
    %v3327 = vlaneseq
    %v3328 = vshrl.u32 %v3327, 7
    %v3329 = vsub.s32 %v3326, %v3328
    %v3330 = vrot.slane %v3314, %v3329
    %v3332 = vunpack.c.l.s4 1966171168
    %v3333 = vunpack.c.0.s8 %v3332
    %v3334 = vlaneseq
    %v3335 = vshrl.u32 %v3334, 7
    %v3336 = vsub.s32 %v3333, %v3335
    %v3337 = vrot.slane %v3315, %v3336
    %v3339 = vunpack.c.l.s4 1966171168
    %v3340 = vunpack.c.0.s8 %v3339
    %v3341 = vlaneseq
    %v3342 = vshrl.u32 %v3341, 7
    %v3343 = vsub.s32 %v3340, %v3342
    %v3344 = vrot.slane %v3316, %v3343
    %v3345 = vcombine.high %v3323, %v3323
    %v3346 = vcombine.high %v3330, %v3330
    %v3347 = vcombine.high %v3337, %v3337
    %v3348 = vcombine.high %v3344, %v3344
    %v3349 = vlaneseq
    %v3350 = vshrl.u32 %v3349, 7
    %v3351 = vsub.s32 0, %v3350
    %v3352 = vrot.slane %v3323, %v3351
    %v3353 = vlaneseq
    %v3354 = vshrl.u32 %v3353, 7
    %v3355 = vsub.s32 0, %v3354
    %v3356 = vrot.slane %v3337, %v3355
    %v3357 = vlaneseq
    %v3358 = vshrl.u32 %v3357, 7
    %v3359 = vsub.s32 0, %v3358
    %v3360 = vrot.slane %v3345, %v3359
    %v3361 = vlaneseq
    %v3362 = vshrl.u32 %v3361, 7
    %v3363 = vsub.s32 0, %v3362
    %v3364 = vrot.slane %v3347, %v3363
    %v3365 = vlaneseq
    %v3366 = vshrl.u32 %v3365, 7
    %v3367 = vsub.s32 0, %v3366
    %v3368 = vrot.slane %v3330, %v3367
    %v3369 = vlaneseq
    %v3370 = vshrl.u32 %v3369, 7
    %v3371 = vsub.s32 0, %v3370
    %v3372 = vrot.slane %v3344, %v3371
    %v3373 = vlaneseq
    %v3374 = vshrl.u32 %v3373, 7
    %v3375 = vsub.s32 0, %v3374
    %v3376 = vrot.slane %v3346, %v3375
    %v3377 = vlaneseq
    %v3378 = vshrl.u32 %v3377, 7
    %v3379 = vsub.s32 0, %v3378
    %v3380 = vrot.slane %v3348, %v3379
    %v3389 = vmul.f32 %v3352, %v1220
    %v3390 = vmul.f32 %v3356, %v1222
    %v3391 = vmul.f32 %v3360, %v1224
    %v3392 = vmul.f32 %v3364, %v1226
    %v3393 = vmul.f32 %v3368, %v1228
    %v3394 = vmul.f32 %v3372, %v1230
    %v3395 = vmul.f32 %v3376, %v1232
    %v3396 = vmul.f32 %v3380, %v1234
    %3405 = vrot.lane.b32.xlu0 %v3389, 32
    %v3406 = vpop.permute.xlu0 %3405
    %3407 = vrot.lane.b32.xlu0 %v3390, 32
    %v3408 = vpop.permute.xlu0 %3407
    %3409 = vrot.lane.b32.xlu0 %v3391, 32
    %v3410 = vpop.permute.xlu0 %3409
    %3411 = vrot.lane.b32.xlu0 %v3392, 32
    %v3412 = vpop.permute.xlu0 %3411
    %3413 = vrot.lane.b32.xlu0 %v3393, 32
    %v3414 = vpop.permute.xlu0 %3413
    %3415 = vrot.lane.b32.xlu0 %v3394, 32
    %v3416 = vpop.permute.xlu0 %3415
    %3417 = vrot.lane.b32.xlu0 %v3395, 32
    %v3418 = vpop.permute.xlu0 %3417
    %3419 = vrot.lane.b32.xlu0 %v3396, 32
    %v3420 = vpop.permute.xlu0 %3419
    %v3429 = vsel %vm1283, %v3406, 0.0
    %3430 = vadd.xlane.f32.xlu0 %v3429
    %v3431 = vpop.xlane.xlu0 %3430
    %v3432 = vsel %vm1283, %v3408, 0.0
    %3433 = vadd.xlane.f32.xlu0 %v3432
    %v3434 = vpop.xlane.xlu0 %3433
    %v3435 = vsel %vm1283, %v3410, 0.0
    %3436 = vadd.xlane.f32.xlu0 %v3435
    %v3437 = vpop.xlane.xlu0 %3436
    %v3438 = vsel %vm1283, %v3412, 0.0
    %3439 = vadd.xlane.f32.xlu0 %v3438
    %v3440 = vpop.xlane.xlu0 %3439
    %v3441 = vsel %vm1283, %v3414, 0.0
    %3442 = vadd.xlane.f32.xlu0 %v3441
    %v3443 = vpop.xlane.xlu0 %3442
    %v3444 = vsel %vm1283, %v3416, 0.0
    %3445 = vadd.xlane.f32.xlu0 %v3444
    %v3446 = vpop.xlane.xlu0 %3445
    %v3447 = vsel %vm1283, %v3418, 0.0
    %3448 = vadd.xlane.f32.xlu0 %v3447
    %v3449 = vpop.xlane.xlu0 %3448
    %v3450 = vsel %vm1283, %v3420, 0.0
    %3451 = vadd.xlane.f32.xlu0 %v3450
    %v3452 = vpop.xlane.xlu0 %3451
    %v3453 = vadd.f32 %v3431, %v1315
    %v3454 = vadd.f32 %v3434, %v1322
    %v3455 = vadd.f32 %v3437, %v1329
    %v3456 = vadd.f32 %v3440, %v1336
    %v3457 = vadd.f32 %v3443, %v1343
    %v3458 = vadd.f32 %v3446, %v1350
    %v3459 = vadd.f32 %v3449, %v1357
    %v3460 = vadd.f32 %v3452, %v1364
    %3469 = vset.pattern.permute.xlu0 0
    %3470 = vperm.xlu0 %3469, %v3453
    %v3471 = vpop.permute.xlu0 %3470
    %3472 = vset.pattern.permute.xlu0 0
    %3473 = vperm.xlu0 %3472, %v3454
    %v3474 = vpop.permute.xlu0 %3473
    %3475 = vset.pattern.permute.xlu0 0
    %3476 = vperm.xlu0 %3475, %v3455
    %v3477 = vpop.permute.xlu0 %3476
    %3478 = vset.pattern.permute.xlu0 0
    %3479 = vperm.xlu0 %3478, %v3456
    %v3480 = vpop.permute.xlu0 %3479
    %3481 = vset.pattern.permute.xlu0 0
    %3482 = vperm.xlu0 %3481, %v3457
    %v3483 = vpop.permute.xlu0 %3482
    %3484 = vset.pattern.permute.xlu0 0
    %3485 = vperm.xlu0 %3484, %v3458
    %v3486 = vpop.permute.xlu0 %3485
    %3487 = vset.pattern.permute.xlu0 0
    %3488 = vperm.xlu0 %3487, %v3459
    %v3489 = vpop.permute.xlu0 %3488
    %3490 = vset.pattern.permute.xlu0 0
    %3491 = vperm.xlu0 %3490, %v3460
    %v3492 = vpop.permute.xlu0 %3491
    %v3493 = vlaneseq
    %v3494 = vshrl.u32 %v3493, 7
    %v3495 = vsub.s32 %v705, %v3494
    %v3496 = vrot.slane %v3471, %v3495
    %v3497 = vlaneseq
    %v3498 = vshrl.u32 %v3497, 7
    %v3499 = vsub.s32 %v705, %v3498
    %v3500 = vrot.slane %v3474, %v3499
    %v3501 = vlaneseq
    %v3502 = vshrl.u32 %v3501, 7
    %v3503 = vsub.s32 %v705, %v3502
    %v3504 = vrot.slane %v3477, %v3503
    %v3505 = vlaneseq
    %v3506 = vshrl.u32 %v3505, 7
    %v3507 = vsub.s32 %v705, %v3506
    %v3508 = vrot.slane %v3480, %v3507
    %v3509 = vlaneseq
    %v3510 = vshrl.u32 %v3509, 7
    %v3511 = vsub.s32 %v705, %v3510
    %v3512 = vrot.slane %v3483, %v3511
    %v3513 = vlaneseq
    %v3514 = vshrl.u32 %v3513, 7
    %v3515 = vsub.s32 %v705, %v3514
    %v3516 = vrot.slane %v3486, %v3515
    %v3517 = vlaneseq
    %v3518 = vshrl.u32 %v3517, 7
    %v3519 = vsub.s32 %v705, %v3518
    %v3520 = vrot.slane %v3489, %v3519
    %v3521 = vlaneseq
    %v3522 = vshrl.u32 %v3521, 7
    %v3523 = vsub.s32 %v705, %v3522
    %v3524 = vrot.slane %v3492, %v3523
    %v3525 = vsel %vm836, %v3500, %v3496
    %v3526 = vsel %vm839, %v3504, %v3525
    %v3527 = vsel %vm842, %v3508, %v3526
    %v3528 = vsel %vm845, %v3512, %v3527
    %v3529 = vsel %vm848, %v3516, %v3528
    %v3530 = vsel %vm851, %v3520, %v3529
    %v3531 = vsel %vm854, %v3524, %v3530
    %v3533 = vsel %vm1453, %v3531, -inf
    %3534 = vmax.xlane.f32.xlu0 %v3533
    %v3535 = vpop.xlane.xlu0 %3534
    %v3537 = vlaneseq
    %v3538 = vshrl.u32 %v3537, 7
    %v3539 = vsub.s32 0, %v3538
    %v3540 = vrot.slane %v3535, %v3539
    %v3541 = vlaneseq
    %v3542 = vshrl.u32 %v3541, 7
    %v3543 = vsub.s32 1, %v3542
    %v3544 = vrot.slane %v3535, %v3543
    %v3545 = vlaneseq
    %v3546 = vshrl.u32 %v3545, 7
    %v3547 = vsub.s32 2, %v3546
    %v3548 = vrot.slane %v3535, %v3547
    %v3549 = vlaneseq
    %v3550 = vshrl.u32 %v3549, 7
    %v3551 = vsub.s32 3, %v3550
    %v3552 = vrot.slane %v3535, %v3551
    %v3553 = vlaneseq
    %v3554 = vshrl.u32 %v3553, 7
    %v3555 = vsub.s32 4, %v3554
    %v3556 = vrot.slane %v3535, %v3555
    %v3557 = vlaneseq
    %v3558 = vshrl.u32 %v3557, 7
    %v3559 = vsub.s32 5, %v3558
    %v3560 = vrot.slane %v3535, %v3559
    %v3561 = vlaneseq
    %v3562 = vshrl.u32 %v3561, 7
    %v3563 = vsub.s32 6, %v3562
    %v3564 = vrot.slane %v3535, %v3563
    %v3565 = vlaneseq
    %v3566 = vshrl.u32 %v3565, 7
    %v3567 = vsub.s32 7, %v3566
    %v3568 = vrot.slane %v3535, %v3567
    %v3577 = vsub.f32 %v3453, %v3540
    %v3578 = vsub.f32 %v3454, %v3544
    %v3579 = vsub.f32 %v3455, %v3548
    %v3580 = vsub.f32 %v3456, %v3552
    %v3581 = vsub.f32 %v3457, %v3556
    %v3582 = vsub.f32 %v3458, %v3560
    %v3583 = vsub.f32 %v3459, %v3564
    %v3584 = vsub.f32 %v3460, %v3568
    %v3585 = vmul.f32 %v3577, 1.442695
    %v3586 = vpow.pop %v3585
    %v3587 = vmul.f32 %v3578, 1.442695
    %v3588 = vpow.pop %v3587
    %v3589 = vmul.f32 %v3579, 1.442695
    %v3590 = vpow.pop %v3589
    %v3591 = vmul.f32 %v3580, 1.442695
    %v3592 = vpow.pop %v3591
    %v3593 = vmul.f32 %v3581, 1.442695
    %v3594 = vpow.pop %v3593
    %v3595 = vmul.f32 %v3582, 1.442695
    %v3596 = vpow.pop %v3595
    %v3597 = vmul.f32 %v3583, 1.442695
    %v3598 = vpow.pop %v3597
    %v3599 = vmul.f32 %v3584, 1.442695
    %v3600 = vpow.pop %v3599
    %3609 = vset.pattern.permute.xlu0 0
    %3610 = vperm.xlu0 %3609, %v3586
    %v3611 = vpop.permute.xlu0 %3610
    %3612 = vset.pattern.permute.xlu0 0
    %3613 = vperm.xlu0 %3612, %v3588
    %v3614 = vpop.permute.xlu0 %3613
    %3615 = vset.pattern.permute.xlu0 0
    %3616 = vperm.xlu0 %3615, %v3590
    %v3617 = vpop.permute.xlu0 %3616
    %3618 = vset.pattern.permute.xlu0 0
    %3619 = vperm.xlu0 %3618, %v3592
    %v3620 = vpop.permute.xlu0 %3619
    %3621 = vset.pattern.permute.xlu0 0
    %3622 = vperm.xlu0 %3621, %v3594
    %v3623 = vpop.permute.xlu0 %3622
    %3624 = vset.pattern.permute.xlu0 0
    %3625 = vperm.xlu0 %3624, %v3596
    %v3626 = vpop.permute.xlu0 %3625
    %3627 = vset.pattern.permute.xlu0 0
    %3628 = vperm.xlu0 %3627, %v3598
    %v3629 = vpop.permute.xlu0 %3628
    %3630 = vset.pattern.permute.xlu0 0
    %3631 = vperm.xlu0 %3630, %v3600
    %v3632 = vpop.permute.xlu0 %3631
    %v3633 = vlaneseq
    %v3634 = vshrl.u32 %v3633, 7
    %v3635 = vsub.s32 %v705, %v3634
    %v3636 = vrot.slane %v3611, %v3635
    %v3637 = vlaneseq
    %v3638 = vshrl.u32 %v3637, 7
    %v3639 = vsub.s32 %v705, %v3638
    %v3640 = vrot.slane %v3614, %v3639
    %v3641 = vlaneseq
    %v3642 = vshrl.u32 %v3641, 7
    %v3643 = vsub.s32 %v705, %v3642
    %v3644 = vrot.slane %v3617, %v3643
    %v3645 = vlaneseq
    %v3646 = vshrl.u32 %v3645, 7
    %v3647 = vsub.s32 %v705, %v3646
    %v3648 = vrot.slane %v3620, %v3647
    %v3649 = vlaneseq
    %v3650 = vshrl.u32 %v3649, 7
    %v3651 = vsub.s32 %v705, %v3650
    %v3652 = vrot.slane %v3623, %v3651
    %v3653 = vlaneseq
    %v3654 = vshrl.u32 %v3653, 7
    %v3655 = vsub.s32 %v705, %v3654
    %v3656 = vrot.slane %v3626, %v3655
    %v3657 = vlaneseq
    %v3658 = vshrl.u32 %v3657, 7
    %v3659 = vsub.s32 %v705, %v3658
    %v3660 = vrot.slane %v3629, %v3659
    %v3661 = vlaneseq
    %v3662 = vshrl.u32 %v3661, 7
    %v3663 = vsub.s32 %v705, %v3662
    %v3664 = vrot.slane %v3632, %v3663
    %v3665 = vsel %vm836, %v3640, %v3636
    %v3666 = vsel %vm839, %v3644, %v3665
    %v3667 = vsel %vm842, %v3648, %v3666
    %v3668 = vsel %vm845, %v3652, %v3667
    %v3669 = vsel %vm848, %v3656, %v3668
    %v3670 = vsel %vm851, %v3660, %v3669
    %v3671 = vsel %vm854, %v3664, %v3670
    %v3673 = vsel %vm1453, %v3671, 0.0
    %3674 = vadd.xlane.f32.xlu0 %v3673
    %v3675 = vpop.xlane.xlu0 %3674
    %v3677 = vlaneseq
    %v3678 = vshrl.u32 %v3677, 7
    %v3679 = vsub.s32 0, %v3678
    %v3680 = vrot.slane %v3675, %v3679
    %v3681 = vlaneseq
    %v3682 = vshrl.u32 %v3681, 7
    %v3683 = vsub.s32 1, %v3682
    %v3684 = vrot.slane %v3675, %v3683
    %v3685 = vlaneseq
    %v3686 = vshrl.u32 %v3685, 7
    %v3687 = vsub.s32 2, %v3686
    %v3688 = vrot.slane %v3675, %v3687
    %v3689 = vlaneseq
    %v3690 = vshrl.u32 %v3689, 7
    %v3691 = vsub.s32 3, %v3690
    %v3692 = vrot.slane %v3675, %v3691
    %v3693 = vlaneseq
    %v3694 = vshrl.u32 %v3693, 7
    %v3695 = vsub.s32 4, %v3694
    %v3696 = vrot.slane %v3675, %v3695
    %v3697 = vlaneseq
    %v3698 = vshrl.u32 %v3697, 7
    %v3699 = vsub.s32 5, %v3698
    %v3700 = vrot.slane %v3675, %v3699
    %v3701 = vlaneseq
    %v3702 = vshrl.u32 %v3701, 7
    %v3703 = vsub.s32 6, %v3702
    %v3704 = vrot.slane %v3675, %v3703
    %v3705 = vlaneseq
    %v3706 = vshrl.u32 %v3705, 7
    %v3707 = vsub.s32 7, %v3706
    %v3708 = vrot.slane %v3675, %v3707
    %v3717 = vrcp.pop %v3680
    %v3718 = vmul.f32 %v3586, %v3717
    %v3719 = vrcp.pop %v3684
    %v3720 = vmul.f32 %v3588, %v3719
    %v3721 = vrcp.pop %v3688
    %v3722 = vmul.f32 %v3590, %v3721
    %v3723 = vrcp.pop %v3692
    %v3724 = vmul.f32 %v3592, %v3723
    %v3725 = vrcp.pop %v3696
    %v3726 = vmul.f32 %v3594, %v3725
    %v3727 = vrcp.pop %v3700
    %v3728 = vmul.f32 %v3596, %v3727
    %v3729 = vrcp.pop %v3704
    %v3730 = vmul.f32 %v3598, %v3729
    %v3731 = vrcp.pop %v3708
    %v3732 = vmul.f32 %v3600, %v3731
    %3734 = vset.pattern.permute.xlu0 0
    %3735 = vperm.xlu0 %3734, %v3718
    %v3736 = vpop.permute.xlu0 %3735
    %3739 = vset.pattern.permute.xlu0 0
    %3740 = vperm.xlu0 %3739, %v3720
    %v3741 = vpop.permute.xlu0 %3740
    %3744 = vset.pattern.permute.xlu0 0
    %3745 = vperm.xlu0 %3744, %v3722
    %v3746 = vpop.permute.xlu0 %3745
    %3749 = vset.pattern.permute.xlu0 0
    %3750 = vperm.xlu0 %3749, %v3724
    %v3751 = vpop.permute.xlu0 %3750
    %3754 = vset.pattern.permute.xlu0 0
    %3755 = vperm.xlu0 %3754, %v3726
    %v3756 = vpop.permute.xlu0 %3755
    %3759 = vset.pattern.permute.xlu0 0
    %3760 = vperm.xlu0 %3759, %v3728
    %v3761 = vpop.permute.xlu0 %3760
    %3764 = vset.pattern.permute.xlu0 0
    %3765 = vperm.xlu0 %3764, %v3730
    %v3766 = vpop.permute.xlu0 %3765
    %3769 = vset.pattern.permute.xlu0 0
    %3770 = vperm.xlu0 %3769, %v3732
    %v3771 = vpop.permute.xlu0 %3770
    %v3773 = vmul.f32 %v3736, %v694
    %v3774 = vmul.f32 %v3741, %v695
    %v3775 = vmul.f32 %v3746, %v696
    %v3776 = vmul.f32 %v3751, %v697
    %v3777 = vmul.f32 %v3756, %v698
    %v3778 = vmul.f32 %v3761, %v699
    %v3779 = vmul.f32 %v3766, %v700
    %v3780 = vmul.f32 %v3771, %v701
    %v3781 = vsel %vm1283, %v3773, 0.0
    %v3782 = vrot.slane %v3781, 4
    %v3783 = vadd.f32 %v3781, %v3782
    %v3784 = vrot.slane %v3783, 2
    %v3785 = vadd.f32 %v3783, %v3784
    %v3786 = vrot.slane %v3785, 1
    %v3787 = vadd.f32 %v3785, %v3786
    %v3788 = vsel %vm1283, %v3774, 0.0
    %v3789 = vrot.slane %v3788, 4
    %v3790 = vadd.f32 %v3788, %v3789
    %v3791 = vrot.slane %v3790, 2
    %v3792 = vadd.f32 %v3790, %v3791
    %v3793 = vrot.slane %v3792, 1
    %v3794 = vadd.f32 %v3792, %v3793
    %v3795 = vsel %vm1283, %v3775, 0.0
    %v3796 = vrot.slane %v3795, 4
    %v3797 = vadd.f32 %v3795, %v3796
    %v3798 = vrot.slane %v3797, 2
    %v3799 = vadd.f32 %v3797, %v3798
    %v3800 = vrot.slane %v3799, 1
    %v3801 = vadd.f32 %v3799, %v3800
    %v3802 = vsel %vm1283, %v3776, 0.0
    %v3803 = vrot.slane %v3802, 4
    %v3804 = vadd.f32 %v3802, %v3803
    %v3805 = vrot.slane %v3804, 2
    %v3806 = vadd.f32 %v3804, %v3805
    %v3807 = vrot.slane %v3806, 1
    %v3808 = vadd.f32 %v3806, %v3807
    %v3809 = vsel %vm1283, %v3777, 0.0
    %v3810 = vrot.slane %v3809, 4
    %v3811 = vadd.f32 %v3809, %v3810
    %v3812 = vrot.slane %v3811, 2
    %v3813 = vadd.f32 %v3811, %v3812
    %v3814 = vrot.slane %v3813, 1
    %v3815 = vadd.f32 %v3813, %v3814
    %v3816 = vsel %vm1283, %v3778, 0.0
    %v3817 = vrot.slane %v3816, 4
    %v3818 = vadd.f32 %v3816, %v3817
    %v3819 = vrot.slane %v3818, 2
    %v3820 = vadd.f32 %v3818, %v3819
    %v3821 = vrot.slane %v3820, 1
    %v3822 = vadd.f32 %v3820, %v3821
    %v3823 = vsel %vm1283, %v3779, 0.0
    %v3824 = vrot.slane %v3823, 4
    %v3825 = vadd.f32 %v3823, %v3824
    %v3826 = vrot.slane %v3825, 2
    %v3827 = vadd.f32 %v3825, %v3826
    %v3828 = vrot.slane %v3827, 1
    %v3829 = vadd.f32 %v3827, %v3828
    %v3830 = vsel %vm1283, %v3780, 0.0
    %v3831 = vrot.slane %v3830, 4
    %v3832 = vadd.f32 %v3830, %v3831
    %v3833 = vrot.slane %v3832, 2
    %v3834 = vadd.f32 %v3832, %v3833
    %v3835 = vrot.slane %v3834, 1
    %v3836 = vadd.f32 %v3834, %v3835
    %v3837 = vpack.c.bf16 %v3787, %v3787
    %v3838 = vpack.c.bf16 %v3794, %v3794
    %v3839 = vpack.c.bf16 %v3801, %v3801
    %v3840 = vpack.c.bf16 %v3808, %v3808
    %v3841 = vpack.c.bf16 %v3815, %v3815
    %v3842 = vpack.c.bf16 %v3822, %v3822
    %v3843 = vpack.c.bf16 %v3829, %v3829
    %v3844 = vpack.c.bf16 %v3836, %v3836
    %3845 = vmatprep.subr.bf16.mxu0 0
    %3846 = vmatpush1.bf16.msra.mxu0 0
    %3847 = vmatprep.subr.bf16.mxu0 0
    %3848 = vmatpush1.bf16.msra.mxu0 0
    %3849 = vmatprep.subr.bf16.mxu0 0
    %3850 = vmatpush1.bf16.msra.mxu0 0
    %3851 = vmatprep.subr.bf16.mxu0 0
    %3852 = vmatpush1.bf16.msra.mxu0 0
    %3853 = vmatprep.subr.bf16.mxu0 0
    %3854 = vmatpush1.bf16.msra.mxu0 0
    %3855 = vmatprep.subr.bf16.mxu0 0
    %3856 = vmatpush1.bf16.msra.mxu0 0
    %3857 = vmatprep.subr.bf16.mxu0 0
    %3858 = vmatpush1.bf16.msra.mxu0 %v1920
    %3859 = vmatprep.subr.bf16.mxu0 0
    %3860 = vmatpush1.bf16.msra.mxu0 %v1919
    %3861 = vmatprep.subr.bf16.mxu0 0
    %3862 = vmatpush2.bf16.msra.mxu0 0
    %3863 = vmatprep.subr.bf16.mxu0 0
    %3864 = vmatpush2.bf16.msra.mxu0 0
    %3865 = vmatprep.subr.bf16.mxu0 0
    %3866 = vmatpush2.bf16.msra.mxu0 0
    %3867 = vmatprep.subr.bf16.mxu0 0
    %3868 = vmatpush2.bf16.msra.mxu0 0
    %3869 = vmatprep.subr.bf16.mxu0 0
    %3870 = vmatpush2.bf16.msra.mxu0 0
    %3871 = vmatprep.subr.bf16.mxu0 0
    %3872 = vmatpush2.bf16.msra.mxu0 0
    %3873 = vmatprep.subr.bf16.mxu0 0
    %3874 = vmatpush2.bf16.msra.mxu0 0
    %3875 = vmatprep.subr.bf16.mxu0 0
    %3876 = vmatpush2.bf16.msra.mxu0 0
    %3877 = vmatprep.mubr.bf16.mxu0 0
    %3878 = vmatmul.mubr.bf16.gmra.mxu0 %v3088
    %v3879 = vpop.f32.mrf.mxu0
    %v3880 = vadd.f32 0.0, %v3879
    %v3881 = vpop.f32.mrf.mxu0
    %v3882 = vpop.f32.mrf.mxu0
    %v3883 = vpop.f32.mrf.mxu0
    %3884 = vdwg.mxu0
    %3886 = vrot.lane.b32.xlu0 %v3298, 32
    %v3887 = vpop.permute.xlu0 %3886
    %v3889 = vsel %vm519, %v3887, 0
    %3891 = vmatprep.subr.bf16.mxu0 0
    %3892 = vmatpush1.bf16.msra.mxu0 0
    %3893 = vmatprep.subr.bf16.mxu0 0
    %3894 = vmatpush1.bf16.msra.mxu0 0
    %3895 = vmatprep.subr.bf16.mxu0 0
    %3896 = vmatpush1.bf16.msra.mxu0 0
    %3897 = vmatprep.subr.bf16.mxu0 0
    %3898 = vmatpush1.bf16.msra.mxu0 0
    %3899 = vmatprep.subr.bf16.mxu0 0
    %3900 = vmatpush1.bf16.msra.mxu0 0
    %3901 = vmatprep.subr.bf16.mxu0 0
    %3902 = vmatpush1.bf16.msra.mxu0 0
    %3903 = vmatprep.subr.bf16.mxu0 0
    %3904 = vmatpush1.bf16.msra.mxu0 %v1972
    %3905 = vmatprep.subr.bf16.mxu0 0
    %3906 = vmatpush1.bf16.msra.mxu0 %v1971
    %3907 = vmatprep.subr.bf16.mxu0 0
    %3908 = vmatpush2.bf16.msra.mxu0 0
    %3909 = vmatprep.subr.bf16.mxu0 0
    %3910 = vmatpush2.bf16.msra.mxu0 0
    %3911 = vmatprep.subr.bf16.mxu0 0
    %3912 = vmatpush2.bf16.msra.mxu0 0
    %3913 = vmatprep.subr.bf16.mxu0 0
    %3914 = vmatpush2.bf16.msra.mxu0 0
    %3915 = vmatprep.subr.bf16.mxu0 0
    %3916 = vmatpush2.bf16.msra.mxu0 0
    %3917 = vmatprep.subr.bf16.mxu0 0
    %3918 = vmatpush2.bf16.msra.mxu0 0
    %3919 = vmatprep.subr.bf16.mxu0 0
    %3920 = vmatpush2.bf16.msra.mxu0 0
    %3921 = vmatprep.subr.bf16.mxu0 0
    %3922 = vmatpush2.bf16.msra.mxu0 0
    %3923 = vmatprep.mubr.bf16.mxu0 0
    %3924 = vmatmul.mubr.bf16.gmra.mxu0 %v3889
    %v3925 = vpop.f32.mrf.mxu0
    %v3926 = vadd.f32 %v3880, %v3925
    %v3927 = vpop.f32.mrf.mxu0
    %v3928 = vpop.f32.mrf.mxu0
    %v3929 = vpop.f32.mrf.mxu0
    %3930 = vdwg.mxu0
    %v3931 = vadd.f32 %v3926, %v2019
    %3932 = vmax.xlane.f32.xlu0 %v3931
    %v3933 = vpop.xlane.xlu0 %3932
    %v3934 = vsub.f32 %v3931, %v3933
    %v3935 = vmul.f32 %v3934, 1.442695
    %v3936 = vpow.pop %v3935
    %3937 = vadd.xlane.f32.xlu0 %v3936
    %v3938 = vpop.xlane.xlu0 %3937
    %v3939 = vlog2.pop %v3938
    %v3940 = vmul.f32 %v3939, 0.6931472
    %v3941 = vadd.f32 %v3933, %v3940
    %v3942 = vsub.f32 %v3931, %v3941
    %s3943 = scalar_lea.vmem [#allocation8], 16
    %3944 = vst [vmem:[%s3943] sm:$0xff] %v3942
    %3945 = vmax.xlane.f32.xlu0 %v3942
    %v3946 = vpop.xlane.xlu0 %3945
    %vm3947 = vcmp.ge.f32.partialorder %v3942, %v3946
    %v3948 = vsel %vm3947, %v705, 128
    %v3949 = vand.u32 %v3948, 65535
    %v3950 = vshra.s32 %v3948, 16
    %v3951 = vcvt.s32.f32 %v3949
    %v3952 = vcvt.s32.f32 %v3950
    %3953 = vmin.xlane.f32.xlu0 %v3952
    %v3954 = vpop.xlane.xlu0 %3953
    %vm3955 = vcmp.eq.f32.partialorder %v3952, %v3954
    %v3956 = vsel %vm3955, %v3951, inf
    %3957 = vmin.xlane.f32.xlu0 %v3956
    %v3958 = vpop.xlane.xlu0 %3957
    %v3959 = vcvt.f32.s32 %v3958
    %v3960 = vcvt.f32.s32 %v3954
    %v3961 = vshll.u32 %v3960, 16
    %v3962 = vadd.s32 %v3961, %v3959
    %vm3963 = vcmp.eq.s32.totalorder %v705, %v3962
    %v3964 = vsel %vm3963, 1, 0
    %v3965 = vcvt.s32.f32 %v3964
    %v3966 = vpack.c.bf16 %v3965, %v3965
    %3967 = vmatprep.subr.bf16.mxu0 0
    %3968 = vmatpush1.bf16.msra.mxu0 %v2095
    %3969 = vmatprep.subr.bf16.mxu0 0
    %3970 = vmatpush1.bf16.msra.mxu0 %v2094
    %3971 = vmatprep.subr.bf16.mxu0 0
    %3972 = vmatpush1.bf16.msra.mxu0 %v2093
    %3973 = vmatprep.subr.bf16.mxu0 0
    %3974 = vmatpush1.bf16.msra.mxu0 %v2092
    %3975 = vmatprep.subr.bf16.mxu0 0
    %3976 = vmatpush1.bf16.msra.mxu0 %v2091
    %3977 = vmatprep.subr.bf16.mxu0 0
    %3978 = vmatpush1.bf16.msra.mxu0 %v2090
    %3979 = vmatprep.subr.bf16.mxu0 0
    %3980 = vmatpush1.bf16.msra.mxu0 %v2089
    %3981 = vmatprep.subr.bf16.mxu0 0
    %3982 = vmatpush1.bf16.msra.mxu0 %v2088
    %3983 = vmatprep.subr.bf16.mxu0 0
    %3984 = vmatpush2.bf16.msra.mxu0 0
    %3985 = vmatprep.subr.bf16.mxu0 0
    %3986 = vmatpush2.bf16.msra.mxu0 0
    %3987 = vmatprep.subr.bf16.mxu0 0
    %3988 = vmatpush2.bf16.msra.mxu0 0
    %3989 = vmatprep.subr.bf16.mxu0 0
    %3990 = vmatpush2.bf16.msra.mxu0 0
    %3991 = vmatprep.subr.bf16.mxu0 0
    %3992 = vmatpush2.bf16.msra.mxu0 0
    %3993 = vmatprep.subr.bf16.mxu0 0
    %3994 = vmatpush2.bf16.msra.mxu0 0
    %3995 = vmatprep.subr.bf16.mxu0 0
    %3996 = vmatpush2.bf16.msra.mxu0 0
    %3997 = vmatprep.subr.bf16.mxu0 0
    %3998 = vmatpush2.bf16.msra.mxu0 0
    %3999 = vmatprep.mubr.bf16.mxu0 0
    %4000 = vmatmul.mubr.bf16.gmra.mxu0 %v3966
    %v4001 = vpop.f32.mrf.mxu0
    %v4002 = vadd.f32 0.0, %v4001
    %v4003 = vpop.f32.mrf.mxu0
    %v4004 = vpop.f32.mrf.mxu0
    %v4005 = vpop.f32.mrf.mxu0
    %4006 = vdwg.mxu0
    %v4007 = vpack.c.bf16 %v4002, %v4002
    %v4016 = vunpack.c.l.b16 %v3837
    %v4017 = vunpack.c.l.b16 %v3838
    %v4018 = vunpack.c.l.b16 %v3839
    %v4019 = vunpack.c.l.b16 %v3840
    %v4020 = vunpack.c.l.b16 %v3841
    %v4021 = vunpack.c.l.b16 %v3842
    %v4022 = vunpack.c.l.b16 %v3843
    %v4023 = vunpack.c.l.b16 %v3844
    %v4024 = vsel %vm836, %v4017, %v4016
    %v4025 = vsel %vm839, %v4018, %v4024
    %v4026 = vsel %vm842, %v4019, %v4025
    %v4027 = vsel %vm845, %v4020, %v4026
    %v4028 = vsel %vm848, %v4021, %v4027
    %v4029 = vsel %vm851, %v4022, %v4028
    %v4030 = vsel %vm854, %v4023, %v4029
    %v4031 = vpack.c.b16 %v4030, %v4030
    %v4033 = vsel %vm519, %v4031, 0
    %4035 = vmatprep.subr.bf16.mxu0 0
    %4036 = vmatpush1.bf16.msra.mxu0 0
    %4037 = vmatprep.subr.bf16.mxu0 0
    %4038 = vmatpush1.bf16.msra.mxu0 0
    %4039 = vmatprep.subr.bf16.mxu0 0
    %4040 = vmatpush1.bf16.msra.mxu0 0
    %4041 = vmatprep.subr.bf16.mxu0 0
    %4042 = vmatpush1.bf16.msra.mxu0 0
    %4043 = vmatprep.subr.bf16.mxu0 0
    %4044 = vmatpush1.bf16.msra.mxu0 0
    %4045 = vmatprep.subr.bf16.mxu0 0
    %4046 = vmatpush1.bf16.msra.mxu0 0
    %4047 = vmatprep.subr.bf16.mxu0 0
    %4048 = vmatpush1.bf16.msra.mxu0 %v715
    %4049 = vmatprep.subr.bf16.mxu0 0
    %4050 = vmatpush1.bf16.msra.mxu0 %v714
    %4051 = vmatprep.subr.bf16.mxu0 0
    %4052 = vmatpush2.bf16.msra.mxu0 0
    %4053 = vmatprep.subr.bf16.mxu0 0
    %4054 = vmatpush2.bf16.msra.mxu0 0
    %4055 = vmatprep.subr.bf16.mxu0 0
    %4056 = vmatpush2.bf16.msra.mxu0 0
    %4057 = vmatprep.subr.bf16.mxu0 0
    %4058 = vmatpush2.bf16.msra.mxu0 0
    %4059 = vmatprep.subr.bf16.mxu0 0
    %4060 = vmatpush2.bf16.msra.mxu0 0
    %4061 = vmatprep.subr.bf16.mxu0 0
    %4062 = vmatpush2.bf16.msra.mxu0 0
    %4063 = vmatprep.subr.bf16.mxu0 0
    %4064 = vmatpush2.bf16.msra.mxu0 0
    %4065 = vmatprep.subr.bf16.mxu0 0
    %4066 = vmatpush2.bf16.msra.mxu0 0
    %4067 = vmatprep.mubr.bf16.mxu0 0
    %4068 = vmatmul.mubr.bf16.gmra.mxu0 %v4033
    %v4069 = vpop.f32.mrf.mxu0
    %v4070 = vadd.f32 0.0, %v4069
    %v4071 = vpop.f32.mrf.mxu0
    %v4072 = vpop.f32.mrf.mxu0
    %v4073 = vpop.f32.mrf.mxu0
    %4074 = vdwg.mxu0
    %v4076 = vsel %vm767, %v4007, 0
    %4078 = vmatprep.subr.bf16.mxu0 0
    %4079 = vmatpush1.bf16.msra.mxu0 0
    %4080 = vmatprep.subr.bf16.mxu0 0
    %4081 = vmatpush1.bf16.msra.mxu0 0
    %4082 = vmatprep.subr.bf16.mxu0 0
    %4083 = vmatpush1.bf16.msra.mxu0 0
    %4084 = vmatprep.subr.bf16.mxu0 0
    %4085 = vmatpush1.bf16.msra.mxu0 0
    %4086 = vmatprep.subr.bf16.mxu0 0
    %4087 = vmatpush1.bf16.msra.mxu0 0
    %4088 = vmatprep.subr.bf16.mxu0 0
    %4089 = vmatpush1.bf16.msra.mxu0 0
    %4090 = vmatprep.subr.bf16.mxu0 0
    %4091 = vmatpush1.bf16.msra.mxu0 0
    %4092 = vmatprep.subr.bf16.mxu0 0
    %4093 = vmatpush1.bf16.msra.mxu0 %v765
    %4094 = vmatprep.subr.bf16.mxu0 0
    %4095 = vmatpush2.bf16.msra.mxu0 0
    %4096 = vmatprep.subr.bf16.mxu0 0
    %4097 = vmatpush2.bf16.msra.mxu0 0
    %4098 = vmatprep.subr.bf16.mxu0 0
    %4099 = vmatpush2.bf16.msra.mxu0 0
    %4100 = vmatprep.subr.bf16.mxu0 0
    %4101 = vmatpush2.bf16.msra.mxu0 0
    %4102 = vmatprep.subr.bf16.mxu0 0
    %4103 = vmatpush2.bf16.msra.mxu0 0
    %4104 = vmatprep.subr.bf16.mxu0 0
    %4105 = vmatpush2.bf16.msra.mxu0 0
    %4106 = vmatprep.subr.bf16.mxu0 0
    %4107 = vmatpush2.bf16.msra.mxu0 0
    %4108 = vmatprep.subr.bf16.mxu0 0
    %4109 = vmatpush2.bf16.msra.mxu0 0
    %4110 = vmatprep.mubr.bf16.mxu0 0
    %4111 = vmatmul.mubr.bf16.gmra.mxu0 %v4076
    %v4112 = vpop.f32.mrf.mxu0
    %v4113 = vadd.f32 %v4070, %v4112
    %v4114 = vpop.f32.mrf.mxu0
    %v4115 = vpop.f32.mrf.mxu0
    %v4116 = vpop.f32.mrf.mxu0
    %4117 = vdwg.mxu0
    %v4118 = vrot.slane %v827, 3
    %v4119 = vrot.slane %v828, 2
    %v4120 = vsel %vm836, %v4119, %v4118
    %v4121 = vrot.slane %v829, 1
    %v4122 = vsel %vm839, %v4121, %v4120
    %v4123 = vsel %vm842, %v830, %v4122
    %v4124 = vrot.slane %v831, 7
    %v4125 = vsel %vm845, %v4124, %v4123
    %v4126 = vrot.slane %v832, 6
    %v4127 = vsel %vm848, %v4126, %v4125
    %v4128 = vrot.slane %v833, 5
    %v4129 = vsel %vm851, %v4128, %v4127
    %v4130 = vrot.slane %v834, 4
    %v4131 = vsel %vm854, %v4130, %v4129
    %v4132 = vpack.c.b16 %v4131, %v4131
    %v4134 = vsel %vm519, %v4132, 0
    %4136 = vmatprep.subr.bf16.mxu0 0
    %4137 = vmatpush1.bf16.msra.mxu0 0
    %4138 = vmatprep.subr.bf16.mxu0 0
    %4139 = vmatpush1.bf16.msra.mxu0 0
    %4140 = vmatprep.subr.bf16.mxu0 0
    %4141 = vmatpush1.bf16.msra.mxu0 0
    %4142 = vmatprep.subr.bf16.mxu0 0
    %4143 = vmatpush1.bf16.msra.mxu0 0
    %4144 = vmatprep.subr.bf16.mxu0 0
    %4145 = vmatpush1.bf16.msra.mxu0 0
    %4146 = vmatprep.subr.bf16.mxu0 0
    %4147 = vmatpush1.bf16.msra.mxu0 0
    %4148 = vmatprep.subr.bf16.mxu0 0
    %4149 = vmatpush1.bf16.msra.mxu0 %v866
    %4150 = vmatprep.subr.bf16.mxu0 0
    %4151 = vmatpush1.bf16.msra.mxu0 %v865
    %4152 = vmatprep.subr.bf16.mxu0 0
    %4153 = vmatpush2.bf16.msra.mxu0 0
    %4154 = vmatprep.subr.bf16.mxu0 0
    %4155 = vmatpush2.bf16.msra.mxu0 0
    %4156 = vmatprep.subr.bf16.mxu0 0
    %4157 = vmatpush2.bf16.msra.mxu0 0
    %4158 = vmatprep.subr.bf16.mxu0 0
    %4159 = vmatpush2.bf16.msra.mxu0 0
    %4160 = vmatprep.subr.bf16.mxu0 0
    %4161 = vmatpush2.bf16.msra.mxu0 0
    %4162 = vmatprep.subr.bf16.mxu0 0
    %4163 = vmatpush2.bf16.msra.mxu0 0
    %4164 = vmatprep.subr.bf16.mxu0 0
    %4165 = vmatpush2.bf16.msra.mxu0 0
    %4166 = vmatprep.subr.bf16.mxu0 0
    %4167 = vmatpush2.bf16.msra.mxu0 0
    %4168 = vmatprep.mubr.bf16.mxu0 0
    %4169 = vmatmul.mubr.bf16.gmra.mxu0 %v4134
    %v4170 = vpop.f32.mrf.mxu0
    %v4171 = vadd.f32 0.0, %v4170
    %v4172 = vpop.f32.mrf.mxu0
    %v4173 = vpop.f32.mrf.mxu0
    %v4174 = vpop.f32.mrf.mxu0
    %4175 = vdwg.mxu0
    %v4176 = vadd.f32 %v4113, %v4171
    %4177 = vmatprep.subr.bf16.mxu0 0
    %4178 = vmatpush1.bf16.msra.mxu0 0
    %4179 = vmatprep.subr.bf16.mxu0 0
    %4180 = vmatpush1.bf16.msra.mxu0 0
    %4181 = vmatprep.subr.bf16.mxu0 0
    %4182 = vmatpush1.bf16.msra.mxu0 0
    %4183 = vmatprep.subr.bf16.mxu0 0
    %4184 = vmatpush1.bf16.msra.mxu0 0
    %4185 = vmatprep.subr.bf16.mxu0 0
    %4186 = vmatpush1.bf16.msra.mxu0 0
    %4187 = vmatprep.subr.bf16.mxu0 0
    %4188 = vmatpush1.bf16.msra.mxu0 0
    %4189 = vmatprep.subr.bf16.mxu0 0
    %4190 = vmatpush1.bf16.msra.mxu0 %v922
    %4191 = vmatprep.subr.bf16.mxu0 0
    %4192 = vmatpush1.bf16.msra.mxu0 %v921
    %4193 = vmatprep.subr.bf16.mxu0 0
    %4194 = vmatpush2.bf16.msra.mxu0 0
    %4195 = vmatprep.subr.bf16.mxu0 0
    %4196 = vmatpush2.bf16.msra.mxu0 0
    %4197 = vmatprep.subr.bf16.mxu0 0
    %4198 = vmatpush2.bf16.msra.mxu0 0
    %4199 = vmatprep.subr.bf16.mxu0 0
    %4200 = vmatpush2.bf16.msra.mxu0 0
    %4201 = vmatprep.subr.bf16.mxu0 0
    %4202 = vmatpush2.bf16.msra.mxu0 0
    %4203 = vmatprep.subr.bf16.mxu0 0
    %4204 = vmatpush2.bf16.msra.mxu0 0
    %4205 = vmatprep.subr.bf16.mxu0 0
    %4206 = vmatpush2.bf16.msra.mxu0 0
    %4207 = vmatprep.subr.bf16.mxu0 0
    %4208 = vmatpush2.bf16.msra.mxu0 0
    %4209 = vmatprep.mubr.bf16.mxu0 0
    %4210 = vmatmul.mubr.bf16.gmra.mxu0 %v3889
    %v4211 = vpop.f32.mrf.mxu0
    %v4212 = vadd.f32 0.0, %v4211
    %v4213 = vpop.f32.mrf.mxu0
    %v4214 = vpop.f32.mrf.mxu0
    %v4215 = vpop.f32.mrf.mxu0
    %4216 = vdwg.mxu0
    %v4217 = vadd.f32 %v4176, %v4212
    %v4218 = vadd.f32 %v4217, %v973
    %v4219 = vxor.u32 %v4218, 2147483648
    %v4220 = vmul.f32 %v4219, 1.442695
    %v4221 = vpow.pop %v4220
    %v4222 = vadd.f32 %v4221, 1.0
    %v4223 = vrcp.pop %v4222
    %v4224 = vmul.f32 1.0, %v4223
    %v4225 = vtanh.pop %v4218
    %v4226 = vmul.f32 %v4224, %v3291
    %4228 = vrot.lane.b32.xlu0 %v4225, 64
    %v4229 = vpop.permute.xlu0 %4228
    %v4231 = vmul.f32 %v4224, %v4229
    %4233 = vrot.lane.b32.xlu0 %v4231, 32
    %v4234 = vpop.permute.xlu0 %4233
    %v4236 = vadd.f32 %v4226, %v4234
    %v4237 = vtanh.pop %v4236
    %4239 = vrot.lane.b32.xlu0 %v4237, 64
    %v4240 = vpop.permute.xlu0 %4239
    %v4242 = vmul.f32 %v4224, %v4240
    %v4243 = vpack.c.bf16 %v4242, %v4242
    %v4245 = vcombine.high %v4242, %v4242
    %v4247 = vunpack.c.l.s4 1966171168
    %v4248 = vunpack.c.0.s8 %v4247
    %v4249 = vlaneseq
    %v4250 = vshrl.u32 %v4249, 7
    %v4251 = vsub.s32 %v4248, %v4250
    %v4252 = vrot.slane %v4242, %v4251
    %v4254 = vunpack.c.l.s4 1966171168
    %v4255 = vunpack.c.0.s8 %v4254
    %v4256 = vlaneseq
    %v4257 = vshrl.u32 %v4256, 7
    %v4258 = vsub.s32 %v4255, %v4257
    %v4259 = vrot.slane %v4245, %v4258
    %v4260 = vcombine.high %v4252, %v4252
    %v4261 = vcombine.high %v4259, %v4259
    %v4263 = vunpack.c.l.s4 1966171168
    %v4264 = vunpack.c.0.s8 %v4263
    %v4265 = vlaneseq
    %v4266 = vshrl.u32 %v4265, 7
    %v4267 = vsub.s32 %v4264, %v4266
    %v4268 = vrot.slane %v4252, %v4267
    %v4270 = vunpack.c.l.s4 1966171168
    %v4271 = vunpack.c.0.s8 %v4270
    %v4272 = vlaneseq
    %v4273 = vshrl.u32 %v4272, 7
    %v4274 = vsub.s32 %v4271, %v4273
    %v4275 = vrot.slane %v4259, %v4274
    %v4277 = vunpack.c.l.s4 1966171168
    %v4278 = vunpack.c.0.s8 %v4277
    %v4279 = vlaneseq
    %v4280 = vshrl.u32 %v4279, 7
    %v4281 = vsub.s32 %v4278, %v4280
    %v4282 = vrot.slane %v4260, %v4281
    %v4284 = vunpack.c.l.s4 1966171168
    %v4285 = vunpack.c.0.s8 %v4284
    %v4286 = vlaneseq
    %v4287 = vshrl.u32 %v4286, 7
    %v4288 = vsub.s32 %v4285, %v4287
    %v4289 = vrot.slane %v4261, %v4288
    %v4290 = vcombine.high %v4268, %v4268
    %v4291 = vcombine.high %v4275, %v4275
    %v4292 = vcombine.high %v4282, %v4282
    %v4293 = vcombine.high %v4289, %v4289
    %v4294 = vlaneseq
    %v4295 = vshrl.u32 %v4294, 7
    %v4296 = vsub.s32 0, %v4295
    %v4297 = vrot.slane %v4268, %v4296
    %v4298 = vlaneseq
    %v4299 = vshrl.u32 %v4298, 7
    %v4300 = vsub.s32 0, %v4299
    %v4301 = vrot.slane %v4282, %v4300
    %v4302 = vlaneseq
    %v4303 = vshrl.u32 %v4302, 7
    %v4304 = vsub.s32 0, %v4303
    %v4305 = vrot.slane %v4290, %v4304
    %v4306 = vlaneseq
    %v4307 = vshrl.u32 %v4306, 7
    %v4308 = vsub.s32 0, %v4307
    %v4309 = vrot.slane %v4292, %v4308
    %v4310 = vlaneseq
    %v4311 = vshrl.u32 %v4310, 7
    %v4312 = vsub.s32 0, %v4311
    %v4313 = vrot.slane %v4275, %v4312
    %v4314 = vlaneseq
    %v4315 = vshrl.u32 %v4314, 7
    %v4316 = vsub.s32 0, %v4315
    %v4317 = vrot.slane %v4289, %v4316
    %v4318 = vlaneseq
    %v4319 = vshrl.u32 %v4318, 7
    %v4320 = vsub.s32 0, %v4319
    %v4321 = vrot.slane %v4291, %v4320
    %v4322 = vlaneseq
    %v4323 = vshrl.u32 %v4322, 7
    %v4324 = vsub.s32 0, %v4323
    %v4325 = vrot.slane %v4293, %v4324
    %v4334 = vmul.f32 %v4297, %v1220
    %v4335 = vmul.f32 %v4301, %v1222
    %v4336 = vmul.f32 %v4305, %v1224
    %v4337 = vmul.f32 %v4309, %v1226
    %v4338 = vmul.f32 %v4313, %v1228
    %v4339 = vmul.f32 %v4317, %v1230
    %v4340 = vmul.f32 %v4321, %v1232
    %v4341 = vmul.f32 %v4325, %v1234
    %4350 = vrot.lane.b32.xlu0 %v4334, 32
    %v4351 = vpop.permute.xlu0 %4350
    %4352 = vrot.lane.b32.xlu0 %v4335, 32
    %v4353 = vpop.permute.xlu0 %4352
    %4354 = vrot.lane.b32.xlu0 %v4336, 32
    %v4355 = vpop.permute.xlu0 %4354
    %4356 = vrot.lane.b32.xlu0 %v4337, 32
    %v4357 = vpop.permute.xlu0 %4356
    %4358 = vrot.lane.b32.xlu0 %v4338, 32
    %v4359 = vpop.permute.xlu0 %4358
    %4360 = vrot.lane.b32.xlu0 %v4339, 32
    %v4361 = vpop.permute.xlu0 %4360
    %4362 = vrot.lane.b32.xlu0 %v4340, 32
    %v4363 = vpop.permute.xlu0 %4362
    %4364 = vrot.lane.b32.xlu0 %v4341, 32
    %v4365 = vpop.permute.xlu0 %4364
    %v4374 = vsel %vm1283, %v4351, 0.0
    %4375 = vadd.xlane.f32.xlu0 %v4374
    %v4376 = vpop.xlane.xlu0 %4375
    %v4377 = vsel %vm1283, %v4353, 0.0
    %4378 = vadd.xlane.f32.xlu0 %v4377
    %v4379 = vpop.xlane.xlu0 %4378
    %v4380 = vsel %vm1283, %v4355, 0.0
    %4381 = vadd.xlane.f32.xlu0 %v4380
    %v4382 = vpop.xlane.xlu0 %4381
    %v4383 = vsel %vm1283, %v4357, 0.0
    %4384 = vadd.xlane.f32.xlu0 %v4383
    %v4385 = vpop.xlane.xlu0 %4384
    %v4386 = vsel %vm1283, %v4359, 0.0
    %4387 = vadd.xlane.f32.xlu0 %v4386
    %v4388 = vpop.xlane.xlu0 %4387
    %v4389 = vsel %vm1283, %v4361, 0.0
    %4390 = vadd.xlane.f32.xlu0 %v4389
    %v4391 = vpop.xlane.xlu0 %4390
    %v4392 = vsel %vm1283, %v4363, 0.0
    %4393 = vadd.xlane.f32.xlu0 %v4392
    %v4394 = vpop.xlane.xlu0 %4393
    %v4395 = vsel %vm1283, %v4365, 0.0
    %4396 = vadd.xlane.f32.xlu0 %v4395
    %v4397 = vpop.xlane.xlu0 %4396
    %v4398 = vadd.f32 %v4376, %v1315
    %v4399 = vadd.f32 %v4379, %v1322
    %v4400 = vadd.f32 %v4382, %v1329
    %v4401 = vadd.f32 %v4385, %v1336
    %v4402 = vadd.f32 %v4388, %v1343
    %v4403 = vadd.f32 %v4391, %v1350
    %v4404 = vadd.f32 %v4394, %v1357
    %v4405 = vadd.f32 %v4397, %v1364
    %4414 = vset.pattern.permute.xlu0 0
    %4415 = vperm.xlu0 %4414, %v4398
    %v4416 = vpop.permute.xlu0 %4415
    %4417 = vset.pattern.permute.xlu0 0
    %4418 = vperm.xlu0 %4417, %v4399
    %v4419 = vpop.permute.xlu0 %4418
    %4420 = vset.pattern.permute.xlu0 0
    %4421 = vperm.xlu0 %4420, %v4400
    %v4422 = vpop.permute.xlu0 %4421
    %4423 = vset.pattern.permute.xlu0 0
    %4424 = vperm.xlu0 %4423, %v4401
    %v4425 = vpop.permute.xlu0 %4424
    %4426 = vset.pattern.permute.xlu0 0
    %4427 = vperm.xlu0 %4426, %v4402
    %v4428 = vpop.permute.xlu0 %4427
    %4429 = vset.pattern.permute.xlu0 0
    %4430 = vperm.xlu0 %4429, %v4403
    %v4431 = vpop.permute.xlu0 %4430
    %4432 = vset.pattern.permute.xlu0 0
    %4433 = vperm.xlu0 %4432, %v4404
    %v4434 = vpop.permute.xlu0 %4433
    %4435 = vset.pattern.permute.xlu0 0
    %4436 = vperm.xlu0 %4435, %v4405
    %v4437 = vpop.permute.xlu0 %4436
    %v4438 = vlaneseq
    %v4439 = vshrl.u32 %v4438, 7
    %v4440 = vsub.s32 %v705, %v4439
    %v4441 = vrot.slane %v4416, %v4440
    %v4442 = vlaneseq
    %v4443 = vshrl.u32 %v4442, 7
    %v4444 = vsub.s32 %v705, %v4443
    %v4445 = vrot.slane %v4419, %v4444
    %v4446 = vlaneseq
    %v4447 = vshrl.u32 %v4446, 7
    %v4448 = vsub.s32 %v705, %v4447
    %v4449 = vrot.slane %v4422, %v4448
    %v4450 = vlaneseq
    %v4451 = vshrl.u32 %v4450, 7
    %v4452 = vsub.s32 %v705, %v4451
    %v4453 = vrot.slane %v4425, %v4452
    %v4454 = vlaneseq
    %v4455 = vshrl.u32 %v4454, 7
    %v4456 = vsub.s32 %v705, %v4455
    %v4457 = vrot.slane %v4428, %v4456
    %v4458 = vlaneseq
    %v4459 = vshrl.u32 %v4458, 7
    %v4460 = vsub.s32 %v705, %v4459
    %v4461 = vrot.slane %v4431, %v4460
    %v4462 = vlaneseq
    %v4463 = vshrl.u32 %v4462, 7
    %v4464 = vsub.s32 %v705, %v4463
    %v4465 = vrot.slane %v4434, %v4464
    %v4466 = vlaneseq
    %v4467 = vshrl.u32 %v4466, 7
    %v4468 = vsub.s32 %v705, %v4467
    %v4469 = vrot.slane %v4437, %v4468
    %v4470 = vsel %vm836, %v4445, %v4441
    %v4471 = vsel %vm839, %v4449, %v4470
    %v4472 = vsel %vm842, %v4453, %v4471
    %v4473 = vsel %vm845, %v4457, %v4472
    %v4474 = vsel %vm848, %v4461, %v4473
    %v4475 = vsel %vm851, %v4465, %v4474
    %v4476 = vsel %vm854, %v4469, %v4475
    %v4478 = vsel %vm1453, %v4476, -inf
    %4479 = vmax.xlane.f32.xlu0 %v4478
    %v4480 = vpop.xlane.xlu0 %4479
    %v4482 = vlaneseq
    %v4483 = vshrl.u32 %v4482, 7
    %v4484 = vsub.s32 0, %v4483
    %v4485 = vrot.slane %v4480, %v4484
    %v4486 = vlaneseq
    %v4487 = vshrl.u32 %v4486, 7
    %v4488 = vsub.s32 1, %v4487
    %v4489 = vrot.slane %v4480, %v4488
    %v4490 = vlaneseq
    %v4491 = vshrl.u32 %v4490, 7
    %v4492 = vsub.s32 2, %v4491
    %v4493 = vrot.slane %v4480, %v4492
    %v4494 = vlaneseq
    %v4495 = vshrl.u32 %v4494, 7
    %v4496 = vsub.s32 3, %v4495
    %v4497 = vrot.slane %v4480, %v4496
    %v4498 = vlaneseq
    %v4499 = vshrl.u32 %v4498, 7
    %v4500 = vsub.s32 4, %v4499
    %v4501 = vrot.slane %v4480, %v4500
    %v4502 = vlaneseq
    %v4503 = vshrl.u32 %v4502, 7
    %v4504 = vsub.s32 5, %v4503
    %v4505 = vrot.slane %v4480, %v4504
    %v4506 = vlaneseq
    %v4507 = vshrl.u32 %v4506, 7
    %v4508 = vsub.s32 6, %v4507
    %v4509 = vrot.slane %v4480, %v4508
    %v4510 = vlaneseq
    %v4511 = vshrl.u32 %v4510, 7
    %v4512 = vsub.s32 7, %v4511
    %v4513 = vrot.slane %v4480, %v4512
    %v4522 = vsub.f32 %v4398, %v4485
    %v4523 = vsub.f32 %v4399, %v4489
    %v4524 = vsub.f32 %v4400, %v4493
    %v4525 = vsub.f32 %v4401, %v4497
    %v4526 = vsub.f32 %v4402, %v4501
    %v4527 = vsub.f32 %v4403, %v4505
    %v4528 = vsub.f32 %v4404, %v4509
    %v4529 = vsub.f32 %v4405, %v4513
    %v4530 = vmul.f32 %v4522, 1.442695
    %v4531 = vpow.pop %v4530
    %v4532 = vmul.f32 %v4523, 1.442695
    %v4533 = vpow.pop %v4532
    %v4534 = vmul.f32 %v4524, 1.442695
    %v4535 = vpow.pop %v4534
    %v4536 = vmul.f32 %v4525, 1.442695
    %v4537 = vpow.pop %v4536
    %v4538 = vmul.f32 %v4526, 1.442695
    %v4539 = vpow.pop %v4538
    %v4540 = vmul.f32 %v4527, 1.442695
    %v4541 = vpow.pop %v4540
    %v4542 = vmul.f32 %v4528, 1.442695
    %v4543 = vpow.pop %v4542
    %v4544 = vmul.f32 %v4529, 1.442695
    %v4545 = vpow.pop %v4544
    %4554 = vset.pattern.permute.xlu0 0
    %4555 = vperm.xlu0 %4554, %v4531
    %v4556 = vpop.permute.xlu0 %4555
    %4557 = vset.pattern.permute.xlu0 0
    %4558 = vperm.xlu0 %4557, %v4533
    %v4559 = vpop.permute.xlu0 %4558
    %4560 = vset.pattern.permute.xlu0 0
    %4561 = vperm.xlu0 %4560, %v4535
    %v4562 = vpop.permute.xlu0 %4561
    %4563 = vset.pattern.permute.xlu0 0
    %4564 = vperm.xlu0 %4563, %v4537
    %v4565 = vpop.permute.xlu0 %4564
    %4566 = vset.pattern.permute.xlu0 0
    %4567 = vperm.xlu0 %4566, %v4539
    %v4568 = vpop.permute.xlu0 %4567
    %4569 = vset.pattern.permute.xlu0 0
    %4570 = vperm.xlu0 %4569, %v4541
    %v4571 = vpop.permute.xlu0 %4570
    %4572 = vset.pattern.permute.xlu0 0
    %4573 = vperm.xlu0 %4572, %v4543
    %v4574 = vpop.permute.xlu0 %4573
    %4575 = vset.pattern.permute.xlu0 0
    %4576 = vperm.xlu0 %4575, %v4545
    %v4577 = vpop.permute.xlu0 %4576
    %v4578 = vlaneseq
    %v4579 = vshrl.u32 %v4578, 7
    %v4580 = vsub.s32 %v705, %v4579
    %v4581 = vrot.slane %v4556, %v4580
    %v4582 = vlaneseq
    %v4583 = vshrl.u32 %v4582, 7
    %v4584 = vsub.s32 %v705, %v4583
    %v4585 = vrot.slane %v4559, %v4584
    %v4586 = vlaneseq
    %v4587 = vshrl.u32 %v4586, 7
    %v4588 = vsub.s32 %v705, %v4587
    %v4589 = vrot.slane %v4562, %v4588
    %v4590 = vlaneseq
    %v4591 = vshrl.u32 %v4590, 7
    %v4592 = vsub.s32 %v705, %v4591
    %v4593 = vrot.slane %v4565, %v4592
    %v4594 = vlaneseq
    %v4595 = vshrl.u32 %v4594, 7
    %v4596 = vsub.s32 %v705, %v4595
    %v4597 = vrot.slane %v4568, %v4596
    %v4598 = vlaneseq
    %v4599 = vshrl.u32 %v4598, 7
    %v4600 = vsub.s32 %v705, %v4599
    %v4601 = vrot.slane %v4571, %v4600
    %v4602 = vlaneseq
    %v4603 = vshrl.u32 %v4602, 7
    %v4604 = vsub.s32 %v705, %v4603
    %v4605 = vrot.slane %v4574, %v4604
    %v4606 = vlaneseq
    %v4607 = vshrl.u32 %v4606, 7
    %v4608 = vsub.s32 %v705, %v4607
    %v4609 = vrot.slane %v4577, %v4608
    %v4610 = vsel %vm836, %v4585, %v4581
    %v4611 = vsel %vm839, %v4589, %v4610
    %v4612 = vsel %vm842, %v4593, %v4611
    %v4613 = vsel %vm845, %v4597, %v4612
    %v4614 = vsel %vm848, %v4601, %v4613
    %v4615 = vsel %vm851, %v4605, %v4614
    %v4616 = vsel %vm854, %v4609, %v4615
    %v4618 = vsel %vm1453, %v4616, 0.0
    %4619 = vadd.xlane.f32.xlu0 %v4618
    %v4620 = vpop.xlane.xlu0 %4619
    %v4622 = vlaneseq
    %v4623 = vshrl.u32 %v4622, 7
    %v4624 = vsub.s32 0, %v4623
    %v4625 = vrot.slane %v4620, %v4624
    %v4626 = vlaneseq
    %v4627 = vshrl.u32 %v4626, 7
    %v4628 = vsub.s32 1, %v4627
    %v4629 = vrot.slane %v4620, %v4628
    %v4630 = vlaneseq
    %v4631 = vshrl.u32 %v4630, 7
    %v4632 = vsub.s32 2, %v4631
    %v4633 = vrot.slane %v4620, %v4632
    %v4634 = vlaneseq
    %v4635 = vshrl.u32 %v4634, 7
    %v4636 = vsub.s32 3, %v4635
    %v4637 = vrot.slane %v4620, %v4636
    %v4638 = vlaneseq
    %v4639 = vshrl.u32 %v4638, 7
    %v4640 = vsub.s32 4, %v4639
    %v4641 = vrot.slane %v4620, %v4640
    %v4642 = vlaneseq
    %v4643 = vshrl.u32 %v4642, 7
    %v4644 = vsub.s32 5, %v4643
    %v4645 = vrot.slane %v4620, %v4644
    %v4646 = vlaneseq
    %v4647 = vshrl.u32 %v4646, 7
    %v4648 = vsub.s32 6, %v4647
    %v4649 = vrot.slane %v4620, %v4648
    %v4650 = vlaneseq
    %v4651 = vshrl.u32 %v4650, 7
    %v4652 = vsub.s32 7, %v4651
    %v4653 = vrot.slane %v4620, %v4652
    %v4662 = vrcp.pop %v4625
    %v4663 = vmul.f32 %v4531, %v4662
    %v4664 = vrcp.pop %v4629
    %v4665 = vmul.f32 %v4533, %v4664
    %v4666 = vrcp.pop %v4633
    %v4667 = vmul.f32 %v4535, %v4666
    %v4668 = vrcp.pop %v4637
    %v4669 = vmul.f32 %v4537, %v4668
    %v4670 = vrcp.pop %v4641
    %v4671 = vmul.f32 %v4539, %v4670
    %v4672 = vrcp.pop %v4645
    %v4673 = vmul.f32 %v4541, %v4672
    %v4674 = vrcp.pop %v4649
    %v4675 = vmul.f32 %v4543, %v4674
    %v4676 = vrcp.pop %v4653
    %v4677 = vmul.f32 %v4545, %v4676
    %4679 = vset.pattern.permute.xlu0 0
    %4680 = vperm.xlu0 %4679, %v4663
    %v4681 = vpop.permute.xlu0 %4680
    %4684 = vset.pattern.permute.xlu0 0
    %4685 = vperm.xlu0 %4684, %v4665
    %v4686 = vpop.permute.xlu0 %4685
    %4689 = vset.pattern.permute.xlu0 0
    %4690 = vperm.xlu0 %4689, %v4667
    %v4691 = vpop.permute.xlu0 %4690
    %4694 = vset.pattern.permute.xlu0 0
    %4695 = vperm.xlu0 %4694, %v4669
    %v4696 = vpop.permute.xlu0 %4695
    %4699 = vset.pattern.permute.xlu0 0
    %4700 = vperm.xlu0 %4699, %v4671
    %v4701 = vpop.permute.xlu0 %4700
    %4704 = vset.pattern.permute.xlu0 0
    %4705 = vperm.xlu0 %4704, %v4673
    %v4706 = vpop.permute.xlu0 %4705
    %4709 = vset.pattern.permute.xlu0 0
    %4710 = vperm.xlu0 %4709, %v4675
    %v4711 = vpop.permute.xlu0 %4710
    %4714 = vset.pattern.permute.xlu0 0
    %4715 = vperm.xlu0 %4714, %v4677
    %v4716 = vpop.permute.xlu0 %4715
    %v4718 = vmul.f32 %v4681, %v694
    %v4719 = vmul.f32 %v4686, %v695
    %v4720 = vmul.f32 %v4691, %v696
    %v4721 = vmul.f32 %v4696, %v697
    %v4722 = vmul.f32 %v4701, %v698
    %v4723 = vmul.f32 %v4706, %v699
    %v4724 = vmul.f32 %v4711, %v700
    %v4725 = vmul.f32 %v4716, %v701
    %v4726 = vsel %vm1283, %v4718, 0.0
    %v4727 = vrot.slane %v4726, 4
    %v4728 = vadd.f32 %v4726, %v4727
    %v4729 = vrot.slane %v4728, 2
    %v4730 = vadd.f32 %v4728, %v4729
    %v4731 = vrot.slane %v4730, 1
    %v4732 = vadd.f32 %v4730, %v4731
    %v4733 = vsel %vm1283, %v4719, 0.0
    %v4734 = vrot.slane %v4733, 4
    %v4735 = vadd.f32 %v4733, %v4734
    %v4736 = vrot.slane %v4735, 2
    %v4737 = vadd.f32 %v4735, %v4736
    %v4738 = vrot.slane %v4737, 1
    %v4739 = vadd.f32 %v4737, %v4738
    %v4740 = vsel %vm1283, %v4720, 0.0
    %v4741 = vrot.slane %v4740, 4
    %v4742 = vadd.f32 %v4740, %v4741
    %v4743 = vrot.slane %v4742, 2
    %v4744 = vadd.f32 %v4742, %v4743
    %v4745 = vrot.slane %v4744, 1
    %v4746 = vadd.f32 %v4744, %v4745
    %v4747 = vsel %vm1283, %v4721, 0.0
    %v4748 = vrot.slane %v4747, 4
    %v4749 = vadd.f32 %v4747, %v4748
    %v4750 = vrot.slane %v4749, 2
    %v4751 = vadd.f32 %v4749, %v4750
    %v4752 = vrot.slane %v4751, 1
    %v4753 = vadd.f32 %v4751, %v4752
    %v4754 = vsel %vm1283, %v4722, 0.0
    %v4755 = vrot.slane %v4754, 4
    %v4756 = vadd.f32 %v4754, %v4755
    %v4757 = vrot.slane %v4756, 2
    %v4758 = vadd.f32 %v4756, %v4757
    %v4759 = vrot.slane %v4758, 1
    %v4760 = vadd.f32 %v4758, %v4759
    %v4761 = vsel %vm1283, %v4723, 0.0
    %v4762 = vrot.slane %v4761, 4
    %v4763 = vadd.f32 %v4761, %v4762
    %v4764 = vrot.slane %v4763, 2
    %v4765 = vadd.f32 %v4763, %v4764
    %v4766 = vrot.slane %v4765, 1
    %v4767 = vadd.f32 %v4765, %v4766
    %v4768 = vsel %vm1283, %v4724, 0.0
    %v4769 = vrot.slane %v4768, 4
    %v4770 = vadd.f32 %v4768, %v4769
    %v4771 = vrot.slane %v4770, 2
    %v4772 = vadd.f32 %v4770, %v4771
    %v4773 = vrot.slane %v4772, 1
    %v4774 = vadd.f32 %v4772, %v4773
    %v4775 = vsel %vm1283, %v4725, 0.0
    %v4776 = vrot.slane %v4775, 4
    %v4777 = vadd.f32 %v4775, %v4776
    %v4778 = vrot.slane %v4777, 2
    %v4779 = vadd.f32 %v4777, %v4778
    %v4780 = vrot.slane %v4779, 1
    %v4781 = vadd.f32 %v4779, %v4780
    %v4782 = vpack.c.bf16 %v4732, %v4732
    %v4783 = vpack.c.bf16 %v4739, %v4739
    %v4784 = vpack.c.bf16 %v4746, %v4746
    %v4785 = vpack.c.bf16 %v4753, %v4753
    %v4786 = vpack.c.bf16 %v4760, %v4760
    %v4787 = vpack.c.bf16 %v4767, %v4767
    %v4788 = vpack.c.bf16 %v4774, %v4774
    %v4789 = vpack.c.bf16 %v4781, %v4781
    %4790 = vmatprep.subr.bf16.mxu0 0
    %4791 = vmatpush1.bf16.msra.mxu0 0
    %4792 = vmatprep.subr.bf16.mxu0 0
    %4793 = vmatpush1.bf16.msra.mxu0 0
    %4794 = vmatprep.subr.bf16.mxu0 0
    %4795 = vmatpush1.bf16.msra.mxu0 0
    %4796 = vmatprep.subr.bf16.mxu0 0
    %4797 = vmatpush1.bf16.msra.mxu0 0
    %4798 = vmatprep.subr.bf16.mxu0 0
    %4799 = vmatpush1.bf16.msra.mxu0 0
    %4800 = vmatprep.subr.bf16.mxu0 0
    %4801 = vmatpush1.bf16.msra.mxu0 0
    %4802 = vmatprep.subr.bf16.mxu0 0
    %4803 = vmatpush1.bf16.msra.mxu0 %v1920
    %4804 = vmatprep.subr.bf16.mxu0 0
    %4805 = vmatpush1.bf16.msra.mxu0 %v1919
    %4806 = vmatprep.subr.bf16.mxu0 0
    %4807 = vmatpush2.bf16.msra.mxu0 0
    %4808 = vmatprep.subr.bf16.mxu0 0
    %4809 = vmatpush2.bf16.msra.mxu0 0
    %4810 = vmatprep.subr.bf16.mxu0 0
    %4811 = vmatpush2.bf16.msra.mxu0 0
    %4812 = vmatprep.subr.bf16.mxu0 0
    %4813 = vmatpush2.bf16.msra.mxu0 0
    %4814 = vmatprep.subr.bf16.mxu0 0
    %4815 = vmatpush2.bf16.msra.mxu0 0
    %4816 = vmatprep.subr.bf16.mxu0 0
    %4817 = vmatpush2.bf16.msra.mxu0 0
    %4818 = vmatprep.subr.bf16.mxu0 0
    %4819 = vmatpush2.bf16.msra.mxu0 0
    %4820 = vmatprep.subr.bf16.mxu0 0
    %4821 = vmatpush2.bf16.msra.mxu0 0
    %4822 = vmatprep.mubr.bf16.mxu0 0
    %4823 = vmatmul.mubr.bf16.gmra.mxu0 %v4033
    %v4824 = vpop.f32.mrf.mxu0
    %v4825 = vadd.f32 0.0, %v4824
    %v4826 = vpop.f32.mrf.mxu0
    %v4827 = vpop.f32.mrf.mxu0
    %v4828 = vpop.f32.mrf.mxu0
    %4829 = vdwg.mxu0
    %4831 = vrot.lane.b32.xlu0 %v4243, 32
    %v4832 = vpop.permute.xlu0 %4831
    %v4834 = vsel %vm519, %v4832, 0
    %4836 = vmatprep.subr.bf16.mxu0 0
    %4837 = vmatpush1.bf16.msra.mxu0 0
    %4838 = vmatprep.subr.bf16.mxu0 0
    %4839 = vmatpush1.bf16.msra.mxu0 0
    %4840 = vmatprep.subr.bf16.mxu0 0
    %4841 = vmatpush1.bf16.msra.mxu0 0
    %4842 = vmatprep.subr.bf16.mxu0 0
    %4843 = vmatpush1.bf16.msra.mxu0 0
    %4844 = vmatprep.subr.bf16.mxu0 0
    %4845 = vmatpush1.bf16.msra.mxu0 0
    %4846 = vmatprep.subr.bf16.mxu0 0
    %4847 = vmatpush1.bf16.msra.mxu0 0
    %4848 = vmatprep.subr.bf16.mxu0 0
    %4849 = vmatpush1.bf16.msra.mxu0 %v1972
    %4850 = vmatprep.subr.bf16.mxu0 0
    %4851 = vmatpush1.bf16.msra.mxu0 %v1971
    %4852 = vmatprep.subr.bf16.mxu0 0
    %4853 = vmatpush2.bf16.msra.mxu0 0
    %4854 = vmatprep.subr.bf16.mxu0 0
    %4855 = vmatpush2.bf16.msra.mxu0 0
    %4856 = vmatprep.subr.bf16.mxu0 0
    %4857 = vmatpush2.bf16.msra.mxu0 0
    %4858 = vmatprep.subr.bf16.mxu0 0
    %4859 = vmatpush2.bf16.msra.mxu0 0
    %4860 = vmatprep.subr.bf16.mxu0 0
    %4861 = vmatpush2.bf16.msra.mxu0 0
    %4862 = vmatprep.subr.bf16.mxu0 0
    %4863 = vmatpush2.bf16.msra.mxu0 0
    %4864 = vmatprep.subr.bf16.mxu0 0
    %4865 = vmatpush2.bf16.msra.mxu0 0
    %4866 = vmatprep.subr.bf16.mxu0 0
    %4867 = vmatpush2.bf16.msra.mxu0 0
    %4868 = vmatprep.mubr.bf16.mxu0 0
    %4869 = vmatmul.mubr.bf16.gmra.mxu0 %v4834
    %v4870 = vpop.f32.mrf.mxu0
    %v4871 = vadd.f32 %v4825, %v4870
    %v4872 = vpop.f32.mrf.mxu0
    %v4873 = vpop.f32.mrf.mxu0
    %v4874 = vpop.f32.mrf.mxu0
    %4875 = vdwg.mxu0
    %v4876 = vadd.f32 %v4871, %v2019
    %4877 = vmax.xlane.f32.xlu0 %v4876
    %v4878 = vpop.xlane.xlu0 %4877
    %v4879 = vsub.f32 %v4876, %v4878
    %v4880 = vmul.f32 %v4879, 1.442695
    %v4881 = vpow.pop %v4880
    %4882 = vadd.xlane.f32.xlu0 %v4881
    %v4883 = vpop.xlane.xlu0 %4882
    %v4884 = vlog2.pop %v4883
    %v4885 = vmul.f32 %v4884, 0.6931472
    %v4886 = vadd.f32 %v4878, %v4885
    %v4887 = vsub.f32 %v4876, %v4886
    %s4888 = scalar_lea.vmem [#allocation8], 24
    %4889 = vst [vmem:[%s4888] sm:$0xff] %v4887
    %4890 = vmax.xlane.f32.xlu0 %v4887
    %v4891 = vpop.xlane.xlu0 %4890
    %vm4892 = vcmp.ge.f32.partialorder %v4887, %v4891
    %v4893 = vsel %vm4892, %v705, 128
    %v4894 = vand.u32 %v4893, 65535
    %v4895 = vshra.s32 %v4893, 16
    %v4896 = vcvt.s32.f32 %v4894
    %v4897 = vcvt.s32.f32 %v4895
    %4898 = vmin.xlane.f32.xlu0 %v4897
    %v4899 = vpop.xlane.xlu0 %4898
    %vm4900 = vcmp.eq.f32.partialorder %v4897, %v4899
    %v4901 = vsel %vm4900, %v4896, inf
    %4902 = vmin.xlane.f32.xlu0 %v4901
    %v4903 = vpop.xlane.xlu0 %4902
    %v4904 = vcvt.f32.s32 %v4903
    %v4905 = vcvt.f32.s32 %v4899
    %v4906 = vshll.u32 %v4905, 16
    %v4907 = vadd.s32 %v4906, %v4904
    %vm4908 = vcmp.eq.s32.totalorder %v705, %v4907
    %v4909 = vsel %vm4908, 1, 0
    %v4910 = vcvt.s32.f32 %v4909
    %v4911 = vpack.c.bf16 %v4910, %v4910
    %4912 = vmatprep.subr.bf16.mxu0 0
    %4913 = vmatpush1.bf16.msra.mxu0 %v2095
    %4914 = vmatprep.subr.bf16.mxu0 0
    %4915 = vmatpush1.bf16.msra.mxu0 %v2094
    %4916 = vmatprep.subr.bf16.mxu0 0
    %4917 = vmatpush1.bf16.msra.mxu0 %v2093
    %4918 = vmatprep.subr.bf16.mxu0 0
    %4919 = vmatpush1.bf16.msra.mxu0 %v2092
    %4920 = vmatprep.subr.bf16.mxu0 0
    %4921 = vmatpush1.bf16.msra.mxu0 %v2091
    %4922 = vmatprep.subr.bf16.mxu0 0
    %4923 = vmatpush1.bf16.msra.mxu0 %v2090
    %4924 = vmatprep.subr.bf16.mxu0 0
    %4925 = vmatpush1.bf16.msra.mxu0 %v2089
    %4926 = vmatprep.subr.bf16.mxu0 0
    %4927 = vmatpush1.bf16.msra.mxu0 %v2088
    %4928 = vmatprep.subr.bf16.mxu0 0
    %4929 = vmatpush2.bf16.msra.mxu0 0
    %4930 = vmatprep.subr.bf16.mxu0 0
    %4931 = vmatpush2.bf16.msra.mxu0 0
    %4932 = vmatprep.subr.bf16.mxu0 0
    %4933 = vmatpush2.bf16.msra.mxu0 0
    %4934 = vmatprep.subr.bf16.mxu0 0
    %4935 = vmatpush2.bf16.msra.mxu0 0
    %4936 = vmatprep.subr.bf16.mxu0 0
    %4937 = vmatpush2.bf16.msra.mxu0 0
    %4938 = vmatprep.subr.bf16.mxu0 0
    %4939 = vmatpush2.bf16.msra.mxu0 0
    %4940 = vmatprep.subr.bf16.mxu0 0
    %4941 = vmatpush2.bf16.msra.mxu0 0
    %4942 = vmatprep.subr.bf16.mxu0 0
    %4943 = vmatpush2.bf16.msra.mxu0 0
    %4944 = vmatprep.mubr.bf16.mxu0 0
    %4945 = vmatmul.mubr.bf16.gmra.mxu0 %v4911
    %v4946 = vpop.f32.mrf.mxu0
    %v4947 = vadd.f32 0.0, %v4946
    %v4948 = vpop.f32.mrf.mxu0
    %v4949 = vpop.f32.mrf.mxu0
    %v4950 = vpop.f32.mrf.mxu0
    %4951 = vdwg.mxu0
    %v4952 = vpack.c.bf16 %v4947, %v4947
    %v4961 = vunpack.c.l.b16 %v4782
    %v4962 = vunpack.c.l.b16 %v4783
    %v4963 = vunpack.c.l.b16 %v4784
    %v4964 = vunpack.c.l.b16 %v4785
    %v4965 = vunpack.c.l.b16 %v4786
    %v4966 = vunpack.c.l.b16 %v4787
    %v4967 = vunpack.c.l.b16 %v4788
    %v4968 = vunpack.c.l.b16 %v4789
    %v4969 = vsel %vm836, %v4962, %v4961
    %v4970 = vsel %vm839, %v4963, %v4969
    %v4971 = vsel %vm842, %v4964, %v4970
    %v4972 = vsel %vm845, %v4965, %v4971
    %v4973 = vsel %vm848, %v4966, %v4972
    %v4974 = vsel %vm851, %v4967, %v4973
    %v4975 = vsel %vm854, %v4968, %v4974
    %v4976 = vpack.c.b16 %v4975, %v4975
    %v4978 = vsel %vm519, %v4976, 0
    %4980 = vmatprep.subr.bf16.mxu0 0
    %4981 = vmatpush1.bf16.msra.mxu0 0
    %4982 = vmatprep.subr.bf16.mxu0 0
    %4983 = vmatpush1.bf16.msra.mxu0 0
    %4984 = vmatprep.subr.bf16.mxu0 0
    %4985 = vmatpush1.bf16.msra.mxu0 0
    %4986 = vmatprep.subr.bf16.mxu0 0
    %4987 = vmatpush1.bf16.msra.mxu0 0
    %4988 = vmatprep.subr.bf16.mxu0 0
    %4989 = vmatpush1.bf16.msra.mxu0 0
    %4990 = vmatprep.subr.bf16.mxu0 0
    %4991 = vmatpush1.bf16.msra.mxu0 0
    %4992 = vmatprep.subr.bf16.mxu0 0
    %4993 = vmatpush1.bf16.msra.mxu0 %v715
    %4994 = vmatprep.subr.bf16.mxu0 0
    %4995 = vmatpush1.bf16.msra.mxu0 %v714
    %4996 = vmatprep.subr.bf16.mxu0 0
    %4997 = vmatpush2.bf16.msra.mxu0 0
    %4998 = vmatprep.subr.bf16.mxu0 0
    %4999 = vmatpush2.bf16.msra.mxu0 0
    %5000 = vmatprep.subr.bf16.mxu0 0
    %5001 = vmatpush2.bf16.msra.mxu0 0
    %5002 = vmatprep.subr.bf16.mxu0 0
    %5003 = vmatpush2.bf16.msra.mxu0 0
    %5004 = vmatprep.subr.bf16.mxu0 0
    %5005 = vmatpush2.bf16.msra.mxu0 0
    %5006 = vmatprep.subr.bf16.mxu0 0
    %5007 = vmatpush2.bf16.msra.mxu0 0
    %5008 = vmatprep.subr.bf16.mxu0 0
    %5009 = vmatpush2.bf16.msra.mxu0 0
    %5010 = vmatprep.subr.bf16.mxu0 0
    %5011 = vmatpush2.bf16.msra.mxu0 0
    %5012 = vmatprep.mubr.bf16.mxu0 0
    %5013 = vmatmul.mubr.bf16.gmra.mxu0 %v4978
    %v5014 = vpop.f32.mrf.mxu0
    %v5015 = vadd.f32 0.0, %v5014
    %v5016 = vpop.f32.mrf.mxu0
    %v5017 = vpop.f32.mrf.mxu0
    %v5018 = vpop.f32.mrf.mxu0
    %5019 = vdwg.mxu0
    %v5021 = vsel %vm767, %v4952, 0
    %5023 = vmatprep.subr.bf16.mxu0 0
    %5024 = vmatpush1.bf16.msra.mxu0 0
    %5025 = vmatprep.subr.bf16.mxu0 0
    %5026 = vmatpush1.bf16.msra.mxu0 0
    %5027 = vmatprep.subr.bf16.mxu0 0
    %5028 = vmatpush1.bf16.msra.mxu0 0
    %5029 = vmatprep.subr.bf16.mxu0 0
    %5030 = vmatpush1.bf16.msra.mxu0 0
    %5031 = vmatprep.subr.bf16.mxu0 0
    %5032 = vmatpush1.bf16.msra.mxu0 0
    %5033 = vmatprep.subr.bf16.mxu0 0
    %5034 = vmatpush1.bf16.msra.mxu0 0
    %5035 = vmatprep.subr.bf16.mxu0 0
    %5036 = vmatpush1.bf16.msra.mxu0 0
    %5037 = vmatprep.subr.bf16.mxu0 0
    %5038 = vmatpush1.bf16.msra.mxu0 %v765
    %5039 = vmatprep.subr.bf16.mxu0 0
    %5040 = vmatpush2.bf16.msra.mxu0 0
    %5041 = vmatprep.subr.bf16.mxu0 0
    %5042 = vmatpush2.bf16.msra.mxu0 0
    %5043 = vmatprep.subr.bf16.mxu0 0
    %5044 = vmatpush2.bf16.msra.mxu0 0
    %5045 = vmatprep.subr.bf16.mxu0 0
    %5046 = vmatpush2.bf16.msra.mxu0 0
    %5047 = vmatprep.subr.bf16.mxu0 0
    %5048 = vmatpush2.bf16.msra.mxu0 0
    %5049 = vmatprep.subr.bf16.mxu0 0
    %5050 = vmatpush2.bf16.msra.mxu0 0
    %5051 = vmatprep.subr.bf16.mxu0 0
    %5052 = vmatpush2.bf16.msra.mxu0 0
    %5053 = vmatprep.subr.bf16.mxu0 0
    %5054 = vmatpush2.bf16.msra.mxu0 0
    %5055 = vmatprep.mubr.bf16.mxu0 0
    %5056 = vmatmul.mubr.bf16.gmra.mxu0 %v5021
    %v5057 = vpop.f32.mrf.mxu0
    %v5058 = vadd.f32 %v5015, %v5057
    %v5059 = vpop.f32.mrf.mxu0
    %v5060 = vpop.f32.mrf.mxu0
    %v5061 = vpop.f32.mrf.mxu0
    %5062 = vdwg.mxu0
    %v5063 = vrot.slane %v827, 4
    %v5064 = vrot.slane %v828, 3
    %v5065 = vsel %vm836, %v5064, %v5063
    %v5066 = vrot.slane %v829, 2
    %v5067 = vsel %vm839, %v5066, %v5065
    %v5068 = vrot.slane %v830, 1
    %v5069 = vsel %vm842, %v5068, %v5067
    %v5070 = vsel %vm845, %v831, %v5069
    %v5071 = vrot.slane %v832, 7
    %v5072 = vsel %vm848, %v5071, %v5070
    %v5073 = vrot.slane %v833, 6
    %v5074 = vsel %vm851, %v5073, %v5072
    %v5075 = vrot.slane %v834, 5
    %v5076 = vsel %vm854, %v5075, %v5074
    %v5077 = vpack.c.b16 %v5076, %v5076
    %v5079 = vsel %vm519, %v5077, 0
    %5081 = vmatprep.subr.bf16.mxu0 0
    %5082 = vmatpush1.bf16.msra.mxu0 0
    %5083 = vmatprep.subr.bf16.mxu0 0
    %5084 = vmatpush1.bf16.msra.mxu0 0
    %5085 = vmatprep.subr.bf16.mxu0 0
    %5086 = vmatpush1.bf16.msra.mxu0 0
    %5087 = vmatprep.subr.bf16.mxu0 0
    %5088 = vmatpush1.bf16.msra.mxu0 0
    %5089 = vmatprep.subr.bf16.mxu0 0
    %5090 = vmatpush1.bf16.msra.mxu0 0
    %5091 = vmatprep.subr.bf16.mxu0 0
    %5092 = vmatpush1.bf16.msra.mxu0 0
    %5093 = vmatprep.subr.bf16.mxu0 0
    %5094 = vmatpush1.bf16.msra.mxu0 %v866
    %5095 = vmatprep.subr.bf16.mxu0 0
    %5096 = vmatpush1.bf16.msra.mxu0 %v865
    %5097 = vmatprep.subr.bf16.mxu0 0
    %5098 = vmatpush2.bf16.msra.mxu0 0
    %5099 = vmatprep.subr.bf16.mxu0 0
    %5100 = vmatpush2.bf16.msra.mxu0 0
    %5101 = vmatprep.subr.bf16.mxu0 0
    %5102 = vmatpush2.bf16.msra.mxu0 0
    %5103 = vmatprep.subr.bf16.mxu0 0
    %5104 = vmatpush2.bf16.msra.mxu0 0
    %5105 = vmatprep.subr.bf16.mxu0 0
    %5106 = vmatpush2.bf16.msra.mxu0 0
    %5107 = vmatprep.subr.bf16.mxu0 0
    %5108 = vmatpush2.bf16.msra.mxu0 0
    %5109 = vmatprep.subr.bf16.mxu0 0
    %5110 = vmatpush2.bf16.msra.mxu0 0
    %5111 = vmatprep.subr.bf16.mxu0 0
    %5112 = vmatpush2.bf16.msra.mxu0 0
    %5113 = vmatprep.mubr.bf16.mxu0 0
    %5114 = vmatmul.mubr.bf16.gmra.mxu0 %v5079
    %v5115 = vpop.f32.mrf.mxu0
    %v5116 = vadd.f32 0.0, %v5115
    %v5117 = vpop.f32.mrf.mxu0
    %v5118 = vpop.f32.mrf.mxu0
    %v5119 = vpop.f32.mrf.mxu0
    %5120 = vdwg.mxu0
    %v5121 = vadd.f32 %v5058, %v5116
    %5122 = vmatprep.subr.bf16.mxu0 0
    %5123 = vmatpush1.bf16.msra.mxu0 0
    %5124 = vmatprep.subr.bf16.mxu0 0
    %5125 = vmatpush1.bf16.msra.mxu0 0
    %5126 = vmatprep.subr.bf16.mxu0 0
    %5127 = vmatpush1.bf16.msra.mxu0 0
    %5128 = vmatprep.subr.bf16.mxu0 0
    %5129 = vmatpush1.bf16.msra.mxu0 0
    %5130 = vmatprep.subr.bf16.mxu0 0
    %5131 = vmatpush1.bf16.msra.mxu0 0
    %5132 = vmatprep.subr.bf16.mxu0 0
    %5133 = vmatpush1.bf16.msra.mxu0 0
    %5134 = vmatprep.subr.bf16.mxu0 0
    %5135 = vmatpush1.bf16.msra.mxu0 %v922
    %5136 = vmatprep.subr.bf16.mxu0 0
    %5137 = vmatpush1.bf16.msra.mxu0 %v921
    %5138 = vmatprep.subr.bf16.mxu0 0
    %5139 = vmatpush2.bf16.msra.mxu0 0
    %5140 = vmatprep.subr.bf16.mxu0 0
    %5141 = vmatpush2.bf16.msra.mxu0 0
    %5142 = vmatprep.subr.bf16.mxu0 0
    %5143 = vmatpush2.bf16.msra.mxu0 0
    %5144 = vmatprep.subr.bf16.mxu0 0
    %5145 = vmatpush2.bf16.msra.mxu0 0
    %5146 = vmatprep.subr.bf16.mxu0 0
    %5147 = vmatpush2.bf16.msra.mxu0 0
    %5148 = vmatprep.subr.bf16.mxu0 0
    %5149 = vmatpush2.bf16.msra.mxu0 0
    %5150 = vmatprep.subr.bf16.mxu0 0
    %5151 = vmatpush2.bf16.msra.mxu0 0
    %5152 = vmatprep.subr.bf16.mxu0 0
    %5153 = vmatpush2.bf16.msra.mxu0 0
    %5154 = vmatprep.mubr.bf16.mxu0 0
    %5155 = vmatmul.mubr.bf16.gmra.mxu0 %v4834
    %v5156 = vpop.f32.mrf.mxu0
    %v5157 = vadd.f32 0.0, %v5156
    %v5158 = vpop.f32.mrf.mxu0
    %v5159 = vpop.f32.mrf.mxu0
    %v5160 = vpop.f32.mrf.mxu0
    %5161 = vdwg.mxu0
    %v5162 = vadd.f32 %v5121, %v5157
    %v5163 = vadd.f32 %v5162, %v973
    %v5164 = vxor.u32 %v5163, 2147483648
    %v5165 = vmul.f32 %v5164, 1.442695
    %v5166 = vpow.pop %v5165
    %v5167 = vadd.f32 %v5166, 1.0
    %v5168 = vrcp.pop %v5167
    %v5169 = vmul.f32 1.0, %v5168
    %v5170 = vtanh.pop %v5163
    %v5171 = vmul.f32 %v5169, %v4236
    %5173 = vrot.lane.b32.xlu0 %v5170, 64
    %v5174 = vpop.permute.xlu0 %5173
    %v5176 = vmul.f32 %v5169, %v5174
    %5178 = vrot.lane.b32.xlu0 %v5176, 32
    %v5179 = vpop.permute.xlu0 %5178
    %v5181 = vadd.f32 %v5171, %v5179
    %v5182 = vtanh.pop %v5181
    %5184 = vrot.lane.b32.xlu0 %v5182, 64
    %v5185 = vpop.permute.xlu0 %5184
    %v5187 = vmul.f32 %v5169, %v5185
    %v5188 = vpack.c.bf16 %v5187, %v5187
    %v5190 = vcombine.high %v5187, %v5187
    %v5192 = vunpack.c.l.s4 1966171168
    %v5193 = vunpack.c.0.s8 %v5192
    %v5194 = vlaneseq
    %v5195 = vshrl.u32 %v5194, 7
    %v5196 = vsub.s32 %v5193, %v5195
    %v5197 = vrot.slane %v5187, %v5196
    %v5199 = vunpack.c.l.s4 1966171168
    %v5200 = vunpack.c.0.s8 %v5199
    %v5201 = vlaneseq
    %v5202 = vshrl.u32 %v5201, 7
    %v5203 = vsub.s32 %v5200, %v5202
    %v5204 = vrot.slane %v5190, %v5203
    %v5205 = vcombine.high %v5197, %v5197
    %v5206 = vcombine.high %v5204, %v5204
    %v5208 = vunpack.c.l.s4 1966171168
    %v5209 = vunpack.c.0.s8 %v5208
    %v5210 = vlaneseq
    %v5211 = vshrl.u32 %v5210, 7
    %v5212 = vsub.s32 %v5209, %v5211
    %v5213 = vrot.slane %v5197, %v5212
    %v5215 = vunpack.c.l.s4 1966171168
    %v5216 = vunpack.c.0.s8 %v5215
    %v5217 = vlaneseq
    %v5218 = vshrl.u32 %v5217, 7
    %v5219 = vsub.s32 %v5216, %v5218
    %v5220 = vrot.slane %v5204, %v5219
    %v5222 = vunpack.c.l.s4 1966171168
    %v5223 = vunpack.c.0.s8 %v5222
    %v5224 = vlaneseq
    %v5225 = vshrl.u32 %v5224, 7
    %v5226 = vsub.s32 %v5223, %v5225
    %v5227 = vrot.slane %v5205, %v5226
    %v5229 = vunpack.c.l.s4 1966171168
    %v5230 = vunpack.c.0.s8 %v5229
    %v5231 = vlaneseq
    %v5232 = vshrl.u32 %v5231, 7
    %v5233 = vsub.s32 %v5230, %v5232
    %v5234 = vrot.slane %v5206, %v5233
    %v5235 = vcombine.high %v5213, %v5213
    %v5236 = vcombine.high %v5220, %v5220
    %v5237 = vcombine.high %v5227, %v5227
    %v5238 = vcombine.high %v5234, %v5234
    %v5239 = vlaneseq
    %v5240 = vshrl.u32 %v5239, 7
    %v5241 = vsub.s32 0, %v5240
    %v5242 = vrot.slane %v5213, %v5241
    %v5243 = vlaneseq
    %v5244 = vshrl.u32 %v5243, 7
    %v5245 = vsub.s32 0, %v5244
    %v5246 = vrot.slane %v5227, %v5245
    %v5247 = vlaneseq
    %v5248 = vshrl.u32 %v5247, 7
    %v5249 = vsub.s32 0, %v5248
    %v5250 = vrot.slane %v5235, %v5249
    %v5251 = vlaneseq
    %v5252 = vshrl.u32 %v5251, 7
    %v5253 = vsub.s32 0, %v5252
    %v5254 = vrot.slane %v5237, %v5253
    %v5255 = vlaneseq
    %v5256 = vshrl.u32 %v5255, 7
    %v5257 = vsub.s32 0, %v5256
    %v5258 = vrot.slane %v5220, %v5257
    %v5259 = vlaneseq
    %v5260 = vshrl.u32 %v5259, 7
    %v5261 = vsub.s32 0, %v5260
    %v5262 = vrot.slane %v5234, %v5261
    %v5263 = vlaneseq
    %v5264 = vshrl.u32 %v5263, 7
    %v5265 = vsub.s32 0, %v5264
    %v5266 = vrot.slane %v5236, %v5265
    %v5267 = vlaneseq
    %v5268 = vshrl.u32 %v5267, 7
    %v5269 = vsub.s32 0, %v5268
    %v5270 = vrot.slane %v5238, %v5269
    %v5279 = vmul.f32 %v5242, %v1220
    %v5280 = vmul.f32 %v5246, %v1222
    %v5281 = vmul.f32 %v5250, %v1224
    %v5282 = vmul.f32 %v5254, %v1226
    %v5283 = vmul.f32 %v5258, %v1228
    %v5284 = vmul.f32 %v5262, %v1230
    %v5285 = vmul.f32 %v5266, %v1232
    %v5286 = vmul.f32 %v5270, %v1234
    %5295 = vrot.lane.b32.xlu0 %v5279, 32
    %v5296 = vpop.permute.xlu0 %5295
    %5297 = vrot.lane.b32.xlu0 %v5280, 32
    %v5298 = vpop.permute.xlu0 %5297
    %5299 = vrot.lane.b32.xlu0 %v5281, 32
    %v5300 = vpop.permute.xlu0 %5299
    %5301 = vrot.lane.b32.xlu0 %v5282, 32
    %v5302 = vpop.permute.xlu0 %5301
    %5303 = vrot.lane.b32.xlu0 %v5283, 32
    %v5304 = vpop.permute.xlu0 %5303
    %5305 = vrot.lane.b32.xlu0 %v5284, 32
    %v5306 = vpop.permute.xlu0 %5305
    %5307 = vrot.lane.b32.xlu0 %v5285, 32
    %v5308 = vpop.permute.xlu0 %5307
    %5309 = vrot.lane.b32.xlu0 %v5286, 32
    %v5310 = vpop.permute.xlu0 %5309
    %v5319 = vsel %vm1283, %v5296, 0.0
    %5320 = vadd.xlane.f32.xlu0 %v5319
    %v5321 = vpop.xlane.xlu0 %5320
    %v5322 = vsel %vm1283, %v5298, 0.0
    %5323 = vadd.xlane.f32.xlu0 %v5322
    %v5324 = vpop.xlane.xlu0 %5323
    %v5325 = vsel %vm1283, %v5300, 0.0
    %5326 = vadd.xlane.f32.xlu0 %v5325
    %v5327 = vpop.xlane.xlu0 %5326
    %v5328 = vsel %vm1283, %v5302, 0.0
    %5329 = vadd.xlane.f32.xlu0 %v5328
    %v5330 = vpop.xlane.xlu0 %5329
    %v5331 = vsel %vm1283, %v5304, 0.0
    %5332 = vadd.xlane.f32.xlu0 %v5331
    %v5333 = vpop.xlane.xlu0 %5332
    %v5334 = vsel %vm1283, %v5306, 0.0
    %5335 = vadd.xlane.f32.xlu0 %v5334
    %v5336 = vpop.xlane.xlu0 %5335
    %v5337 = vsel %vm1283, %v5308, 0.0
    %5338 = vadd.xlane.f32.xlu0 %v5337
    %v5339 = vpop.xlane.xlu0 %5338
    %v5340 = vsel %vm1283, %v5310, 0.0
    %5341 = vadd.xlane.f32.xlu0 %v5340
    %v5342 = vpop.xlane.xlu0 %5341
    %v5343 = vadd.f32 %v5321, %v1315
    %v5344 = vadd.f32 %v5324, %v1322
    %v5345 = vadd.f32 %v5327, %v1329
    %v5346 = vadd.f32 %v5330, %v1336
    %v5347 = vadd.f32 %v5333, %v1343
    %v5348 = vadd.f32 %v5336, %v1350
    %v5349 = vadd.f32 %v5339, %v1357
    %v5350 = vadd.f32 %v5342, %v1364
    %5359 = vset.pattern.permute.xlu0 0
    %5360 = vperm.xlu0 %5359, %v5343
    %v5361 = vpop.permute.xlu0 %5360
    %5362 = vset.pattern.permute.xlu0 0
    %5363 = vperm.xlu0 %5362, %v5344
    %v5364 = vpop.permute.xlu0 %5363
    %5365 = vset.pattern.permute.xlu0 0
    %5366 = vperm.xlu0 %5365, %v5345
    %v5367 = vpop.permute.xlu0 %5366
    %5368 = vset.pattern.permute.xlu0 0
    %5369 = vperm.xlu0 %5368, %v5346
    %v5370 = vpop.permute.xlu0 %5369
    %5371 = vset.pattern.permute.xlu0 0
    %5372 = vperm.xlu0 %5371, %v5347
    %v5373 = vpop.permute.xlu0 %5372
    %5374 = vset.pattern.permute.xlu0 0
    %5375 = vperm.xlu0 %5374, %v5348
    %v5376 = vpop.permute.xlu0 %5375
    %5377 = vset.pattern.permute.xlu0 0
    %5378 = vperm.xlu0 %5377, %v5349
    %v5379 = vpop.permute.xlu0 %5378
    %5380 = vset.pattern.permute.xlu0 0
    %5381 = vperm.xlu0 %5380, %v5350
    %v5382 = vpop.permute.xlu0 %5381
    %v5383 = vlaneseq
    %v5384 = vshrl.u32 %v5383, 7
    %v5385 = vsub.s32 %v705, %v5384
    %v5386 = vrot.slane %v5361, %v5385
    %v5387 = vlaneseq
    %v5388 = vshrl.u32 %v5387, 7
    %v5389 = vsub.s32 %v705, %v5388
    %v5390 = vrot.slane %v5364, %v5389
    %v5391 = vlaneseq
    %v5392 = vshrl.u32 %v5391, 7
    %v5393 = vsub.s32 %v705, %v5392
    %v5394 = vrot.slane %v5367, %v5393
    %v5395 = vlaneseq
    %v5396 = vshrl.u32 %v5395, 7
    %v5397 = vsub.s32 %v705, %v5396
    %v5398 = vrot.slane %v5370, %v5397
    %v5399 = vlaneseq
    %v5400 = vshrl.u32 %v5399, 7
    %v5401 = vsub.s32 %v705, %v5400
    %v5402 = vrot.slane %v5373, %v5401
    %v5403 = vlaneseq
    %v5404 = vshrl.u32 %v5403, 7
    %v5405 = vsub.s32 %v705, %v5404
    %v5406 = vrot.slane %v5376, %v5405
    %v5407 = vlaneseq
    %v5408 = vshrl.u32 %v5407, 7
    %v5409 = vsub.s32 %v705, %v5408
    %v5410 = vrot.slane %v5379, %v5409
    %v5411 = vlaneseq
    %v5412 = vshrl.u32 %v5411, 7
    %v5413 = vsub.s32 %v705, %v5412
    %v5414 = vrot.slane %v5382, %v5413
    %v5415 = vsel %vm836, %v5390, %v5386
    %v5416 = vsel %vm839, %v5394, %v5415
    %v5417 = vsel %vm842, %v5398, %v5416
    %v5418 = vsel %vm845, %v5402, %v5417
    %v5419 = vsel %vm848, %v5406, %v5418
    %v5420 = vsel %vm851, %v5410, %v5419
    %v5421 = vsel %vm854, %v5414, %v5420
    %v5423 = vsel %vm1453, %v5421, -inf
    %5424 = vmax.xlane.f32.xlu0 %v5423
    %v5425 = vpop.xlane.xlu0 %5424
    %v5427 = vlaneseq
    %v5428 = vshrl.u32 %v5427, 7
    %v5429 = vsub.s32 0, %v5428
    %v5430 = vrot.slane %v5425, %v5429
    %v5431 = vlaneseq
    %v5432 = vshrl.u32 %v5431, 7
    %v5433 = vsub.s32 1, %v5432
    %v5434 = vrot.slane %v5425, %v5433
    %v5435 = vlaneseq
    %v5436 = vshrl.u32 %v5435, 7
    %v5437 = vsub.s32 2, %v5436
    %v5438 = vrot.slane %v5425, %v5437
    %v5439 = vlaneseq
    %v5440 = vshrl.u32 %v5439, 7
    %v5441 = vsub.s32 3, %v5440
    %v5442 = vrot.slane %v5425, %v5441
    %v5443 = vlaneseq
    %v5444 = vshrl.u32 %v5443, 7
    %v5445 = vsub.s32 4, %v5444
    %v5446 = vrot.slane %v5425, %v5445
    %v5447 = vlaneseq
    %v5448 = vshrl.u32 %v5447, 7
    %v5449 = vsub.s32 5, %v5448
    %v5450 = vrot.slane %v5425, %v5449
    %v5451 = vlaneseq
    %v5452 = vshrl.u32 %v5451, 7
    %v5453 = vsub.s32 6, %v5452
    %v5454 = vrot.slane %v5425, %v5453
    %v5455 = vlaneseq
    %v5456 = vshrl.u32 %v5455, 7
    %v5457 = vsub.s32 7, %v5456
    %v5458 = vrot.slane %v5425, %v5457
    %v5467 = vsub.f32 %v5343, %v5430
    %v5468 = vsub.f32 %v5344, %v5434
    %v5469 = vsub.f32 %v5345, %v5438
    %v5470 = vsub.f32 %v5346, %v5442
    %v5471 = vsub.f32 %v5347, %v5446
    %v5472 = vsub.f32 %v5348, %v5450
    %v5473 = vsub.f32 %v5349, %v5454
    %v5474 = vsub.f32 %v5350, %v5458
    %v5475 = vmul.f32 %v5467, 1.442695
    %v5476 = vpow.pop %v5475
    %v5477 = vmul.f32 %v5468, 1.442695
    %v5478 = vpow.pop %v5477
    %v5479 = vmul.f32 %v5469, 1.442695
    %v5480 = vpow.pop %v5479
    %v5481 = vmul.f32 %v5470, 1.442695
    %v5482 = vpow.pop %v5481
    %v5483 = vmul.f32 %v5471, 1.442695
    %v5484 = vpow.pop %v5483
    %v5485 = vmul.f32 %v5472, 1.442695
    %v5486 = vpow.pop %v5485
    %v5487 = vmul.f32 %v5473, 1.442695
    %v5488 = vpow.pop %v5487
    %v5489 = vmul.f32 %v5474, 1.442695
    %v5490 = vpow.pop %v5489
    %5499 = vset.pattern.permute.xlu0 0
    %5500 = vperm.xlu0 %5499, %v5476
    %v5501 = vpop.permute.xlu0 %5500
    %5502 = vset.pattern.permute.xlu0 0
    %5503 = vperm.xlu0 %5502, %v5478
    %v5504 = vpop.permute.xlu0 %5503
    %5505 = vset.pattern.permute.xlu0 0
    %5506 = vperm.xlu0 %5505, %v5480
    %v5507 = vpop.permute.xlu0 %5506
    %5508 = vset.pattern.permute.xlu0 0
    %5509 = vperm.xlu0 %5508, %v5482
    %v5510 = vpop.permute.xlu0 %5509
    %5511 = vset.pattern.permute.xlu0 0
    %5512 = vperm.xlu0 %5511, %v5484
    %v5513 = vpop.permute.xlu0 %5512
    %5514 = vset.pattern.permute.xlu0 0
    %5515 = vperm.xlu0 %5514, %v5486
    %v5516 = vpop.permute.xlu0 %5515
    %5517 = vset.pattern.permute.xlu0 0
    %5518 = vperm.xlu0 %5517, %v5488
    %v5519 = vpop.permute.xlu0 %5518
    %5520 = vset.pattern.permute.xlu0 0
    %5521 = vperm.xlu0 %5520, %v5490
    %v5522 = vpop.permute.xlu0 %5521
    %v5523 = vlaneseq
    %v5524 = vshrl.u32 %v5523, 7
    %v5525 = vsub.s32 %v705, %v5524
    %v5526 = vrot.slane %v5501, %v5525
    %v5527 = vlaneseq
    %v5528 = vshrl.u32 %v5527, 7
    %v5529 = vsub.s32 %v705, %v5528
    %v5530 = vrot.slane %v5504, %v5529
    %v5531 = vlaneseq
    %v5532 = vshrl.u32 %v5531, 7
    %v5533 = vsub.s32 %v705, %v5532
    %v5534 = vrot.slane %v5507, %v5533
    %v5535 = vlaneseq
    %v5536 = vshrl.u32 %v5535, 7
    %v5537 = vsub.s32 %v705, %v5536
    %v5538 = vrot.slane %v5510, %v5537
    %v5539 = vlaneseq
    %v5540 = vshrl.u32 %v5539, 7
    %v5541 = vsub.s32 %v705, %v5540
    %v5542 = vrot.slane %v5513, %v5541
    %v5543 = vlaneseq
    %v5544 = vshrl.u32 %v5543, 7
    %v5545 = vsub.s32 %v705, %v5544
    %v5546 = vrot.slane %v5516, %v5545
    %v5547 = vlaneseq
    %v5548 = vshrl.u32 %v5547, 7
    %v5549 = vsub.s32 %v705, %v5548
    %v5550 = vrot.slane %v5519, %v5549
    %v5551 = vlaneseq
    %v5552 = vshrl.u32 %v5551, 7
    %v5553 = vsub.s32 %v705, %v5552
    %v5554 = vrot.slane %v5522, %v5553
    %v5555 = vsel %vm836, %v5530, %v5526
    %v5556 = vsel %vm839, %v5534, %v5555
    %v5557 = vsel %vm842, %v5538, %v5556
    %v5558 = vsel %vm845, %v5542, %v5557
    %v5559 = vsel %vm848, %v5546, %v5558
    %v5560 = vsel %vm851, %v5550, %v5559
    %v5561 = vsel %vm854, %v5554, %v5560
    %v5563 = vsel %vm1453, %v5561, 0.0
    %5564 = vadd.xlane.f32.xlu0 %v5563
    %v5565 = vpop.xlane.xlu0 %5564
    %v5567 = vlaneseq
    %v5568 = vshrl.u32 %v5567, 7
    %v5569 = vsub.s32 0, %v5568
    %v5570 = vrot.slane %v5565, %v5569
    %v5571 = vlaneseq
    %v5572 = vshrl.u32 %v5571, 7
    %v5573 = vsub.s32 1, %v5572
    %v5574 = vrot.slane %v5565, %v5573
    %v5575 = vlaneseq
    %v5576 = vshrl.u32 %v5575, 7
    %v5577 = vsub.s32 2, %v5576
    %v5578 = vrot.slane %v5565, %v5577
    %v5579 = vlaneseq
    %v5580 = vshrl.u32 %v5579, 7
    %v5581 = vsub.s32 3, %v5580
    %v5582 = vrot.slane %v5565, %v5581
    %v5583 = vlaneseq
    %v5584 = vshrl.u32 %v5583, 7
    %v5585 = vsub.s32 4, %v5584
    %v5586 = vrot.slane %v5565, %v5585
    %v5587 = vlaneseq
    %v5588 = vshrl.u32 %v5587, 7
    %v5589 = vsub.s32 5, %v5588
    %v5590 = vrot.slane %v5565, %v5589
    %v5591 = vlaneseq
    %v5592 = vshrl.u32 %v5591, 7
    %v5593 = vsub.s32 6, %v5592
    %v5594 = vrot.slane %v5565, %v5593
    %v5595 = vlaneseq
    %v5596 = vshrl.u32 %v5595, 7
    %v5597 = vsub.s32 7, %v5596
    %v5598 = vrot.slane %v5565, %v5597
    %v5607 = vrcp.pop %v5570
    %v5608 = vmul.f32 %v5476, %v5607
    %v5609 = vrcp.pop %v5574
    %v5610 = vmul.f32 %v5478, %v5609
    %v5611 = vrcp.pop %v5578
    %v5612 = vmul.f32 %v5480, %v5611
    %v5613 = vrcp.pop %v5582
    %v5614 = vmul.f32 %v5482, %v5613
    %v5615 = vrcp.pop %v5586
    %v5616 = vmul.f32 %v5484, %v5615
    %v5617 = vrcp.pop %v5590
    %v5618 = vmul.f32 %v5486, %v5617
    %v5619 = vrcp.pop %v5594
    %v5620 = vmul.f32 %v5488, %v5619
    %v5621 = vrcp.pop %v5598
    %v5622 = vmul.f32 %v5490, %v5621
    %5624 = vset.pattern.permute.xlu0 0
    %5625 = vperm.xlu0 %5624, %v5608
    %v5626 = vpop.permute.xlu0 %5625
    %5629 = vset.pattern.permute.xlu0 0
    %5630 = vperm.xlu0 %5629, %v5610
    %v5631 = vpop.permute.xlu0 %5630
    %5634 = vset.pattern.permute.xlu0 0
    %5635 = vperm.xlu0 %5634, %v5612
    %v5636 = vpop.permute.xlu0 %5635
    %5639 = vset.pattern.permute.xlu0 0
    %5640 = vperm.xlu0 %5639, %v5614
    %v5641 = vpop.permute.xlu0 %5640
    %5644 = vset.pattern.permute.xlu0 0
    %5645 = vperm.xlu0 %5644, %v5616
    %v5646 = vpop.permute.xlu0 %5645
    %5649 = vset.pattern.permute.xlu0 0
    %5650 = vperm.xlu0 %5649, %v5618
    %v5651 = vpop.permute.xlu0 %5650
    %5654 = vset.pattern.permute.xlu0 0
    %5655 = vperm.xlu0 %5654, %v5620
    %v5656 = vpop.permute.xlu0 %5655
    %5659 = vset.pattern.permute.xlu0 0
    %5660 = vperm.xlu0 %5659, %v5622
    %v5661 = vpop.permute.xlu0 %5660
    %v5663 = vmul.f32 %v5626, %v694
    %v5664 = vmul.f32 %v5631, %v695
    %v5665 = vmul.f32 %v5636, %v696
    %v5666 = vmul.f32 %v5641, %v697
    %v5667 = vmul.f32 %v5646, %v698
    %v5668 = vmul.f32 %v5651, %v699
    %v5669 = vmul.f32 %v5656, %v700
    %v5670 = vmul.f32 %v5661, %v701
    %v5671 = vsel %vm1283, %v5663, 0.0
    %v5672 = vrot.slane %v5671, 4
    %v5673 = vadd.f32 %v5671, %v5672
    %v5674 = vrot.slane %v5673, 2
    %v5675 = vadd.f32 %v5673, %v5674
    %v5676 = vrot.slane %v5675, 1
    %v5677 = vadd.f32 %v5675, %v5676
    %v5678 = vsel %vm1283, %v5664, 0.0
    %v5679 = vrot.slane %v5678, 4
    %v5680 = vadd.f32 %v5678, %v5679
    %v5681 = vrot.slane %v5680, 2
    %v5682 = vadd.f32 %v5680, %v5681
    %v5683 = vrot.slane %v5682, 1
    %v5684 = vadd.f32 %v5682, %v5683
    %v5685 = vsel %vm1283, %v5665, 0.0
    %v5686 = vrot.slane %v5685, 4
    %v5687 = vadd.f32 %v5685, %v5686
    %v5688 = vrot.slane %v5687, 2
    %v5689 = vadd.f32 %v5687, %v5688
    %v5690 = vrot.slane %v5689, 1
    %v5691 = vadd.f32 %v5689, %v5690
    %v5692 = vsel %vm1283, %v5666, 0.0
    %v5693 = vrot.slane %v5692, 4
    %v5694 = vadd.f32 %v5692, %v5693
    %v5695 = vrot.slane %v5694, 2
    %v5696 = vadd.f32 %v5694, %v5695
    %v5697 = vrot.slane %v5696, 1
    %v5698 = vadd.f32 %v5696, %v5697
    %v5699 = vsel %vm1283, %v5667, 0.0
    %v5700 = vrot.slane %v5699, 4
    %v5701 = vadd.f32 %v5699, %v5700
    %v5702 = vrot.slane %v5701, 2
    %v5703 = vadd.f32 %v5701, %v5702
    %v5704 = vrot.slane %v5703, 1
    %v5705 = vadd.f32 %v5703, %v5704
    %v5706 = vsel %vm1283, %v5668, 0.0
    %v5707 = vrot.slane %v5706, 4
    %v5708 = vadd.f32 %v5706, %v5707
    %v5709 = vrot.slane %v5708, 2
    %v5710 = vadd.f32 %v5708, %v5709
    %v5711 = vrot.slane %v5710, 1
    %v5712 = vadd.f32 %v5710, %v5711
    %v5713 = vsel %vm1283, %v5669, 0.0
    %v5714 = vrot.slane %v5713, 4
    %v5715 = vadd.f32 %v5713, %v5714
    %v5716 = vrot.slane %v5715, 2
    %v5717 = vadd.f32 %v5715, %v5716
    %v5718 = vrot.slane %v5717, 1
    %v5719 = vadd.f32 %v5717, %v5718
    %v5720 = vsel %vm1283, %v5670, 0.0
    %v5721 = vrot.slane %v5720, 4
    %v5722 = vadd.f32 %v5720, %v5721
    %v5723 = vrot.slane %v5722, 2
    %v5724 = vadd.f32 %v5722, %v5723
    %v5725 = vrot.slane %v5724, 1
    %v5726 = vadd.f32 %v5724, %v5725
    %v5727 = vpack.c.bf16 %v5677, %v5677
    %v5728 = vpack.c.bf16 %v5684, %v5684
    %v5729 = vpack.c.bf16 %v5691, %v5691
    %v5730 = vpack.c.bf16 %v5698, %v5698
    %v5731 = vpack.c.bf16 %v5705, %v5705
    %v5732 = vpack.c.bf16 %v5712, %v5712
    %v5733 = vpack.c.bf16 %v5719, %v5719
    %v5734 = vpack.c.bf16 %v5726, %v5726
    %5735 = vmatprep.subr.bf16.mxu0 0
    %5736 = vmatpush1.bf16.msra.mxu0 0
    %5737 = vmatprep.subr.bf16.mxu0 0
    %5738 = vmatpush1.bf16.msra.mxu0 0
    %5739 = vmatprep.subr.bf16.mxu0 0
    %5740 = vmatpush1.bf16.msra.mxu0 0
    %5741 = vmatprep.subr.bf16.mxu0 0
    %5742 = vmatpush1.bf16.msra.mxu0 0
    %5743 = vmatprep.subr.bf16.mxu0 0
    %5744 = vmatpush1.bf16.msra.mxu0 0
    %5745 = vmatprep.subr.bf16.mxu0 0
    %5746 = vmatpush1.bf16.msra.mxu0 0
    %5747 = vmatprep.subr.bf16.mxu0 0
    %5748 = vmatpush1.bf16.msra.mxu0 %v1920
    %5749 = vmatprep.subr.bf16.mxu0 0
    %5750 = vmatpush1.bf16.msra.mxu0 %v1919
    %5751 = vmatprep.subr.bf16.mxu0 0
    %5752 = vmatpush2.bf16.msra.mxu0 0
    %5753 = vmatprep.subr.bf16.mxu0 0
    %5754 = vmatpush2.bf16.msra.mxu0 0
    %5755 = vmatprep.subr.bf16.mxu0 0
    %5756 = vmatpush2.bf16.msra.mxu0 0
    %5757 = vmatprep.subr.bf16.mxu0 0
    %5758 = vmatpush2.bf16.msra.mxu0 0
    %5759 = vmatprep.subr.bf16.mxu0 0
    %5760 = vmatpush2.bf16.msra.mxu0 0
    %5761 = vmatprep.subr.bf16.mxu0 0
    %5762 = vmatpush2.bf16.msra.mxu0 0
    %5763 = vmatprep.subr.bf16.mxu0 0
    %5764 = vmatpush2.bf16.msra.mxu0 0
    %5765 = vmatprep.subr.bf16.mxu0 0
    %5766 = vmatpush2.bf16.msra.mxu0 0
    %5767 = vmatprep.mubr.bf16.mxu0 0
    %5768 = vmatmul.mubr.bf16.gmra.mxu0 %v4978
    %v5769 = vpop.f32.mrf.mxu0
    %v5770 = vadd.f32 0.0, %v5769
    %v5771 = vpop.f32.mrf.mxu0
    %v5772 = vpop.f32.mrf.mxu0
    %v5773 = vpop.f32.mrf.mxu0
    %5774 = vdwg.mxu0
    %5776 = vrot.lane.b32.xlu0 %v5188, 32
    %v5777 = vpop.permute.xlu0 %5776
    %v5779 = vsel %vm519, %v5777, 0
    %5781 = vmatprep.subr.bf16.mxu0 0
    %5782 = vmatpush1.bf16.msra.mxu0 0
    %5783 = vmatprep.subr.bf16.mxu0 0
    %5784 = vmatpush1.bf16.msra.mxu0 0
    %5785 = vmatprep.subr.bf16.mxu0 0
    %5786 = vmatpush1.bf16.msra.mxu0 0
    %5787 = vmatprep.subr.bf16.mxu0 0
    %5788 = vmatpush1.bf16.msra.mxu0 0
    %5789 = vmatprep.subr.bf16.mxu0 0
    %5790 = vmatpush1.bf16.msra.mxu0 0
    %5791 = vmatprep.subr.bf16.mxu0 0
    %5792 = vmatpush1.bf16.msra.mxu0 0
    %5793 = vmatprep.subr.bf16.mxu0 0
    %5794 = vmatpush1.bf16.msra.mxu0 %v1972
    %5795 = vmatprep.subr.bf16.mxu0 0
    %5796 = vmatpush1.bf16.msra.mxu0 %v1971
    %5797 = vmatprep.subr.bf16.mxu0 0
    %5798 = vmatpush2.bf16.msra.mxu0 0
    %5799 = vmatprep.subr.bf16.mxu0 0
    %5800 = vmatpush2.bf16.msra.mxu0 0
    %5801 = vmatprep.subr.bf16.mxu0 0
    %5802 = vmatpush2.bf16.msra.mxu0 0
    %5803 = vmatprep.subr.bf16.mxu0 0
    %5804 = vmatpush2.bf16.msra.mxu0 0
    %5805 = vmatprep.subr.bf16.mxu0 0
    %5806 = vmatpush2.bf16.msra.mxu0 0
    %5807 = vmatprep.subr.bf16.mxu0 0
    %5808 = vmatpush2.bf16.msra.mxu0 0
    %5809 = vmatprep.subr.bf16.mxu0 0
    %5810 = vmatpush2.bf16.msra.mxu0 0
    %5811 = vmatprep.subr.bf16.mxu0 0
    %5812 = vmatpush2.bf16.msra.mxu0 0
    %5813 = vmatprep.mubr.bf16.mxu0 0
    %5814 = vmatmul.mubr.bf16.gmra.mxu0 %v5779
    %v5815 = vpop.f32.mrf.mxu0
    %v5816 = vadd.f32 %v5770, %v5815
    %v5817 = vpop.f32.mrf.mxu0
    %v5818 = vpop.f32.mrf.mxu0
    %v5819 = vpop.f32.mrf.mxu0
    %5820 = vdwg.mxu0
    %v5821 = vadd.f32 %v5816, %v2019
    %5822 = vmax.xlane.f32.xlu0 %v5821
    %v5823 = vpop.xlane.xlu0 %5822
    %v5824 = vsub.f32 %v5821, %v5823
    %v5825 = vmul.f32 %v5824, 1.442695
    %v5826 = vpow.pop %v5825
    %5827 = vadd.xlane.f32.xlu0 %v5826
    %v5828 = vpop.xlane.xlu0 %5827
    %v5829 = vlog2.pop %v5828
    %v5830 = vmul.f32 %v5829, 0.6931472
    %v5831 = vadd.f32 %v5823, %v5830
    %v5832 = vsub.f32 %v5821, %v5831
    %s5833 = scalar_lea.vmem [#allocation8], 32
    %5834 = vst [vmem:[%s5833] sm:$0xff] %v5832
    %5835 = vmax.xlane.f32.xlu0 %v5832
    %v5836 = vpop.xlane.xlu0 %5835
    %vm5837 = vcmp.ge.f32.partialorder %v5832, %v5836
    %v5838 = vsel %vm5837, %v705, 128
    %v5839 = vand.u32 %v5838, 65535
    %v5840 = vshra.s32 %v5838, 16
    %v5841 = vcvt.s32.f32 %v5839
    %v5842 = vcvt.s32.f32 %v5840
    %5843 = vmin.xlane.f32.xlu0 %v5842
    %v5844 = vpop.xlane.xlu0 %5843
    %vm5845 = vcmp.eq.f32.partialorder %v5842, %v5844
    %v5846 = vsel %vm5845, %v5841, inf
    %5847 = vmin.xlane.f32.xlu0 %v5846
    %v5848 = vpop.xlane.xlu0 %5847
    %v5849 = vcvt.f32.s32 %v5848
    %v5850 = vcvt.f32.s32 %v5844
    %v5851 = vshll.u32 %v5850, 16
    %v5852 = vadd.s32 %v5851, %v5849
    %vm5853 = vcmp.eq.s32.totalorder %v705, %v5852
    %v5854 = vsel %vm5853, 1, 0
    %v5855 = vcvt.s32.f32 %v5854
    %v5856 = vpack.c.bf16 %v5855, %v5855
    %5857 = vmatprep.subr.bf16.mxu0 0
    %5858 = vmatpush1.bf16.msra.mxu0 %v2095
    %5859 = vmatprep.subr.bf16.mxu0 0
    %5860 = vmatpush1.bf16.msra.mxu0 %v2094
    %5861 = vmatprep.subr.bf16.mxu0 0
    %5862 = vmatpush1.bf16.msra.mxu0 %v2093
    %5863 = vmatprep.subr.bf16.mxu0 0
    %5864 = vmatpush1.bf16.msra.mxu0 %v2092
    %5865 = vmatprep.subr.bf16.mxu0 0
    %5866 = vmatpush1.bf16.msra.mxu0 %v2091
    %5867 = vmatprep.subr.bf16.mxu0 0
    %5868 = vmatpush1.bf16.msra.mxu0 %v2090
    %5869 = vmatprep.subr.bf16.mxu0 0
    %5870 = vmatpush1.bf16.msra.mxu0 %v2089
    %5871 = vmatprep.subr.bf16.mxu0 0
    %5872 = vmatpush1.bf16.msra.mxu0 %v2088
    %5873 = vmatprep.subr.bf16.mxu0 0
    %5874 = vmatpush2.bf16.msra.mxu0 0
    %5875 = vmatprep.subr.bf16.mxu0 0
    %5876 = vmatpush2.bf16.msra.mxu0 0
    %5877 = vmatprep.subr.bf16.mxu0 0
    %5878 = vmatpush2.bf16.msra.mxu0 0
    %5879 = vmatprep.subr.bf16.mxu0 0
    %5880 = vmatpush2.bf16.msra.mxu0 0
    %5881 = vmatprep.subr.bf16.mxu0 0
    %5882 = vmatpush2.bf16.msra.mxu0 0
    %5883 = vmatprep.subr.bf16.mxu0 0
    %5884 = vmatpush2.bf16.msra.mxu0 0
    %5885 = vmatprep.subr.bf16.mxu0 0
    %5886 = vmatpush2.bf16.msra.mxu0 0
    %5887 = vmatprep.subr.bf16.mxu0 0
    %5888 = vmatpush2.bf16.msra.mxu0 0
    %5889 = vmatprep.mubr.bf16.mxu0 0
    %5890 = vmatmul.mubr.bf16.gmra.mxu0 %v5856
    %v5891 = vpop.f32.mrf.mxu0
    %v5892 = vadd.f32 0.0, %v5891
    %v5893 = vpop.f32.mrf.mxu0
    %v5894 = vpop.f32.mrf.mxu0
    %v5895 = vpop.f32.mrf.mxu0
    %5896 = vdwg.mxu0
    %v5897 = vpack.c.bf16 %v5892, %v5892
    %v5906 = vunpack.c.l.b16 %v5727
    %v5907 = vunpack.c.l.b16 %v5728
    %v5908 = vunpack.c.l.b16 %v5729
    %v5909 = vunpack.c.l.b16 %v5730
    %v5910 = vunpack.c.l.b16 %v5731
    %v5911 = vunpack.c.l.b16 %v5732
    %v5912 = vunpack.c.l.b16 %v5733
    %v5913 = vunpack.c.l.b16 %v5734
    %v5914 = vsel %vm836, %v5907, %v5906
    %v5915 = vsel %vm839, %v5908, %v5914
    %v5916 = vsel %vm842, %v5909, %v5915
    %v5917 = vsel %vm845, %v5910, %v5916
    %v5918 = vsel %vm848, %v5911, %v5917
    %v5919 = vsel %vm851, %v5912, %v5918
    %v5920 = vsel %vm854, %v5913, %v5919
    %v5921 = vpack.c.b16 %v5920, %v5920
    %v5923 = vsel %vm519, %v5921, 0
    %5925 = vmatprep.subr.bf16.mxu0 0
    %5926 = vmatpush1.bf16.msra.mxu0 0
    %5927 = vmatprep.subr.bf16.mxu0 0
    %5928 = vmatpush1.bf16.msra.mxu0 0
    %5929 = vmatprep.subr.bf16.mxu0 0
    %5930 = vmatpush1.bf16.msra.mxu0 0
    %5931 = vmatprep.subr.bf16.mxu0 0
    %5932 = vmatpush1.bf16.msra.mxu0 0
    %5933 = vmatprep.subr.bf16.mxu0 0
    %5934 = vmatpush1.bf16.msra.mxu0 0
    %5935 = vmatprep.subr.bf16.mxu0 0
    %5936 = vmatpush1.bf16.msra.mxu0 0
    %5937 = vmatprep.subr.bf16.mxu0 0
    %5938 = vmatpush1.bf16.msra.mxu0 %v715
    %5939 = vmatprep.subr.bf16.mxu0 0
    %5940 = vmatpush1.bf16.msra.mxu0 %v714
    %5941 = vmatprep.subr.bf16.mxu0 0
    %5942 = vmatpush2.bf16.msra.mxu0 0
    %5943 = vmatprep.subr.bf16.mxu0 0
    %5944 = vmatpush2.bf16.msra.mxu0 0
    %5945 = vmatprep.subr.bf16.mxu0 0
    %5946 = vmatpush2.bf16.msra.mxu0 0
    %5947 = vmatprep.subr.bf16.mxu0 0
    %5948 = vmatpush2.bf16.msra.mxu0 0
    %5949 = vmatprep.subr.bf16.mxu0 0
    %5950 = vmatpush2.bf16.msra.mxu0 0
    %5951 = vmatprep.subr.bf16.mxu0 0
    %5952 = vmatpush2.bf16.msra.mxu0 0
    %5953 = vmatprep.subr.bf16.mxu0 0
    %5954 = vmatpush2.bf16.msra.mxu0 0
    %5955 = vmatprep.subr.bf16.mxu0 0
    %5956 = vmatpush2.bf16.msra.mxu0 0
    %5957 = vmatprep.mubr.bf16.mxu0 0
    %5958 = vmatmul.mubr.bf16.gmra.mxu0 %v5923
    %v5959 = vpop.f32.mrf.mxu0
    %v5960 = vadd.f32 0.0, %v5959
    %v5961 = vpop.f32.mrf.mxu0
    %v5962 = vpop.f32.mrf.mxu0
    %v5963 = vpop.f32.mrf.mxu0
    %5964 = vdwg.mxu0
    %v5966 = vsel %vm767, %v5897, 0
    %5968 = vmatprep.subr.bf16.mxu0 0
    %5969 = vmatpush1.bf16.msra.mxu0 0
    %5970 = vmatprep.subr.bf16.mxu0 0
    %5971 = vmatpush1.bf16.msra.mxu0 0
    %5972 = vmatprep.subr.bf16.mxu0 0
    %5973 = vmatpush1.bf16.msra.mxu0 0
    %5974 = vmatprep.subr.bf16.mxu0 0
    %5975 = vmatpush1.bf16.msra.mxu0 0
    %5976 = vmatprep.subr.bf16.mxu0 0
    %5977 = vmatpush1.bf16.msra.mxu0 0
    %5978 = vmatprep.subr.bf16.mxu0 0
    %5979 = vmatpush1.bf16.msra.mxu0 0
    %5980 = vmatprep.subr.bf16.mxu0 0
    %5981 = vmatpush1.bf16.msra.mxu0 0
    %5982 = vmatprep.subr.bf16.mxu0 0
    %5983 = vmatpush1.bf16.msra.mxu0 %v765
    %5984 = vmatprep.subr.bf16.mxu0 0
    %5985 = vmatpush2.bf16.msra.mxu0 0
    %5986 = vmatprep.subr.bf16.mxu0 0
    %5987 = vmatpush2.bf16.msra.mxu0 0
    %5988 = vmatprep.subr.bf16.mxu0 0
    %5989 = vmatpush2.bf16.msra.mxu0 0
    %5990 = vmatprep.subr.bf16.mxu0 0
    %5991 = vmatpush2.bf16.msra.mxu0 0
    %5992 = vmatprep.subr.bf16.mxu0 0
    %5993 = vmatpush2.bf16.msra.mxu0 0
    %5994 = vmatprep.subr.bf16.mxu0 0
    %5995 = vmatpush2.bf16.msra.mxu0 0
    %5996 = vmatprep.subr.bf16.mxu0 0
    %5997 = vmatpush2.bf16.msra.mxu0 0
    %5998 = vmatprep.subr.bf16.mxu0 0
    %5999 = vmatpush2.bf16.msra.mxu0 0
    %6000 = vmatprep.mubr.bf16.mxu0 0
    %6001 = vmatmul.mubr.bf16.gmra.mxu0 %v5966
    %v6002 = vpop.f32.mrf.mxu0
    %v6003 = vadd.f32 %v5960, %v6002
    %v6004 = vpop.f32.mrf.mxu0
    %v6005 = vpop.f32.mrf.mxu0
    %v6006 = vpop.f32.mrf.mxu0
    %6007 = vdwg.mxu0
    %v6008 = vrot.slane %v827, 5
    %v6009 = vrot.slane %v828, 4
    %v6010 = vsel %vm836, %v6009, %v6008
    %v6011 = vrot.slane %v829, 3
    %v6012 = vsel %vm839, %v6011, %v6010
    %v6013 = vrot.slane %v830, 2
    %v6014 = vsel %vm842, %v6013, %v6012
    %v6015 = vrot.slane %v831, 1
    %v6016 = vsel %vm845, %v6015, %v6014
    %v6017 = vsel %vm848, %v832, %v6016
    %v6018 = vrot.slane %v833, 7
    %v6019 = vsel %vm851, %v6018, %v6017
    %v6020 = vrot.slane %v834, 6
    %v6021 = vsel %vm854, %v6020, %v6019
    %v6022 = vpack.c.b16 %v6021, %v6021
    %v6024 = vsel %vm519, %v6022, 0
    %6026 = vmatprep.subr.bf16.mxu0 0
    %6027 = vmatpush1.bf16.msra.mxu0 0
    %6028 = vmatprep.subr.bf16.mxu0 0
    %6029 = vmatpush1.bf16.msra.mxu0 0
    %6030 = vmatprep.subr.bf16.mxu0 0
    %6031 = vmatpush1.bf16.msra.mxu0 0
    %6032 = vmatprep.subr.bf16.mxu0 0
    %6033 = vmatpush1.bf16.msra.mxu0 0
    %6034 = vmatprep.subr.bf16.mxu0 0
    %6035 = vmatpush1.bf16.msra.mxu0 0
    %6036 = vmatprep.subr.bf16.mxu0 0
    %6037 = vmatpush1.bf16.msra.mxu0 0
    %6038 = vmatprep.subr.bf16.mxu0 0
    %6039 = vmatpush1.bf16.msra.mxu0 %v866
    %6040 = vmatprep.subr.bf16.mxu0 0
    %6041 = vmatpush1.bf16.msra.mxu0 %v865
    %6042 = vmatprep.subr.bf16.mxu0 0
    %6043 = vmatpush2.bf16.msra.mxu0 0
    %6044 = vmatprep.subr.bf16.mxu0 0
    %6045 = vmatpush2.bf16.msra.mxu0 0
    %6046 = vmatprep.subr.bf16.mxu0 0
    %6047 = vmatpush2.bf16.msra.mxu0 0
    %6048 = vmatprep.subr.bf16.mxu0 0
    %6049 = vmatpush2.bf16.msra.mxu0 0
    %6050 = vmatprep.subr.bf16.mxu0 0
    %6051 = vmatpush2.bf16.msra.mxu0 0
    %6052 = vmatprep.subr.bf16.mxu0 0
    %6053 = vmatpush2.bf16.msra.mxu0 0
    %6054 = vmatprep.subr.bf16.mxu0 0
    %6055 = vmatpush2.bf16.msra.mxu0 0
    %6056 = vmatprep.subr.bf16.mxu0 0
    %6057 = vmatpush2.bf16.msra.mxu0 0
    %6058 = vmatprep.mubr.bf16.mxu0 0
    %6059 = vmatmul.mubr.bf16.gmra.mxu0 %v6024
    %v6060 = vpop.f32.mrf.mxu0
    %v6061 = vadd.f32 0.0, %v6060
    %v6062 = vpop.f32.mrf.mxu0
    %v6063 = vpop.f32.mrf.mxu0
    %v6064 = vpop.f32.mrf.mxu0
    %6065 = vdwg.mxu0
    %v6066 = vadd.f32 %v6003, %v6061
    %6067 = vmatprep.subr.bf16.mxu0 0
    %6068 = vmatpush1.bf16.msra.mxu0 0
    %6069 = vmatprep.subr.bf16.mxu0 0
    %6070 = vmatpush1.bf16.msra.mxu0 0
    %6071 = vmatprep.subr.bf16.mxu0 0
    %6072 = vmatpush1.bf16.msra.mxu0 0
    %6073 = vmatprep.subr.bf16.mxu0 0
    %6074 = vmatpush1.bf16.msra.mxu0 0
    %6075 = vmatprep.subr.bf16.mxu0 0
    %6076 = vmatpush1.bf16.msra.mxu0 0
    %6077 = vmatprep.subr.bf16.mxu0 0
    %6078 = vmatpush1.bf16.msra.mxu0 0
    %6079 = vmatprep.subr.bf16.mxu0 0
    %6080 = vmatpush1.bf16.msra.mxu0 %v922
    %6081 = vmatprep.subr.bf16.mxu0 0
    %6082 = vmatpush1.bf16.msra.mxu0 %v921
    %6083 = vmatprep.subr.bf16.mxu0 0
    %6084 = vmatpush2.bf16.msra.mxu0 0
    %6085 = vmatprep.subr.bf16.mxu0 0
    %6086 = vmatpush2.bf16.msra.mxu0 0
    %6087 = vmatprep.subr.bf16.mxu0 0
    %6088 = vmatpush2.bf16.msra.mxu0 0
    %6089 = vmatprep.subr.bf16.mxu0 0
    %6090 = vmatpush2.bf16.msra.mxu0 0
    %6091 = vmatprep.subr.bf16.mxu0 0
    %6092 = vmatpush2.bf16.msra.mxu0 0
    %6093 = vmatprep.subr.bf16.mxu0 0
    %6094 = vmatpush2.bf16.msra.mxu0 0
    %6095 = vmatprep.subr.bf16.mxu0 0
    %6096 = vmatpush2.bf16.msra.mxu0 0
    %6097 = vmatprep.subr.bf16.mxu0 0
    %6098 = vmatpush2.bf16.msra.mxu0 0
    %6099 = vmatprep.mubr.bf16.mxu0 0
    %6100 = vmatmul.mubr.bf16.gmra.mxu0 %v5779
    %v6101 = vpop.f32.mrf.mxu0
    %v6102 = vadd.f32 0.0, %v6101
    %v6103 = vpop.f32.mrf.mxu0
    %v6104 = vpop.f32.mrf.mxu0
    %v6105 = vpop.f32.mrf.mxu0
    %6106 = vdwg.mxu0
    %v6107 = vadd.f32 %v6066, %v6102
    %v6108 = vadd.f32 %v6107, %v973
    %v6109 = vxor.u32 %v6108, 2147483648
    %v6110 = vmul.f32 %v6109, 1.442695
    %v6111 = vpow.pop %v6110
    %v6112 = vadd.f32 %v6111, 1.0
    %v6113 = vrcp.pop %v6112
    %v6114 = vmul.f32 1.0, %v6113
    %v6115 = vtanh.pop %v6108
    %v6116 = vmul.f32 %v6114, %v5181
    %6118 = vrot.lane.b32.xlu0 %v6115, 64
    %v6119 = vpop.permute.xlu0 %6118
    %v6121 = vmul.f32 %v6114, %v6119
    %6123 = vrot.lane.b32.xlu0 %v6121, 32
    %v6124 = vpop.permute.xlu0 %6123
    %v6126 = vadd.f32 %v6116, %v6124
    %v6127 = vtanh.pop %v6126
    %6129 = vrot.lane.b32.xlu0 %v6127, 64
    %v6130 = vpop.permute.xlu0 %6129
    %v6132 = vmul.f32 %v6114, %v6130
    %v6133 = vpack.c.bf16 %v6132, %v6132
    %6134 = vmatprep.subr.bf16.mxu0 0
    %6135 = vmatpush1.bf16.msra.mxu0 0
    %6136 = vmatprep.subr.bf16.mxu0 0
    %6137 = vmatpush1.bf16.msra.mxu0 0
    %6138 = vmatprep.subr.bf16.mxu0 0
    %6139 = vmatpush1.bf16.msra.mxu0 0
    %6140 = vmatprep.subr.bf16.mxu0 0
    %6141 = vmatpush1.bf16.msra.mxu0 0
    %6142 = vmatprep.subr.bf16.mxu0 0
    %6143 = vmatpush1.bf16.msra.mxu0 0
    %6144 = vmatprep.subr.bf16.mxu0 0
    %6145 = vmatpush1.bf16.msra.mxu0 0
    %6146 = vmatprep.subr.bf16.mxu0 0
    %6147 = vmatpush1.bf16.msra.mxu0 %v1920
    %6148 = vmatprep.subr.bf16.mxu0 0
    %6149 = vmatpush1.bf16.msra.mxu0 %v1919
    %6150 = vmatprep.subr.bf16.mxu0 0
    %6151 = vmatpush2.bf16.msra.mxu0 0
    %6152 = vmatprep.subr.bf16.mxu0 0
    %6153 = vmatpush2.bf16.msra.mxu0 0
    %6154 = vmatprep.subr.bf16.mxu0 0
    %6155 = vmatpush2.bf16.msra.mxu0 0
    %6156 = vmatprep.subr.bf16.mxu0 0
    %6157 = vmatpush2.bf16.msra.mxu0 0
    %6158 = vmatprep.subr.bf16.mxu0 0
    %6159 = vmatpush2.bf16.msra.mxu0 0
    %6160 = vmatprep.subr.bf16.mxu0 0
    %6161 = vmatpush2.bf16.msra.mxu0 0
    %6162 = vmatprep.subr.bf16.mxu0 0
    %6163 = vmatpush2.bf16.msra.mxu0 0
    %6164 = vmatprep.subr.bf16.mxu0 0
    %6165 = vmatpush2.bf16.msra.mxu0 0
    %6166 = vmatprep.mubr.bf16.mxu0 0
    %6167 = vmatmul.mubr.bf16.gmra.mxu0 %v5923
    %v6168 = vpop.f32.mrf.mxu0
    %v6169 = vadd.f32 0.0, %v6168
    %v6170 = vpop.f32.mrf.mxu0
    %v6171 = vpop.f32.mrf.mxu0
    %v6172 = vpop.f32.mrf.mxu0
    %6173 = vdwg.mxu0
    %6175 = vrot.lane.b32.xlu0 %v6133, 32
    %v6176 = vpop.permute.xlu0 %6175
    %v6178 = vsel %vm519, %v6176, 0
    %6180 = vmatprep.subr.bf16.mxu0 0
    %6181 = vmatpush1.bf16.msra.mxu0 0
    %6182 = vmatprep.subr.bf16.mxu0 0
    %6183 = vmatpush1.bf16.msra.mxu0 0
    %6184 = vmatprep.subr.bf16.mxu0 0
    %6185 = vmatpush1.bf16.msra.mxu0 0
    %6186 = vmatprep.subr.bf16.mxu0 0
    %6187 = vmatpush1.bf16.msra.mxu0 0
    %6188 = vmatprep.subr.bf16.mxu0 0
    %6189 = vmatpush1.bf16.msra.mxu0 0
    %6190 = vmatprep.subr.bf16.mxu0 0
    %6191 = vmatpush1.bf16.msra.mxu0 0
    %6192 = vmatprep.subr.bf16.mxu0 0
    %6193 = vmatpush1.bf16.msra.mxu0 %v1972
    %6194 = vmatprep.subr.bf16.mxu0 0
    %6195 = vmatpush1.bf16.msra.mxu0 %v1971
    %6196 = vmatprep.subr.bf16.mxu0 0
    %6197 = vmatpush2.bf16.msra.mxu0 0
    %6198 = vmatprep.subr.bf16.mxu0 0
    %6199 = vmatpush2.bf16.msra.mxu0 0
    %6200 = vmatprep.subr.bf16.mxu0 0
    %6201 = vmatpush2.bf16.msra.mxu0 0
    %6202 = vmatprep.subr.bf16.mxu0 0
    %6203 = vmatpush2.bf16.msra.mxu0 0
    %6204 = vmatprep.subr.bf16.mxu0 0
    %6205 = vmatpush2.bf16.msra.mxu0 0
    %6206 = vmatprep.subr.bf16.mxu0 0
    %6207 = vmatpush2.bf16.msra.mxu0 0
    %6208 = vmatprep.subr.bf16.mxu0 0
    %6209 = vmatpush2.bf16.msra.mxu0 0
    %6210 = vmatprep.subr.bf16.mxu0 0
    %6211 = vmatpush2.bf16.msra.mxu0 0
    %6212 = vmatprep.mubr.bf16.mxu0 0
    %6213 = vmatmul.mubr.bf16.gmra.mxu0 %v6178
    %v6214 = vpop.f32.mrf.mxu0
    %v6215 = vadd.f32 %v6169, %v6214
    %v6216 = vpop.f32.mrf.mxu0
    %v6217 = vpop.f32.mrf.mxu0
    %v6218 = vpop.f32.mrf.mxu0
    %6219 = vdwg.mxu0
    %v6220 = vadd.f32 %v6215, %v2019
    %6221 = vmax.xlane.f32.xlu0 %v6220
    %v6222 = vpop.xlane.xlu0 %6221
    %v6223 = vsub.f32 %v6220, %v6222
    %v6224 = vmul.f32 %v6223, 1.442695
    %v6225 = vpow.pop %v6224
    %6226 = vadd.xlane.f32.xlu0 %v6225
    %v6227 = vpop.xlane.xlu0 %6226
    %v6228 = vlog2.pop %v6227
    %v6229 = vmul.f32 %v6228, 0.6931472
    %v6230 = vadd.f32 %v6222, %v6229
    %v6231 = vsub.f32 %v6220, %v6230
    %s6232 = scalar_lea.vmem [#allocation8], 40
    %6233 = vst [vmem:[%s6232] sm:$0xff] %v6231
    // Predicated region
    $region86: #{tpu_custom_call.1} parent=1 // pred_check
      _
    $region87: #{tpu_custom_call.1} parent=1 // pred_check_branch
      %6235 = sbr.rel (0) target = $region89
    $region88: #{tpu_custom_call.1} parent=1 // pred_region
      %s6237 = ssub.s32 768, 768
      %6238 = vsyncadd [#allocation4], %s6237
      %s6239 = sshll.u32 [#allocation8], 4
      %s6240 = int_to_ptr.vmem [resolvable:$true] %s6239
      %6245 = dma.vmem_to_hbm [thread:$0]  %s6240, 768, %s18, [#allocation4], 128, 128, 8
    $region89: #{tpu_custom_call.1} parent=1 // pred_fallthru
      _
    // Predicated region
    $region90: #{tpu_custom_call.1} parent=1 // pred_check
      _
    $region91: #{tpu_custom_call.1} parent=1 // pred_check_branch
      %6247 = sbr.rel (0) target = $region93
    $region92: #{tpu_custom_call.1} parent=1 // pred_region
      %s6249 = ssub.s32 128, 128
      %6250 = vsyncadd [#allocation10], %s6249
      %s6252 = sshll.u32 [#allocation9], 4
      %s6253 = int_to_ptr.vmem [resolvable:$true] %s6252
      %6255 = dma.vmem_to_hbm [thread:$0]  %s6253, 128, %s19, [#allocation10]
    $region93: #{tpu_custom_call.1} parent=1 // pred_fallthru
      _
    // Predicated region
    $region94: #{tpu_custom_call.1} parent=1 // pred_check
      _
    $region95: #{tpu_custom_call.1} parent=1 // pred_check_branch
      %6257 = sbr.rel (0) target = $region97
    $region96: #{tpu_custom_call.1} parent=1 // pred_region
      %6258 = dma.done [#allocation4], 768
    $region97: #{tpu_custom_call.1} parent=1 // pred_fallthru
      _
    // Predicated region
    $region98: #{tpu_custom_call.1} parent=1 // pred_check
      _
    $region99: #{tpu_custom_call.1} parent=1 // pred_check_branch
      %6260 = sbr.rel (0) target = $region101
    $region100: #{tpu_custom_call.1} parent=1 // pred_region
      %6261 = dma.done [#allocation10], 128
    $region101: #{tpu_custom_call.1} parent=1 // pred_fallthru
      _
    %6262 = vsyncpa [#allocation3], 1
    %6263 = vsyncpa [#allocation6], 1
    %6264 = vsyncpa [#allocation4], 1
    %6265 = vsyncpa [#allocation10], 1

</llo_original>
